<compile_context>
chip_gen: v7x
topology: tpu7x:2x2x1
jax: 0.10.0
libtpu: 0.0.40
codegen_flags: <defaults>
</compile_context>

<pallas_src>
import math
from functools import partial

import jax
import jax.numpy as jnp
import numpy as np
from jax.experimental import pallas as pl
from jax.experimental.pallas import tpu as pltpu

DIM = 64
assert (DIM - 4) % 6 == 0
L = (DIM - 4) // 6                                       # 10 frequency bands
FREQ_BANDS = tuple(float(2.0 ** i) for i in range(L))    # exact powers of two (no learned params)

_MAX_TILE_N = 16 * 1024   # per-grid-step lane width (4 MiB f32 output block)
_MAX_CHUNK = 2048         # in-kernel lane chunk: bounds each (64, chunk) f32 temp to 512 KiB

# ---------------------------------------------------------------------------
# Per-output-row constants, packed as a tiny (DIM, 3) table: [freq, phase, channel].
#   row 0..2   : coords_norm passthrough (overwritten after the sin-slab store)
#   row 3+6i+k : band i, channel k%3, sin for k<3 / cos (phase pi/2) for k>=3
#   row 63     : scaled L2 norm (overwritten after the sin-slab store)
# ---------------------------------------------------------------------------
_ROW_PARAMS = np.zeros((DIM, 3), np.float32)
_ROW_PARAMS[:, 0] = 1.0                                   # dummy freq for rows 0..2 and 63
_ROW_PARAMS[0, 2], _ROW_PARAMS[1, 2], _ROW_PARAMS[2, 2] = 0.0, 1.0, 2.0
for _i in range(L):
    for _k in range(6):
        _r = 3 + 6 * _i + _k
        _ROW_PARAMS[_r, 0] = FREQ_BANDS[_i]               # frequency (exact power of two)
        _ROW_PARAMS[_r, 1] = 0.0 if _k < 3 else math.pi / 2.0   # phase: sin -> 0, cos -> pi/2
        _ROW_PARAMS[_r, 2] = float(_k % 3)                # source channel


def _freq_encoding_kernel(stats_ref, params_ref, coords_ref, out_ref, *, chunk: int):
    """One (batch, N-tile) grid step.

    stats_ref : (B, 8) f32, SMEM   [cmin_xyz, inv_range_xyz, l2_min, inv_l2_range]
    params_ref: (DIM, 3) f32, VMEM [freq, phase, channel] per output row
    coords_ref: (1, 3, TILE_N)     raw coordinates (input dtype)
    out_ref   : (1, DIM, TILE_N)
    """
    b = pl.program_id(0)
    cmin0, cmin1, cmin2 = stats_ref[b, 0], stats_ref[b, 1], stats_ref[b, 2]
    inv0, inv1, inv2 = stats_ref[b, 3], stats_ref[b, 4], stats_ref[b, 5]
    l2_min, inv_l2 = stats_ref[b, 6], stats_ref[b, 7]

    freq_col = params_ref[:, 0:1]                 # (DIM, 1) exact powers of two
    phase_col = params_ref[:, 1:2]                # (DIM, 1) 0 (sin rows) or pi/2 (cos rows)
    chan_col = params_ref[:, 2:3]                 # (DIM, 1) source channel as 0.0 / 1.0 / 2.0
    is_ch0 = chan_col == 0.0
    is_ch1 = chan_col == 1.0

    def do_chunk(c0):
        # Normalized coords for this lane chunk (reciprocals hoisted -> multiply-only hot path).
        x0 = coords_ref[0, 0:1, pl.ds(c0, chunk)].astype(jnp.float32)   # (1, chunk)
        x1 = coords_ref[0, 1:2, pl.ds(c0, chunk)].astype(jnp.float32)
        x2 = coords_ref[0, 2:3, pl.ds(c0, chunk)].astype(jnp.float32)
        xn0 = (x0 - cmin0) * inv0
        xn1 = (x1 - cmin1) * inv1
        xn2 = (x2 - cmin2) * inv2

        # Channel-replicated base slab: base[r, :] = coords_norm[channel(r), :].
        # Two vselects against per-row masks replace the old 10-piece concatenate
        # (no sublane relayout, no materialized parts list, stays in the elementwise chain).
        base = jnp.where(is_ch0, xn0, jnp.where(is_ch1, xn1, xn2))      # (DIM, chunk)

        # t = f * coords_norm is exact (f is a power of two, coords_norm in [0,1));
        # t - 2*floor(t/2) is an exact mod-2 reduction, so sin arguments stay in [0, 2.5*pi].
        # cos rows reuse the same sin via the per-row +pi/2 phase column (x pi applied once).
        t = base * freq_col
        fu = jnp.floor(t * 0.5)
        red = (t - fu) - fu                                             # exact, in [0, 2)
        ang = red * np.float32(math.pi) + phase_col
        # One sublane-aligned 64-row store (rows 0..2 / 63 hold harmless dummy sins for now).
        out_ref[0, :, pl.ds(c0, chunk)] = jnp.sin(ang).astype(out_ref.dtype)

        # Overwrite the 4 non-sinusoid rows: tiny masked row stores, far cheaper than the old
        # sublane-misaligned 30-row stores at offsets 3 and 33.
        out_ref[0, 0:1, pl.ds(c0, chunk)] = xn0.astype(out_ref.dtype)
        out_ref[0, 1:2, pl.ds(c0, chunk)] = xn1.astype(out_ref.dtype)
        out_ref[0, 2:3, pl.ds(c0, chunk)] = xn2.astype(out_ref.dtype)
        # Elementwise L2 (no cross-sublane reduce); accumulation order matches the XLA pre-pass
        # so l2_min / inv_l2_range are bitwise-consistent with the values reduced here.
        l2 = jnp.sqrt(xn0 * xn0 + xn1 * xn1 + xn2 * xn2)
        out_ref[0, DIM - 1:DIM, pl.ds(c0, chunk)] = ((l2 - l2_min) * inv_l2).astype(out_ref.dtype)

    n_chunks = coords_ref.shape[2] // chunk
    if n_chunks == 1:
        do_chunk(0)
    else:
        # fori_loop (not an unrolled Python loop) bounds the live range of the per-chunk
        # (64, chunk) temporaries, keeping VMEM pressure flat regardless of tile_n.
        def body(j, carry):
            do_chunk(pl.multiple_of(j * chunk, 128))
            return carry

        jax.lax.fori_loop(0, n_chunks, body, 0)


def _choose_tile_n(B: int, N: int, max_tile: int = _MAX_TILE_N) -> int:
    """Largest lane-aligned divisor of N, but with enough grid steps to feed both v7x cores."""
    aligned = [d for d in range(128, min(N, max_tile) + 1, 128) if N % d == 0]
    if not aligned:
        # No multiple-of-128 divisor: fall back to a full (or largest-divisor) block.
        # Correct, but lane-masked partial stores -> slower; prefer N % 128 == 0 inputs.
        if N <= max_tile:
            return N
        return max(d for d in range(1, max_tile + 1) if N % d == 0)
    # Prefer >=8 total grid steps while keeping tiles >=4096 lanes (per-step overhead ~0.35us
    # stays small on v5e/v6e); otherwise settle for >=2 steps; otherwise the largest tile.
    for steps, floor in ((8, 4096), (2, 128), (1, 128)):
        ok = [d for d in aligned if B * (N // d) >= steps and d >= floor]
        if ok:
            return max(ok)
    return max(aligned)


def _choose_chunk(tile_n: int, max_chunk: int = _MAX_CHUNK) -> int:
    if tile_n <= max_chunk:
        return tile_n
    for c in range(max_chunk, 0, -128):
        if tile_n % c == 0:
            return c
    return tile_n


def frequency_encoding(coords: jax.Array, *, tile_n: int | None = None,
                       out_dtype=None) -> jax.Array:
    """coords: [B, 3, N] -> embeddings [B, DIM, N] (same semantics as the PyTorch module)."""
    B, C, N = coords.shape
    assert C == 3, "Input coordinates should have 3 channels (x, y, z)"
    out_dtype = coords.dtype if out_dtype is None else out_dtype

    if tile_n is None:
        tile_n = _choose_tile_n(B, N)
    assert N % tile_n == 0, "N must be divisible by tile_n"
    n_tiles = N // tile_n
    chunk = _choose_chunk(tile_n)

    # Per-batch normalization stats over the FULL point axis (tiny XLA pre-pass, ~5% of the
    # kernel's HBM traffic).  Reads `coords` directly (no materialized f32 copy of the input)
    # and hoists the divides so the kernel's hot path is multiply-only.  The L2 accumulation
    # order mirrors the kernel exactly so l2_min / inv_l2_range are consistent.
    cf = coords.astype(jnp.float32)
    cmin = jnp.min(cf, axis=2, keepdims=True)                       # (B, 3, 1)
    cmax = jnp.max(cf, axis=2, keepdims=True)
    inv_range = 1.0 / (cmax - cmin + 1e-6)
    xn = (cf - cmin) * inv_range
    l2 = jnp.sqrt(xn[:, 0:1] * xn[:, 0:1] + xn[:, 1:2] * xn[:, 1:2] + xn[:, 2:3] * xn[:, 2:3])
    l2_min = jnp.min(l2, axis=2, keepdims=True)
    l2_max = jnp.max(l2, axis=2, keepdims=True)
    inv_l2_range = 1.0 / (l2_max - l2_min + 1e-6)
    stats = jnp.concatenate(
        [cmin[:, :, 0], inv_range[:, :, 0], l2_min[:, :, 0], inv_l2_range[:, :, 0]],
        axis=1).astype(jnp.float32)                                  # (B, 8)

    params = jnp.asarray(_ROW_PARAMS)                                # (DIM, 3) row table

    kernel = partial(_freq_encoding_kernel, chunk=chunk)
    return pl.pallas_call(
        kernel,
        out_shape=jax.ShapeDtypeStruct((B, DIM, N), out_dtype),
        grid=(B, n_tiles),
        in_specs=[
            pl.BlockSpec(memory_space=pltpu.MemorySpace.SMEM),          # (B, 8) stats, whole array
            pl.BlockSpec((DIM, 3), lambda b, n: (0, 0)),                # (64, 3) row table
            pl.BlockSpec((1, 3, tile_n), lambda b, n: (b, 0, n)),       # coords tile
        ],
        out_specs=pl.BlockSpec((1, DIM, tile_n), lambda b, n: (b, 0, n)),
        compiler_params=pltpu.CompilerParams(
            dimension_semantics=("parallel", "parallel"),
            vmem_limit_bytes=32 * 1024 * 1024,                          # safe on v5e/v6e/v7x
        ),
    )(stats, params, coords)


def _reference_f64(coords: np.ndarray) -> np.ndarray:
    """float64 numpy oracle mirroring the PyTorch forward."""
    c = coords.astype(np.float64)
    cmin = c.min(axis=2, keepdims=True)
    cmax = c.max(axis=2, keepdims=True)
    xn = (c - cmin) / (cmax - cmin + 1e-6)
    l2 = np.linalg.norm(xn, axis=1, keepdims=True)
    lmin = l2.min(axis=2, keepdims=True)
    lmax = l2.max(axis=2, keepdims=True)
    l2s = (l2 - lmin) / (lmax - lmin + 1e-6)
    parts = [xn]
    for f in FREQ_BANDS:
        parts.append(np.sin(xn * f * np.pi))
        parts.append(np.cos(xn * f * np.pi))
    parts.append(l2s)
    return np.concatenate(parts, axis=1)


if __name__ == "__main__":
    B, C, N = 2, 3, 1024
    key = jax.random.PRNGKey(0)
    coords = jax.random.normal(key, (B, C, N), dtype=jnp.float32) * 5.0

    out = jax.block_until_ready(jax.jit(frequency_encoding)(coords))
    assert out.shape == (B, DIM, N), out.shape

    out_np = np.asarray(out).astype(np.float64)
    ref = _reference_f64(np.asarray(coords))

    # Non-transcendental channels: tight absolute check against the float64 oracle.
    np.testing.assert_allclose(out_np[:, 0:3], ref[:, 0:3], rtol=0.0, atol=2e-5)
    np.testing.assert_allclose(out_np[:, DIM - 1:DIM], ref[:, DIM - 1:DIM], rtol=0.0, atol=2e-5)

    # sin/cos channels: f32 rounding of coords_norm is amplified by f*pi in the angle
    # (up to 512*pi at the top band), so the tolerance scales with the band.
    for i, f in enumerate(FREQ_BANDS):
        lo = 3 + 6 * i
        atol = 3e-5 + f * math.pi * 6e-7
        np.testing.assert_allclose(out_np[:, lo:lo + 6], ref[:, lo:lo + 6], rtol=0.0, atol=atol)

    print("KERNEL_OK")
</pallas_src>

<mosaic_0001>
module attributes {stable_mosaic.version = 11 : i64} {
  func.func @_freq_encoding_kernel(%arg0: i32, %arg1: i32, %arg2: memref<2x8xf32, #tpu.memory_space<smem>>, %arg3: memref<64x3xf32, #tpu.memory_space<vmem>>, %arg4: memref<1x3x1024xf32, #tpu.memory_space<vmem>>, %arg5: memref<1x64x1024xf32, #tpu.memory_space<vmem>>) attributes {dimension_semantics = [#tpu.dimension_semantics<parallel>, #tpu.dimension_semantics<parallel>], iteration_bounds = array<i64: 2, 1>, scalar_prefetch = 0 : i64, scratch_operands = 0 : i64, tpu.core_type = #tpu.core_type<tc>, window_params = [{transform_indices = @transform_0, window_bounds = array<i64: 2, 8>}, {pipeline_mode = #tpu.pipeline_mode<synchronous>, transform_indices = @transform_1, window_bounds = array<i64: 64, 3>}, {transform_indices = @transform_2, window_bounds = array<i64: 1, 3, 1024>}, {transform_indices = @transform_3, window_bounds = array<i64: 1, 64, 1024>}]} {
    %0 = arith.index_cast %arg0 : i32 to index
    %c0 = arith.constant 0 : index
    %1 = memref.load %arg2[%0, %c0] : memref<2x8xf32, #tpu.memory_space<smem>>
    %2 = arith.index_cast %arg0 : i32 to index
    %c1 = arith.constant 1 : index
    %3 = memref.load %arg2[%2, %c1] : memref<2x8xf32, #tpu.memory_space<smem>>
    %4 = arith.index_cast %arg0 : i32 to index
    %c2 = arith.constant 2 : index
    %5 = memref.load %arg2[%4, %c2] : memref<2x8xf32, #tpu.memory_space<smem>>
    %6 = arith.index_cast %arg0 : i32 to index
    %c3 = arith.constant 3 : index
    %7 = memref.load %arg2[%6, %c3] : memref<2x8xf32, #tpu.memory_space<smem>>
    %8 = arith.index_cast %arg0 : i32 to index
    %c4 = arith.constant 4 : index
    %9 = memref.load %arg2[%8, %c4] : memref<2x8xf32, #tpu.memory_space<smem>>
    %10 = arith.index_cast %arg0 : i32 to index
    %c5 = arith.constant 5 : index
    %11 = memref.load %arg2[%10, %c5] : memref<2x8xf32, #tpu.memory_space<smem>>
    %12 = arith.index_cast %arg0 : i32 to index
    %c6 = arith.constant 6 : index
    %13 = memref.load %arg2[%12, %c6] : memref<2x8xf32, #tpu.memory_space<smem>>
    %14 = arith.index_cast %arg0 : i32 to index
    %c7 = arith.constant 7 : index
    %15 = memref.load %arg2[%14, %c7] : memref<2x8xf32, #tpu.memory_space<smem>>
    %c0_0 = arith.constant 0 : index
    %c0_1 = arith.constant 0 : index
    %16 = vector.load %arg3[%c0_0, %c0_1] : memref<64x3xf32, #tpu.memory_space<vmem>>, vector<64x1xf32>
    %c0_2 = arith.constant 0 : index
    %c1_3 = arith.constant 1 : index
    %17 = vector.load %arg3[%c0_2, %c1_3] : memref<64x3xf32, #tpu.memory_space<vmem>>, vector<64x1xf32>
    %c0_4 = arith.constant 0 : index
    %c2_5 = arith.constant 2 : index
    %18 = vector.load %arg3[%c0_4, %c2_5] : memref<64x3xf32, #tpu.memory_space<vmem>>, vector<64x1xf32>
    %cst = arith.constant 0.000000e+00 : f32
    %19 = vector.broadcast %cst : f32 to vector<64x1xf32>
    %20 = arith.cmpf oeq, %18, %19 : vector<64x1xf32>
    %cst_6 = arith.constant 1.000000e+00 : f32
    %21 = vector.broadcast %cst_6 : f32 to vector<64x1xf32>
    %22 = arith.cmpf oeq, %18, %21 : vector<64x1xf32>
    %c0_7 = arith.constant 0 : index
    %c0_8 = arith.constant 0 : index
    %c0_9 = arith.constant 0 : index
    %23 = vector.load %arg4[%c0_7, %c0_8, %c0_9] : memref<1x3x1024xf32, #tpu.memory_space<vmem>>, vector<1x1x1024xf32>
    %24 = vector.shape_cast %23 : vector<1x1x1024xf32> to vector<1x1024xf32>
    %c0_10 = arith.constant 0 : index
    %c1_11 = arith.constant 1 : index
    %c0_12 = arith.constant 0 : index
    %25 = vector.load %arg4[%c0_10, %c1_11, %c0_12] : memref<1x3x1024xf32, #tpu.memory_space<vmem>>, vector<1x1x1024xf32>
    %26 = vector.shape_cast %25 : vector<1x1x1024xf32> to vector<1x1024xf32>
    %c0_13 = arith.constant 0 : index
    %c2_14 = arith.constant 2 : index
    %c0_15 = arith.constant 0 : index
    %27 = vector.load %arg4[%c0_13, %c2_14, %c0_15] : memref<1x3x1024xf32, #tpu.memory_space<vmem>>, vector<1x1x1024xf32>
    %28 = vector.shape_cast %27 : vector<1x1x1024xf32> to vector<1x1024xf32>
    %29 = vector.broadcast %1 : f32 to vector<1x1024xf32>
    %30 = arith.subf %24, %29 : vector<1x1024xf32>
    %31 = vector.broadcast %7 : f32 to vector<1x1024xf32>
    %32 = arith.mulf %30, %31 : vector<1x1024xf32>
    %33 = vector.broadcast %3 : f32 to vector<1x1024xf32>
    %34 = arith.subf %26, %33 : vector<1x1024xf32>
    %35 = vector.broadcast %9 : f32 to vector<1x1024xf32>
    %36 = arith.mulf %34, %35 : vector<1x1024xf32>
    %37 = vector.broadcast %5 : f32 to vector<1x1024xf32>
    %38 = arith.subf %28, %37 : vector<1x1024xf32>
    %39 = vector.broadcast %11 : f32 to vector<1x1024xf32>
    %40 = arith.mulf %38, %39 : vector<1x1024xf32>
    %41 = vector.shape_cast %22 : vector<64x1xi1> to vector<64x1xi1>
    %42 = vector.broadcast %41 : vector<64x1xi1> to vector<64x1024xi1>
    %43 = vector.shape_cast %36 : vector<1x1024xf32> to vector<1x1024xf32>
    %44 = vector.broadcast %43 : vector<1x1024xf32> to vector<64x1024xf32>
    %45 = vector.shape_cast %40 : vector<1x1024xf32> to vector<1x1024xf32>
    %46 = vector.broadcast %45 : vector<1x1024xf32> to vector<64x1024xf32>
    %47 = arith.select %42, %44, %46 : vector<64x1024xi1>, vector<64x1024xf32>
    %48 = vector.shape_cast %20 : vector<64x1xi1> to vector<64x1xi1>
    %49 = vector.broadcast %48 : vector<64x1xi1> to vector<64x1024xi1>
    %50 = vector.shape_cast %32 : vector<1x1024xf32> to vector<1x1024xf32>
    %51 = vector.broadcast %50 : vector<1x1024xf32> to vector<64x1024xf32>
    %52 = arith.select %49, %51, %47 : vector<64x1024xi1>, vector<64x1024xf32>
    %53 = vector.broadcast %16 : vector<64x1xf32> to vector<64x1024xf32>
    %54 = arith.mulf %52, %53 : vector<64x1024xf32>
    %cst_16 = arith.constant 5.000000e-01 : f32
    %55 = vector.broadcast %cst_16 : f32 to vector<64x1024xf32>
    %56 = arith.mulf %54, %55 : vector<64x1024xf32>
    %57 = math.floor %56 : vector<64x1024xf32>
    %58 = arith.subf %54, %57 : vector<64x1024xf32>
    %59 = arith.subf %58, %57 : vector<64x1024xf32>
    %cst_17 = arith.constant 3.14159274 : f32
    %60 = vector.broadcast %cst_17 : f32 to vector<64x1024xf32>
    %61 = arith.mulf %59, %60 : vector<64x1024xf32>
    %62 = vector.broadcast %17 : vector<64x1xf32> to vector<64x1024xf32>
    %63 = arith.addf %61, %62 : vector<64x1024xf32>
    %64 = math.sin %63 : vector<64x1024xf32>
    %c0_18 = arith.constant 0 : index
    %c0_19 = arith.constant 0 : index
    %c0_20 = arith.constant 0 : index
    %65 = vector.load %arg5[%c0_18, %c0_19, %c0_20] : memref<1x64x1024xf32, #tpu.memory_space<vmem>>, vector<1x64x1024xf32>
    %66 = vector.shape_cast %65 : vector<1x64x1024xf32> to vector<64x1024xf32>
    %67 = vector.shape_cast %64 : vector<64x1024xf32> to vector<1x64x1024xf32>
    tpu.vector_store %arg5[%c0_18, %c0_19, %c0_20], %67 {strides = array<i32>} : memref<1x64x1024xf32, #tpu.memory_space<vmem>>, vector<1x64x1024xf32>,
    %c0_21 = arith.constant 0 : index
    %c0_22 = arith.constant 0 : index
    %c0_23 = arith.constant 0 : index
    %68 = vector.load %arg5[%c0_21, %c0_22, %c0_23] : memref<1x64x1024xf32, #tpu.memory_space<vmem>>, vector<1x1x1024xf32>
    %69 = vector.shape_cast %68 : vector<1x1x1024xf32> to vector<1x1024xf32>
    %70 = vector.shape_cast %32 : vector<1x1024xf32> to vector<1x1x1024xf32>
    tpu.vector_store %arg5[%c0_21, %c0_22, %c0_23], %70 {strides = array<i32>} : memref<1x64x1024xf32, #tpu.memory_space<vmem>>, vector<1x1x1024xf32>,
    %c0_24 = arith.constant 0 : index
    %c1_25 = arith.constant 1 : index
    %c0_26 = arith.constant 0 : index
    %71 = vector.load %arg5[%c0_24, %c1_25, %c0_26] : memref<1x64x1024xf32, #tpu.memory_space<vmem>>, vector<1x1x1024xf32>
    %72 = vector.shape_cast %71 : vector<1x1x1024xf32> to vector<1x1024xf32>
    %73 = vector.shape_cast %36 : vector<1x1024xf32> to vector<1x1x1024xf32>
    tpu.vector_store %arg5[%c0_24, %c1_25, %c0_26], %73 {strides = array<i32>} : memref<1x64x1024xf32, #tpu.memory_space<vmem>>, vector<1x1x1024xf32>,
    %c0_27 = arith.constant 0 : index
    %c2_28 = arith.constant 2 : index
    %c0_29 = arith.constant 0 : index
    %74 = vector.load %arg5[%c0_27, %c2_28, %c0_29] : memref<1x64x1024xf32, #tpu.memory_space<vmem>>, vector<1x1x1024xf32>
    %75 = vector.shape_cast %74 : vector<1x1x1024xf32> to vector<1x1024xf32>
    %76 = vector.shape_cast %40 : vector<1x1024xf32> to vector<1x1x1024xf32>
    tpu.vector_store %arg5[%c0_27, %c2_28, %c0_29], %76 {strides = array<i32>} : memref<1x64x1024xf32, #tpu.memory_space<vmem>>, vector<1x1x1024xf32>,
    %77 = arith.mulf %32, %32 : vector<1x1024xf32>
    %78 = arith.mulf %36, %36 : vector<1x1024xf32>
    %79 = arith.addf %77, %78 : vector<1x1024xf32>
    %80 = arith.mulf %40, %40 : vector<1x1024xf32>
    %81 = arith.addf %79, %80 : vector<1x1024xf32>
    %82 = math.sqrt %81 : vector<1x1024xf32>
    %83 = vector.broadcast %13 : f32 to vector<1x1024xf32>
    %84 = arith.subf %82, %83 : vector<1x1024xf32>
    %85 = vector.broadcast %15 : f32 to vector<1x1024xf32>
    %86 = arith.mulf %84, %85 : vector<1x1024xf32>
    %c0_30 = arith.constant 0 : index
    %c63 = arith.constant 63 : index
    %c0_31 = arith.constant 0 : index
    %87 = vector.load %arg5[%c0_30, %c63, %c0_31] : memref<1x64x1024xf32, #tpu.memory_space<vmem>>, vector<1x1x1024xf32>
    %88 = vector.shape_cast %87 : vector<1x1x1024xf32> to vector<1x1024xf32>
    %89 = vector.shape_cast %86 : vector<1x1024xf32> to vector<1x1x1024xf32>
    tpu.vector_store %arg5[%c0_30, %c63, %c0_31], %89 {strides = array<i32>} : memref<1x64x1024xf32, #tpu.memory_space<vmem>>, vector<1x1x1024xf32>,
    return
  }
  func.func @transform_0(%arg0: i32, %arg1: i32) -> (i32, i32) {
    %c0_i32 = arith.constant 0 : i32
    %c0_i32_0 = arith.constant 0 : i32
    %c0_i32_1 = arith.constant 0 : i32
    return %c0_i32, %c0_i32_0 : i32, i32
  }
  func.func @transform_1(%arg0: i32, %arg1: i32) -> (i32, i32) {
    %c0_i32 = arith.constant 0 : i32
    %c0_i32_0 = arith.constant 0 : i32
    %c0_i32_1 = arith.constant 0 : i32
    return %c0_i32, %c0_i32_0 : i32, i32
  }
  func.func @transform_2(%arg0: i32, %arg1: i32) -> (i32, i32, i32) {
    %c0_i32 = arith.constant 0 : i32
    %c0_i32_0 = arith.constant 0 : i32
    return %arg0, %c0_i32, %arg1 : i32, i32, i32
  }
  func.func @transform_3(%arg0: i32, %arg1: i32) -> (i32, i32, i32) {
    %c0_i32 = arith.constant 0 : i32
    %c0_i32_0 = arith.constant 0 : i32
    return %arg0, %c0_i32, %arg1 : i32, i32, i32
  }
}

</mosaic_0001>

<llo_original>
// kernel: frequency_encoding.1
$region0: #{frequency_encoding.1}
  #allocation0 [shape = 'u32[]', space=smem, size = 0x4, offset = 0x4, fixed_abs, tag = 'smem constant byte address 0x4 - core index']
  #allocation1 [shape = 'u32[144,128]{1,0:T(1,128)}', space=vmem, size = 0x12000, scoped, tag = 'internal scratch']
  %s0 = inlined_call_operand.vmem [shape: f32[2,8], index: 0, kind: input, shape index: {}]
  %s1 = inlined_call_operand.vmem [shape: f32[64,3], index: 1, kind: input, shape index: {}]
  %s2 = inlined_call_operand.vmem [shape: f32[2,3,1024], index: 2, kind: input, shape index: {}]
  %s3 = inlined_call_operand.hbm [shape: f32[2,64,1024], index: 3, kind: output, shape index: {}]
  %s4 = sld [smem:[#allocation0]]
  $region49: #{frequency_encoding.1} parent=0
    _
  %s6 = ssub.s32 1, %s4
  %s7 = scalar_select 0, %s6, %s4
  $region1: #{frequency_encoding.1} parent=0
    #allocation2 [shape = 'u8[1024]{0}', space=smem, size = 0x400, scoped, tag = 'input window, operand 0, single buffered']
    #allocation3 [shape = 's32[2]{0}', space=sflag, size = 0x8, scoped, tag = 'scoped memory for frequency_encoding.1']
    #allocation4 [shape = 's32[2]{0}', space=sflag, size = 0x8, scoped, tag = 'scoped memory for frequency_encoding.1']
    #allocation5 [shape = 'u8[524288]{0}', space=vmem, size = 0x80000, scoped, tag = 'output window, operand 0']
    %8 = vsyncpa [#allocation4], 0
    %9 = vsyncpa [#allocation3], 0
    %s10 = scalar_lea.sflag [#allocation3], 1
    %11 = vsyncpa %s10, 0
    loop: start=0, step=1, limit=4
    $region2: #{frequency_encoding.1} parent=1 // loop_pre_header
      _
    $region3: #{frequency_encoding.1} parent=1 // loop_header
      %s13 = sphi 0, %s17
      %p14 = scmp.ge.s32.totalorder %s13, 4
      %s20 = sphi 0, %s32
      %s21 = sphi 0, %s28
      %s22 = sphi 0, %s20
      %s23 = sphi 0, %s21
      %s24 = sphi 0, %s22
      %s25 = sphi 0, %s23
      %s33 = sphi 0, %s33
      %s35 = sphi 0, %s33
      %s36 = sphi 0, %s35
      %s50 = sphi 0, %s36
      %s54 = sphi 0, %s54
      %s56 = sphi 0, %s54
      %s57 = sphi 0, %s56
      %s71 = sphi 0, %s57
      %s79 = sphi 0, %s81
      %s82 = sphi 0, %s79
      %s83 = sphi 0, %s82
      %s99 = sphi 0, %s83
      %s107 = sphi 0, %s109
      %s110 = sphi 0, %s107
      %s111 = sphi 0, %s110
      %s127 = sphi 0, %s111
    $region4: #{frequency_encoding.1} parent=1 // loop_header_branch
      %16 = sbr.rel (%p14) target = $region8
    $region5: #{frequency_encoding.1} parent=1 // loop_body
      %s18 = ssub.s32 %s13, 1
      %s19 = ssub.s32 %s13, 2
      %s26 = sadd.s32 1, %s21
      %p27 = scmp.ge.s32.totalorder %s26, 1
      %s28 = scalar_select %p27, 0, %s26
      %s29 = sadd.s32 1, %s20
      %s30 = scalar_select %p27, %s29, %s20
      %p31 = scmp.ge.s32.totalorder %s30, 2
      %s32 = scalar_select %p31, 0, %s30
      %s34 = sadd.s32 %s33, 1
      %p37 = scmp.eq.s32.totalorder %s13, 1
      %p38 = scmp.ne.s32.totalorder %s33, %s35
      %p39 = scmp.eq.s32.totalorder %s13, 0
      %p40 = por %p38, %p39
      %p41 = scmp.ne.s32.totalorder %s33, %s35
      %p42 = scmp.eq.s32.totalorder %s18, 1
      %p43 = por %p41, %p42
      %p44 = scmp.ne.s32.totalorder %s35, %s36
      %p45 = scmp.eq.s32.totalorder %s18, 0
      %p46 = por %p44, %p45
      %p47 = scmp.ne.s32.totalorder %s35, %s36
      %p48 = scmp.eq.s32.totalorder %s19, 1
      %p49 = por %p47, %p48
      %p51 = scmp.ne.s32.totalorder %s36, %s50
      %p52 = scmp.eq.s32.totalorder %s19, 0
      %p53 = por %p51, %p52
      %s55 = sadd.s32 %s54, 1
      %p58 = scmp.eq.s32.totalorder %s13, 1
      %p59 = scmp.ne.s32.totalorder %s54, %s56
      %p60 = scmp.eq.s32.totalorder %s13, 0
      %p61 = por %p59, %p60
      %p62 = scmp.ne.s32.totalorder %s54, %s56
      %p63 = scmp.eq.s32.totalorder %s18, 1
      %p64 = por %p62, %p63
      %p65 = scmp.ne.s32.totalorder %s56, %s57
      %p66 = scmp.eq.s32.totalorder %s18, 0
      %p67 = por %p65, %p66
      %p68 = scmp.ne.s32.totalorder %s56, %s57
      %p69 = scmp.eq.s32.totalorder %s19, 1
      %p70 = por %p68, %p69
      %p72 = scmp.ne.s32.totalorder %s57, %s71
      %p73 = scmp.eq.s32.totalorder %s19, 0
      %p74 = por %p72, %p73
      %s75 = ssub.s32 %s20, %s32
      %s76 = ssub.s32 %s21, %s28
      %s77 = sor.u32 %s75, %s76
      %p78 = scmp.eq.s32.totalorder %s77, 0
      %s80 = sadd.s32 %s79, 1
      %s81 = scalar_select %p78, %s79, %s80
      %p84 = pneg %p78
      %p85 = scmp.eq.s32.totalorder %s13, 1
      %p86 = por %p84, %p85
      %p87 = scmp.ne.s32.totalorder %s79, %s82
      %p88 = scmp.eq.s32.totalorder %s13, 0
      %p89 = por %p87, %p88
      %p90 = scmp.ne.s32.totalorder %s79, %s82
      %p91 = scmp.eq.s32.totalorder %s18, 1
      %p92 = por %p90, %p91
      %p93 = scmp.ne.s32.totalorder %s82, %s83
      %p94 = scmp.eq.s32.totalorder %s18, 0
      %p95 = por %p93, %p94
      %p96 = scmp.ne.s32.totalorder %s82, %s83
      %p97 = scmp.eq.s32.totalorder %s19, 1
      %p98 = por %p96, %p97
      %p100 = scmp.ne.s32.totalorder %s83, %s99
      %p101 = scmp.eq.s32.totalorder %s19, 0
      %p102 = por %p100, %p101
      %s103 = ssub.s32 %s20, %s32
      %s104 = ssub.s32 %s21, %s28
      %s105 = sor.u32 %s103, %s104
      %p106 = scmp.eq.s32.totalorder %s105, 0
      %s108 = sadd.s32 %s107, 1
      %s109 = scalar_select %p106, %s107, %s108
      %p112 = pneg %p106
      %p113 = scmp.eq.s32.totalorder %s13, 1
      %p114 = por %p112, %p113
      %p115 = scmp.ne.s32.totalorder %s107, %s110
      %p116 = scmp.eq.s32.totalorder %s13, 0
      %p117 = por %p115, %p116
      %p118 = scmp.ne.s32.totalorder %s107, %s110
      %p119 = scmp.eq.s32.totalorder %s18, 1
      %p120 = por %p118, %p119
      %p121 = scmp.ne.s32.totalorder %s110, %s111
      %p122 = scmp.eq.s32.totalorder %s18, 0
      %p123 = por %p121, %p122
      %p124 = scmp.ne.s32.totalorder %s110, %s111
      %p125 = scmp.eq.s32.totalorder %s19, 1
      %p126 = por %p124, %p125
      %p128 = scmp.ne.s32.totalorder %s111, %s127
      %p129 = scmp.eq.s32.totalorder %s19, 0
      %p130 = por %p128, %p129
      %p131 = scmp.le.s32.totalorder 1, %s13
      %p132 = scmp.lt.s32.totalorder %s13, 3
      %p133 = pnand %p131, %p132
      %p134 = pneg %p133
      // Predicated region
      $region9: #{frequency_encoding.1} parent=5 // pred_check
        _
      $region10: #{frequency_encoding.1} parent=5 // pred_check_branch
        %136 = sbr.rel (%p133) target = $region12
      $region11: #{frequency_encoding.1} parent=5 // pred_region
        %s137 = ssub.s32 %s13, 1
        // Predicated region
        $region13: #{frequency_encoding.1} parent=11 // pred_check
          %p138 = pneg %p46
        $region14: #{frequency_encoding.1} parent=11 // pred_check_branch
          %140 = sbr.rel (%p138) target = $region16
        $region15: #{frequency_encoding.1} parent=11 // pred_region
          %s142 = ssub.s32 32, 32
          %143 = vsyncadd [#allocation4], %s142
          %s145 = sshll.u32 %s0, 4
          %s146 = int_to_ptr.vmem [resolvable:$true] %s145
          %148 = dma.vmem_to_smem %s146, 32, [#allocation2], [#allocation4]
        $region16: #{frequency_encoding.1} parent=11 // pred_fallthru
          _
        // Predicated region
        $region17: #{frequency_encoding.1} parent=11 // pred_check
          %p149 = pneg %p67
        $region18: #{frequency_encoding.1} parent=11 // pred_check_branch
          %151 = sbr.rel (%p149) target = $region20
        $region19: #{frequency_encoding.1} parent=11 // pred_region
          _
        $region20: #{frequency_encoding.1} parent=11 // pred_fallthru
          _
      $region12: #{frequency_encoding.1} parent=5 // pred_fallthru
        _
      %p152 = scmp.lt.s32.totalorder %s13, 2
      // Predicated region
      $region21: #{frequency_encoding.1} parent=5 // pred_check
        %p153 = pneg %p152
      $region22: #{frequency_encoding.1} parent=5 // pred_check_branch
        %155 = sbr.rel (%p153) target = $region24
      $region23: #{frequency_encoding.1} parent=5 // pred_region
        // Predicated region
        $region25: #{frequency_encoding.1} parent=23 // pred_check
          %p156 = pneg %p89
        $region26: #{frequency_encoding.1} parent=23 // pred_check_branch
          %158 = sbr.rel (%p156) target = $region28
        $region27: #{frequency_encoding.1} parent=23 // pred_region
          %s159 = smul.u32 8, %s21
          %p160 = scmp.lt.s32.totalorder %s20, 1
          %s161 = scalar_select %p160, %s20, 1
          %p162 = scmp.lt.s32.totalorder %s159, 7
          %s163 = scalar_select %p162, %s159, 7
          %s164 = smul.addr %s161, 8
          %s165 = sadd.s32 %s163, %s164
          %s166 = smul.addr %s165, 4
          %s167 = scalar_lea.vmem %s2, %s166
          %s168 = smul.u32 8, %s21
        $region28: #{frequency_encoding.1} parent=23 // pred_fallthru
          _
      $region24: #{frequency_encoding.1} parent=5 // pred_fallthru
        _
      %p169 = scmp.le.s32.totalorder 1, %s13
      %p170 = scmp.lt.s32.totalorder %s13, 3
      %p171 = pnand %p169, %p170
      %p172 = pneg %p171
      // Predicated region
      $region29: #{frequency_encoding.1} parent=5 // pred_check
        _
      $region30: #{frequency_encoding.1} parent=5 // pred_check_branch
        %174 = sbr.rel (%p171) target = $region32
      $region31: #{frequency_encoding.1} parent=5 // pred_region
        %s175 = ssub.s32 %s13, 1
        // Predicated region
        $region33: #{frequency_encoding.1} parent=31 // pred_check
          %p176 = pneg %p46
        $region34: #{frequency_encoding.1} parent=31 // pred_check_branch
          %178 = sbr.rel (%p176) target = $region36
        $region35: #{frequency_encoding.1} parent=31 // pred_region
          %179 = dma.done [#allocation4], 32
        $region36: #{frequency_encoding.1} parent=31 // pred_fallthru
          _
        %180 = sfence
        %p181 = pneg %p46
        %p182 = pneg %p43
        %p183 = pneg %p67
        %p184 = pneg %p64
        %s185 = smul.u32 8, %s23
        %p186 = scmp.lt.s32.totalorder %s22, 1
        %s187 = scalar_select %p186, %s22, 1
        %p188 = scmp.lt.s32.totalorder %s185, 7
        %s189 = scalar_select %p188, %s185, 7
        %s190 = smul.addr %s187, 8
        %s191 = sadd.s32 %s189, %s190
        %s192 = smul.addr %s191, 4
        %s193 = scalar_lea.vmem %s2, %s192
        %p194 = pneg %p95
        %p195 = pneg %p92
        %p196 = pneg %p123
        %p197 = pneg %p120
        %s198 = sand.u32 %s110, 1
        %s199 = scalar_lea.sflag [#allocation3], %s198
        %s200 = sand.u32 %s110, 1
        %s201 = smul.addr %s200, 512
        %s202 = scalar_lea.vmem [#allocation5], %s201
        %s203 = smul.u32 8, %s23
        %p204 = scmp.lt.s32.totalorder %s22, 1
        %s205 = scalar_select %p204, %s22, 1
        %p206 = scmp.lt.s32.totalorder %s203, 7
        %s207 = scalar_select %p206, %s203, 7
        %s208 = smul.addr %s205, 8
        %s209 = sadd.s32 %s207, %s208
        %s210 = smul.addr %s209, 4
        %s211 = scalar_lea.vmem %s2, %s210
        %s212 = smul.u32 8, %s23
        %s213 = smul.u32 8, %s23
        %s214 = smul.u32 %s22, 128
        %s215 = sld [smem:[#allocation2 + %s214]]
        %s216 = sadd.s32 %s214, 1
        %s217 = sld [smem:[#allocation2 + %s216]]
        %s218 = sadd.s32 %s214, 2
        %s219 = sld [smem:[#allocation2 + %s218]]
        %s220 = sadd.s32 %s214, 3
        %s221 = sld [smem:[#allocation2 + %s220]]
        %s222 = sadd.s32 %s214, 4
        %s223 = sld [smem:[#allocation2 + %s222]]
        %s224 = sadd.s32 %s214, 5
        %s225 = sld [smem:[#allocation2 + %s224]]
        %s226 = sadd.s32 %s214, 6
        %s227 = sld [smem:[#allocation2 + %s226]]
        %s228 = sadd.s32 %s214, 7
        %s229 = sld [smem:[#allocation2 + %s228]]
        %v230 = vld [vmem:[%s1] sm:$0xff]
        %v231 = vld [vmem:[%s1 + $0x8] sm:$0xff]
        %v232 = vld [vmem:[%s1 + $0x10] sm:$0xff]
        %v233 = vld [vmem:[%s1 + $0x18] sm:$0xff]
        %v234 = vld [vmem:[%s1 + $0x20] sm:$0xff]
        %v235 = vld [vmem:[%s1 + $0x28] sm:$0xff]
        %v236 = vld [vmem:[%s1 + $0x30] sm:$0xff]
        %v237 = vld [vmem:[%s1 + $0x38] sm:$0xff]
        %vm238 = vcmp.eq.f32.partialorder %v230, 0.0
        %vm239 = vcmp.eq.f32.partialorder %v231, 0.0
        %vm240 = vcmp.eq.f32.partialorder %v232, 0.0
        %vm241 = vcmp.eq.f32.partialorder %v233, 0.0
        %vm242 = vcmp.eq.f32.partialorder %v234, 0.0
        %vm243 = vcmp.eq.f32.partialorder %v235, 0.0
        %vm244 = vcmp.eq.f32.partialorder %v236, 0.0
        %vm245 = vcmp.eq.f32.partialorder %v237, 0.0
        %vm246 = vcmp.eq.f32.partialorder %v230, 1.0
        %vm247 = vcmp.eq.f32.partialorder %v231, 1.0
        %vm248 = vcmp.eq.f32.partialorder %v232, 1.0
        %vm249 = vcmp.eq.f32.partialorder %v233, 1.0
        %vm250 = vcmp.eq.f32.partialorder %v234, 1.0
        %vm251 = vcmp.eq.f32.partialorder %v235, 1.0
        %vm252 = vcmp.eq.f32.partialorder %v236, 1.0
        %vm253 = vcmp.eq.f32.partialorder %v237, 1.0
        %v254 = vld [vmem:[%s211] ss:$4 sm:$0xff]
        %s255 = scalar_lea.vmem %s211, 1
        %v256 = vld [vmem:[%s255] ss:$4 sm:$0xff]
        %s257 = scalar_lea.vmem %s211, 2
        %v258 = vld [vmem:[%s257] ss:$4 sm:$0xff]
        %v259 = vstv %s215
        %v260 = vsub.f32 %v254, %v259
        %v261 = vstv %s221
        %v262 = vmul.f32 %v260, %v261
        %v263 = vstv %s217
        %v264 = vsub.f32 %v256, %v263
        %v265 = vstv %s223
        %v266 = vmul.f32 %v264, %v265
        %v267 = vstv %s219
        %v268 = vsub.f32 %v258, %v267
        %v269 = vstv %s225
        %v270 = vmul.f32 %v268, %v269
        %v271 = vsel %vm246, 1, 0
        %v272 = vsel %vm247, 1, 0
        %v273 = vsel %vm248, 1, 0
        %v274 = vsel %vm249, 1, 0
        %v275 = vsel %vm250, 1, 0
        %v276 = vsel %vm251, 1, 0
        %v277 = vsel %vm252, 1, 0
        %v278 = vsel %vm253, 1, 0
        %279 = vset.pattern.permute.xlu0 2
        %280 = vperm.xlu0 %279, %v271
        %v281 = vpop.permute.xlu0 %280
        %282 = vset.pattern.permute.xlu0 2
        %283 = vperm.xlu0 %282, %v272
        %v284 = vpop.permute.xlu0 %283
        %285 = vset.pattern.permute.xlu0 2
        %286 = vperm.xlu0 %285, %v273
        %v287 = vpop.permute.xlu0 %286
        %288 = vset.pattern.permute.xlu0 2
        %289 = vperm.xlu0 %288, %v274
        %v290 = vpop.permute.xlu0 %289
        %291 = vset.pattern.permute.xlu0 2
        %292 = vperm.xlu0 %291, %v275
        %v293 = vpop.permute.xlu0 %292
        %294 = vset.pattern.permute.xlu0 2
        %295 = vperm.xlu0 %294, %v276
        %v296 = vpop.permute.xlu0 %295
        %297 = vset.pattern.permute.xlu0 2
        %298 = vperm.xlu0 %297, %v277
        %v299 = vpop.permute.xlu0 %298
        %300 = vset.pattern.permute.xlu0 2
        %301 = vperm.xlu0 %300, %v278
        %v302 = vpop.permute.xlu0 %301
        %vm303 = vcmp.eq.s32.totalorder %v281, 1
        %vm304 = vcmp.eq.s32.totalorder %v284, 1
        %vm305 = vcmp.eq.s32.totalorder %v287, 1
        %vm306 = vcmp.eq.s32.totalorder %v290, 1
        %vm307 = vcmp.eq.s32.totalorder %v293, 1
        %vm308 = vcmp.eq.s32.totalorder %v296, 1
        %vm309 = vcmp.eq.s32.totalorder %v299, 1
        %vm310 = vcmp.eq.s32.totalorder %v302, 1
        %v312 = vlaneseq
        %v313 = vshrl.u32 %v312, 7
        %v314 = vsub.s32 0, %v313
        %v315 = vrot.slane %v266, %v314
        %v316 = vlaneseq
        %v317 = vshrl.u32 %v316, 7
        %v318 = vsub.s32 1, %v317
        %v319 = vrot.slane %v266, %v318
        %v320 = vlaneseq
        %v321 = vshrl.u32 %v320, 7
        %v322 = vsub.s32 2, %v321
        %v323 = vrot.slane %v266, %v322
        %v324 = vlaneseq
        %v325 = vshrl.u32 %v324, 7
        %v326 = vsub.s32 3, %v325
        %v327 = vrot.slane %v266, %v326
        %v328 = vlaneseq
        %v329 = vshrl.u32 %v328, 7
        %v330 = vsub.s32 4, %v329
        %v331 = vrot.slane %v266, %v330
        %v332 = vlaneseq
        %v333 = vshrl.u32 %v332, 7
        %v334 = vsub.s32 5, %v333
        %v335 = vrot.slane %v266, %v334
        %v336 = vlaneseq
        %v337 = vshrl.u32 %v336, 7
        %v338 = vsub.s32 6, %v337
        %v339 = vrot.slane %v266, %v338
        %v340 = vlaneseq
        %v341 = vshrl.u32 %v340, 7
        %v342 = vsub.s32 7, %v341
        %v343 = vrot.slane %v266, %v342
        %v353 = vlaneseq
        %v354 = vshrl.u32 %v353, 7
        %v355 = vsub.s32 0, %v354
        %v356 = vrot.slane %v270, %v355
        %v357 = vlaneseq
        %v358 = vshrl.u32 %v357, 7
        %v359 = vsub.s32 1, %v358
        %v360 = vrot.slane %v270, %v359
        %v361 = vlaneseq
        %v362 = vshrl.u32 %v361, 7
        %v363 = vsub.s32 2, %v362
        %v364 = vrot.slane %v270, %v363
        %v365 = vlaneseq
        %v366 = vshrl.u32 %v365, 7
        %v367 = vsub.s32 3, %v366
        %v368 = vrot.slane %v270, %v367
        %v369 = vlaneseq
        %v370 = vshrl.u32 %v369, 7
        %v371 = vsub.s32 4, %v370
        %v372 = vrot.slane %v270, %v371
        %v373 = vlaneseq
        %v374 = vshrl.u32 %v373, 7
        %v375 = vsub.s32 5, %v374
        %v376 = vrot.slane %v270, %v375
        %v377 = vlaneseq
        %v378 = vshrl.u32 %v377, 7
        %v379 = vsub.s32 6, %v378
        %v380 = vrot.slane %v270, %v379
        %v381 = vlaneseq
        %v382 = vshrl.u32 %v381, 7
        %v383 = vsub.s32 7, %v382
        %v384 = vrot.slane %v270, %v383
        %v393 = vsel %vm303, %v315, %v356
        %v394 = vsel %vm303, %v319, %v360
        %v395 = vsel %vm303, %v323, %v364
        %v396 = vsel %vm303, %v327, %v368
        %v397 = vsel %vm303, %v331, %v372
        %v398 = vsel %vm303, %v335, %v376
        %v399 = vsel %vm303, %v339, %v380
        %v400 = vsel %vm303, %v343, %v384
        %v401 = vsel %vm304, %v315, %v356
        %v402 = vsel %vm304, %v319, %v360
        %v403 = vsel %vm304, %v323, %v364
        %v404 = vsel %vm304, %v327, %v368
        %v405 = vsel %vm304, %v331, %v372
        %v406 = vsel %vm304, %v335, %v376
        %v407 = vsel %vm304, %v339, %v380
        %v408 = vsel %vm304, %v343, %v384
        %v409 = vsel %vm305, %v315, %v356
        %v410 = vsel %vm305, %v319, %v360
        %v411 = vsel %vm305, %v323, %v364
        %v412 = vsel %vm305, %v327, %v368
        %v413 = vsel %vm305, %v331, %v372
        %v414 = vsel %vm305, %v335, %v376
        %v415 = vsel %vm305, %v339, %v380
        %v416 = vsel %vm305, %v343, %v384
        %v417 = vsel %vm306, %v315, %v356
        %v418 = vsel %vm306, %v319, %v360
        %v419 = vsel %vm306, %v323, %v364
        %v420 = vsel %vm306, %v327, %v368
        %v421 = vsel %vm306, %v331, %v372
        %v422 = vsel %vm306, %v335, %v376
        %v423 = vsel %vm306, %v339, %v380
        %v424 = vsel %vm306, %v343, %v384
        %v425 = vsel %vm307, %v315, %v356
        %v426 = vsel %vm307, %v319, %v360
        %v427 = vsel %vm307, %v323, %v364
        %v428 = vsel %vm307, %v327, %v368
        %v429 = vsel %vm307, %v331, %v372
        %v430 = vsel %vm307, %v335, %v376
        %v431 = vsel %vm307, %v339, %v380
        %v432 = vsel %vm307, %v343, %v384
        %v433 = vsel %vm308, %v315, %v356
        %v434 = vsel %vm308, %v319, %v360
        %v435 = vsel %vm308, %v323, %v364
        %v436 = vsel %vm308, %v327, %v368
        %v437 = vsel %vm308, %v331, %v372
        %v438 = vsel %vm308, %v335, %v376
        %v439 = vsel %vm308, %v339, %v380
        %v440 = vsel %vm308, %v343, %v384
        %v441 = vsel %vm309, %v315, %v356
        %v442 = vsel %vm309, %v319, %v360
        %v443 = vsel %vm309, %v323, %v364
        %v444 = vsel %vm309, %v327, %v368
        %v445 = vsel %vm309, %v331, %v372
        %v446 = vsel %vm309, %v335, %v376
        %v447 = vsel %vm309, %v339, %v380
        %v448 = vsel %vm309, %v343, %v384
        %v449 = vsel %vm310, %v315, %v356
        %v450 = vsel %vm310, %v319, %v360
        %v451 = vsel %vm310, %v323, %v364
        %v452 = vsel %vm310, %v327, %v368
        %v453 = vsel %vm310, %v331, %v372
        %v454 = vsel %vm310, %v335, %v376
        %v455 = vsel %vm310, %v339, %v380
        %v456 = vsel %vm310, %v343, %v384
        %v457 = vsel %vm238, 1, 0
        %v458 = vsel %vm239, 1, 0
        %v459 = vsel %vm240, 1, 0
        %v460 = vsel %vm241, 1, 0
        %v461 = vsel %vm242, 1, 0
        %v462 = vsel %vm243, 1, 0
        %v463 = vsel %vm244, 1, 0
        %v464 = vsel %vm245, 1, 0
        %465 = vset.pattern.permute.xlu0 2
        %466 = vperm.xlu0 %465, %v457
        %v467 = vpop.permute.xlu0 %466
        %468 = vset.pattern.permute.xlu0 2
        %469 = vperm.xlu0 %468, %v458
        %v470 = vpop.permute.xlu0 %469
        %471 = vset.pattern.permute.xlu0 2
        %472 = vperm.xlu0 %471, %v459
        %v473 = vpop.permute.xlu0 %472
        %474 = vset.pattern.permute.xlu0 2
        %475 = vperm.xlu0 %474, %v460
        %v476 = vpop.permute.xlu0 %475
        %477 = vset.pattern.permute.xlu0 2
        %478 = vperm.xlu0 %477, %v461
        %v479 = vpop.permute.xlu0 %478
        %480 = vset.pattern.permute.xlu0 2
        %481 = vperm.xlu0 %480, %v462
        %v482 = vpop.permute.xlu0 %481
        %483 = vset.pattern.permute.xlu0 2
        %484 = vperm.xlu0 %483, %v463
        %v485 = vpop.permute.xlu0 %484
        %486 = vset.pattern.permute.xlu0 2
        %487 = vperm.xlu0 %486, %v464
        %v488 = vpop.permute.xlu0 %487
        %vm489 = vcmp.eq.s32.totalorder %v467, 1
        %vm490 = vcmp.eq.s32.totalorder %v470, 1
        %vm491 = vcmp.eq.s32.totalorder %v473, 1
        %vm492 = vcmp.eq.s32.totalorder %v476, 1
        %vm493 = vcmp.eq.s32.totalorder %v479, 1
        %vm494 = vcmp.eq.s32.totalorder %v482, 1
        %vm495 = vcmp.eq.s32.totalorder %v485, 1
        %vm496 = vcmp.eq.s32.totalorder %v488, 1
        %v498 = vlaneseq
        %v499 = vshrl.u32 %v498, 7
        %v500 = vsub.s32 0, %v499
        %v501 = vrot.slane %v262, %v500
        %v502 = vlaneseq
        %v503 = vshrl.u32 %v502, 7
        %v504 = vsub.s32 1, %v503
        %v505 = vrot.slane %v262, %v504
        %v506 = vlaneseq
        %v507 = vshrl.u32 %v506, 7
        %v508 = vsub.s32 2, %v507
        %v509 = vrot.slane %v262, %v508
        %v510 = vlaneseq
        %v511 = vshrl.u32 %v510, 7
        %v512 = vsub.s32 3, %v511
        %v513 = vrot.slane %v262, %v512
        %v514 = vlaneseq
        %v515 = vshrl.u32 %v514, 7
        %v516 = vsub.s32 4, %v515
        %v517 = vrot.slane %v262, %v516
        %v518 = vlaneseq
        %v519 = vshrl.u32 %v518, 7
        %v520 = vsub.s32 5, %v519
        %v521 = vrot.slane %v262, %v520
        %v522 = vlaneseq
        %v523 = vshrl.u32 %v522, 7
        %v524 = vsub.s32 6, %v523
        %v525 = vrot.slane %v262, %v524
        %v526 = vlaneseq
        %v527 = vshrl.u32 %v526, 7
        %v528 = vsub.s32 7, %v527
        %v529 = vrot.slane %v262, %v528
        %v538 = vsel %vm489, %v501, %v393
        %v539 = vsel %vm489, %v505, %v394
        %v540 = vsel %vm489, %v509, %v395
        %v541 = vsel %vm489, %v513, %v396
        %v542 = vsel %vm489, %v517, %v397
        %v543 = vsel %vm489, %v521, %v398
        %v544 = vsel %vm489, %v525, %v399
        %v545 = vsel %vm489, %v529, %v400
        %v546 = vsel %vm490, %v501, %v401
        %v547 = vsel %vm490, %v505, %v402
        %v548 = vsel %vm490, %v509, %v403
        %v549 = vsel %vm490, %v513, %v404
        %v550 = vsel %vm490, %v517, %v405
        %v551 = vsel %vm490, %v521, %v406
        %v552 = vsel %vm490, %v525, %v407
        %v553 = vsel %vm490, %v529, %v408
        %v554 = vsel %vm491, %v501, %v409
        %v555 = vsel %vm491, %v505, %v410
        %v556 = vsel %vm491, %v509, %v411
        %v557 = vsel %vm491, %v513, %v412
        %v558 = vsel %vm491, %v517, %v413
        %v559 = vsel %vm491, %v521, %v414
        %v560 = vsel %vm491, %v525, %v415
        %v561 = vsel %vm491, %v529, %v416
        %v562 = vsel %vm492, %v501, %v417
        %v563 = vsel %vm492, %v505, %v418
        %v564 = vsel %vm492, %v509, %v419
        %v565 = vsel %vm492, %v513, %v420
        %v566 = vsel %vm492, %v517, %v421
        %v567 = vsel %vm492, %v521, %v422
        %v568 = vsel %vm492, %v525, %v423
        %v569 = vsel %vm492, %v529, %v424
        %v570 = vsel %vm493, %v501, %v425
        %v571 = vsel %vm493, %v505, %v426
        %v572 = vsel %vm493, %v509, %v427
        %v573 = vsel %vm493, %v513, %v428
        %v574 = vsel %vm493, %v517, %v429
        %v575 = vsel %vm493, %v521, %v430
        %v576 = vsel %vm493, %v525, %v431
        %v577 = vsel %vm493, %v529, %v432
        %v578 = vsel %vm494, %v501, %v433
        %v579 = vsel %vm494, %v505, %v434
        %v580 = vsel %vm494, %v509, %v435
        %v581 = vsel %vm494, %v513, %v436
        %v582 = vsel %vm494, %v517, %v437
        %v583 = vsel %vm494, %v521, %v438
        %v584 = vsel %vm494, %v525, %v439
        %v585 = vsel %vm494, %v529, %v440
        %v586 = vsel %vm495, %v501, %v441
        %v587 = vsel %vm495, %v505, %v442
        %v588 = vsel %vm495, %v509, %v443
        %v589 = vsel %vm495, %v513, %v444
        %v590 = vsel %vm495, %v517, %v445
        %v591 = vsel %vm495, %v521, %v446
        %v592 = vsel %vm495, %v525, %v447
        %v593 = vsel %vm495, %v529, %v448
        %v594 = vsel %vm496, %v501, %v449
        %v595 = vsel %vm496, %v505, %v450
        %v596 = vsel %vm496, %v509, %v451
        %v597 = vsel %vm496, %v513, %v452
        %v598 = vsel %vm496, %v517, %v453
        %v599 = vsel %vm496, %v521, %v454
        %v600 = vsel %vm496, %v525, %v455
        %v601 = vsel %vm496, %v529, %v456
        %603 = vset.pattern.permute.xlu0 0
        %604 = vperm.xlu0 %603, %v230
        %v605 = vpop.permute.xlu0 %604
        %608 = vset.pattern.permute.xlu0 0
        %609 = vperm.xlu0 %608, %v231
        %v610 = vpop.permute.xlu0 %609
        %613 = vset.pattern.permute.xlu0 0
        %614 = vperm.xlu0 %613, %v232
        %v615 = vpop.permute.xlu0 %614
        %618 = vset.pattern.permute.xlu0 0
        %619 = vperm.xlu0 %618, %v233
        %v620 = vpop.permute.xlu0 %619
        %623 = vset.pattern.permute.xlu0 0
        %624 = vperm.xlu0 %623, %v234
        %v625 = vpop.permute.xlu0 %624
        %628 = vset.pattern.permute.xlu0 0
        %629 = vperm.xlu0 %628, %v235
        %v630 = vpop.permute.xlu0 %629
        %633 = vset.pattern.permute.xlu0 0
        %634 = vperm.xlu0 %633, %v236
        %v635 = vpop.permute.xlu0 %634
        %638 = vset.pattern.permute.xlu0 0
        %639 = vperm.xlu0 %638, %v237
        %v640 = vpop.permute.xlu0 %639
        %v642 = vmul.f32 %v538, %v605
        %v643 = vmul.f32 %v539, %v605
        %v644 = vmul.f32 %v540, %v605
        %v645 = vmul.f32 %v541, %v605
        %v646 = vmul.f32 %v542, %v605
        %v647 = vmul.f32 %v543, %v605
        %v648 = vmul.f32 %v544, %v605
        %v649 = vmul.f32 %v545, %v605
        %v650 = vmul.f32 %v546, %v610
        %v651 = vmul.f32 %v547, %v610
        %v652 = vmul.f32 %v548, %v610
        %v653 = vmul.f32 %v549, %v610
        %v654 = vmul.f32 %v550, %v610
        %v655 = vmul.f32 %v551, %v610
        %v656 = vmul.f32 %v552, %v610
        %v657 = vmul.f32 %v553, %v610
        %v658 = vmul.f32 %v554, %v615
        %v659 = vmul.f32 %v555, %v615
        %v660 = vmul.f32 %v556, %v615
        %v661 = vmul.f32 %v557, %v615
        %v662 = vmul.f32 %v558, %v615
        %v663 = vmul.f32 %v559, %v615
        %v664 = vmul.f32 %v560, %v615
        %v665 = vmul.f32 %v561, %v615
        %v666 = vmul.f32 %v562, %v620
        %v667 = vmul.f32 %v563, %v620
        %v668 = vmul.f32 %v564, %v620
        %v669 = vmul.f32 %v565, %v620
        %v670 = vmul.f32 %v566, %v620
        %v671 = vmul.f32 %v567, %v620
        %v672 = vmul.f32 %v568, %v620
        %v673 = vmul.f32 %v569, %v620
        %v674 = vmul.f32 %v570, %v625
        %v675 = vmul.f32 %v571, %v625
        %v676 = vmul.f32 %v572, %v625
        %v677 = vmul.f32 %v573, %v625
        %v678 = vmul.f32 %v574, %v625
        %v679 = vmul.f32 %v575, %v625
        %v680 = vmul.f32 %v576, %v625
        %v681 = vmul.f32 %v577, %v625
        %v682 = vmul.f32 %v578, %v630
        %v683 = vmul.f32 %v579, %v630
        %v684 = vmul.f32 %v580, %v630
        %v685 = vmul.f32 %v581, %v630
        %v686 = vmul.f32 %v582, %v630
        %v687 = vmul.f32 %v583, %v630
        %v688 = vmul.f32 %v584, %v630
        %v689 = vmul.f32 %v585, %v630
        %v690 = vmul.f32 %v586, %v635
        %v691 = vmul.f32 %v587, %v635
        %v692 = vmul.f32 %v588, %v635
        %v693 = vmul.f32 %v589, %v635
        %v694 = vmul.f32 %v590, %v635
        %v695 = vmul.f32 %v591, %v635
        %v696 = vmul.f32 %v592, %v635
        %v697 = vmul.f32 %v593, %v635
        %v698 = vmul.f32 %v594, %v640
        %v699 = vmul.f32 %v595, %v640
        %v700 = vmul.f32 %v596, %v640
        %v701 = vmul.f32 %v597, %v640
        %v702 = vmul.f32 %v598, %v640
        %v703 = vmul.f32 %v599, %v640
        %v704 = vmul.f32 %v600, %v640
        %v705 = vmul.f32 %v601, %v640
        %v706 = vmul.f32 %v642, 0.5
        %v707 = vmul.f32 %v643, 0.5
        %v708 = vmul.f32 %v644, 0.5
        %v709 = vmul.f32 %v645, 0.5
        %v710 = vmul.f32 %v646, 0.5
        %v711 = vmul.f32 %v647, 0.5
        %v712 = vmul.f32 %v648, 0.5
        %v713 = vmul.f32 %v649, 0.5
        %v714 = vmul.f32 %v650, 0.5
        %v715 = vmul.f32 %v651, 0.5
        %v716 = vmul.f32 %v652, 0.5
        %v717 = vmul.f32 %v653, 0.5
        %v718 = vmul.f32 %v654, 0.5
        %v719 = vmul.f32 %v655, 0.5
        %v720 = vmul.f32 %v656, 0.5
        %v721 = vmul.f32 %v657, 0.5
        %v722 = vmul.f32 %v658, 0.5
        %v723 = vmul.f32 %v659, 0.5
        %v724 = vmul.f32 %v660, 0.5
        %v725 = vmul.f32 %v661, 0.5
        %v726 = vmul.f32 %v662, 0.5
        %v727 = vmul.f32 %v663, 0.5
        %v728 = vmul.f32 %v664, 0.5
        %v729 = vmul.f32 %v665, 0.5
        %v730 = vmul.f32 %v666, 0.5
        %v731 = vmul.f32 %v667, 0.5
        %v732 = vmul.f32 %v668, 0.5
        %v733 = vmul.f32 %v669, 0.5
        %v734 = vmul.f32 %v670, 0.5
        %v735 = vmul.f32 %v671, 0.5
        %v736 = vmul.f32 %v672, 0.5
        %v737 = vmul.f32 %v673, 0.5
        %v738 = vmul.f32 %v674, 0.5
        %v739 = vmul.f32 %v675, 0.5
        %v740 = vmul.f32 %v676, 0.5
        %v741 = vmul.f32 %v677, 0.5
        %v742 = vmul.f32 %v678, 0.5
        %v743 = vmul.f32 %v679, 0.5
        %v744 = vmul.f32 %v680, 0.5
        %v745 = vmul.f32 %v681, 0.5
        %v746 = vmul.f32 %v682, 0.5
        %v747 = vmul.f32 %v683, 0.5
        %v748 = vmul.f32 %v684, 0.5
        %v749 = vmul.f32 %v685, 0.5
        %v750 = vmul.f32 %v686, 0.5
        %v751 = vmul.f32 %v687, 0.5
        %v752 = vmul.f32 %v688, 0.5
        %v753 = vmul.f32 %v689, 0.5
        %v754 = vmul.f32 %v690, 0.5
        %v755 = vmul.f32 %v691, 0.5
        %v756 = vmul.f32 %v692, 0.5
        %v757 = vmul.f32 %v693, 0.5
        %v758 = vmul.f32 %v694, 0.5
        %v759 = vmul.f32 %v695, 0.5
        %v760 = vmul.f32 %v696, 0.5
        %v761 = vmul.f32 %v697, 0.5
        %v762 = vmul.f32 %v698, 0.5
        %v763 = vmul.f32 %v699, 0.5
        %v764 = vmul.f32 %v700, 0.5
        %v765 = vmul.f32 %v701, 0.5
        %v766 = vmul.f32 %v702, 0.5
        %v767 = vmul.f32 %v703, 0.5
        %v768 = vmul.f32 %v704, 0.5
        %v769 = vmul.f32 %v705, 0.5
        %v770 = vfloor.f32 %v706
        %v771 = vfloor.f32 %v707
        %v772 = vfloor.f32 %v708
        %v773 = vfloor.f32 %v709
        %v774 = vfloor.f32 %v710
        %v775 = vfloor.f32 %v711
        %v776 = vfloor.f32 %v712
        %v777 = vfloor.f32 %v713
        %v778 = vfloor.f32 %v714
        %v779 = vfloor.f32 %v715
        %v780 = vfloor.f32 %v716
        %v781 = vfloor.f32 %v717
        %v782 = vfloor.f32 %v718
        %v783 = vfloor.f32 %v719
        %v784 = vfloor.f32 %v720
        %v785 = vfloor.f32 %v721
        %v786 = vfloor.f32 %v722
        %v787 = vfloor.f32 %v723
        %v788 = vfloor.f32 %v724
        %v789 = vfloor.f32 %v725
        %v790 = vfloor.f32 %v726
        %v791 = vfloor.f32 %v727
        %v792 = vfloor.f32 %v728
        %v793 = vfloor.f32 %v729
        %v794 = vfloor.f32 %v730
        %v795 = vfloor.f32 %v731
        %v796 = vfloor.f32 %v732
        %v797 = vfloor.f32 %v733
        %v798 = vfloor.f32 %v734
        %v799 = vfloor.f32 %v735
        %v800 = vfloor.f32 %v736
        %v801 = vfloor.f32 %v737
        %v802 = vfloor.f32 %v738
        %v803 = vfloor.f32 %v739
        %v804 = vfloor.f32 %v740
        %v805 = vfloor.f32 %v741
        %v806 = vfloor.f32 %v742
        %v807 = vfloor.f32 %v743
        %v808 = vfloor.f32 %v744
        %v809 = vfloor.f32 %v745
        %v810 = vfloor.f32 %v746
        %v811 = vfloor.f32 %v747
        %v812 = vfloor.f32 %v748
        %v813 = vfloor.f32 %v749
        %v814 = vfloor.f32 %v750
        %v815 = vfloor.f32 %v751
        %v816 = vfloor.f32 %v752
        %v817 = vfloor.f32 %v753
        %v818 = vfloor.f32 %v754
        %v819 = vfloor.f32 %v755
        %v820 = vfloor.f32 %v756
        %v821 = vfloor.f32 %v757
        %v822 = vfloor.f32 %v758
        %v823 = vfloor.f32 %v759
        %v824 = vfloor.f32 %v760
        %v825 = vfloor.f32 %v761
        %v826 = vfloor.f32 %v762
        %v827 = vfloor.f32 %v763
        %v828 = vfloor.f32 %v764
        %v829 = vfloor.f32 %v765
        %v830 = vfloor.f32 %v766
        %v831 = vfloor.f32 %v767
        %v832 = vfloor.f32 %v768
        %v833 = vfloor.f32 %v769
        %v834 = vsub.f32 %v642, %v770
        %v835 = vsub.f32 %v643, %v771
        %v836 = vsub.f32 %v644, %v772
        %v837 = vsub.f32 %v645, %v773
        %v838 = vsub.f32 %v646, %v774
        %v839 = vsub.f32 %v647, %v775
        %v840 = vsub.f32 %v648, %v776
        %v841 = vsub.f32 %v649, %v777
        %v842 = vsub.f32 %v650, %v778
        %v843 = vsub.f32 %v651, %v779
        %v844 = vsub.f32 %v652, %v780
        %v845 = vsub.f32 %v653, %v781
        %v846 = vsub.f32 %v654, %v782
        %v847 = vsub.f32 %v655, %v783
        %v848 = vsub.f32 %v656, %v784
        %v849 = vsub.f32 %v657, %v785
        %v850 = vsub.f32 %v658, %v786
        %v851 = vsub.f32 %v659, %v787
        %v852 = vsub.f32 %v660, %v788
        %v853 = vsub.f32 %v661, %v789
        %v854 = vsub.f32 %v662, %v790
        %v855 = vsub.f32 %v663, %v791
        %v856 = vsub.f32 %v664, %v792
        %v857 = vsub.f32 %v665, %v793
        %v858 = vsub.f32 %v666, %v794
        %v859 = vsub.f32 %v667, %v795
        %v860 = vsub.f32 %v668, %v796
        %v861 = vsub.f32 %v669, %v797
        %v862 = vsub.f32 %v670, %v798
        %v863 = vsub.f32 %v671, %v799
        %v864 = vsub.f32 %v672, %v800
        %v865 = vsub.f32 %v673, %v801
        %v866 = vsub.f32 %v674, %v802
        %v867 = vsub.f32 %v675, %v803
        %v868 = vsub.f32 %v676, %v804
        %v869 = vsub.f32 %v677, %v805
        %v870 = vsub.f32 %v678, %v806
        %v871 = vsub.f32 %v679, %v807
        %v872 = vsub.f32 %v680, %v808
        %v873 = vsub.f32 %v681, %v809
        %v874 = vsub.f32 %v682, %v810
        %v875 = vsub.f32 %v683, %v811
        %v876 = vsub.f32 %v684, %v812
        %v877 = vsub.f32 %v685, %v813
        %v878 = vsub.f32 %v686, %v814
        %v879 = vsub.f32 %v687, %v815
        %v880 = vsub.f32 %v688, %v816
        %v881 = vsub.f32 %v689, %v817
        %v882 = vsub.f32 %v690, %v818
        %v883 = vsub.f32 %v691, %v819
        %v884 = vsub.f32 %v692, %v820
        %v885 = vsub.f32 %v693, %v821
        %v886 = vsub.f32 %v694, %v822
        %v887 = vsub.f32 %v695, %v823
        %v888 = vsub.f32 %v696, %v824
        %v889 = vsub.f32 %v697, %v825
        %v890 = vsub.f32 %v698, %v826
        %v891 = vsub.f32 %v699, %v827
        %v892 = vsub.f32 %v700, %v828
        %v893 = vsub.f32 %v701, %v829
        %v894 = vsub.f32 %v702, %v830
        %v895 = vsub.f32 %v703, %v831
        %v896 = vsub.f32 %v704, %v832
        %v897 = vsub.f32 %v705, %v833
        %v898 = vsub.f32 %v834, %v770
        %v899 = vsub.f32 %v835, %v771
        %v900 = vsub.f32 %v836, %v772
        %v901 = vsub.f32 %v837, %v773
        %v902 = vsub.f32 %v838, %v774
        %v903 = vsub.f32 %v839, %v775
        %v904 = vsub.f32 %v840, %v776
        %v905 = vsub.f32 %v841, %v777
        %v906 = vsub.f32 %v842, %v778
        %v907 = vsub.f32 %v843, %v779
        %v908 = vsub.f32 %v844, %v780
        %v909 = vsub.f32 %v845, %v781
        %v910 = vsub.f32 %v846, %v782
        %v911 = vsub.f32 %v847, %v783
        %v912 = vsub.f32 %v848, %v784
        %v913 = vsub.f32 %v849, %v785
        %v914 = vsub.f32 %v850, %v786
        %v915 = vsub.f32 %v851, %v787
        %v916 = vsub.f32 %v852, %v788
        %v917 = vsub.f32 %v853, %v789
        %v918 = vsub.f32 %v854, %v790
        %v919 = vsub.f32 %v855, %v791
        %v920 = vsub.f32 %v856, %v792
        %v921 = vsub.f32 %v857, %v793
        %v922 = vsub.f32 %v858, %v794
        %v923 = vsub.f32 %v859, %v795
        %v924 = vsub.f32 %v860, %v796
        %v925 = vsub.f32 %v861, %v797
        %v926 = vsub.f32 %v862, %v798
        %v927 = vsub.f32 %v863, %v799
        %v928 = vsub.f32 %v864, %v800
        %v929 = vsub.f32 %v865, %v801
        %v930 = vsub.f32 %v866, %v802
        %v931 = vsub.f32 %v867, %v803
        %v932 = vsub.f32 %v868, %v804
        %v933 = vsub.f32 %v869, %v805
        %v934 = vsub.f32 %v870, %v806
        %v935 = vsub.f32 %v871, %v807
        %v936 = vsub.f32 %v872, %v808
        %v937 = vsub.f32 %v873, %v809
        %v938 = vsub.f32 %v874, %v810
        %v939 = vsub.f32 %v875, %v811
        %v940 = vsub.f32 %v876, %v812
        %v941 = vsub.f32 %v877, %v813
        %v942 = vsub.f32 %v878, %v814
        %v943 = vsub.f32 %v879, %v815
        %v944 = vsub.f32 %v880, %v816
        %v945 = vsub.f32 %v881, %v817
        %v946 = vsub.f32 %v882, %v818
        %v947 = vsub.f32 %v883, %v819
        %v948 = vsub.f32 %v884, %v820
        %v949 = vsub.f32 %v885, %v821
        %v950 = vsub.f32 %v886, %v822
        %v951 = vsub.f32 %v887, %v823
        %v952 = vsub.f32 %v888, %v824
        %v953 = vsub.f32 %v889, %v825
        %v954 = vsub.f32 %v890, %v826
        %v955 = vsub.f32 %v891, %v827
        %v956 = vsub.f32 %v892, %v828
        %v957 = vsub.f32 %v893, %v829
        %v958 = vsub.f32 %v894, %v830
        %v959 = vsub.f32 %v895, %v831
        %v960 = vsub.f32 %v896, %v832
        %v961 = vsub.f32 %v897, %v833
        %v962 = vmul.f32 %v898, 3.1415927
        %v963 = vmul.f32 %v899, 3.1415927
        %v964 = vmul.f32 %v900, 3.1415927
        %v965 = vmul.f32 %v901, 3.1415927
        %v966 = vmul.f32 %v902, 3.1415927
        %v967 = vmul.f32 %v903, 3.1415927
        %v968 = vmul.f32 %v904, 3.1415927
        %v969 = vmul.f32 %v905, 3.1415927
        %v970 = vmul.f32 %v906, 3.1415927
        %v971 = vmul.f32 %v907, 3.1415927
        %v972 = vmul.f32 %v908, 3.1415927
        %v973 = vmul.f32 %v909, 3.1415927
        %v974 = vmul.f32 %v910, 3.1415927
        %v975 = vmul.f32 %v911, 3.1415927
        %v976 = vmul.f32 %v912, 3.1415927
        %v977 = vmul.f32 %v913, 3.1415927
        %v978 = vmul.f32 %v914, 3.1415927
        %v979 = vmul.f32 %v915, 3.1415927
        %v980 = vmul.f32 %v916, 3.1415927
        %v981 = vmul.f32 %v917, 3.1415927
        %v982 = vmul.f32 %v918, 3.1415927
        %v983 = vmul.f32 %v919, 3.1415927
        %v984 = vmul.f32 %v920, 3.1415927
        %v985 = vmul.f32 %v921, 3.1415927
        %v986 = vmul.f32 %v922, 3.1415927
        %v987 = vmul.f32 %v923, 3.1415927
        %v988 = vmul.f32 %v924, 3.1415927
        %v989 = vmul.f32 %v925, 3.1415927
        %v990 = vmul.f32 %v926, 3.1415927
        %v991 = vmul.f32 %v927, 3.1415927
        %v992 = vmul.f32 %v928, 3.1415927
        %v993 = vmul.f32 %v929, 3.1415927
        %v994 = vmul.f32 %v930, 3.1415927
        %v995 = vmul.f32 %v931, 3.1415927
        %v996 = vmul.f32 %v932, 3.1415927
        %v997 = vmul.f32 %v933, 3.1415927
        %v998 = vmul.f32 %v934, 3.1415927
        %v999 = vmul.f32 %v935, 3.1415927
        %v1000 = vmul.f32 %v936, 3.1415927
        %v1001 = vmul.f32 %v937, 3.1415927
        %v1002 = vmul.f32 %v938, 3.1415927
        %v1003 = vmul.f32 %v939, 3.1415927
        %v1004 = vmul.f32 %v940, 3.1415927
        %v1005 = vmul.f32 %v941, 3.1415927
        %v1006 = vmul.f32 %v942, 3.1415927
        %v1007 = vmul.f32 %v943, 3.1415927
        %v1008 = vmul.f32 %v944, 3.1415927
        %v1009 = vmul.f32 %v945, 3.1415927
        %v1010 = vmul.f32 %v946, 3.1415927
        %v1011 = vmul.f32 %v947, 3.1415927
        %v1012 = vmul.f32 %v948, 3.1415927
        %v1013 = vmul.f32 %v949, 3.1415927
        %v1014 = vmul.f32 %v950, 3.1415927
        %v1015 = vmul.f32 %v951, 3.1415927
        %v1016 = vmul.f32 %v952, 3.1415927
        %v1017 = vmul.f32 %v953, 3.1415927
        %v1018 = vmul.f32 %v954, 3.1415927
        %v1019 = vmul.f32 %v955, 3.1415927
        %v1020 = vmul.f32 %v956, 3.1415927
        %v1021 = vmul.f32 %v957, 3.1415927
        %v1022 = vmul.f32 %v958, 3.1415927
        %v1023 = vmul.f32 %v959, 3.1415927
        %v1024 = vmul.f32 %v960, 3.1415927
        %v1025 = vmul.f32 %v961, 3.1415927
        %1026 = vset.pattern.permute.xlu0 1
        %1027 = vperm.xlu0 %1026, %v230
        %v1028 = vpop.permute.xlu0 %1027
        %1030 = vset.pattern.permute.xlu0 1
        %1031 = vperm.xlu0 %1030, %v231
        %v1032 = vpop.permute.xlu0 %1031
        %1034 = vset.pattern.permute.xlu0 1
        %1035 = vperm.xlu0 %1034, %v232
        %v1036 = vpop.permute.xlu0 %1035
        %1038 = vset.pattern.permute.xlu0 1
        %1039 = vperm.xlu0 %1038, %v233
        %v1040 = vpop.permute.xlu0 %1039
        %1042 = vset.pattern.permute.xlu0 1
        %1043 = vperm.xlu0 %1042, %v234
        %v1044 = vpop.permute.xlu0 %1043
        %1046 = vset.pattern.permute.xlu0 1
        %1047 = vperm.xlu0 %1046, %v235
        %v1048 = vpop.permute.xlu0 %1047
        %1050 = vset.pattern.permute.xlu0 1
        %1051 = vperm.xlu0 %1050, %v236
        %v1052 = vpop.permute.xlu0 %1051
        %1054 = vset.pattern.permute.xlu0 1
        %1055 = vperm.xlu0 %1054, %v237
        %v1056 = vpop.permute.xlu0 %1055
        %v1058 = vadd.f32 %v962, %v1028
        %v1059 = vadd.f32 %v963, %v1028
        %v1060 = vadd.f32 %v964, %v1028
        %v1061 = vadd.f32 %v965, %v1028
        %v1062 = vadd.f32 %v966, %v1028
        %v1063 = vadd.f32 %v967, %v1028
        %v1064 = vadd.f32 %v968, %v1028
        %v1065 = vadd.f32 %v969, %v1028
        %v1066 = vadd.f32 %v970, %v1032
        %v1067 = vadd.f32 %v971, %v1032
        %v1068 = vadd.f32 %v972, %v1032
        %v1069 = vadd.f32 %v973, %v1032
        %v1070 = vadd.f32 %v974, %v1032
        %v1071 = vadd.f32 %v975, %v1032
        %v1072 = vadd.f32 %v976, %v1032
        %v1073 = vadd.f32 %v977, %v1032
        %v1074 = vadd.f32 %v978, %v1036
        %v1075 = vadd.f32 %v979, %v1036
        %v1076 = vadd.f32 %v980, %v1036
        %v1077 = vadd.f32 %v981, %v1036
        %v1078 = vadd.f32 %v982, %v1036
        %v1079 = vadd.f32 %v983, %v1036
        %v1080 = vadd.f32 %v984, %v1036
        %v1081 = vadd.f32 %v985, %v1036
        %v1082 = vadd.f32 %v986, %v1040
        %v1083 = vadd.f32 %v987, %v1040
        %v1084 = vadd.f32 %v988, %v1040
        %v1085 = vadd.f32 %v989, %v1040
        %v1086 = vadd.f32 %v990, %v1040
        %v1087 = vadd.f32 %v991, %v1040
        %v1088 = vadd.f32 %v992, %v1040
        %v1089 = vadd.f32 %v993, %v1040
        %v1090 = vadd.f32 %v994, %v1044
        %v1091 = vadd.f32 %v995, %v1044
        %v1092 = vadd.f32 %v996, %v1044
        %v1093 = vadd.f32 %v997, %v1044
        %v1094 = vadd.f32 %v998, %v1044
        %v1095 = vadd.f32 %v999, %v1044
        %v1096 = vadd.f32 %v1000, %v1044
        %v1097 = vadd.f32 %v1001, %v1044
        %v1098 = vadd.f32 %v1002, %v1048
        %v1099 = vadd.f32 %v1003, %v1048
        %v1100 = vadd.f32 %v1004, %v1048
        %v1101 = vadd.f32 %v1005, %v1048
        %v1102 = vadd.f32 %v1006, %v1048
        %v1103 = vadd.f32 %v1007, %v1048
        %v1104 = vadd.f32 %v1008, %v1048
        %v1105 = vadd.f32 %v1009, %v1048
        %v1106 = vadd.f32 %v1010, %v1052
        %v1107 = vadd.f32 %v1011, %v1052
        %v1108 = vadd.f32 %v1012, %v1052
        %v1109 = vadd.f32 %v1013, %v1052
        %v1110 = vadd.f32 %v1014, %v1052
        %v1111 = vadd.f32 %v1015, %v1052
        %v1112 = vadd.f32 %v1016, %v1052
        %v1113 = vadd.f32 %v1017, %v1052
        %v1114 = vadd.f32 %v1018, %v1056
        %v1115 = vadd.f32 %v1019, %v1056
        %v1116 = vadd.f32 %v1020, %v1056
        %v1117 = vadd.f32 %v1021, %v1056
        %v1118 = vadd.f32 %v1022, %v1056
        %v1119 = vadd.f32 %v1023, %v1056
        %v1120 = vadd.f32 %v1024, %v1056
        %v1121 = vadd.f32 %v1025, %v1056
        %v1122 = vand.u32 2147483647, %v1058
        %vm1123 = vcmp.le.f32.partialorder %v1122, 0.7853982
        %vm1124 = vcmp.lt.s32.totalorder %v1058, 0
        %v1125 = vand.u32 %v1058, 2139095040
        %v1126 = vshrl.u32 %v1125, 23
        %v1127 = vsub.s32 %v1126, 127
        %v1128 = vand.u32 2147483647, %v1058
        %v1129 = vand.u32 %v1128, 8388607
        %v1130 = vor.u32 %v1129, 8388608
        %v1131 = vsub.s32 0, %v1130
        %v1132 = vadd.s32 %v1127, 1
        %vm1133 = vcmp.gt.s32.totalorder %v1132, 0
        %v1134 = vsel %vm1133, %v1132, 0
        %v1135 = vshrl.u32 %v1134, 5
        %v1136 = vand.u32 %v1134, 31
        %v1137 = vsub.s32 32, %v1136
        %v1138 = vshrl.u32 683565275, %v1137
        %v1139 = vshll.u32 683565275, %v1136
        %v1140 = vshrl.u32 2475754826, %v1137
        %v1141 = vor.u32 %v1139, %v1140
        %v1142 = vshll.u32 2475754826, %v1136
        %v1143 = vshrl.u32 2131351028, %v1137
        %v1144 = vor.u32 %v1142, %v1143
        %v1145 = vshll.u32 2131351028, %v1136
        %v1146 = vshrl.u32 2102212464, %v1137
        %v1147 = vor.u32 %v1145, %v1146
        %v1148 = vshll.u32 2102212464, %v1136
        %v1149 = vshrl.u32 920167782, %v1137
        %v1150 = vor.u32 %v1148, %v1149
        %v1151 = vshll.u32 920167782, %v1136
        %v1152 = vshrl.u32 1326507024, %v1137
        %v1153 = vor.u32 %v1151, %v1152
        %vm1154 = vcmp.lt.s32.totalorder %v1135, 1
        %vm1155 = vcmp.lt.s32.totalorder %v1135, 2
        %vm1156 = vcmp.lt.s32.totalorder %v1135, 3
        %vm1157 = vcmp.lt.s32.totalorder %v1135, 4
        %v1158 = vsel %vm1154, %v1138, %v1141
        %v1159 = vsel %vm1157, %v1147, 2102212464
        %v1160 = vsel %vm1156, %v1144, %v1159
        %v1161 = vsel %vm1155, %v1158, %v1160
        %v1162 = vsel %vm1154, %v1141, %v1144
        %v1163 = vsel %vm1157, %v1150, 920167782
        %v1164 = vsel %vm1156, %v1147, %v1163
        %v1165 = vsel %vm1155, %v1162, %v1164
        %v1166 = vsel %vm1154, %v1144, %v1147
        %v1167 = vsel %vm1157, %v1153, 1326507024
        %v1168 = vsel %vm1156, %v1150, %v1167
        %v1169 = vsel %vm1155, %v1166, %v1168
        %v1170 = vshll.u32 %v1130, 8
        %v1171 = vmul.u32.u64.compose %v1170, %v1169
        %v1172 = vextract.low.u32 %v1171
        %v1173 = vextract.high.u32 %v1171
        %v1174 = vmul.u32.u64.compose %v1170, %v1165
        %v1175 = vextract.low.u32 %v1174
        %v1176 = vextract.high.u32 %v1174
        %v1177 = vmul.u32 %v1170, %v1161
        %v1178 = vadd.s32 %v1173, %v1175
        %vm1179 = vc.u32 %v1173, %v1175
        %v1180 = vadd.s32 %v1176, 1
        %v1181 = vsel %vm1179, %v1180, %v1176
        %v1182 = vadd.s32 %v1177, %v1181
        %v1183 = vadd.s32 %v1182, 536870912
        %v1184 = vshrl.u32 %v1183, 30
        %v1185 = vshll.u32 %v1184, 30
        %v1186 = vsub.s32 %v1182, %v1185
        %vm1187 = vcmp.lt.s32.totalorder %v1186, 0
        %v1188 = vsub.s32 0, %v1186
        %v1189 = vsel %vm1187, %v1188, %v1186
        %v1190 = vclz %v1189
        %v1191 = vsub.s32 %v1190, 2
        %vm1192 = vcmp.gt.s32.totalorder 0, %v1191
        %v1193 = vsel %vm1192, 0, %v1191
        %v1194 = vsub.s32 32, %v1193
        %v1195 = vshll.u32 %v1186, %v1193
        %v1196 = vshrl.u32 %v1178, %v1194
        %v1197 = vor.u32 %v1195, %v1196
        %v1198 = vsub.s32 4294967266, %v1193
        %v1199 = vadd.s32 %v1198, 127
        %v1200 = vshll.u32 %v1199, 23
        %v1201 = vor.u32 4788187, %v1200
        %v1202 = vand.u32 2147483647, %v1201
        %v1204 = vcvt.s32.f32 %v1197
        %v1205 = vmul.f32 %v1204, %v1202
        %v1206 = vxor.u32 %v1205, 2147483648
        %v1207 = vsel %vm1124, %v1206, %v1205
        %v1208 = vsub.s32 4, %v1184
        %v1209 = vsel %vm1124, %v1208, %v1184
        %v1210 = vsel %vm1123, %v1058, %v1207
        %v1211 = vsel %vm1123, 0, %v1209
        %v1212 = vcosq.f32.pop %v1210
        %v1213 = vsinq.f32.pop %v1210
        %vm1214 = vweird.f32 %v1058
        %v1215 = vadd.s32 %v1211, 3
        %v1216 = vand.u32 %v1215, 3
        %vm1217 = vcmp.lt.s32.totalorder %v1216, 2
        %vm1218 = vcmp.eq.s32.totalorder %v1216, 0
        %v1219 = vxor.u32 %v1213, 2147483648
        %v1220 = vsel %vm1218, %v1212, %v1219
        %vm1221 = vcmp.eq.s32.totalorder %v1216, 2
        %v1222 = vxor.u32 %v1212, 2147483648
        %v1223 = vsel %vm1221, %v1222, %v1213
        %v1224 = vsel %vm1217, %v1220, %v1223
        %v1225 = vsel %vm1214, nan, %v1224
        %v1226 = vand.u32 2147483647, %v1059
        %vm1227 = vcmp.le.f32.partialorder %v1226, 0.7853982
        %vm1228 = vcmp.lt.s32.totalorder %v1059, 0
        %v1229 = vand.u32 %v1059, 2139095040
        %v1230 = vshrl.u32 %v1229, 23
        %v1231 = vsub.s32 %v1230, 127
        %v1232 = vand.u32 2147483647, %v1059
        %v1233 = vand.u32 %v1232, 8388607
        %v1234 = vor.u32 %v1233, 8388608
        %v1235 = vsub.s32 0, %v1234
        %v1236 = vadd.s32 %v1231, 1
        %vm1237 = vcmp.gt.s32.totalorder %v1236, 0
        %v1238 = vsel %vm1237, %v1236, 0
        %v1239 = vshrl.u32 %v1238, 5
        %v1240 = vand.u32 %v1238, 31
        %v1241 = vsub.s32 32, %v1240
        %v1242 = vshrl.u32 683565275, %v1241
        %v1243 = vshll.u32 683565275, %v1240
        %v1244 = vshrl.u32 2475754826, %v1241
        %v1245 = vor.u32 %v1243, %v1244
        %v1246 = vshll.u32 2475754826, %v1240
        %v1247 = vshrl.u32 2131351028, %v1241
        %v1248 = vor.u32 %v1246, %v1247
        %v1249 = vshll.u32 2131351028, %v1240
        %v1250 = vshrl.u32 2102212464, %v1241
        %v1251 = vor.u32 %v1249, %v1250
        %v1252 = vshll.u32 2102212464, %v1240
        %v1253 = vshrl.u32 920167782, %v1241
        %v1254 = vor.u32 %v1252, %v1253
        %v1255 = vshll.u32 920167782, %v1240
        %v1256 = vshrl.u32 1326507024, %v1241
        %v1257 = vor.u32 %v1255, %v1256
        %vm1258 = vcmp.lt.s32.totalorder %v1239, 1
        %vm1259 = vcmp.lt.s32.totalorder %v1239, 2
        %vm1260 = vcmp.lt.s32.totalorder %v1239, 3
        %vm1261 = vcmp.lt.s32.totalorder %v1239, 4
        %v1262 = vsel %vm1258, %v1242, %v1245
        %v1263 = vsel %vm1261, %v1251, 2102212464
        %v1264 = vsel %vm1260, %v1248, %v1263
        %v1265 = vsel %vm1259, %v1262, %v1264
        %v1266 = vsel %vm1258, %v1245, %v1248
        %v1267 = vsel %vm1261, %v1254, 920167782
        %v1268 = vsel %vm1260, %v1251, %v1267
        %v1269 = vsel %vm1259, %v1266, %v1268
        %v1270 = vsel %vm1258, %v1248, %v1251
        %v1271 = vsel %vm1261, %v1257, 1326507024
        %v1272 = vsel %vm1260, %v1254, %v1271
        %v1273 = vsel %vm1259, %v1270, %v1272
        %v1274 = vshll.u32 %v1234, 8
        %v1275 = vmul.u32.u64.compose %v1274, %v1273
        %v1276 = vextract.low.u32 %v1275
        %v1277 = vextract.high.u32 %v1275
        %v1278 = vmul.u32.u64.compose %v1274, %v1269
        %v1279 = vextract.low.u32 %v1278
        %v1280 = vextract.high.u32 %v1278
        %v1281 = vmul.u32 %v1274, %v1265
        %v1282 = vadd.s32 %v1277, %v1279
        %vm1283 = vc.u32 %v1277, %v1279
        %v1284 = vadd.s32 %v1280, 1
        %v1285 = vsel %vm1283, %v1284, %v1280
        %v1286 = vadd.s32 %v1281, %v1285
        %v1287 = vadd.s32 %v1286, 536870912
        %v1288 = vshrl.u32 %v1287, 30
        %v1289 = vshll.u32 %v1288, 30
        %v1290 = vsub.s32 %v1286, %v1289
        %vm1291 = vcmp.lt.s32.totalorder %v1290, 0
        %v1292 = vsub.s32 0, %v1290
        %v1293 = vsel %vm1291, %v1292, %v1290
        %v1294 = vclz %v1293
        %v1295 = vsub.s32 %v1294, 2
        %vm1296 = vcmp.gt.s32.totalorder 0, %v1295
        %v1297 = vsel %vm1296, 0, %v1295
        %v1298 = vsub.s32 32, %v1297
        %v1299 = vshll.u32 %v1290, %v1297
        %v1300 = vshrl.u32 %v1282, %v1298
        %v1301 = vor.u32 %v1299, %v1300
        %v1302 = vsub.s32 4294967266, %v1297
        %v1303 = vadd.s32 %v1302, 127
        %v1304 = vshll.u32 %v1303, 23
        %v1305 = vor.u32 4788187, %v1304
        %v1306 = vand.u32 2147483647, %v1305
        %v1308 = vcvt.s32.f32 %v1301
        %v1309 = vmul.f32 %v1308, %v1306
        %v1310 = vxor.u32 %v1309, 2147483648
        %v1311 = vsel %vm1228, %v1310, %v1309
        %v1312 = vsub.s32 4, %v1288
        %v1313 = vsel %vm1228, %v1312, %v1288
        %v1314 = vsel %vm1227, %v1059, %v1311
        %v1315 = vsel %vm1227, 0, %v1313
        %v1316 = vcosq.f32.pop %v1314
        %v1317 = vsinq.f32.pop %v1314
        %vm1318 = vweird.f32 %v1059
        %v1319 = vadd.s32 %v1315, 3
        %v1320 = vand.u32 %v1319, 3
        %vm1321 = vcmp.lt.s32.totalorder %v1320, 2
        %vm1322 = vcmp.eq.s32.totalorder %v1320, 0
        %v1323 = vxor.u32 %v1317, 2147483648
        %v1324 = vsel %vm1322, %v1316, %v1323
        %vm1325 = vcmp.eq.s32.totalorder %v1320, 2
        %v1326 = vxor.u32 %v1316, 2147483648
        %v1327 = vsel %vm1325, %v1326, %v1317
        %v1328 = vsel %vm1321, %v1324, %v1327
        %v1329 = vsel %vm1318, nan, %v1328
        %v1330 = vand.u32 2147483647, %v1060
        %vm1331 = vcmp.le.f32.partialorder %v1330, 0.7853982
        %vm1332 = vcmp.lt.s32.totalorder %v1060, 0
        %v1333 = vand.u32 %v1060, 2139095040
        %v1334 = vshrl.u32 %v1333, 23
        %v1335 = vsub.s32 %v1334, 127
        %v1336 = vand.u32 2147483647, %v1060
        %v1337 = vand.u32 %v1336, 8388607
        %v1338 = vor.u32 %v1337, 8388608
        %v1339 = vsub.s32 0, %v1338
        %v1340 = vadd.s32 %v1335, 1
        %vm1341 = vcmp.gt.s32.totalorder %v1340, 0
        %v1342 = vsel %vm1341, %v1340, 0
        %v1343 = vshrl.u32 %v1342, 5
        %v1344 = vand.u32 %v1342, 31
        %v1345 = vsub.s32 32, %v1344
        %v1346 = vshrl.u32 683565275, %v1345
        %v1347 = vshll.u32 683565275, %v1344
        %v1348 = vshrl.u32 2475754826, %v1345
        %v1349 = vor.u32 %v1347, %v1348
        %v1350 = vshll.u32 2475754826, %v1344
        %v1351 = vshrl.u32 2131351028, %v1345
        %v1352 = vor.u32 %v1350, %v1351
        %v1353 = vshll.u32 2131351028, %v1344
        %v1354 = vshrl.u32 2102212464, %v1345
        %v1355 = vor.u32 %v1353, %v1354
        %v1356 = vshll.u32 2102212464, %v1344
        %v1357 = vshrl.u32 920167782, %v1345
        %v1358 = vor.u32 %v1356, %v1357
        %v1359 = vshll.u32 920167782, %v1344
        %v1360 = vshrl.u32 1326507024, %v1345
        %v1361 = vor.u32 %v1359, %v1360
        %vm1362 = vcmp.lt.s32.totalorder %v1343, 1
        %vm1363 = vcmp.lt.s32.totalorder %v1343, 2
        %vm1364 = vcmp.lt.s32.totalorder %v1343, 3
        %vm1365 = vcmp.lt.s32.totalorder %v1343, 4
        %v1366 = vsel %vm1362, %v1346, %v1349
        %v1367 = vsel %vm1365, %v1355, 2102212464
        %v1368 = vsel %vm1364, %v1352, %v1367
        %v1369 = vsel %vm1363, %v1366, %v1368
        %v1370 = vsel %vm1362, %v1349, %v1352
        %v1371 = vsel %vm1365, %v1358, 920167782
        %v1372 = vsel %vm1364, %v1355, %v1371
        %v1373 = vsel %vm1363, %v1370, %v1372
        %v1374 = vsel %vm1362, %v1352, %v1355
        %v1375 = vsel %vm1365, %v1361, 1326507024
        %v1376 = vsel %vm1364, %v1358, %v1375
        %v1377 = vsel %vm1363, %v1374, %v1376
        %v1378 = vshll.u32 %v1338, 8
        %v1379 = vmul.u32.u64.compose %v1378, %v1377
        %v1380 = vextract.low.u32 %v1379
        %v1381 = vextract.high.u32 %v1379
        %v1382 = vmul.u32.u64.compose %v1378, %v1373
        %v1383 = vextract.low.u32 %v1382
        %v1384 = vextract.high.u32 %v1382
        %v1385 = vmul.u32 %v1378, %v1369
        %v1386 = vadd.s32 %v1381, %v1383
        %vm1387 = vc.u32 %v1381, %v1383
        %v1388 = vadd.s32 %v1384, 1
        %v1389 = vsel %vm1387, %v1388, %v1384
        %v1390 = vadd.s32 %v1385, %v1389
        %v1391 = vadd.s32 %v1390, 536870912
        %v1392 = vshrl.u32 %v1391, 30
        %v1393 = vshll.u32 %v1392, 30
        %v1394 = vsub.s32 %v1390, %v1393
        %vm1395 = vcmp.lt.s32.totalorder %v1394, 0
        %v1396 = vsub.s32 0, %v1394
        %v1397 = vsel %vm1395, %v1396, %v1394
        %v1398 = vclz %v1397
        %v1399 = vsub.s32 %v1398, 2
        %vm1400 = vcmp.gt.s32.totalorder 0, %v1399
        %v1401 = vsel %vm1400, 0, %v1399
        %v1402 = vsub.s32 32, %v1401
        %v1403 = vshll.u32 %v1394, %v1401
        %v1404 = vshrl.u32 %v1386, %v1402
        %v1405 = vor.u32 %v1403, %v1404
        %v1406 = vsub.s32 4294967266, %v1401
        %v1407 = vadd.s32 %v1406, 127
        %v1408 = vshll.u32 %v1407, 23
        %v1409 = vor.u32 4788187, %v1408
        %v1410 = vand.u32 2147483647, %v1409
        %v1412 = vcvt.s32.f32 %v1405
        %v1413 = vmul.f32 %v1412, %v1410
        %v1414 = vxor.u32 %v1413, 2147483648
        %v1415 = vsel %vm1332, %v1414, %v1413
        %v1416 = vsub.s32 4, %v1392
        %v1417 = vsel %vm1332, %v1416, %v1392
        %v1418 = vsel %vm1331, %v1060, %v1415
        %v1419 = vsel %vm1331, 0, %v1417
        %v1420 = vcosq.f32.pop %v1418
        %v1421 = vsinq.f32.pop %v1418
        %vm1422 = vweird.f32 %v1060
        %v1423 = vadd.s32 %v1419, 3
        %v1424 = vand.u32 %v1423, 3
        %vm1425 = vcmp.lt.s32.totalorder %v1424, 2
        %vm1426 = vcmp.eq.s32.totalorder %v1424, 0
        %v1427 = vxor.u32 %v1421, 2147483648
        %v1428 = vsel %vm1426, %v1420, %v1427
        %vm1429 = vcmp.eq.s32.totalorder %v1424, 2
        %v1430 = vxor.u32 %v1420, 2147483648
        %v1431 = vsel %vm1429, %v1430, %v1421
        %v1432 = vsel %vm1425, %v1428, %v1431
        %v1433 = vsel %vm1422, nan, %v1432
        %v1434 = vand.u32 2147483647, %v1061
        %vm1435 = vcmp.le.f32.partialorder %v1434, 0.7853982
        %vm1436 = vcmp.lt.s32.totalorder %v1061, 0
        %v1437 = vand.u32 %v1061, 2139095040
        %v1438 = vshrl.u32 %v1437, 23
        %v1439 = vsub.s32 %v1438, 127
        %v1440 = vand.u32 2147483647, %v1061
        %v1441 = vand.u32 %v1440, 8388607
        %v1442 = vor.u32 %v1441, 8388608
        %v1443 = vsub.s32 0, %v1442
        %v1444 = vadd.s32 %v1439, 1
        %vm1445 = vcmp.gt.s32.totalorder %v1444, 0
        %v1446 = vsel %vm1445, %v1444, 0
        %v1447 = vshrl.u32 %v1446, 5
        %v1448 = vand.u32 %v1446, 31
        %v1449 = vsub.s32 32, %v1448
        %v1450 = vshrl.u32 683565275, %v1449
        %v1451 = vshll.u32 683565275, %v1448
        %v1452 = vshrl.u32 2475754826, %v1449
        %v1453 = vor.u32 %v1451, %v1452
        %v1454 = vshll.u32 2475754826, %v1448
        %v1455 = vshrl.u32 2131351028, %v1449
        %v1456 = vor.u32 %v1454, %v1455
        %v1457 = vshll.u32 2131351028, %v1448
        %v1458 = vshrl.u32 2102212464, %v1449
        %v1459 = vor.u32 %v1457, %v1458
        %v1460 = vshll.u32 2102212464, %v1448
        %v1461 = vshrl.u32 920167782, %v1449
        %v1462 = vor.u32 %v1460, %v1461
        %v1463 = vshll.u32 920167782, %v1448
        %v1464 = vshrl.u32 1326507024, %v1449
        %v1465 = vor.u32 %v1463, %v1464
        %vm1466 = vcmp.lt.s32.totalorder %v1447, 1
        %vm1467 = vcmp.lt.s32.totalorder %v1447, 2
        %vm1468 = vcmp.lt.s32.totalorder %v1447, 3
        %vm1469 = vcmp.lt.s32.totalorder %v1447, 4
        %v1470 = vsel %vm1466, %v1450, %v1453
        %v1471 = vsel %vm1469, %v1459, 2102212464
        %v1472 = vsel %vm1468, %v1456, %v1471
        %v1473 = vsel %vm1467, %v1470, %v1472
        %v1474 = vsel %vm1466, %v1453, %v1456
        %v1475 = vsel %vm1469, %v1462, 920167782
        %v1476 = vsel %vm1468, %v1459, %v1475
        %v1477 = vsel %vm1467, %v1474, %v1476
        %v1478 = vsel %vm1466, %v1456, %v1459
        %v1479 = vsel %vm1469, %v1465, 1326507024
        %v1480 = vsel %vm1468, %v1462, %v1479
        %v1481 = vsel %vm1467, %v1478, %v1480
        %v1482 = vshll.u32 %v1442, 8
        %v1483 = vmul.u32.u64.compose %v1482, %v1481
        %v1484 = vextract.low.u32 %v1483
        %v1485 = vextract.high.u32 %v1483
        %v1486 = vmul.u32.u64.compose %v1482, %v1477
        %v1487 = vextract.low.u32 %v1486
        %v1488 = vextract.high.u32 %v1486
        %v1489 = vmul.u32 %v1482, %v1473
        %v1490 = vadd.s32 %v1485, %v1487
        %vm1491 = vc.u32 %v1485, %v1487
        %v1492 = vadd.s32 %v1488, 1
        %v1493 = vsel %vm1491, %v1492, %v1488
        %v1494 = vadd.s32 %v1489, %v1493
        %v1495 = vadd.s32 %v1494, 536870912
        %v1496 = vshrl.u32 %v1495, 30
        %v1497 = vshll.u32 %v1496, 30
        %v1498 = vsub.s32 %v1494, %v1497
        %vm1499 = vcmp.lt.s32.totalorder %v1498, 0
        %v1500 = vsub.s32 0, %v1498
        %v1501 = vsel %vm1499, %v1500, %v1498
        %v1502 = vclz %v1501
        %v1503 = vsub.s32 %v1502, 2
        %vm1504 = vcmp.gt.s32.totalorder 0, %v1503
        %v1505 = vsel %vm1504, 0, %v1503
        %v1506 = vsub.s32 32, %v1505
        %v1507 = vshll.u32 %v1498, %v1505
        %v1508 = vshrl.u32 %v1490, %v1506
        %v1509 = vor.u32 %v1507, %v1508
        %v1510 = vsub.s32 4294967266, %v1505
        %v1511 = vadd.s32 %v1510, 127
        %v1512 = vshll.u32 %v1511, 23
        %v1513 = vor.u32 4788187, %v1512
        %v1514 = vand.u32 2147483647, %v1513
        %v1516 = vcvt.s32.f32 %v1509
        %v1517 = vmul.f32 %v1516, %v1514
        %v1518 = vxor.u32 %v1517, 2147483648
        %v1519 = vsel %vm1436, %v1518, %v1517
        %v1520 = vsub.s32 4, %v1496
        %v1521 = vsel %vm1436, %v1520, %v1496
        %v1522 = vsel %vm1435, %v1061, %v1519
        %v1523 = vsel %vm1435, 0, %v1521
        %v1524 = vcosq.f32.pop %v1522
        %v1525 = vsinq.f32.pop %v1522
        %vm1526 = vweird.f32 %v1061
        %v1527 = vadd.s32 %v1523, 3
        %v1528 = vand.u32 %v1527, 3
        %vm1529 = vcmp.lt.s32.totalorder %v1528, 2
        %vm1530 = vcmp.eq.s32.totalorder %v1528, 0
        %v1531 = vxor.u32 %v1525, 2147483648
        %v1532 = vsel %vm1530, %v1524, %v1531
        %vm1533 = vcmp.eq.s32.totalorder %v1528, 2
        %v1534 = vxor.u32 %v1524, 2147483648
        %v1535 = vsel %vm1533, %v1534, %v1525
        %v1536 = vsel %vm1529, %v1532, %v1535
        %v1537 = vsel %vm1526, nan, %v1536
        %v1538 = vand.u32 2147483647, %v1062
        %vm1539 = vcmp.le.f32.partialorder %v1538, 0.7853982
        %vm1540 = vcmp.lt.s32.totalorder %v1062, 0
        %v1541 = vand.u32 %v1062, 2139095040
        %v1542 = vshrl.u32 %v1541, 23
        %v1543 = vsub.s32 %v1542, 127
        %v1544 = vand.u32 2147483647, %v1062
        %v1545 = vand.u32 %v1544, 8388607
        %v1546 = vor.u32 %v1545, 8388608
        %v1547 = vsub.s32 0, %v1546
        %v1548 = vadd.s32 %v1543, 1
        %vm1549 = vcmp.gt.s32.totalorder %v1548, 0
        %v1550 = vsel %vm1549, %v1548, 0
        %v1551 = vshrl.u32 %v1550, 5
        %v1552 = vand.u32 %v1550, 31
        %v1553 = vsub.s32 32, %v1552
        %v1554 = vshrl.u32 683565275, %v1553
        %v1555 = vshll.u32 683565275, %v1552
        %v1556 = vshrl.u32 2475754826, %v1553
        %v1557 = vor.u32 %v1555, %v1556
        %v1558 = vshll.u32 2475754826, %v1552
        %v1559 = vshrl.u32 2131351028, %v1553
        %v1560 = vor.u32 %v1558, %v1559
        %v1561 = vshll.u32 2131351028, %v1552
        %v1562 = vshrl.u32 2102212464, %v1553
        %v1563 = vor.u32 %v1561, %v1562
        %v1564 = vshll.u32 2102212464, %v1552
        %v1565 = vshrl.u32 920167782, %v1553
        %v1566 = vor.u32 %v1564, %v1565
        %v1567 = vshll.u32 920167782, %v1552
        %v1568 = vshrl.u32 1326507024, %v1553
        %v1569 = vor.u32 %v1567, %v1568
        %vm1570 = vcmp.lt.s32.totalorder %v1551, 1
        %vm1571 = vcmp.lt.s32.totalorder %v1551, 2
        %vm1572 = vcmp.lt.s32.totalorder %v1551, 3
        %vm1573 = vcmp.lt.s32.totalorder %v1551, 4
        %v1574 = vsel %vm1570, %v1554, %v1557
        %v1575 = vsel %vm1573, %v1563, 2102212464
        %v1576 = vsel %vm1572, %v1560, %v1575
        %v1577 = vsel %vm1571, %v1574, %v1576
        %v1578 = vsel %vm1570, %v1557, %v1560
        %v1579 = vsel %vm1573, %v1566, 920167782
        %v1580 = vsel %vm1572, %v1563, %v1579
        %v1581 = vsel %vm1571, %v1578, %v1580
        %v1582 = vsel %vm1570, %v1560, %v1563
        %v1583 = vsel %vm1573, %v1569, 1326507024
        %v1584 = vsel %vm1572, %v1566, %v1583
        %v1585 = vsel %vm1571, %v1582, %v1584
        %v1586 = vshll.u32 %v1546, 8
        %v1587 = vmul.u32.u64.compose %v1586, %v1585
        %v1588 = vextract.low.u32 %v1587
        %v1589 = vextract.high.u32 %v1587
        %v1590 = vmul.u32.u64.compose %v1586, %v1581
        %v1591 = vextract.low.u32 %v1590
        %v1592 = vextract.high.u32 %v1590
        %v1593 = vmul.u32 %v1586, %v1577
        %v1594 = vadd.s32 %v1589, %v1591
        %vm1595 = vc.u32 %v1589, %v1591
        %v1596 = vadd.s32 %v1592, 1
        %v1597 = vsel %vm1595, %v1596, %v1592
        %v1598 = vadd.s32 %v1593, %v1597
        %v1599 = vadd.s32 %v1598, 536870912
        %v1600 = vshrl.u32 %v1599, 30
        %v1601 = vshll.u32 %v1600, 30
        %v1602 = vsub.s32 %v1598, %v1601
        %vm1603 = vcmp.lt.s32.totalorder %v1602, 0
        %v1604 = vsub.s32 0, %v1602
        %v1605 = vsel %vm1603, %v1604, %v1602
        %v1606 = vclz %v1605
        %v1607 = vsub.s32 %v1606, 2
        %vm1608 = vcmp.gt.s32.totalorder 0, %v1607
        %v1609 = vsel %vm1608, 0, %v1607
        %v1610 = vsub.s32 32, %v1609
        %v1611 = vshll.u32 %v1602, %v1609
        %v1612 = vshrl.u32 %v1594, %v1610
        %v1613 = vor.u32 %v1611, %v1612
        %v1614 = vsub.s32 4294967266, %v1609
        %v1615 = vadd.s32 %v1614, 127
        %v1616 = vshll.u32 %v1615, 23
        %v1617 = vor.u32 4788187, %v1616
        %v1618 = vand.u32 2147483647, %v1617
        %v1620 = vcvt.s32.f32 %v1613
        %v1621 = vmul.f32 %v1620, %v1618
        %v1622 = vxor.u32 %v1621, 2147483648
        %v1623 = vsel %vm1540, %v1622, %v1621
        %v1624 = vsub.s32 4, %v1600
        %v1625 = vsel %vm1540, %v1624, %v1600
        %v1626 = vsel %vm1539, %v1062, %v1623
        %v1627 = vsel %vm1539, 0, %v1625
        %v1628 = vcosq.f32.pop %v1626
        %v1629 = vsinq.f32.pop %v1626
        %vm1630 = vweird.f32 %v1062
        %v1631 = vadd.s32 %v1627, 3
        %v1632 = vand.u32 %v1631, 3
        %vm1633 = vcmp.lt.s32.totalorder %v1632, 2
        %vm1634 = vcmp.eq.s32.totalorder %v1632, 0
        %v1635 = vxor.u32 %v1629, 2147483648
        %v1636 = vsel %vm1634, %v1628, %v1635
        %vm1637 = vcmp.eq.s32.totalorder %v1632, 2
        %v1638 = vxor.u32 %v1628, 2147483648
        %v1639 = vsel %vm1637, %v1638, %v1629
        %v1640 = vsel %vm1633, %v1636, %v1639
        %v1641 = vsel %vm1630, nan, %v1640
        %v1642 = vand.u32 2147483647, %v1063
        %vm1643 = vcmp.le.f32.partialorder %v1642, 0.7853982
        %vm1644 = vcmp.lt.s32.totalorder %v1063, 0
        %v1645 = vand.u32 %v1063, 2139095040
        %v1646 = vshrl.u32 %v1645, 23
        %v1647 = vsub.s32 %v1646, 127
        %v1648 = vand.u32 2147483647, %v1063
        %v1649 = vand.u32 %v1648, 8388607
        %v1650 = vor.u32 %v1649, 8388608
        %v1651 = vsub.s32 0, %v1650
        %v1652 = vadd.s32 %v1647, 1
        %vm1653 = vcmp.gt.s32.totalorder %v1652, 0
        %v1654 = vsel %vm1653, %v1652, 0
        %v1655 = vshrl.u32 %v1654, 5
        %v1656 = vand.u32 %v1654, 31
        %v1657 = vsub.s32 32, %v1656
        %v1658 = vshrl.u32 683565275, %v1657
        %v1659 = vshll.u32 683565275, %v1656
        %v1660 = vshrl.u32 2475754826, %v1657
        %v1661 = vor.u32 %v1659, %v1660
        %v1662 = vshll.u32 2475754826, %v1656
        %v1663 = vshrl.u32 2131351028, %v1657
        %v1664 = vor.u32 %v1662, %v1663
        %v1665 = vshll.u32 2131351028, %v1656
        %v1666 = vshrl.u32 2102212464, %v1657
        %v1667 = vor.u32 %v1665, %v1666
        %v1668 = vshll.u32 2102212464, %v1656
        %v1669 = vshrl.u32 920167782, %v1657
        %v1670 = vor.u32 %v1668, %v1669
        %v1671 = vshll.u32 920167782, %v1656
        %v1672 = vshrl.u32 1326507024, %v1657
        %v1673 = vor.u32 %v1671, %v1672
        %vm1674 = vcmp.lt.s32.totalorder %v1655, 1
        %vm1675 = vcmp.lt.s32.totalorder %v1655, 2
        %vm1676 = vcmp.lt.s32.totalorder %v1655, 3
        %vm1677 = vcmp.lt.s32.totalorder %v1655, 4
        %v1678 = vsel %vm1674, %v1658, %v1661
        %v1679 = vsel %vm1677, %v1667, 2102212464
        %v1680 = vsel %vm1676, %v1664, %v1679
        %v1681 = vsel %vm1675, %v1678, %v1680
        %v1682 = vsel %vm1674, %v1661, %v1664
        %v1683 = vsel %vm1677, %v1670, 920167782
        %v1684 = vsel %vm1676, %v1667, %v1683
        %v1685 = vsel %vm1675, %v1682, %v1684
        %v1686 = vsel %vm1674, %v1664, %v1667
        %v1687 = vsel %vm1677, %v1673, 1326507024
        %v1688 = vsel %vm1676, %v1670, %v1687
        %v1689 = vsel %vm1675, %v1686, %v1688
        %v1690 = vshll.u32 %v1650, 8
        %v1691 = vmul.u32.u64.compose %v1690, %v1689
        %v1692 = vextract.low.u32 %v1691
        %v1693 = vextract.high.u32 %v1691
        %v1694 = vmul.u32.u64.compose %v1690, %v1685
        %v1695 = vextract.low.u32 %v1694
        %v1696 = vextract.high.u32 %v1694
        %v1697 = vmul.u32 %v1690, %v1681
        %v1698 = vadd.s32 %v1693, %v1695
        %vm1699 = vc.u32 %v1693, %v1695
        %v1700 = vadd.s32 %v1696, 1
        %v1701 = vsel %vm1699, %v1700, %v1696
        %v1702 = vadd.s32 %v1697, %v1701
        %v1703 = vadd.s32 %v1702, 536870912
        %v1704 = vshrl.u32 %v1703, 30
        %v1705 = vshll.u32 %v1704, 30
        %v1706 = vsub.s32 %v1702, %v1705
        %vm1707 = vcmp.lt.s32.totalorder %v1706, 0
        %v1708 = vsub.s32 0, %v1706
        %v1709 = vsel %vm1707, %v1708, %v1706
        %v1710 = vclz %v1709
        %v1711 = vsub.s32 %v1710, 2
        %vm1712 = vcmp.gt.s32.totalorder 0, %v1711
        %v1713 = vsel %vm1712, 0, %v1711
        %v1714 = vsub.s32 32, %v1713
        %v1715 = vshll.u32 %v1706, %v1713
        %v1716 = vshrl.u32 %v1698, %v1714
        %v1717 = vor.u32 %v1715, %v1716
        %v1718 = vsub.s32 4294967266, %v1713
        %v1719 = vadd.s32 %v1718, 127
        %v1720 = vshll.u32 %v1719, 23
        %v1721 = vor.u32 4788187, %v1720
        %v1722 = vand.u32 2147483647, %v1721
        %v1724 = vcvt.s32.f32 %v1717
        %v1725 = vmul.f32 %v1724, %v1722
        %v1726 = vxor.u32 %v1725, 2147483648
        %v1727 = vsel %vm1644, %v1726, %v1725
        %v1728 = vsub.s32 4, %v1704
        %v1729 = vsel %vm1644, %v1728, %v1704
        %v1730 = vsel %vm1643, %v1063, %v1727
        %v1731 = vsel %vm1643, 0, %v1729
        %v1732 = vcosq.f32.pop %v1730
        %v1733 = vsinq.f32.pop %v1730
        %vm1734 = vweird.f32 %v1063
        %v1735 = vadd.s32 %v1731, 3
        %v1736 = vand.u32 %v1735, 3
        %vm1737 = vcmp.lt.s32.totalorder %v1736, 2
        %vm1738 = vcmp.eq.s32.totalorder %v1736, 0
        %v1739 = vxor.u32 %v1733, 2147483648
        %v1740 = vsel %vm1738, %v1732, %v1739
        %vm1741 = vcmp.eq.s32.totalorder %v1736, 2
        %v1742 = vxor.u32 %v1732, 2147483648
        %v1743 = vsel %vm1741, %v1742, %v1733
        %v1744 = vsel %vm1737, %v1740, %v1743
        %v1745 = vsel %vm1734, nan, %v1744
        %v1746 = vand.u32 2147483647, %v1064
        %vm1747 = vcmp.le.f32.partialorder %v1746, 0.7853982
        %vm1748 = vcmp.lt.s32.totalorder %v1064, 0
        %v1749 = vand.u32 %v1064, 2139095040
        %v1750 = vshrl.u32 %v1749, 23
        %v1751 = vsub.s32 %v1750, 127
        %v1752 = vand.u32 2147483647, %v1064
        %v1753 = vand.u32 %v1752, 8388607
        %v1754 = vor.u32 %v1753, 8388608
        %v1755 = vsub.s32 0, %v1754
        %v1756 = vadd.s32 %v1751, 1
        %vm1757 = vcmp.gt.s32.totalorder %v1756, 0
        %v1758 = vsel %vm1757, %v1756, 0
        %v1759 = vshrl.u32 %v1758, 5
        %v1760 = vand.u32 %v1758, 31
        %v1761 = vsub.s32 32, %v1760
        %v1762 = vshrl.u32 683565275, %v1761
        %v1763 = vshll.u32 683565275, %v1760
        %v1764 = vshrl.u32 2475754826, %v1761
        %v1765 = vor.u32 %v1763, %v1764
        %v1766 = vshll.u32 2475754826, %v1760
        %v1767 = vshrl.u32 2131351028, %v1761
        %v1768 = vor.u32 %v1766, %v1767
        %v1769 = vshll.u32 2131351028, %v1760
        %v1770 = vshrl.u32 2102212464, %v1761
        %v1771 = vor.u32 %v1769, %v1770
        %v1772 = vshll.u32 2102212464, %v1760
        %v1773 = vshrl.u32 920167782, %v1761
        %v1774 = vor.u32 %v1772, %v1773
        %v1775 = vshll.u32 920167782, %v1760
        %v1776 = vshrl.u32 1326507024, %v1761
        %v1777 = vor.u32 %v1775, %v1776
        %vm1778 = vcmp.lt.s32.totalorder %v1759, 1
        %vm1779 = vcmp.lt.s32.totalorder %v1759, 2
        %vm1780 = vcmp.lt.s32.totalorder %v1759, 3
        %vm1781 = vcmp.lt.s32.totalorder %v1759, 4
        %v1782 = vsel %vm1778, %v1762, %v1765
        %v1783 = vsel %vm1781, %v1771, 2102212464
        %v1784 = vsel %vm1780, %v1768, %v1783
        %v1785 = vsel %vm1779, %v1782, %v1784
        %v1786 = vsel %vm1778, %v1765, %v1768
        %v1787 = vsel %vm1781, %v1774, 920167782
        %v1788 = vsel %vm1780, %v1771, %v1787
        %v1789 = vsel %vm1779, %v1786, %v1788
        %v1790 = vsel %vm1778, %v1768, %v1771
        %v1791 = vsel %vm1781, %v1777, 1326507024
        %v1792 = vsel %vm1780, %v1774, %v1791
        %v1793 = vsel %vm1779, %v1790, %v1792
        %v1794 = vshll.u32 %v1754, 8
        %v1795 = vmul.u32.u64.compose %v1794, %v1793
        %v1796 = vextract.low.u32 %v1795
        %v1797 = vextract.high.u32 %v1795
        %v1798 = vmul.u32.u64.compose %v1794, %v1789
        %v1799 = vextract.low.u32 %v1798
        %v1800 = vextract.high.u32 %v1798
        %v1801 = vmul.u32 %v1794, %v1785
        %v1802 = vadd.s32 %v1797, %v1799
        %vm1803 = vc.u32 %v1797, %v1799
        %v1804 = vadd.s32 %v1800, 1
        %v1805 = vsel %vm1803, %v1804, %v1800
        %v1806 = vadd.s32 %v1801, %v1805
        %v1807 = vadd.s32 %v1806, 536870912
        %v1808 = vshrl.u32 %v1807, 30
        %v1809 = vshll.u32 %v1808, 30
        %v1810 = vsub.s32 %v1806, %v1809
        %vm1811 = vcmp.lt.s32.totalorder %v1810, 0
        %v1812 = vsub.s32 0, %v1810
        %v1813 = vsel %vm1811, %v1812, %v1810
        %v1814 = vclz %v1813
        %v1815 = vsub.s32 %v1814, 2
        %vm1816 = vcmp.gt.s32.totalorder 0, %v1815
        %v1817 = vsel %vm1816, 0, %v1815
        %v1818 = vsub.s32 32, %v1817
        %v1819 = vshll.u32 %v1810, %v1817
        %v1820 = vshrl.u32 %v1802, %v1818
        %v1821 = vor.u32 %v1819, %v1820
        %v1822 = vsub.s32 4294967266, %v1817
        %v1823 = vadd.s32 %v1822, 127
        %v1824 = vshll.u32 %v1823, 23
        %v1825 = vor.u32 4788187, %v1824
        %v1826 = vand.u32 2147483647, %v1825
        %v1828 = vcvt.s32.f32 %v1821
        %v1829 = vmul.f32 %v1828, %v1826
        %v1830 = vxor.u32 %v1829, 2147483648
        %v1831 = vsel %vm1748, %v1830, %v1829
        %v1832 = vsub.s32 4, %v1808
        %v1833 = vsel %vm1748, %v1832, %v1808
        %v1834 = vsel %vm1747, %v1064, %v1831
        %v1835 = vsel %vm1747, 0, %v1833
        %v1836 = vcosq.f32.pop %v1834
        %v1837 = vsinq.f32.pop %v1834
        %vm1838 = vweird.f32 %v1064
        %v1839 = vadd.s32 %v1835, 3
        %v1840 = vand.u32 %v1839, 3
        %vm1841 = vcmp.lt.s32.totalorder %v1840, 2
        %vm1842 = vcmp.eq.s32.totalorder %v1840, 0
        %v1843 = vxor.u32 %v1837, 2147483648
        %v1844 = vsel %vm1842, %v1836, %v1843
        %vm1845 = vcmp.eq.s32.totalorder %v1840, 2
        %v1846 = vxor.u32 %v1836, 2147483648
        %v1847 = vsel %vm1845, %v1846, %v1837
        %v1848 = vsel %vm1841, %v1844, %v1847
        %v1849 = vsel %vm1838, nan, %v1848
        %v1850 = vand.u32 2147483647, %v1065
        %vm1851 = vcmp.le.f32.partialorder %v1850, 0.7853982
        %vm1852 = vcmp.lt.s32.totalorder %v1065, 0
        %v1853 = vand.u32 %v1065, 2139095040
        %v1854 = vshrl.u32 %v1853, 23
        %v1855 = vsub.s32 %v1854, 127
        %v1856 = vand.u32 2147483647, %v1065
        %v1857 = vand.u32 %v1856, 8388607
        %v1858 = vor.u32 %v1857, 8388608
        %v1859 = vsub.s32 0, %v1858
        %v1860 = vadd.s32 %v1855, 1
        %vm1861 = vcmp.gt.s32.totalorder %v1860, 0
        %v1862 = vsel %vm1861, %v1860, 0
        %v1863 = vshrl.u32 %v1862, 5
        %v1864 = vand.u32 %v1862, 31
        %v1865 = vsub.s32 32, %v1864
        %v1866 = vshrl.u32 683565275, %v1865
        %v1867 = vshll.u32 683565275, %v1864
        %v1868 = vshrl.u32 2475754826, %v1865
        %v1869 = vor.u32 %v1867, %v1868
        %v1870 = vshll.u32 2475754826, %v1864
        %v1871 = vshrl.u32 2131351028, %v1865
        %v1872 = vor.u32 %v1870, %v1871
        %v1873 = vshll.u32 2131351028, %v1864
        %v1874 = vshrl.u32 2102212464, %v1865
        %v1875 = vor.u32 %v1873, %v1874
        %v1876 = vshll.u32 2102212464, %v1864
        %v1877 = vshrl.u32 920167782, %v1865
        %v1878 = vor.u32 %v1876, %v1877
        %v1879 = vshll.u32 920167782, %v1864
        %v1880 = vshrl.u32 1326507024, %v1865
        %v1881 = vor.u32 %v1879, %v1880
        %vm1882 = vcmp.lt.s32.totalorder %v1863, 1
        %vm1883 = vcmp.lt.s32.totalorder %v1863, 2
        %vm1884 = vcmp.lt.s32.totalorder %v1863, 3
        %vm1885 = vcmp.lt.s32.totalorder %v1863, 4
        %v1886 = vsel %vm1882, %v1866, %v1869
        %v1887 = vsel %vm1885, %v1875, 2102212464
        %v1888 = vsel %vm1884, %v1872, %v1887
        %v1889 = vsel %vm1883, %v1886, %v1888
        %v1890 = vsel %vm1882, %v1869, %v1872
        %v1891 = vsel %vm1885, %v1878, 920167782
        %v1892 = vsel %vm1884, %v1875, %v1891
        %v1893 = vsel %vm1883, %v1890, %v1892
        %v1894 = vsel %vm1882, %v1872, %v1875
        %v1895 = vsel %vm1885, %v1881, 1326507024
        %v1896 = vsel %vm1884, %v1878, %v1895
        %v1897 = vsel %vm1883, %v1894, %v1896
        %v1898 = vshll.u32 %v1858, 8
        %v1899 = vmul.u32.u64.compose %v1898, %v1897
        %v1900 = vextract.low.u32 %v1899
        %v1901 = vextract.high.u32 %v1899
        %v1902 = vmul.u32.u64.compose %v1898, %v1893
        %v1903 = vextract.low.u32 %v1902
        %v1904 = vextract.high.u32 %v1902
        %v1905 = vmul.u32 %v1898, %v1889
        %v1906 = vadd.s32 %v1901, %v1903
        %vm1907 = vc.u32 %v1901, %v1903
        %v1908 = vadd.s32 %v1904, 1
        %v1909 = vsel %vm1907, %v1908, %v1904
        %v1910 = vadd.s32 %v1905, %v1909
        %v1911 = vadd.s32 %v1910, 536870912
        %v1912 = vshrl.u32 %v1911, 30
        %v1913 = vshll.u32 %v1912, 30
        %v1914 = vsub.s32 %v1910, %v1913
        %vm1915 = vcmp.lt.s32.totalorder %v1914, 0
        %v1916 = vsub.s32 0, %v1914
        %v1917 = vsel %vm1915, %v1916, %v1914
        %v1918 = vclz %v1917
        %v1919 = vsub.s32 %v1918, 2
        %vm1920 = vcmp.gt.s32.totalorder 0, %v1919
        %v1921 = vsel %vm1920, 0, %v1919
        %v1922 = vsub.s32 32, %v1921
        %v1923 = vshll.u32 %v1914, %v1921
        %v1924 = vshrl.u32 %v1906, %v1922
        %v1925 = vor.u32 %v1923, %v1924
        %v1926 = vsub.s32 4294967266, %v1921
        %v1927 = vadd.s32 %v1926, 127
        %v1928 = vshll.u32 %v1927, 23
        %v1929 = vor.u32 4788187, %v1928
        %v1930 = vand.u32 2147483647, %v1929
        %v1932 = vcvt.s32.f32 %v1925
        %v1933 = vmul.f32 %v1932, %v1930
        %v1934 = vxor.u32 %v1933, 2147483648
        %v1935 = vsel %vm1852, %v1934, %v1933
        %v1936 = vsub.s32 4, %v1912
        %v1937 = vsel %vm1852, %v1936, %v1912
        %v1938 = vsel %vm1851, %v1065, %v1935
        %v1939 = vsel %vm1851, 0, %v1937
        %v1940 = vcosq.f32.pop %v1938
        %v1941 = vsinq.f32.pop %v1938
        %vm1942 = vweird.f32 %v1065
        %v1943 = vadd.s32 %v1939, 3
        %v1944 = vand.u32 %v1943, 3
        %vm1945 = vcmp.lt.s32.totalorder %v1944, 2
        %vm1946 = vcmp.eq.s32.totalorder %v1944, 0
        %v1947 = vxor.u32 %v1941, 2147483648
        %v1948 = vsel %vm1946, %v1940, %v1947
        %vm1949 = vcmp.eq.s32.totalorder %v1944, 2
        %v1950 = vxor.u32 %v1940, 2147483648
        %v1951 = vsel %vm1949, %v1950, %v1941
        %v1952 = vsel %vm1945, %v1948, %v1951
        %v1953 = vsel %vm1942, nan, %v1952
        %v1954 = vand.u32 2147483647, %v1066
        %vm1955 = vcmp.le.f32.partialorder %v1954, 0.7853982
        %vm1956 = vcmp.lt.s32.totalorder %v1066, 0
        %v1957 = vand.u32 %v1066, 2139095040
        %v1958 = vshrl.u32 %v1957, 23
        %v1959 = vsub.s32 %v1958, 127
        %v1960 = vand.u32 2147483647, %v1066
        %v1961 = vand.u32 %v1960, 8388607
        %v1962 = vor.u32 %v1961, 8388608
        %v1963 = vsub.s32 0, %v1962
        %v1964 = vadd.s32 %v1959, 1
        %vm1965 = vcmp.gt.s32.totalorder %v1964, 0
        %v1966 = vsel %vm1965, %v1964, 0
        %v1967 = vshrl.u32 %v1966, 5
        %v1968 = vand.u32 %v1966, 31
        %v1969 = vsub.s32 32, %v1968
        %v1970 = vshrl.u32 683565275, %v1969
        %v1971 = vshll.u32 683565275, %v1968
        %v1972 = vshrl.u32 2475754826, %v1969
        %v1973 = vor.u32 %v1971, %v1972
        %v1974 = vshll.u32 2475754826, %v1968
        %v1975 = vshrl.u32 2131351028, %v1969
        %v1976 = vor.u32 %v1974, %v1975
        %v1977 = vshll.u32 2131351028, %v1968
        %v1978 = vshrl.u32 2102212464, %v1969
        %v1979 = vor.u32 %v1977, %v1978
        %v1980 = vshll.u32 2102212464, %v1968
        %v1981 = vshrl.u32 920167782, %v1969
        %v1982 = vor.u32 %v1980, %v1981
        %v1983 = vshll.u32 920167782, %v1968
        %v1984 = vshrl.u32 1326507024, %v1969
        %v1985 = vor.u32 %v1983, %v1984
        %vm1986 = vcmp.lt.s32.totalorder %v1967, 1
        %vm1987 = vcmp.lt.s32.totalorder %v1967, 2
        %vm1988 = vcmp.lt.s32.totalorder %v1967, 3
        %vm1989 = vcmp.lt.s32.totalorder %v1967, 4
        %v1990 = vsel %vm1986, %v1970, %v1973
        %v1991 = vsel %vm1989, %v1979, 2102212464
        %v1992 = vsel %vm1988, %v1976, %v1991
        %v1993 = vsel %vm1987, %v1990, %v1992
        %v1994 = vsel %vm1986, %v1973, %v1976
        %v1995 = vsel %vm1989, %v1982, 920167782
        %v1996 = vsel %vm1988, %v1979, %v1995
        %v1997 = vsel %vm1987, %v1994, %v1996
        %v1998 = vsel %vm1986, %v1976, %v1979
        %v1999 = vsel %vm1989, %v1985, 1326507024
        %v2000 = vsel %vm1988, %v1982, %v1999
        %v2001 = vsel %vm1987, %v1998, %v2000
        %v2002 = vshll.u32 %v1962, 8
        %v2003 = vmul.u32.u64.compose %v2002, %v2001
        %v2004 = vextract.low.u32 %v2003
        %v2005 = vextract.high.u32 %v2003
        %v2006 = vmul.u32.u64.compose %v2002, %v1997
        %v2007 = vextract.low.u32 %v2006
        %v2008 = vextract.high.u32 %v2006
        %v2009 = vmul.u32 %v2002, %v1993
        %v2010 = vadd.s32 %v2005, %v2007
        %vm2011 = vc.u32 %v2005, %v2007
        %v2012 = vadd.s32 %v2008, 1
        %v2013 = vsel %vm2011, %v2012, %v2008
        %v2014 = vadd.s32 %v2009, %v2013
        %v2015 = vadd.s32 %v2014, 536870912
        %v2016 = vshrl.u32 %v2015, 30
        %v2017 = vshll.u32 %v2016, 30
        %v2018 = vsub.s32 %v2014, %v2017
        %vm2019 = vcmp.lt.s32.totalorder %v2018, 0
        %v2020 = vsub.s32 0, %v2018
        %v2021 = vsel %vm2019, %v2020, %v2018
        %v2022 = vclz %v2021
        %v2023 = vsub.s32 %v2022, 2
        %vm2024 = vcmp.gt.s32.totalorder 0, %v2023
        %v2025 = vsel %vm2024, 0, %v2023
        %v2026 = vsub.s32 32, %v2025
        %v2027 = vshll.u32 %v2018, %v2025
        %v2028 = vshrl.u32 %v2010, %v2026
        %v2029 = vor.u32 %v2027, %v2028
        %v2030 = vsub.s32 4294967266, %v2025
        %v2031 = vadd.s32 %v2030, 127
        %v2032 = vshll.u32 %v2031, 23
        %v2033 = vor.u32 4788187, %v2032
        %v2034 = vand.u32 2147483647, %v2033
        %v2036 = vcvt.s32.f32 %v2029
        %v2037 = vmul.f32 %v2036, %v2034
        %v2038 = vxor.u32 %v2037, 2147483648
        %v2039 = vsel %vm1956, %v2038, %v2037
        %v2040 = vsub.s32 4, %v2016
        %v2041 = vsel %vm1956, %v2040, %v2016
        %v2042 = vsel %vm1955, %v1066, %v2039
        %v2043 = vsel %vm1955, 0, %v2041
        %v2044 = vcosq.f32.pop %v2042
        %v2045 = vsinq.f32.pop %v2042
        %vm2046 = vweird.f32 %v1066
        %v2047 = vadd.s32 %v2043, 3
        %v2048 = vand.u32 %v2047, 3
        %vm2049 = vcmp.lt.s32.totalorder %v2048, 2
        %vm2050 = vcmp.eq.s32.totalorder %v2048, 0
        %v2051 = vxor.u32 %v2045, 2147483648
        %v2052 = vsel %vm2050, %v2044, %v2051
        %vm2053 = vcmp.eq.s32.totalorder %v2048, 2
        %v2054 = vxor.u32 %v2044, 2147483648
        %v2055 = vsel %vm2053, %v2054, %v2045
        %v2056 = vsel %vm2049, %v2052, %v2055
        %v2057 = vsel %vm2046, nan, %v2056
        %v2058 = vand.u32 2147483647, %v1067
        %vm2059 = vcmp.le.f32.partialorder %v2058, 0.7853982
        %vm2060 = vcmp.lt.s32.totalorder %v1067, 0
        %v2061 = vand.u32 %v1067, 2139095040
        %v2062 = vshrl.u32 %v2061, 23
        %v2063 = vsub.s32 %v2062, 127
        %v2064 = vand.u32 2147483647, %v1067
        %v2065 = vand.u32 %v2064, 8388607
        %v2066 = vor.u32 %v2065, 8388608
        %v2067 = vsub.s32 0, %v2066
        %v2068 = vadd.s32 %v2063, 1
        %vm2069 = vcmp.gt.s32.totalorder %v2068, 0
        %v2070 = vsel %vm2069, %v2068, 0
        %v2071 = vshrl.u32 %v2070, 5
        %v2072 = vand.u32 %v2070, 31
        %v2073 = vsub.s32 32, %v2072
        %v2074 = vshrl.u32 683565275, %v2073
        %v2075 = vshll.u32 683565275, %v2072
        %v2076 = vshrl.u32 2475754826, %v2073
        %v2077 = vor.u32 %v2075, %v2076
        %v2078 = vshll.u32 2475754826, %v2072
        %v2079 = vshrl.u32 2131351028, %v2073
        %v2080 = vor.u32 %v2078, %v2079
        %v2081 = vshll.u32 2131351028, %v2072
        %v2082 = vshrl.u32 2102212464, %v2073
        %v2083 = vor.u32 %v2081, %v2082
        %v2084 = vshll.u32 2102212464, %v2072
        %v2085 = vshrl.u32 920167782, %v2073
        %v2086 = vor.u32 %v2084, %v2085
        %v2087 = vshll.u32 920167782, %v2072
        %v2088 = vshrl.u32 1326507024, %v2073
        %v2089 = vor.u32 %v2087, %v2088
        %vm2090 = vcmp.lt.s32.totalorder %v2071, 1
        %vm2091 = vcmp.lt.s32.totalorder %v2071, 2
        %vm2092 = vcmp.lt.s32.totalorder %v2071, 3
        %vm2093 = vcmp.lt.s32.totalorder %v2071, 4
        %v2094 = vsel %vm2090, %v2074, %v2077
        %v2095 = vsel %vm2093, %v2083, 2102212464
        %v2096 = vsel %vm2092, %v2080, %v2095
        %v2097 = vsel %vm2091, %v2094, %v2096
        %v2098 = vsel %vm2090, %v2077, %v2080
        %v2099 = vsel %vm2093, %v2086, 920167782
        %v2100 = vsel %vm2092, %v2083, %v2099
        %v2101 = vsel %vm2091, %v2098, %v2100
        %v2102 = vsel %vm2090, %v2080, %v2083
        %v2103 = vsel %vm2093, %v2089, 1326507024
        %v2104 = vsel %vm2092, %v2086, %v2103
        %v2105 = vsel %vm2091, %v2102, %v2104
        %v2106 = vshll.u32 %v2066, 8
        %v2107 = vmul.u32.u64.compose %v2106, %v2105
        %v2108 = vextract.low.u32 %v2107
        %v2109 = vextract.high.u32 %v2107
        %v2110 = vmul.u32.u64.compose %v2106, %v2101
        %v2111 = vextract.low.u32 %v2110
        %v2112 = vextract.high.u32 %v2110
        %v2113 = vmul.u32 %v2106, %v2097
        %v2114 = vadd.s32 %v2109, %v2111
        %vm2115 = vc.u32 %v2109, %v2111
        %v2116 = vadd.s32 %v2112, 1
        %v2117 = vsel %vm2115, %v2116, %v2112
        %v2118 = vadd.s32 %v2113, %v2117
        %v2119 = vadd.s32 %v2118, 536870912
        %v2120 = vshrl.u32 %v2119, 30
        %v2121 = vshll.u32 %v2120, 30
        %v2122 = vsub.s32 %v2118, %v2121
        %vm2123 = vcmp.lt.s32.totalorder %v2122, 0
        %v2124 = vsub.s32 0, %v2122
        %v2125 = vsel %vm2123, %v2124, %v2122
        %v2126 = vclz %v2125
        %v2127 = vsub.s32 %v2126, 2
        %vm2128 = vcmp.gt.s32.totalorder 0, %v2127
        %v2129 = vsel %vm2128, 0, %v2127
        %v2130 = vsub.s32 32, %v2129
        %v2131 = vshll.u32 %v2122, %v2129
        %v2132 = vshrl.u32 %v2114, %v2130
        %v2133 = vor.u32 %v2131, %v2132
        %v2134 = vsub.s32 4294967266, %v2129
        %v2135 = vadd.s32 %v2134, 127
        %v2136 = vshll.u32 %v2135, 23
        %v2137 = vor.u32 4788187, %v2136
        %v2138 = vand.u32 2147483647, %v2137
        %v2140 = vcvt.s32.f32 %v2133
        %v2141 = vmul.f32 %v2140, %v2138
        %v2142 = vxor.u32 %v2141, 2147483648
        %v2143 = vsel %vm2060, %v2142, %v2141
        %v2144 = vsub.s32 4, %v2120
        %v2145 = vsel %vm2060, %v2144, %v2120
        %v2146 = vsel %vm2059, %v1067, %v2143
        %v2147 = vsel %vm2059, 0, %v2145
        %v2148 = vcosq.f32.pop %v2146
        %v2149 = vsinq.f32.pop %v2146
        %vm2150 = vweird.f32 %v1067
        %v2151 = vadd.s32 %v2147, 3
        %v2152 = vand.u32 %v2151, 3
        %vm2153 = vcmp.lt.s32.totalorder %v2152, 2
        %vm2154 = vcmp.eq.s32.totalorder %v2152, 0
        %v2155 = vxor.u32 %v2149, 2147483648
        %v2156 = vsel %vm2154, %v2148, %v2155
        %vm2157 = vcmp.eq.s32.totalorder %v2152, 2
        %v2158 = vxor.u32 %v2148, 2147483648
        %v2159 = vsel %vm2157, %v2158, %v2149
        %v2160 = vsel %vm2153, %v2156, %v2159
        %v2161 = vsel %vm2150, nan, %v2160
        %v2162 = vand.u32 2147483647, %v1068
        %vm2163 = vcmp.le.f32.partialorder %v2162, 0.7853982
        %vm2164 = vcmp.lt.s32.totalorder %v1068, 0
        %v2165 = vand.u32 %v1068, 2139095040
        %v2166 = vshrl.u32 %v2165, 23
        %v2167 = vsub.s32 %v2166, 127
        %v2168 = vand.u32 2147483647, %v1068
        %v2169 = vand.u32 %v2168, 8388607
        %v2170 = vor.u32 %v2169, 8388608
        %v2171 = vsub.s32 0, %v2170
        %v2172 = vadd.s32 %v2167, 1
        %vm2173 = vcmp.gt.s32.totalorder %v2172, 0
        %v2174 = vsel %vm2173, %v2172, 0
        %v2175 = vshrl.u32 %v2174, 5
        %v2176 = vand.u32 %v2174, 31
        %v2177 = vsub.s32 32, %v2176
        %v2178 = vshrl.u32 683565275, %v2177
        %v2179 = vshll.u32 683565275, %v2176
        %v2180 = vshrl.u32 2475754826, %v2177
        %v2181 = vor.u32 %v2179, %v2180
        %v2182 = vshll.u32 2475754826, %v2176
        %v2183 = vshrl.u32 2131351028, %v2177
        %v2184 = vor.u32 %v2182, %v2183
        %v2185 = vshll.u32 2131351028, %v2176
        %v2186 = vshrl.u32 2102212464, %v2177
        %v2187 = vor.u32 %v2185, %v2186
        %v2188 = vshll.u32 2102212464, %v2176
        %v2189 = vshrl.u32 920167782, %v2177
        %v2190 = vor.u32 %v2188, %v2189
        %v2191 = vshll.u32 920167782, %v2176
        %v2192 = vshrl.u32 1326507024, %v2177
        %v2193 = vor.u32 %v2191, %v2192
        %vm2194 = vcmp.lt.s32.totalorder %v2175, 1
        %vm2195 = vcmp.lt.s32.totalorder %v2175, 2
        %vm2196 = vcmp.lt.s32.totalorder %v2175, 3
        %vm2197 = vcmp.lt.s32.totalorder %v2175, 4
        %v2198 = vsel %vm2194, %v2178, %v2181
        %v2199 = vsel %vm2197, %v2187, 2102212464
        %v2200 = vsel %vm2196, %v2184, %v2199
        %v2201 = vsel %vm2195, %v2198, %v2200
        %v2202 = vsel %vm2194, %v2181, %v2184
        %v2203 = vsel %vm2197, %v2190, 920167782
        %v2204 = vsel %vm2196, %v2187, %v2203
        %v2205 = vsel %vm2195, %v2202, %v2204
        %v2206 = vsel %vm2194, %v2184, %v2187
        %v2207 = vsel %vm2197, %v2193, 1326507024
        %v2208 = vsel %vm2196, %v2190, %v2207
        %v2209 = vsel %vm2195, %v2206, %v2208
        %v2210 = vshll.u32 %v2170, 8
        %v2211 = vmul.u32.u64.compose %v2210, %v2209
        %v2212 = vextract.low.u32 %v2211
        %v2213 = vextract.high.u32 %v2211
        %v2214 = vmul.u32.u64.compose %v2210, %v2205
        %v2215 = vextract.low.u32 %v2214
        %v2216 = vextract.high.u32 %v2214
        %v2217 = vmul.u32 %v2210, %v2201
        %v2218 = vadd.s32 %v2213, %v2215
        %vm2219 = vc.u32 %v2213, %v2215
        %v2220 = vadd.s32 %v2216, 1
        %v2221 = vsel %vm2219, %v2220, %v2216
        %v2222 = vadd.s32 %v2217, %v2221
        %v2223 = vadd.s32 %v2222, 536870912
        %v2224 = vshrl.u32 %v2223, 30
        %v2225 = vshll.u32 %v2224, 30
        %v2226 = vsub.s32 %v2222, %v2225
        %vm2227 = vcmp.lt.s32.totalorder %v2226, 0
        %v2228 = vsub.s32 0, %v2226
        %v2229 = vsel %vm2227, %v2228, %v2226
        %v2230 = vclz %v2229
        %v2231 = vsub.s32 %v2230, 2
        %vm2232 = vcmp.gt.s32.totalorder 0, %v2231
        %v2233 = vsel %vm2232, 0, %v2231
        %v2234 = vsub.s32 32, %v2233
        %v2235 = vshll.u32 %v2226, %v2233
        %v2236 = vshrl.u32 %v2218, %v2234
        %v2237 = vor.u32 %v2235, %v2236
        %v2238 = vsub.s32 4294967266, %v2233
        %v2239 = vadd.s32 %v2238, 127
        %v2240 = vshll.u32 %v2239, 23
        %v2241 = vor.u32 4788187, %v2240
        %v2242 = vand.u32 2147483647, %v2241
        %v2244 = vcvt.s32.f32 %v2237
        %v2245 = vmul.f32 %v2244, %v2242
        %v2246 = vxor.u32 %v2245, 2147483648
        %v2247 = vsel %vm2164, %v2246, %v2245
        %v2248 = vsub.s32 4, %v2224
        %v2249 = vsel %vm2164, %v2248, %v2224
        %v2250 = vsel %vm2163, %v1068, %v2247
        %v2251 = vsel %vm2163, 0, %v2249
        %v2252 = vcosq.f32.pop %v2250
        %v2253 = vsinq.f32.pop %v2250
        %vm2254 = vweird.f32 %v1068
        %v2255 = vadd.s32 %v2251, 3
        %v2256 = vand.u32 %v2255, 3
        %vm2257 = vcmp.lt.s32.totalorder %v2256, 2
        %vm2258 = vcmp.eq.s32.totalorder %v2256, 0
        %v2259 = vxor.u32 %v2253, 2147483648
        %v2260 = vsel %vm2258, %v2252, %v2259
        %vm2261 = vcmp.eq.s32.totalorder %v2256, 2
        %v2262 = vxor.u32 %v2252, 2147483648
        %v2263 = vsel %vm2261, %v2262, %v2253
        %v2264 = vsel %vm2257, %v2260, %v2263
        %v2265 = vsel %vm2254, nan, %v2264
        %v2266 = vand.u32 2147483647, %v1069
        %vm2267 = vcmp.le.f32.partialorder %v2266, 0.7853982
        %vm2268 = vcmp.lt.s32.totalorder %v1069, 0
        %v2269 = vand.u32 %v1069, 2139095040
        %v2270 = vshrl.u32 %v2269, 23
        %v2271 = vsub.s32 %v2270, 127
        %v2272 = vand.u32 2147483647, %v1069
        %v2273 = vand.u32 %v2272, 8388607
        %v2274 = vor.u32 %v2273, 8388608
        %v2275 = vsub.s32 0, %v2274
        %v2276 = vadd.s32 %v2271, 1
        %vm2277 = vcmp.gt.s32.totalorder %v2276, 0
        %v2278 = vsel %vm2277, %v2276, 0
        %v2279 = vshrl.u32 %v2278, 5
        %v2280 = vand.u32 %v2278, 31
        %v2281 = vsub.s32 32, %v2280
        %v2282 = vshrl.u32 683565275, %v2281
        %v2283 = vshll.u32 683565275, %v2280
        %v2284 = vshrl.u32 2475754826, %v2281
        %v2285 = vor.u32 %v2283, %v2284
        %v2286 = vshll.u32 2475754826, %v2280
        %v2287 = vshrl.u32 2131351028, %v2281
        %v2288 = vor.u32 %v2286, %v2287
        %v2289 = vshll.u32 2131351028, %v2280
        %v2290 = vshrl.u32 2102212464, %v2281
        %v2291 = vor.u32 %v2289, %v2290
        %v2292 = vshll.u32 2102212464, %v2280
        %v2293 = vshrl.u32 920167782, %v2281
        %v2294 = vor.u32 %v2292, %v2293
        %v2295 = vshll.u32 920167782, %v2280
        %v2296 = vshrl.u32 1326507024, %v2281
        %v2297 = vor.u32 %v2295, %v2296
        %vm2298 = vcmp.lt.s32.totalorder %v2279, 1
        %vm2299 = vcmp.lt.s32.totalorder %v2279, 2
        %vm2300 = vcmp.lt.s32.totalorder %v2279, 3
        %vm2301 = vcmp.lt.s32.totalorder %v2279, 4
        %v2302 = vsel %vm2298, %v2282, %v2285
        %v2303 = vsel %vm2301, %v2291, 2102212464
        %v2304 = vsel %vm2300, %v2288, %v2303
        %v2305 = vsel %vm2299, %v2302, %v2304
        %v2306 = vsel %vm2298, %v2285, %v2288
        %v2307 = vsel %vm2301, %v2294, 920167782
        %v2308 = vsel %vm2300, %v2291, %v2307
        %v2309 = vsel %vm2299, %v2306, %v2308
        %v2310 = vsel %vm2298, %v2288, %v2291
        %v2311 = vsel %vm2301, %v2297, 1326507024
        %v2312 = vsel %vm2300, %v2294, %v2311
        %v2313 = vsel %vm2299, %v2310, %v2312
        %v2314 = vshll.u32 %v2274, 8
        %v2315 = vmul.u32.u64.compose %v2314, %v2313
        %v2316 = vextract.low.u32 %v2315
        %v2317 = vextract.high.u32 %v2315
        %v2318 = vmul.u32.u64.compose %v2314, %v2309
        %v2319 = vextract.low.u32 %v2318
        %v2320 = vextract.high.u32 %v2318
        %v2321 = vmul.u32 %v2314, %v2305
        %v2322 = vadd.s32 %v2317, %v2319
        %vm2323 = vc.u32 %v2317, %v2319
        %v2324 = vadd.s32 %v2320, 1
        %v2325 = vsel %vm2323, %v2324, %v2320
        %v2326 = vadd.s32 %v2321, %v2325
        %v2327 = vadd.s32 %v2326, 536870912
        %v2328 = vshrl.u32 %v2327, 30
        %v2329 = vshll.u32 %v2328, 30
        %v2330 = vsub.s32 %v2326, %v2329
        %vm2331 = vcmp.lt.s32.totalorder %v2330, 0
        %v2332 = vsub.s32 0, %v2330
        %v2333 = vsel %vm2331, %v2332, %v2330
        %v2334 = vclz %v2333
        %v2335 = vsub.s32 %v2334, 2
        %vm2336 = vcmp.gt.s32.totalorder 0, %v2335
        %v2337 = vsel %vm2336, 0, %v2335
        %v2338 = vsub.s32 32, %v2337
        %v2339 = vshll.u32 %v2330, %v2337
        %v2340 = vshrl.u32 %v2322, %v2338
        %v2341 = vor.u32 %v2339, %v2340
        %v2342 = vsub.s32 4294967266, %v2337
        %v2343 = vadd.s32 %v2342, 127
        %v2344 = vshll.u32 %v2343, 23
        %v2345 = vor.u32 4788187, %v2344
        %v2346 = vand.u32 2147483647, %v2345
        %v2348 = vcvt.s32.f32 %v2341
        %v2349 = vmul.f32 %v2348, %v2346
        %v2350 = vxor.u32 %v2349, 2147483648
        %v2351 = vsel %vm2268, %v2350, %v2349
        %v2352 = vsub.s32 4, %v2328
        %v2353 = vsel %vm2268, %v2352, %v2328
        %v2354 = vsel %vm2267, %v1069, %v2351
        %v2355 = vsel %vm2267, 0, %v2353
        %v2356 = vcosq.f32.pop %v2354
        %v2357 = vsinq.f32.pop %v2354
        %vm2358 = vweird.f32 %v1069
        %v2359 = vadd.s32 %v2355, 3
        %v2360 = vand.u32 %v2359, 3
        %vm2361 = vcmp.lt.s32.totalorder %v2360, 2
        %vm2362 = vcmp.eq.s32.totalorder %v2360, 0
        %v2363 = vxor.u32 %v2357, 2147483648
        %v2364 = vsel %vm2362, %v2356, %v2363
        %vm2365 = vcmp.eq.s32.totalorder %v2360, 2
        %v2366 = vxor.u32 %v2356, 2147483648
        %v2367 = vsel %vm2365, %v2366, %v2357
        %v2368 = vsel %vm2361, %v2364, %v2367
        %v2369 = vsel %vm2358, nan, %v2368
        %v2370 = vand.u32 2147483647, %v1070
        %vm2371 = vcmp.le.f32.partialorder %v2370, 0.7853982
        %vm2372 = vcmp.lt.s32.totalorder %v1070, 0
        %v2373 = vand.u32 %v1070, 2139095040
        %v2374 = vshrl.u32 %v2373, 23
        %v2375 = vsub.s32 %v2374, 127
        %v2376 = vand.u32 2147483647, %v1070
        %v2377 = vand.u32 %v2376, 8388607
        %v2378 = vor.u32 %v2377, 8388608
        %v2379 = vsub.s32 0, %v2378
        %v2380 = vadd.s32 %v2375, 1
        %vm2381 = vcmp.gt.s32.totalorder %v2380, 0
        %v2382 = vsel %vm2381, %v2380, 0
        %v2383 = vshrl.u32 %v2382, 5
        %v2384 = vand.u32 %v2382, 31
        %v2385 = vsub.s32 32, %v2384
        %v2386 = vshrl.u32 683565275, %v2385
        %v2387 = vshll.u32 683565275, %v2384
        %v2388 = vshrl.u32 2475754826, %v2385
        %v2389 = vor.u32 %v2387, %v2388
        %v2390 = vshll.u32 2475754826, %v2384
        %v2391 = vshrl.u32 2131351028, %v2385
        %v2392 = vor.u32 %v2390, %v2391
        %v2393 = vshll.u32 2131351028, %v2384
        %v2394 = vshrl.u32 2102212464, %v2385
        %v2395 = vor.u32 %v2393, %v2394
        %v2396 = vshll.u32 2102212464, %v2384
        %v2397 = vshrl.u32 920167782, %v2385
        %v2398 = vor.u32 %v2396, %v2397
        %v2399 = vshll.u32 920167782, %v2384
        %v2400 = vshrl.u32 1326507024, %v2385
        %v2401 = vor.u32 %v2399, %v2400
        %vm2402 = vcmp.lt.s32.totalorder %v2383, 1
        %vm2403 = vcmp.lt.s32.totalorder %v2383, 2
        %vm2404 = vcmp.lt.s32.totalorder %v2383, 3
        %vm2405 = vcmp.lt.s32.totalorder %v2383, 4
        %v2406 = vsel %vm2402, %v2386, %v2389
        %v2407 = vsel %vm2405, %v2395, 2102212464
        %v2408 = vsel %vm2404, %v2392, %v2407
        %v2409 = vsel %vm2403, %v2406, %v2408
        %v2410 = vsel %vm2402, %v2389, %v2392
        %v2411 = vsel %vm2405, %v2398, 920167782
        %v2412 = vsel %vm2404, %v2395, %v2411
        %v2413 = vsel %vm2403, %v2410, %v2412
        %v2414 = vsel %vm2402, %v2392, %v2395
        %v2415 = vsel %vm2405, %v2401, 1326507024
        %v2416 = vsel %vm2404, %v2398, %v2415
        %v2417 = vsel %vm2403, %v2414, %v2416
        %v2418 = vshll.u32 %v2378, 8
        %v2419 = vmul.u32.u64.compose %v2418, %v2417
        %v2420 = vextract.low.u32 %v2419
        %v2421 = vextract.high.u32 %v2419
        %v2422 = vmul.u32.u64.compose %v2418, %v2413
        %v2423 = vextract.low.u32 %v2422
        %v2424 = vextract.high.u32 %v2422
        %v2425 = vmul.u32 %v2418, %v2409
        %v2426 = vadd.s32 %v2421, %v2423
        %vm2427 = vc.u32 %v2421, %v2423
        %v2428 = vadd.s32 %v2424, 1
        %v2429 = vsel %vm2427, %v2428, %v2424
        %v2430 = vadd.s32 %v2425, %v2429
        %v2431 = vadd.s32 %v2430, 536870912
        %v2432 = vshrl.u32 %v2431, 30
        %v2433 = vshll.u32 %v2432, 30
        %v2434 = vsub.s32 %v2430, %v2433
        %vm2435 = vcmp.lt.s32.totalorder %v2434, 0
        %v2436 = vsub.s32 0, %v2434
        %v2437 = vsel %vm2435, %v2436, %v2434
        %v2438 = vclz %v2437
        %v2439 = vsub.s32 %v2438, 2
        %vm2440 = vcmp.gt.s32.totalorder 0, %v2439
        %v2441 = vsel %vm2440, 0, %v2439
        %v2442 = vsub.s32 32, %v2441
        %v2443 = vshll.u32 %v2434, %v2441
        %v2444 = vshrl.u32 %v2426, %v2442
        %v2445 = vor.u32 %v2443, %v2444
        %v2446 = vsub.s32 4294967266, %v2441
        %v2447 = vadd.s32 %v2446, 127
        %v2448 = vshll.u32 %v2447, 23
        %v2449 = vor.u32 4788187, %v2448
        %v2450 = vand.u32 2147483647, %v2449
        %v2452 = vcvt.s32.f32 %v2445
        %v2453 = vmul.f32 %v2452, %v2450
        %v2454 = vxor.u32 %v2453, 2147483648
        %v2455 = vsel %vm2372, %v2454, %v2453
        %v2456 = vsub.s32 4, %v2432
        %v2457 = vsel %vm2372, %v2456, %v2432
        %v2458 = vsel %vm2371, %v1070, %v2455
        %v2459 = vsel %vm2371, 0, %v2457
        %v2460 = vcosq.f32.pop %v2458
        %v2461 = vsinq.f32.pop %v2458
        %vm2462 = vweird.f32 %v1070
        %v2463 = vadd.s32 %v2459, 3
        %v2464 = vand.u32 %v2463, 3
        %vm2465 = vcmp.lt.s32.totalorder %v2464, 2
        %vm2466 = vcmp.eq.s32.totalorder %v2464, 0
        %v2467 = vxor.u32 %v2461, 2147483648
        %v2468 = vsel %vm2466, %v2460, %v2467
        %vm2469 = vcmp.eq.s32.totalorder %v2464, 2
        %v2470 = vxor.u32 %v2460, 2147483648
        %v2471 = vsel %vm2469, %v2470, %v2461
        %v2472 = vsel %vm2465, %v2468, %v2471
        %v2473 = vsel %vm2462, nan, %v2472
        %v2474 = vand.u32 2147483647, %v1071
        %vm2475 = vcmp.le.f32.partialorder %v2474, 0.7853982
        %vm2476 = vcmp.lt.s32.totalorder %v1071, 0
        %v2477 = vand.u32 %v1071, 2139095040
        %v2478 = vshrl.u32 %v2477, 23
        %v2479 = vsub.s32 %v2478, 127
        %v2480 = vand.u32 2147483647, %v1071
        %v2481 = vand.u32 %v2480, 8388607
        %v2482 = vor.u32 %v2481, 8388608
        %v2483 = vsub.s32 0, %v2482
        %v2484 = vadd.s32 %v2479, 1
        %vm2485 = vcmp.gt.s32.totalorder %v2484, 0
        %v2486 = vsel %vm2485, %v2484, 0
        %v2487 = vshrl.u32 %v2486, 5
        %v2488 = vand.u32 %v2486, 31
        %v2489 = vsub.s32 32, %v2488
        %v2490 = vshrl.u32 683565275, %v2489
        %v2491 = vshll.u32 683565275, %v2488
        %v2492 = vshrl.u32 2475754826, %v2489
        %v2493 = vor.u32 %v2491, %v2492
        %v2494 = vshll.u32 2475754826, %v2488
        %v2495 = vshrl.u32 2131351028, %v2489
        %v2496 = vor.u32 %v2494, %v2495
        %v2497 = vshll.u32 2131351028, %v2488
        %v2498 = vshrl.u32 2102212464, %v2489
        %v2499 = vor.u32 %v2497, %v2498
        %v2500 = vshll.u32 2102212464, %v2488
        %v2501 = vshrl.u32 920167782, %v2489
        %v2502 = vor.u32 %v2500, %v2501
        %v2503 = vshll.u32 920167782, %v2488
        %v2504 = vshrl.u32 1326507024, %v2489
        %v2505 = vor.u32 %v2503, %v2504
        %vm2506 = vcmp.lt.s32.totalorder %v2487, 1
        %vm2507 = vcmp.lt.s32.totalorder %v2487, 2
        %vm2508 = vcmp.lt.s32.totalorder %v2487, 3
        %vm2509 = vcmp.lt.s32.totalorder %v2487, 4
        %v2510 = vsel %vm2506, %v2490, %v2493
        %v2511 = vsel %vm2509, %v2499, 2102212464
        %v2512 = vsel %vm2508, %v2496, %v2511
        %v2513 = vsel %vm2507, %v2510, %v2512
        %v2514 = vsel %vm2506, %v2493, %v2496
        %v2515 = vsel %vm2509, %v2502, 920167782
        %v2516 = vsel %vm2508, %v2499, %v2515
        %v2517 = vsel %vm2507, %v2514, %v2516
        %v2518 = vsel %vm2506, %v2496, %v2499
        %v2519 = vsel %vm2509, %v2505, 1326507024
        %v2520 = vsel %vm2508, %v2502, %v2519
        %v2521 = vsel %vm2507, %v2518, %v2520
        %v2522 = vshll.u32 %v2482, 8
        %v2523 = vmul.u32.u64.compose %v2522, %v2521
        %v2524 = vextract.low.u32 %v2523
        %v2525 = vextract.high.u32 %v2523
        %v2526 = vmul.u32.u64.compose %v2522, %v2517
        %v2527 = vextract.low.u32 %v2526
        %v2528 = vextract.high.u32 %v2526
        %v2529 = vmul.u32 %v2522, %v2513
        %v2530 = vadd.s32 %v2525, %v2527
        %vm2531 = vc.u32 %v2525, %v2527
        %v2532 = vadd.s32 %v2528, 1
        %v2533 = vsel %vm2531, %v2532, %v2528
        %v2534 = vadd.s32 %v2529, %v2533
        %v2535 = vadd.s32 %v2534, 536870912
        %v2536 = vshrl.u32 %v2535, 30
        %v2537 = vshll.u32 %v2536, 30
        %v2538 = vsub.s32 %v2534, %v2537
        %vm2539 = vcmp.lt.s32.totalorder %v2538, 0
        %v2540 = vsub.s32 0, %v2538
        %v2541 = vsel %vm2539, %v2540, %v2538
        %v2542 = vclz %v2541
        %v2543 = vsub.s32 %v2542, 2
        %vm2544 = vcmp.gt.s32.totalorder 0, %v2543
        %v2545 = vsel %vm2544, 0, %v2543
        %v2546 = vsub.s32 32, %v2545
        %v2547 = vshll.u32 %v2538, %v2545
        %v2548 = vshrl.u32 %v2530, %v2546
        %v2549 = vor.u32 %v2547, %v2548
        %v2550 = vsub.s32 4294967266, %v2545
        %v2551 = vadd.s32 %v2550, 127
        %v2552 = vshll.u32 %v2551, 23
        %v2553 = vor.u32 4788187, %v2552
        %v2554 = vand.u32 2147483647, %v2553
        %v2556 = vcvt.s32.f32 %v2549
        %v2557 = vmul.f32 %v2556, %v2554
        %v2558 = vxor.u32 %v2557, 2147483648
        %v2559 = vsel %vm2476, %v2558, %v2557
        %v2560 = vsub.s32 4, %v2536
        %v2561 = vsel %vm2476, %v2560, %v2536
        %v2562 = vsel %vm2475, %v1071, %v2559
        %v2563 = vsel %vm2475, 0, %v2561
        %v2564 = vcosq.f32.pop %v2562
        %v2565 = vsinq.f32.pop %v2562
        %vm2566 = vweird.f32 %v1071
        %v2567 = vadd.s32 %v2563, 3
        %v2568 = vand.u32 %v2567, 3
        %vm2569 = vcmp.lt.s32.totalorder %v2568, 2
        %vm2570 = vcmp.eq.s32.totalorder %v2568, 0
        %v2571 = vxor.u32 %v2565, 2147483648
        %v2572 = vsel %vm2570, %v2564, %v2571
        %vm2573 = vcmp.eq.s32.totalorder %v2568, 2
        %v2574 = vxor.u32 %v2564, 2147483648
        %v2575 = vsel %vm2573, %v2574, %v2565
        %v2576 = vsel %vm2569, %v2572, %v2575
        %v2577 = vsel %vm2566, nan, %v2576
        %v2578 = vand.u32 2147483647, %v1072
        %vm2579 = vcmp.le.f32.partialorder %v2578, 0.7853982
        %vm2580 = vcmp.lt.s32.totalorder %v1072, 0
        %v2581 = vand.u32 %v1072, 2139095040
        %v2582 = vshrl.u32 %v2581, 23
        %v2583 = vsub.s32 %v2582, 127
        %v2584 = vand.u32 2147483647, %v1072
        %v2585 = vand.u32 %v2584, 8388607
        %v2586 = vor.u32 %v2585, 8388608
        %v2587 = vsub.s32 0, %v2586
        %v2588 = vadd.s32 %v2583, 1
        %vm2589 = vcmp.gt.s32.totalorder %v2588, 0
        %v2590 = vsel %vm2589, %v2588, 0
        %v2591 = vshrl.u32 %v2590, 5
        %v2592 = vand.u32 %v2590, 31
        %v2593 = vsub.s32 32, %v2592
        %v2594 = vshrl.u32 683565275, %v2593
        %v2595 = vshll.u32 683565275, %v2592
        %v2596 = vshrl.u32 2475754826, %v2593
        %v2597 = vor.u32 %v2595, %v2596
        %v2598 = vshll.u32 2475754826, %v2592
        %v2599 = vshrl.u32 2131351028, %v2593
        %v2600 = vor.u32 %v2598, %v2599
        %v2601 = vshll.u32 2131351028, %v2592
        %v2602 = vshrl.u32 2102212464, %v2593
        %v2603 = vor.u32 %v2601, %v2602
        %v2604 = vshll.u32 2102212464, %v2592
        %v2605 = vshrl.u32 920167782, %v2593
        %v2606 = vor.u32 %v2604, %v2605
        %v2607 = vshll.u32 920167782, %v2592
        %v2608 = vshrl.u32 1326507024, %v2593
        %v2609 = vor.u32 %v2607, %v2608
        %vm2610 = vcmp.lt.s32.totalorder %v2591, 1
        %vm2611 = vcmp.lt.s32.totalorder %v2591, 2
        %vm2612 = vcmp.lt.s32.totalorder %v2591, 3
        %vm2613 = vcmp.lt.s32.totalorder %v2591, 4
        %v2614 = vsel %vm2610, %v2594, %v2597
        %v2615 = vsel %vm2613, %v2603, 2102212464
        %v2616 = vsel %vm2612, %v2600, %v2615
        %v2617 = vsel %vm2611, %v2614, %v2616
        %v2618 = vsel %vm2610, %v2597, %v2600
        %v2619 = vsel %vm2613, %v2606, 920167782
        %v2620 = vsel %vm2612, %v2603, %v2619
        %v2621 = vsel %vm2611, %v2618, %v2620
        %v2622 = vsel %vm2610, %v2600, %v2603
        %v2623 = vsel %vm2613, %v2609, 1326507024
        %v2624 = vsel %vm2612, %v2606, %v2623
        %v2625 = vsel %vm2611, %v2622, %v2624
        %v2626 = vshll.u32 %v2586, 8
        %v2627 = vmul.u32.u64.compose %v2626, %v2625
        %v2628 = vextract.low.u32 %v2627
        %v2629 = vextract.high.u32 %v2627
        %v2630 = vmul.u32.u64.compose %v2626, %v2621
        %v2631 = vextract.low.u32 %v2630
        %v2632 = vextract.high.u32 %v2630
        %v2633 = vmul.u32 %v2626, %v2617
        %v2634 = vadd.s32 %v2629, %v2631
        %vm2635 = vc.u32 %v2629, %v2631
        %v2636 = vadd.s32 %v2632, 1
        %v2637 = vsel %vm2635, %v2636, %v2632
        %v2638 = vadd.s32 %v2633, %v2637
        %v2639 = vadd.s32 %v2638, 536870912
        %v2640 = vshrl.u32 %v2639, 30
        %v2641 = vshll.u32 %v2640, 30
        %v2642 = vsub.s32 %v2638, %v2641
        %vm2643 = vcmp.lt.s32.totalorder %v2642, 0
        %v2644 = vsub.s32 0, %v2642
        %v2645 = vsel %vm2643, %v2644, %v2642
        %v2646 = vclz %v2645
        %v2647 = vsub.s32 %v2646, 2
        %vm2648 = vcmp.gt.s32.totalorder 0, %v2647
        %v2649 = vsel %vm2648, 0, %v2647
        %v2650 = vsub.s32 32, %v2649
        %v2651 = vshll.u32 %v2642, %v2649
        %v2652 = vshrl.u32 %v2634, %v2650
        %v2653 = vor.u32 %v2651, %v2652
        %v2654 = vsub.s32 4294967266, %v2649
        %v2655 = vadd.s32 %v2654, 127
        %v2656 = vshll.u32 %v2655, 23
        %v2657 = vor.u32 4788187, %v2656
        %v2658 = vand.u32 2147483647, %v2657
        %v2660 = vcvt.s32.f32 %v2653
        %v2661 = vmul.f32 %v2660, %v2658
        %v2662 = vxor.u32 %v2661, 2147483648
        %v2663 = vsel %vm2580, %v2662, %v2661
        %v2664 = vsub.s32 4, %v2640
        %v2665 = vsel %vm2580, %v2664, %v2640
        %v2666 = vsel %vm2579, %v1072, %v2663
        %v2667 = vsel %vm2579, 0, %v2665
        %v2668 = vcosq.f32.pop %v2666
        %v2669 = vsinq.f32.pop %v2666
        %vm2670 = vweird.f32 %v1072
        %v2671 = vadd.s32 %v2667, 3
        %v2672 = vand.u32 %v2671, 3
        %vm2673 = vcmp.lt.s32.totalorder %v2672, 2
        %vm2674 = vcmp.eq.s32.totalorder %v2672, 0
        %v2675 = vxor.u32 %v2669, 2147483648
        %v2676 = vsel %vm2674, %v2668, %v2675
        %vm2677 = vcmp.eq.s32.totalorder %v2672, 2
        %v2678 = vxor.u32 %v2668, 2147483648
        %v2679 = vsel %vm2677, %v2678, %v2669
        %v2680 = vsel %vm2673, %v2676, %v2679
        %v2681 = vsel %vm2670, nan, %v2680
        %v2682 = vand.u32 2147483647, %v1073
        %vm2683 = vcmp.le.f32.partialorder %v2682, 0.7853982
        %vm2684 = vcmp.lt.s32.totalorder %v1073, 0
        %v2685 = vand.u32 %v1073, 2139095040
        %v2686 = vshrl.u32 %v2685, 23
        %v2687 = vsub.s32 %v2686, 127
        %v2688 = vand.u32 2147483647, %v1073
        %v2689 = vand.u32 %v2688, 8388607
        %v2690 = vor.u32 %v2689, 8388608
        %v2691 = vsub.s32 0, %v2690
        %v2692 = vadd.s32 %v2687, 1
        %vm2693 = vcmp.gt.s32.totalorder %v2692, 0
        %v2694 = vsel %vm2693, %v2692, 0
        %v2695 = vshrl.u32 %v2694, 5
        %v2696 = vand.u32 %v2694, 31
        %v2697 = vsub.s32 32, %v2696
        %v2698 = vshrl.u32 683565275, %v2697
        %v2699 = vshll.u32 683565275, %v2696
        %v2700 = vshrl.u32 2475754826, %v2697
        %v2701 = vor.u32 %v2699, %v2700
        %v2702 = vshll.u32 2475754826, %v2696
        %v2703 = vshrl.u32 2131351028, %v2697
        %v2704 = vor.u32 %v2702, %v2703
        %v2705 = vshll.u32 2131351028, %v2696
        %v2706 = vshrl.u32 2102212464, %v2697
        %v2707 = vor.u32 %v2705, %v2706
        %v2708 = vshll.u32 2102212464, %v2696
        %v2709 = vshrl.u32 920167782, %v2697
        %v2710 = vor.u32 %v2708, %v2709
        %v2711 = vshll.u32 920167782, %v2696
        %v2712 = vshrl.u32 1326507024, %v2697
        %v2713 = vor.u32 %v2711, %v2712
        %vm2714 = vcmp.lt.s32.totalorder %v2695, 1
        %vm2715 = vcmp.lt.s32.totalorder %v2695, 2
        %vm2716 = vcmp.lt.s32.totalorder %v2695, 3
        %vm2717 = vcmp.lt.s32.totalorder %v2695, 4
        %v2718 = vsel %vm2714, %v2698, %v2701
        %v2719 = vsel %vm2717, %v2707, 2102212464
        %v2720 = vsel %vm2716, %v2704, %v2719
        %v2721 = vsel %vm2715, %v2718, %v2720
        %v2722 = vsel %vm2714, %v2701, %v2704
        %v2723 = vsel %vm2717, %v2710, 920167782
        %v2724 = vsel %vm2716, %v2707, %v2723
        %v2725 = vsel %vm2715, %v2722, %v2724
        %v2726 = vsel %vm2714, %v2704, %v2707
        %v2727 = vsel %vm2717, %v2713, 1326507024
        %v2728 = vsel %vm2716, %v2710, %v2727
        %v2729 = vsel %vm2715, %v2726, %v2728
        %v2730 = vshll.u32 %v2690, 8
        %v2731 = vmul.u32.u64.compose %v2730, %v2729
        %v2732 = vextract.low.u32 %v2731
        %v2733 = vextract.high.u32 %v2731
        %v2734 = vmul.u32.u64.compose %v2730, %v2725
        %v2735 = vextract.low.u32 %v2734
        %v2736 = vextract.high.u32 %v2734
        %v2737 = vmul.u32 %v2730, %v2721
        %v2738 = vadd.s32 %v2733, %v2735
        %vm2739 = vc.u32 %v2733, %v2735
        %v2740 = vadd.s32 %v2736, 1
        %v2741 = vsel %vm2739, %v2740, %v2736
        %v2742 = vadd.s32 %v2737, %v2741
        %v2743 = vadd.s32 %v2742, 536870912
        %v2744 = vshrl.u32 %v2743, 30
        %v2745 = vshll.u32 %v2744, 30
        %v2746 = vsub.s32 %v2742, %v2745
        %vm2747 = vcmp.lt.s32.totalorder %v2746, 0
        %v2748 = vsub.s32 0, %v2746
        %v2749 = vsel %vm2747, %v2748, %v2746
        %v2750 = vclz %v2749
        %v2751 = vsub.s32 %v2750, 2
        %vm2752 = vcmp.gt.s32.totalorder 0, %v2751
        %v2753 = vsel %vm2752, 0, %v2751
        %v2754 = vsub.s32 32, %v2753
        %v2755 = vshll.u32 %v2746, %v2753
        %v2756 = vshrl.u32 %v2738, %v2754
        %v2757 = vor.u32 %v2755, %v2756
        %v2758 = vsub.s32 4294967266, %v2753
        %v2759 = vadd.s32 %v2758, 127
        %v2760 = vshll.u32 %v2759, 23
        %v2761 = vor.u32 4788187, %v2760
        %v2762 = vand.u32 2147483647, %v2761
        %v2764 = vcvt.s32.f32 %v2757
        %v2765 = vmul.f32 %v2764, %v2762
        %v2766 = vxor.u32 %v2765, 2147483648
        %v2767 = vsel %vm2684, %v2766, %v2765
        %v2768 = vsub.s32 4, %v2744
        %v2769 = vsel %vm2684, %v2768, %v2744
        %v2770 = vsel %vm2683, %v1073, %v2767
        %v2771 = vsel %vm2683, 0, %v2769
        %v2772 = vcosq.f32.pop %v2770
        %v2773 = vsinq.f32.pop %v2770
        %vm2774 = vweird.f32 %v1073
        %v2775 = vadd.s32 %v2771, 3
        %v2776 = vand.u32 %v2775, 3
        %vm2777 = vcmp.lt.s32.totalorder %v2776, 2
        %vm2778 = vcmp.eq.s32.totalorder %v2776, 0
        %v2779 = vxor.u32 %v2773, 2147483648
        %v2780 = vsel %vm2778, %v2772, %v2779
        %vm2781 = vcmp.eq.s32.totalorder %v2776, 2
        %v2782 = vxor.u32 %v2772, 2147483648
        %v2783 = vsel %vm2781, %v2782, %v2773
        %v2784 = vsel %vm2777, %v2780, %v2783
        %v2785 = vsel %vm2774, nan, %v2784
        %v2786 = vand.u32 2147483647, %v1074
        %vm2787 = vcmp.le.f32.partialorder %v2786, 0.7853982
        %vm2788 = vcmp.lt.s32.totalorder %v1074, 0
        %v2789 = vand.u32 %v1074, 2139095040
        %v2790 = vshrl.u32 %v2789, 23
        %v2791 = vsub.s32 %v2790, 127
        %v2792 = vand.u32 2147483647, %v1074
        %v2793 = vand.u32 %v2792, 8388607
        %v2794 = vor.u32 %v2793, 8388608
        %v2795 = vsub.s32 0, %v2794
        %v2796 = vadd.s32 %v2791, 1
        %vm2797 = vcmp.gt.s32.totalorder %v2796, 0
        %v2798 = vsel %vm2797, %v2796, 0
        %v2799 = vshrl.u32 %v2798, 5
        %v2800 = vand.u32 %v2798, 31
        %v2801 = vsub.s32 32, %v2800
        %v2802 = vshrl.u32 683565275, %v2801
        %v2803 = vshll.u32 683565275, %v2800
        %v2804 = vshrl.u32 2475754826, %v2801
        %v2805 = vor.u32 %v2803, %v2804
        %v2806 = vshll.u32 2475754826, %v2800
        %v2807 = vshrl.u32 2131351028, %v2801
        %v2808 = vor.u32 %v2806, %v2807
        %v2809 = vshll.u32 2131351028, %v2800
        %v2810 = vshrl.u32 2102212464, %v2801
        %v2811 = vor.u32 %v2809, %v2810
        %v2812 = vshll.u32 2102212464, %v2800
        %v2813 = vshrl.u32 920167782, %v2801
        %v2814 = vor.u32 %v2812, %v2813
        %v2815 = vshll.u32 920167782, %v2800
        %v2816 = vshrl.u32 1326507024, %v2801
        %v2817 = vor.u32 %v2815, %v2816
        %vm2818 = vcmp.lt.s32.totalorder %v2799, 1
        %vm2819 = vcmp.lt.s32.totalorder %v2799, 2
        %vm2820 = vcmp.lt.s32.totalorder %v2799, 3
        %vm2821 = vcmp.lt.s32.totalorder %v2799, 4
        %v2822 = vsel %vm2818, %v2802, %v2805
        %v2823 = vsel %vm2821, %v2811, 2102212464
        %v2824 = vsel %vm2820, %v2808, %v2823
        %v2825 = vsel %vm2819, %v2822, %v2824
        %v2826 = vsel %vm2818, %v2805, %v2808
        %v2827 = vsel %vm2821, %v2814, 920167782
        %v2828 = vsel %vm2820, %v2811, %v2827
        %v2829 = vsel %vm2819, %v2826, %v2828
        %v2830 = vsel %vm2818, %v2808, %v2811
        %v2831 = vsel %vm2821, %v2817, 1326507024
        %v2832 = vsel %vm2820, %v2814, %v2831
        %v2833 = vsel %vm2819, %v2830, %v2832
        %v2834 = vshll.u32 %v2794, 8
        %v2835 = vmul.u32.u64.compose %v2834, %v2833
        %v2836 = vextract.low.u32 %v2835
        %v2837 = vextract.high.u32 %v2835
        %v2838 = vmul.u32.u64.compose %v2834, %v2829
        %v2839 = vextract.low.u32 %v2838
        %v2840 = vextract.high.u32 %v2838
        %v2841 = vmul.u32 %v2834, %v2825
        %v2842 = vadd.s32 %v2837, %v2839
        %vm2843 = vc.u32 %v2837, %v2839
        %v2844 = vadd.s32 %v2840, 1
        %v2845 = vsel %vm2843, %v2844, %v2840
        %v2846 = vadd.s32 %v2841, %v2845
        %v2847 = vadd.s32 %v2846, 536870912
        %v2848 = vshrl.u32 %v2847, 30
        %v2849 = vshll.u32 %v2848, 30
        %v2850 = vsub.s32 %v2846, %v2849
        %vm2851 = vcmp.lt.s32.totalorder %v2850, 0
        %v2852 = vsub.s32 0, %v2850
        %v2853 = vsel %vm2851, %v2852, %v2850
        %v2854 = vclz %v2853
        %v2855 = vsub.s32 %v2854, 2
        %vm2856 = vcmp.gt.s32.totalorder 0, %v2855
        %v2857 = vsel %vm2856, 0, %v2855
        %v2858 = vsub.s32 32, %v2857
        %v2859 = vshll.u32 %v2850, %v2857
        %v2860 = vshrl.u32 %v2842, %v2858
        %v2861 = vor.u32 %v2859, %v2860
        %v2862 = vsub.s32 4294967266, %v2857
        %v2863 = vadd.s32 %v2862, 127
        %v2864 = vshll.u32 %v2863, 23
        %v2865 = vor.u32 4788187, %v2864
        %v2866 = vand.u32 2147483647, %v2865
        %v2868 = vcvt.s32.f32 %v2861
        %v2869 = vmul.f32 %v2868, %v2866
        %v2870 = vxor.u32 %v2869, 2147483648
        %v2871 = vsel %vm2788, %v2870, %v2869
        %v2872 = vsub.s32 4, %v2848
        %v2873 = vsel %vm2788, %v2872, %v2848
        %v2874 = vsel %vm2787, %v1074, %v2871
        %v2875 = vsel %vm2787, 0, %v2873
        %v2876 = vcosq.f32.pop %v2874
        %v2877 = vsinq.f32.pop %v2874
        %vm2878 = vweird.f32 %v1074
        %v2879 = vadd.s32 %v2875, 3
        %v2880 = vand.u32 %v2879, 3
        %vm2881 = vcmp.lt.s32.totalorder %v2880, 2
        %vm2882 = vcmp.eq.s32.totalorder %v2880, 0
        %v2883 = vxor.u32 %v2877, 2147483648
        %v2884 = vsel %vm2882, %v2876, %v2883
        %vm2885 = vcmp.eq.s32.totalorder %v2880, 2
        %v2886 = vxor.u32 %v2876, 2147483648
        %v2887 = vsel %vm2885, %v2886, %v2877
        %v2888 = vsel %vm2881, %v2884, %v2887
        %v2889 = vsel %vm2878, nan, %v2888
        %v2890 = vand.u32 2147483647, %v1075
        %vm2891 = vcmp.le.f32.partialorder %v2890, 0.7853982
        %vm2892 = vcmp.lt.s32.totalorder %v1075, 0
        %v2893 = vand.u32 %v1075, 2139095040
        %v2894 = vshrl.u32 %v2893, 23
        %v2895 = vsub.s32 %v2894, 127
        %v2896 = vand.u32 2147483647, %v1075
        %v2897 = vand.u32 %v2896, 8388607
        %v2898 = vor.u32 %v2897, 8388608
        %v2899 = vsub.s32 0, %v2898
        %v2900 = vadd.s32 %v2895, 1
        %vm2901 = vcmp.gt.s32.totalorder %v2900, 0
        %v2902 = vsel %vm2901, %v2900, 0
        %v2903 = vshrl.u32 %v2902, 5
        %v2904 = vand.u32 %v2902, 31
        %v2905 = vsub.s32 32, %v2904
        %v2906 = vshrl.u32 683565275, %v2905
        %v2907 = vshll.u32 683565275, %v2904
        %v2908 = vshrl.u32 2475754826, %v2905
        %v2909 = vor.u32 %v2907, %v2908
        %v2910 = vshll.u32 2475754826, %v2904
        %v2911 = vshrl.u32 2131351028, %v2905
        %v2912 = vor.u32 %v2910, %v2911
        %v2913 = vshll.u32 2131351028, %v2904
        %v2914 = vshrl.u32 2102212464, %v2905
        %v2915 = vor.u32 %v2913, %v2914
        %v2916 = vshll.u32 2102212464, %v2904
        %v2917 = vshrl.u32 920167782, %v2905
        %v2918 = vor.u32 %v2916, %v2917
        %v2919 = vshll.u32 920167782, %v2904
        %v2920 = vshrl.u32 1326507024, %v2905
        %v2921 = vor.u32 %v2919, %v2920
        %vm2922 = vcmp.lt.s32.totalorder %v2903, 1
        %vm2923 = vcmp.lt.s32.totalorder %v2903, 2
        %vm2924 = vcmp.lt.s32.totalorder %v2903, 3
        %vm2925 = vcmp.lt.s32.totalorder %v2903, 4
        %v2926 = vsel %vm2922, %v2906, %v2909
        %v2927 = vsel %vm2925, %v2915, 2102212464
        %v2928 = vsel %vm2924, %v2912, %v2927
        %v2929 = vsel %vm2923, %v2926, %v2928
        %v2930 = vsel %vm2922, %v2909, %v2912
        %v2931 = vsel %vm2925, %v2918, 920167782
        %v2932 = vsel %vm2924, %v2915, %v2931
        %v2933 = vsel %vm2923, %v2930, %v2932
        %v2934 = vsel %vm2922, %v2912, %v2915
        %v2935 = vsel %vm2925, %v2921, 1326507024
        %v2936 = vsel %vm2924, %v2918, %v2935
        %v2937 = vsel %vm2923, %v2934, %v2936
        %v2938 = vshll.u32 %v2898, 8
        %v2939 = vmul.u32.u64.compose %v2938, %v2937
        %v2940 = vextract.low.u32 %v2939
        %v2941 = vextract.high.u32 %v2939
        %v2942 = vmul.u32.u64.compose %v2938, %v2933
        %v2943 = vextract.low.u32 %v2942
        %v2944 = vextract.high.u32 %v2942
        %v2945 = vmul.u32 %v2938, %v2929
        %v2946 = vadd.s32 %v2941, %v2943
        %vm2947 = vc.u32 %v2941, %v2943
        %v2948 = vadd.s32 %v2944, 1
        %v2949 = vsel %vm2947, %v2948, %v2944
        %v2950 = vadd.s32 %v2945, %v2949
        %v2951 = vadd.s32 %v2950, 536870912
        %v2952 = vshrl.u32 %v2951, 30
        %v2953 = vshll.u32 %v2952, 30
        %v2954 = vsub.s32 %v2950, %v2953
        %vm2955 = vcmp.lt.s32.totalorder %v2954, 0
        %v2956 = vsub.s32 0, %v2954
        %v2957 = vsel %vm2955, %v2956, %v2954
        %v2958 = vclz %v2957
        %v2959 = vsub.s32 %v2958, 2
        %vm2960 = vcmp.gt.s32.totalorder 0, %v2959
        %v2961 = vsel %vm2960, 0, %v2959
        %v2962 = vsub.s32 32, %v2961
        %v2963 = vshll.u32 %v2954, %v2961
        %v2964 = vshrl.u32 %v2946, %v2962
        %v2965 = vor.u32 %v2963, %v2964
        %v2966 = vsub.s32 4294967266, %v2961
        %v2967 = vadd.s32 %v2966, 127
        %v2968 = vshll.u32 %v2967, 23
        %v2969 = vor.u32 4788187, %v2968
        %v2970 = vand.u32 2147483647, %v2969
        %v2972 = vcvt.s32.f32 %v2965
        %v2973 = vmul.f32 %v2972, %v2970
        %v2974 = vxor.u32 %v2973, 2147483648
        %v2975 = vsel %vm2892, %v2974, %v2973
        %v2976 = vsub.s32 4, %v2952
        %v2977 = vsel %vm2892, %v2976, %v2952
        %v2978 = vsel %vm2891, %v1075, %v2975
        %v2979 = vsel %vm2891, 0, %v2977
        %v2980 = vcosq.f32.pop %v2978
        %v2981 = vsinq.f32.pop %v2978
        %vm2982 = vweird.f32 %v1075
        %v2983 = vadd.s32 %v2979, 3
        %v2984 = vand.u32 %v2983, 3
        %vm2985 = vcmp.lt.s32.totalorder %v2984, 2
        %vm2986 = vcmp.eq.s32.totalorder %v2984, 0
        %v2987 = vxor.u32 %v2981, 2147483648
        %v2988 = vsel %vm2986, %v2980, %v2987
        %vm2989 = vcmp.eq.s32.totalorder %v2984, 2
        %v2990 = vxor.u32 %v2980, 2147483648
        %v2991 = vsel %vm2989, %v2990, %v2981
        %v2992 = vsel %vm2985, %v2988, %v2991
        %v2993 = vsel %vm2982, nan, %v2992
        %v2994 = vand.u32 2147483647, %v1076
        %vm2995 = vcmp.le.f32.partialorder %v2994, 0.7853982
        %vm2996 = vcmp.lt.s32.totalorder %v1076, 0
        %v2997 = vand.u32 %v1076, 2139095040
        %v2998 = vshrl.u32 %v2997, 23
        %v2999 = vsub.s32 %v2998, 127
        %v3000 = vand.u32 2147483647, %v1076
        %v3001 = vand.u32 %v3000, 8388607
        %v3002 = vor.u32 %v3001, 8388608
        %v3003 = vsub.s32 0, %v3002
        %v3004 = vadd.s32 %v2999, 1
        %vm3005 = vcmp.gt.s32.totalorder %v3004, 0
        %v3006 = vsel %vm3005, %v3004, 0
        %v3007 = vshrl.u32 %v3006, 5
        %v3008 = vand.u32 %v3006, 31
        %v3009 = vsub.s32 32, %v3008
        %v3010 = vshrl.u32 683565275, %v3009
        %v3011 = vshll.u32 683565275, %v3008
        %v3012 = vshrl.u32 2475754826, %v3009
        %v3013 = vor.u32 %v3011, %v3012
        %v3014 = vshll.u32 2475754826, %v3008
        %v3015 = vshrl.u32 2131351028, %v3009
        %v3016 = vor.u32 %v3014, %v3015
        %v3017 = vshll.u32 2131351028, %v3008
        %v3018 = vshrl.u32 2102212464, %v3009
        %v3019 = vor.u32 %v3017, %v3018
        %v3020 = vshll.u32 2102212464, %v3008
        %v3021 = vshrl.u32 920167782, %v3009
        %v3022 = vor.u32 %v3020, %v3021
        %v3023 = vshll.u32 920167782, %v3008
        %v3024 = vshrl.u32 1326507024, %v3009
        %v3025 = vor.u32 %v3023, %v3024
        %vm3026 = vcmp.lt.s32.totalorder %v3007, 1
        %vm3027 = vcmp.lt.s32.totalorder %v3007, 2
        %vm3028 = vcmp.lt.s32.totalorder %v3007, 3
        %vm3029 = vcmp.lt.s32.totalorder %v3007, 4
        %v3030 = vsel %vm3026, %v3010, %v3013
        %v3031 = vsel %vm3029, %v3019, 2102212464
        %v3032 = vsel %vm3028, %v3016, %v3031
        %v3033 = vsel %vm3027, %v3030, %v3032
        %v3034 = vsel %vm3026, %v3013, %v3016
        %v3035 = vsel %vm3029, %v3022, 920167782
        %v3036 = vsel %vm3028, %v3019, %v3035
        %v3037 = vsel %vm3027, %v3034, %v3036
        %v3038 = vsel %vm3026, %v3016, %v3019
        %v3039 = vsel %vm3029, %v3025, 1326507024
        %v3040 = vsel %vm3028, %v3022, %v3039
        %v3041 = vsel %vm3027, %v3038, %v3040
        %v3042 = vshll.u32 %v3002, 8
        %v3043 = vmul.u32.u64.compose %v3042, %v3041
        %v3044 = vextract.low.u32 %v3043
        %v3045 = vextract.high.u32 %v3043
        %v3046 = vmul.u32.u64.compose %v3042, %v3037
        %v3047 = vextract.low.u32 %v3046
        %v3048 = vextract.high.u32 %v3046
        %v3049 = vmul.u32 %v3042, %v3033
        %v3050 = vadd.s32 %v3045, %v3047
        %vm3051 = vc.u32 %v3045, %v3047
        %v3052 = vadd.s32 %v3048, 1
        %v3053 = vsel %vm3051, %v3052, %v3048
        %v3054 = vadd.s32 %v3049, %v3053
        %v3055 = vadd.s32 %v3054, 536870912
        %v3056 = vshrl.u32 %v3055, 30
        %v3057 = vshll.u32 %v3056, 30
        %v3058 = vsub.s32 %v3054, %v3057
        %vm3059 = vcmp.lt.s32.totalorder %v3058, 0
        %v3060 = vsub.s32 0, %v3058
        %v3061 = vsel %vm3059, %v3060, %v3058
        %v3062 = vclz %v3061
        %v3063 = vsub.s32 %v3062, 2
        %vm3064 = vcmp.gt.s32.totalorder 0, %v3063
        %v3065 = vsel %vm3064, 0, %v3063
        %v3066 = vsub.s32 32, %v3065
        %v3067 = vshll.u32 %v3058, %v3065
        %v3068 = vshrl.u32 %v3050, %v3066
        %v3069 = vor.u32 %v3067, %v3068
        %v3070 = vsub.s32 4294967266, %v3065
        %v3071 = vadd.s32 %v3070, 127
        %v3072 = vshll.u32 %v3071, 23
        %v3073 = vor.u32 4788187, %v3072
        %v3074 = vand.u32 2147483647, %v3073
        %v3076 = vcvt.s32.f32 %v3069
        %v3077 = vmul.f32 %v3076, %v3074
        %v3078 = vxor.u32 %v3077, 2147483648
        %v3079 = vsel %vm2996, %v3078, %v3077
        %v3080 = vsub.s32 4, %v3056
        %v3081 = vsel %vm2996, %v3080, %v3056
        %v3082 = vsel %vm2995, %v1076, %v3079
        %v3083 = vsel %vm2995, 0, %v3081
        %v3084 = vcosq.f32.pop %v3082
        %v3085 = vsinq.f32.pop %v3082
        %vm3086 = vweird.f32 %v1076
        %v3087 = vadd.s32 %v3083, 3
        %v3088 = vand.u32 %v3087, 3
        %vm3089 = vcmp.lt.s32.totalorder %v3088, 2
        %vm3090 = vcmp.eq.s32.totalorder %v3088, 0
        %v3091 = vxor.u32 %v3085, 2147483648
        %v3092 = vsel %vm3090, %v3084, %v3091
        %vm3093 = vcmp.eq.s32.totalorder %v3088, 2
        %v3094 = vxor.u32 %v3084, 2147483648
        %v3095 = vsel %vm3093, %v3094, %v3085
        %v3096 = vsel %vm3089, %v3092, %v3095
        %v3097 = vsel %vm3086, nan, %v3096
        %v3098 = vand.u32 2147483647, %v1077
        %vm3099 = vcmp.le.f32.partialorder %v3098, 0.7853982
        %vm3100 = vcmp.lt.s32.totalorder %v1077, 0
        %v3101 = vand.u32 %v1077, 2139095040
        %v3102 = vshrl.u32 %v3101, 23
        %v3103 = vsub.s32 %v3102, 127
        %v3104 = vand.u32 2147483647, %v1077
        %v3105 = vand.u32 %v3104, 8388607
        %v3106 = vor.u32 %v3105, 8388608
        %v3107 = vsub.s32 0, %v3106
        %v3108 = vadd.s32 %v3103, 1
        %vm3109 = vcmp.gt.s32.totalorder %v3108, 0
        %v3110 = vsel %vm3109, %v3108, 0
        %v3111 = vshrl.u32 %v3110, 5
        %v3112 = vand.u32 %v3110, 31
        %v3113 = vsub.s32 32, %v3112
        %v3114 = vshrl.u32 683565275, %v3113
        %v3115 = vshll.u32 683565275, %v3112
        %v3116 = vshrl.u32 2475754826, %v3113
        %v3117 = vor.u32 %v3115, %v3116
        %v3118 = vshll.u32 2475754826, %v3112
        %v3119 = vshrl.u32 2131351028, %v3113
        %v3120 = vor.u32 %v3118, %v3119
        %v3121 = vshll.u32 2131351028, %v3112
        %v3122 = vshrl.u32 2102212464, %v3113
        %v3123 = vor.u32 %v3121, %v3122
        %v3124 = vshll.u32 2102212464, %v3112
        %v3125 = vshrl.u32 920167782, %v3113
        %v3126 = vor.u32 %v3124, %v3125
        %v3127 = vshll.u32 920167782, %v3112
        %v3128 = vshrl.u32 1326507024, %v3113
        %v3129 = vor.u32 %v3127, %v3128
        %vm3130 = vcmp.lt.s32.totalorder %v3111, 1
        %vm3131 = vcmp.lt.s32.totalorder %v3111, 2
        %vm3132 = vcmp.lt.s32.totalorder %v3111, 3
        %vm3133 = vcmp.lt.s32.totalorder %v3111, 4
        %v3134 = vsel %vm3130, %v3114, %v3117
        %v3135 = vsel %vm3133, %v3123, 2102212464
        %v3136 = vsel %vm3132, %v3120, %v3135
        %v3137 = vsel %vm3131, %v3134, %v3136
        %v3138 = vsel %vm3130, %v3117, %v3120
        %v3139 = vsel %vm3133, %v3126, 920167782
        %v3140 = vsel %vm3132, %v3123, %v3139
        %v3141 = vsel %vm3131, %v3138, %v3140
        %v3142 = vsel %vm3130, %v3120, %v3123
        %v3143 = vsel %vm3133, %v3129, 1326507024
        %v3144 = vsel %vm3132, %v3126, %v3143
        %v3145 = vsel %vm3131, %v3142, %v3144
        %v3146 = vshll.u32 %v3106, 8
        %v3147 = vmul.u32.u64.compose %v3146, %v3145
        %v3148 = vextract.low.u32 %v3147
        %v3149 = vextract.high.u32 %v3147
        %v3150 = vmul.u32.u64.compose %v3146, %v3141
        %v3151 = vextract.low.u32 %v3150
        %v3152 = vextract.high.u32 %v3150
        %v3153 = vmul.u32 %v3146, %v3137
        %v3154 = vadd.s32 %v3149, %v3151
        %vm3155 = vc.u32 %v3149, %v3151
        %v3156 = vadd.s32 %v3152, 1
        %v3157 = vsel %vm3155, %v3156, %v3152
        %v3158 = vadd.s32 %v3153, %v3157
        %v3159 = vadd.s32 %v3158, 536870912
        %v3160 = vshrl.u32 %v3159, 30
        %v3161 = vshll.u32 %v3160, 30
        %v3162 = vsub.s32 %v3158, %v3161
        %vm3163 = vcmp.lt.s32.totalorder %v3162, 0
        %v3164 = vsub.s32 0, %v3162
        %v3165 = vsel %vm3163, %v3164, %v3162
        %v3166 = vclz %v3165
        %v3167 = vsub.s32 %v3166, 2
        %vm3168 = vcmp.gt.s32.totalorder 0, %v3167
        %v3169 = vsel %vm3168, 0, %v3167
        %v3170 = vsub.s32 32, %v3169
        %v3171 = vshll.u32 %v3162, %v3169
        %v3172 = vshrl.u32 %v3154, %v3170
        %v3173 = vor.u32 %v3171, %v3172
        %v3174 = vsub.s32 4294967266, %v3169
        %v3175 = vadd.s32 %v3174, 127
        %v3176 = vshll.u32 %v3175, 23
        %v3177 = vor.u32 4788187, %v3176
        %v3178 = vand.u32 2147483647, %v3177
        %v3180 = vcvt.s32.f32 %v3173
        %v3181 = vmul.f32 %v3180, %v3178
        %v3182 = vxor.u32 %v3181, 2147483648
        %v3183 = vsel %vm3100, %v3182, %v3181
        %v3184 = vsub.s32 4, %v3160
        %v3185 = vsel %vm3100, %v3184, %v3160
        %v3186 = vsel %vm3099, %v1077, %v3183
        %v3187 = vsel %vm3099, 0, %v3185
        %v3188 = vcosq.f32.pop %v3186
        %v3189 = vsinq.f32.pop %v3186
        %vm3190 = vweird.f32 %v1077
        %v3191 = vadd.s32 %v3187, 3
        %v3192 = vand.u32 %v3191, 3
        %vm3193 = vcmp.lt.s32.totalorder %v3192, 2
        %vm3194 = vcmp.eq.s32.totalorder %v3192, 0
        %v3195 = vxor.u32 %v3189, 2147483648
        %v3196 = vsel %vm3194, %v3188, %v3195
        %vm3197 = vcmp.eq.s32.totalorder %v3192, 2
        %v3198 = vxor.u32 %v3188, 2147483648
        %v3199 = vsel %vm3197, %v3198, %v3189
        %v3200 = vsel %vm3193, %v3196, %v3199
        %v3201 = vsel %vm3190, nan, %v3200
        %v3202 = vand.u32 2147483647, %v1078
        %vm3203 = vcmp.le.f32.partialorder %v3202, 0.7853982
        %vm3204 = vcmp.lt.s32.totalorder %v1078, 0
        %v3205 = vand.u32 %v1078, 2139095040
        %v3206 = vshrl.u32 %v3205, 23
        %v3207 = vsub.s32 %v3206, 127
        %v3208 = vand.u32 2147483647, %v1078
        %v3209 = vand.u32 %v3208, 8388607
        %v3210 = vor.u32 %v3209, 8388608
        %v3211 = vsub.s32 0, %v3210
        %v3212 = vadd.s32 %v3207, 1
        %vm3213 = vcmp.gt.s32.totalorder %v3212, 0
        %v3214 = vsel %vm3213, %v3212, 0
        %v3215 = vshrl.u32 %v3214, 5
        %v3216 = vand.u32 %v3214, 31
        %v3217 = vsub.s32 32, %v3216
        %v3218 = vshrl.u32 683565275, %v3217
        %v3219 = vshll.u32 683565275, %v3216
        %v3220 = vshrl.u32 2475754826, %v3217
        %v3221 = vor.u32 %v3219, %v3220
        %v3222 = vshll.u32 2475754826, %v3216
        %v3223 = vshrl.u32 2131351028, %v3217
        %v3224 = vor.u32 %v3222, %v3223
        %v3225 = vshll.u32 2131351028, %v3216
        %v3226 = vshrl.u32 2102212464, %v3217
        %v3227 = vor.u32 %v3225, %v3226
        %v3228 = vshll.u32 2102212464, %v3216
        %v3229 = vshrl.u32 920167782, %v3217
        %v3230 = vor.u32 %v3228, %v3229
        %v3231 = vshll.u32 920167782, %v3216
        %v3232 = vshrl.u32 1326507024, %v3217
        %v3233 = vor.u32 %v3231, %v3232
        %vm3234 = vcmp.lt.s32.totalorder %v3215, 1
        %vm3235 = vcmp.lt.s32.totalorder %v3215, 2
        %vm3236 = vcmp.lt.s32.totalorder %v3215, 3
        %vm3237 = vcmp.lt.s32.totalorder %v3215, 4
        %v3238 = vsel %vm3234, %v3218, %v3221
        %v3239 = vsel %vm3237, %v3227, 2102212464
        %v3240 = vsel %vm3236, %v3224, %v3239
        %v3241 = vsel %vm3235, %v3238, %v3240
        %v3242 = vsel %vm3234, %v3221, %v3224
        %v3243 = vsel %vm3237, %v3230, 920167782
        %v3244 = vsel %vm3236, %v3227, %v3243
        %v3245 = vsel %vm3235, %v3242, %v3244
        %v3246 = vsel %vm3234, %v3224, %v3227
        %v3247 = vsel %vm3237, %v3233, 1326507024
        %v3248 = vsel %vm3236, %v3230, %v3247
        %v3249 = vsel %vm3235, %v3246, %v3248
        %v3250 = vshll.u32 %v3210, 8
        %v3251 = vmul.u32.u64.compose %v3250, %v3249
        %v3252 = vextract.low.u32 %v3251
        %v3253 = vextract.high.u32 %v3251
        %v3254 = vmul.u32.u64.compose %v3250, %v3245
        %v3255 = vextract.low.u32 %v3254
        %v3256 = vextract.high.u32 %v3254
        %v3257 = vmul.u32 %v3250, %v3241
        %v3258 = vadd.s32 %v3253, %v3255
        %vm3259 = vc.u32 %v3253, %v3255
        %v3260 = vadd.s32 %v3256, 1
        %v3261 = vsel %vm3259, %v3260, %v3256
        %v3262 = vadd.s32 %v3257, %v3261
        %v3263 = vadd.s32 %v3262, 536870912
        %v3264 = vshrl.u32 %v3263, 30
        %v3265 = vshll.u32 %v3264, 30
        %v3266 = vsub.s32 %v3262, %v3265
        %vm3267 = vcmp.lt.s32.totalorder %v3266, 0
        %v3268 = vsub.s32 0, %v3266
        %v3269 = vsel %vm3267, %v3268, %v3266
        %v3270 = vclz %v3269
        %v3271 = vsub.s32 %v3270, 2
        %vm3272 = vcmp.gt.s32.totalorder 0, %v3271
        %v3273 = vsel %vm3272, 0, %v3271
        %v3274 = vsub.s32 32, %v3273
        %v3275 = vshll.u32 %v3266, %v3273
        %v3276 = vshrl.u32 %v3258, %v3274
        %v3277 = vor.u32 %v3275, %v3276
        %v3278 = vsub.s32 4294967266, %v3273
        %v3279 = vadd.s32 %v3278, 127
        %v3280 = vshll.u32 %v3279, 23
        %v3281 = vor.u32 4788187, %v3280
        %v3282 = vand.u32 2147483647, %v3281
        %v3284 = vcvt.s32.f32 %v3277
        %v3285 = vmul.f32 %v3284, %v3282
        %v3286 = vxor.u32 %v3285, 2147483648
        %v3287 = vsel %vm3204, %v3286, %v3285
        %v3288 = vsub.s32 4, %v3264
        %v3289 = vsel %vm3204, %v3288, %v3264
        %v3290 = vsel %vm3203, %v1078, %v3287
        %v3291 = vsel %vm3203, 0, %v3289
        %v3292 = vcosq.f32.pop %v3290
        %v3293 = vsinq.f32.pop %v3290
        %vm3294 = vweird.f32 %v1078
        %v3295 = vadd.s32 %v3291, 3
        %v3296 = vand.u32 %v3295, 3
        %vm3297 = vcmp.lt.s32.totalorder %v3296, 2
        %vm3298 = vcmp.eq.s32.totalorder %v3296, 0
        %v3299 = vxor.u32 %v3293, 2147483648
        %v3300 = vsel %vm3298, %v3292, %v3299
        %vm3301 = vcmp.eq.s32.totalorder %v3296, 2
        %v3302 = vxor.u32 %v3292, 2147483648
        %v3303 = vsel %vm3301, %v3302, %v3293
        %v3304 = vsel %vm3297, %v3300, %v3303
        %v3305 = vsel %vm3294, nan, %v3304
        %v3306 = vand.u32 2147483647, %v1079
        %vm3307 = vcmp.le.f32.partialorder %v3306, 0.7853982
        %vm3308 = vcmp.lt.s32.totalorder %v1079, 0
        %v3309 = vand.u32 %v1079, 2139095040
        %v3310 = vshrl.u32 %v3309, 23
        %v3311 = vsub.s32 %v3310, 127
        %v3312 = vand.u32 2147483647, %v1079
        %v3313 = vand.u32 %v3312, 8388607
        %v3314 = vor.u32 %v3313, 8388608
        %v3315 = vsub.s32 0, %v3314
        %v3316 = vadd.s32 %v3311, 1
        %vm3317 = vcmp.gt.s32.totalorder %v3316, 0
        %v3318 = vsel %vm3317, %v3316, 0
        %v3319 = vshrl.u32 %v3318, 5
        %v3320 = vand.u32 %v3318, 31
        %v3321 = vsub.s32 32, %v3320
        %v3322 = vshrl.u32 683565275, %v3321
        %v3323 = vshll.u32 683565275, %v3320
        %v3324 = vshrl.u32 2475754826, %v3321
        %v3325 = vor.u32 %v3323, %v3324
        %v3326 = vshll.u32 2475754826, %v3320
        %v3327 = vshrl.u32 2131351028, %v3321
        %v3328 = vor.u32 %v3326, %v3327
        %v3329 = vshll.u32 2131351028, %v3320
        %v3330 = vshrl.u32 2102212464, %v3321
        %v3331 = vor.u32 %v3329, %v3330
        %v3332 = vshll.u32 2102212464, %v3320
        %v3333 = vshrl.u32 920167782, %v3321
        %v3334 = vor.u32 %v3332, %v3333
        %v3335 = vshll.u32 920167782, %v3320
        %v3336 = vshrl.u32 1326507024, %v3321
        %v3337 = vor.u32 %v3335, %v3336
        %vm3338 = vcmp.lt.s32.totalorder %v3319, 1
        %vm3339 = vcmp.lt.s32.totalorder %v3319, 2
        %vm3340 = vcmp.lt.s32.totalorder %v3319, 3
        %vm3341 = vcmp.lt.s32.totalorder %v3319, 4
        %v3342 = vsel %vm3338, %v3322, %v3325
        %v3343 = vsel %vm3341, %v3331, 2102212464
        %v3344 = vsel %vm3340, %v3328, %v3343
        %v3345 = vsel %vm3339, %v3342, %v3344
        %v3346 = vsel %vm3338, %v3325, %v3328
        %v3347 = vsel %vm3341, %v3334, 920167782
        %v3348 = vsel %vm3340, %v3331, %v3347
        %v3349 = vsel %vm3339, %v3346, %v3348
        %v3350 = vsel %vm3338, %v3328, %v3331
        %v3351 = vsel %vm3341, %v3337, 1326507024
        %v3352 = vsel %vm3340, %v3334, %v3351
        %v3353 = vsel %vm3339, %v3350, %v3352
        %v3354 = vshll.u32 %v3314, 8
        %v3355 = vmul.u32.u64.compose %v3354, %v3353
        %v3356 = vextract.low.u32 %v3355
        %v3357 = vextract.high.u32 %v3355
        %v3358 = vmul.u32.u64.compose %v3354, %v3349
        %v3359 = vextract.low.u32 %v3358
        %v3360 = vextract.high.u32 %v3358
        %v3361 = vmul.u32 %v3354, %v3345
        %v3362 = vadd.s32 %v3357, %v3359
        %vm3363 = vc.u32 %v3357, %v3359
        %v3364 = vadd.s32 %v3360, 1
        %v3365 = vsel %vm3363, %v3364, %v3360
        %v3366 = vadd.s32 %v3361, %v3365
        %v3367 = vadd.s32 %v3366, 536870912
        %v3368 = vshrl.u32 %v3367, 30
        %v3369 = vshll.u32 %v3368, 30
        %v3370 = vsub.s32 %v3366, %v3369
        %vm3371 = vcmp.lt.s32.totalorder %v3370, 0
        %v3372 = vsub.s32 0, %v3370
        %v3373 = vsel %vm3371, %v3372, %v3370
        %v3374 = vclz %v3373
        %v3375 = vsub.s32 %v3374, 2
        %vm3376 = vcmp.gt.s32.totalorder 0, %v3375
        %v3377 = vsel %vm3376, 0, %v3375
        %v3378 = vsub.s32 32, %v3377
        %v3379 = vshll.u32 %v3370, %v3377
        %v3380 = vshrl.u32 %v3362, %v3378
        %v3381 = vor.u32 %v3379, %v3380
        %v3382 = vsub.s32 4294967266, %v3377
        %v3383 = vadd.s32 %v3382, 127
        %v3384 = vshll.u32 %v3383, 23
        %v3385 = vor.u32 4788187, %v3384
        %v3386 = vand.u32 2147483647, %v3385
        %v3388 = vcvt.s32.f32 %v3381
        %v3389 = vmul.f32 %v3388, %v3386
        %v3390 = vxor.u32 %v3389, 2147483648
        %v3391 = vsel %vm3308, %v3390, %v3389
        %v3392 = vsub.s32 4, %v3368
        %v3393 = vsel %vm3308, %v3392, %v3368
        %v3394 = vsel %vm3307, %v1079, %v3391
        %v3395 = vsel %vm3307, 0, %v3393
        %v3396 = vcosq.f32.pop %v3394
        %v3397 = vsinq.f32.pop %v3394
        %vm3398 = vweird.f32 %v1079
        %v3399 = vadd.s32 %v3395, 3
        %v3400 = vand.u32 %v3399, 3
        %vm3401 = vcmp.lt.s32.totalorder %v3400, 2
        %vm3402 = vcmp.eq.s32.totalorder %v3400, 0
        %v3403 = vxor.u32 %v3397, 2147483648
        %v3404 = vsel %vm3402, %v3396, %v3403
        %vm3405 = vcmp.eq.s32.totalorder %v3400, 2
        %v3406 = vxor.u32 %v3396, 2147483648
        %v3407 = vsel %vm3405, %v3406, %v3397
        %v3408 = vsel %vm3401, %v3404, %v3407
        %v3409 = vsel %vm3398, nan, %v3408
        %v3410 = vand.u32 2147483647, %v1080
        %vm3411 = vcmp.le.f32.partialorder %v3410, 0.7853982
        %vm3412 = vcmp.lt.s32.totalorder %v1080, 0
        %v3413 = vand.u32 %v1080, 2139095040
        %v3414 = vshrl.u32 %v3413, 23
        %v3415 = vsub.s32 %v3414, 127
        %v3416 = vand.u32 2147483647, %v1080
        %v3417 = vand.u32 %v3416, 8388607
        %v3418 = vor.u32 %v3417, 8388608
        %v3419 = vsub.s32 0, %v3418
        %v3420 = vadd.s32 %v3415, 1
        %vm3421 = vcmp.gt.s32.totalorder %v3420, 0
        %v3422 = vsel %vm3421, %v3420, 0
        %v3423 = vshrl.u32 %v3422, 5
        %v3424 = vand.u32 %v3422, 31
        %v3425 = vsub.s32 32, %v3424
        %v3426 = vshrl.u32 683565275, %v3425
        %v3427 = vshll.u32 683565275, %v3424
        %v3428 = vshrl.u32 2475754826, %v3425
        %v3429 = vor.u32 %v3427, %v3428
        %v3430 = vshll.u32 2475754826, %v3424
        %v3431 = vshrl.u32 2131351028, %v3425
        %v3432 = vor.u32 %v3430, %v3431
        %v3433 = vshll.u32 2131351028, %v3424
        %v3434 = vshrl.u32 2102212464, %v3425
        %v3435 = vor.u32 %v3433, %v3434
        %v3436 = vshll.u32 2102212464, %v3424
        %v3437 = vshrl.u32 920167782, %v3425
        %v3438 = vor.u32 %v3436, %v3437
        %v3439 = vshll.u32 920167782, %v3424
        %v3440 = vshrl.u32 1326507024, %v3425
        %v3441 = vor.u32 %v3439, %v3440
        %vm3442 = vcmp.lt.s32.totalorder %v3423, 1
        %vm3443 = vcmp.lt.s32.totalorder %v3423, 2
        %vm3444 = vcmp.lt.s32.totalorder %v3423, 3
        %vm3445 = vcmp.lt.s32.totalorder %v3423, 4
        %v3446 = vsel %vm3442, %v3426, %v3429
        %v3447 = vsel %vm3445, %v3435, 2102212464
        %v3448 = vsel %vm3444, %v3432, %v3447
        %v3449 = vsel %vm3443, %v3446, %v3448
        %v3450 = vsel %vm3442, %v3429, %v3432
        %v3451 = vsel %vm3445, %v3438, 920167782
        %v3452 = vsel %vm3444, %v3435, %v3451
        %v3453 = vsel %vm3443, %v3450, %v3452
        %v3454 = vsel %vm3442, %v3432, %v3435
        %v3455 = vsel %vm3445, %v3441, 1326507024
        %v3456 = vsel %vm3444, %v3438, %v3455
        %v3457 = vsel %vm3443, %v3454, %v3456
        %v3458 = vshll.u32 %v3418, 8
        %v3459 = vmul.u32.u64.compose %v3458, %v3457
        %v3460 = vextract.low.u32 %v3459
        %v3461 = vextract.high.u32 %v3459
        %v3462 = vmul.u32.u64.compose %v3458, %v3453
        %v3463 = vextract.low.u32 %v3462
        %v3464 = vextract.high.u32 %v3462
        %v3465 = vmul.u32 %v3458, %v3449
        %v3466 = vadd.s32 %v3461, %v3463
        %vm3467 = vc.u32 %v3461, %v3463
        %v3468 = vadd.s32 %v3464, 1
        %v3469 = vsel %vm3467, %v3468, %v3464
        %v3470 = vadd.s32 %v3465, %v3469
        %v3471 = vadd.s32 %v3470, 536870912
        %v3472 = vshrl.u32 %v3471, 30
        %v3473 = vshll.u32 %v3472, 30
        %v3474 = vsub.s32 %v3470, %v3473
        %vm3475 = vcmp.lt.s32.totalorder %v3474, 0
        %v3476 = vsub.s32 0, %v3474
        %v3477 = vsel %vm3475, %v3476, %v3474
        %v3478 = vclz %v3477
        %v3479 = vsub.s32 %v3478, 2
        %vm3480 = vcmp.gt.s32.totalorder 0, %v3479
        %v3481 = vsel %vm3480, 0, %v3479
        %v3482 = vsub.s32 32, %v3481
        %v3483 = vshll.u32 %v3474, %v3481
        %v3484 = vshrl.u32 %v3466, %v3482
        %v3485 = vor.u32 %v3483, %v3484
        %v3486 = vsub.s32 4294967266, %v3481
        %v3487 = vadd.s32 %v3486, 127
        %v3488 = vshll.u32 %v3487, 23
        %v3489 = vor.u32 4788187, %v3488
        %v3490 = vand.u32 2147483647, %v3489
        %v3492 = vcvt.s32.f32 %v3485
        %v3493 = vmul.f32 %v3492, %v3490
        %v3494 = vxor.u32 %v3493, 2147483648
        %v3495 = vsel %vm3412, %v3494, %v3493
        %v3496 = vsub.s32 4, %v3472
        %v3497 = vsel %vm3412, %v3496, %v3472
        %v3498 = vsel %vm3411, %v1080, %v3495
        %v3499 = vsel %vm3411, 0, %v3497
        %v3500 = vcosq.f32.pop %v3498
        %v3501 = vsinq.f32.pop %v3498
        %vm3502 = vweird.f32 %v1080
        %v3503 = vadd.s32 %v3499, 3
        %v3504 = vand.u32 %v3503, 3
        %vm3505 = vcmp.lt.s32.totalorder %v3504, 2
        %vm3506 = vcmp.eq.s32.totalorder %v3504, 0
        %v3507 = vxor.u32 %v3501, 2147483648
        %v3508 = vsel %vm3506, %v3500, %v3507
        %vm3509 = vcmp.eq.s32.totalorder %v3504, 2
        %v3510 = vxor.u32 %v3500, 2147483648
        %v3511 = vsel %vm3509, %v3510, %v3501
        %v3512 = vsel %vm3505, %v3508, %v3511
        %v3513 = vsel %vm3502, nan, %v3512
        %v3514 = vand.u32 2147483647, %v1081
        %vm3515 = vcmp.le.f32.partialorder %v3514, 0.7853982
        %vm3516 = vcmp.lt.s32.totalorder %v1081, 0
        %v3517 = vand.u32 %v1081, 2139095040
        %v3518 = vshrl.u32 %v3517, 23
        %v3519 = vsub.s32 %v3518, 127
        %v3520 = vand.u32 2147483647, %v1081
        %v3521 = vand.u32 %v3520, 8388607
        %v3522 = vor.u32 %v3521, 8388608
        %v3523 = vsub.s32 0, %v3522
        %v3524 = vadd.s32 %v3519, 1
        %vm3525 = vcmp.gt.s32.totalorder %v3524, 0
        %v3526 = vsel %vm3525, %v3524, 0
        %v3527 = vshrl.u32 %v3526, 5
        %v3528 = vand.u32 %v3526, 31
        %v3529 = vsub.s32 32, %v3528
        %v3530 = vshrl.u32 683565275, %v3529
        %v3531 = vshll.u32 683565275, %v3528
        %v3532 = vshrl.u32 2475754826, %v3529
        %v3533 = vor.u32 %v3531, %v3532
        %v3534 = vshll.u32 2475754826, %v3528
        %v3535 = vshrl.u32 2131351028, %v3529
        %v3536 = vor.u32 %v3534, %v3535
        %v3537 = vshll.u32 2131351028, %v3528
        %v3538 = vshrl.u32 2102212464, %v3529
        %v3539 = vor.u32 %v3537, %v3538
        %v3540 = vshll.u32 2102212464, %v3528
        %v3541 = vshrl.u32 920167782, %v3529
        %v3542 = vor.u32 %v3540, %v3541
        %v3543 = vshll.u32 920167782, %v3528
        %v3544 = vshrl.u32 1326507024, %v3529
        %v3545 = vor.u32 %v3543, %v3544
        %vm3546 = vcmp.lt.s32.totalorder %v3527, 1
        %vm3547 = vcmp.lt.s32.totalorder %v3527, 2
        %vm3548 = vcmp.lt.s32.totalorder %v3527, 3
        %vm3549 = vcmp.lt.s32.totalorder %v3527, 4
        %v3550 = vsel %vm3546, %v3530, %v3533
        %v3551 = vsel %vm3549, %v3539, 2102212464
        %v3552 = vsel %vm3548, %v3536, %v3551
        %v3553 = vsel %vm3547, %v3550, %v3552
        %v3554 = vsel %vm3546, %v3533, %v3536
        %v3555 = vsel %vm3549, %v3542, 920167782
        %v3556 = vsel %vm3548, %v3539, %v3555
        %v3557 = vsel %vm3547, %v3554, %v3556
        %v3558 = vsel %vm3546, %v3536, %v3539
        %v3559 = vsel %vm3549, %v3545, 1326507024
        %v3560 = vsel %vm3548, %v3542, %v3559
        %v3561 = vsel %vm3547, %v3558, %v3560
        %v3562 = vshll.u32 %v3522, 8
        %v3563 = vmul.u32.u64.compose %v3562, %v3561
        %v3564 = vextract.low.u32 %v3563
        %v3565 = vextract.high.u32 %v3563
        %v3566 = vmul.u32.u64.compose %v3562, %v3557
        %v3567 = vextract.low.u32 %v3566
        %v3568 = vextract.high.u32 %v3566
        %v3569 = vmul.u32 %v3562, %v3553
        %v3570 = vadd.s32 %v3565, %v3567
        %vm3571 = vc.u32 %v3565, %v3567
        %v3572 = vadd.s32 %v3568, 1
        %v3573 = vsel %vm3571, %v3572, %v3568
        %v3574 = vadd.s32 %v3569, %v3573
        %v3575 = vadd.s32 %v3574, 536870912
        %v3576 = vshrl.u32 %v3575, 30
        %v3577 = vshll.u32 %v3576, 30
        %v3578 = vsub.s32 %v3574, %v3577
        %vm3579 = vcmp.lt.s32.totalorder %v3578, 0
        %v3580 = vsub.s32 0, %v3578
        %v3581 = vsel %vm3579, %v3580, %v3578
        %v3582 = vclz %v3581
        %v3583 = vsub.s32 %v3582, 2
        %vm3584 = vcmp.gt.s32.totalorder 0, %v3583
        %v3585 = vsel %vm3584, 0, %v3583
        %v3586 = vsub.s32 32, %v3585
        %v3587 = vshll.u32 %v3578, %v3585
        %v3588 = vshrl.u32 %v3570, %v3586
        %v3589 = vor.u32 %v3587, %v3588
        %v3590 = vsub.s32 4294967266, %v3585
        %v3591 = vadd.s32 %v3590, 127
        %v3592 = vshll.u32 %v3591, 23
        %v3593 = vor.u32 4788187, %v3592
        %v3594 = vand.u32 2147483647, %v3593
        %v3596 = vcvt.s32.f32 %v3589
        %v3597 = vmul.f32 %v3596, %v3594
        %v3598 = vxor.u32 %v3597, 2147483648
        %v3599 = vsel %vm3516, %v3598, %v3597
        %v3600 = vsub.s32 4, %v3576
        %v3601 = vsel %vm3516, %v3600, %v3576
        %v3602 = vsel %vm3515, %v1081, %v3599
        %v3603 = vsel %vm3515, 0, %v3601
        %v3604 = vcosq.f32.pop %v3602
        %v3605 = vsinq.f32.pop %v3602
        %vm3606 = vweird.f32 %v1081
        %v3607 = vadd.s32 %v3603, 3
        %v3608 = vand.u32 %v3607, 3
        %vm3609 = vcmp.lt.s32.totalorder %v3608, 2
        %vm3610 = vcmp.eq.s32.totalorder %v3608, 0
        %v3611 = vxor.u32 %v3605, 2147483648
        %v3612 = vsel %vm3610, %v3604, %v3611
        %vm3613 = vcmp.eq.s32.totalorder %v3608, 2
        %v3614 = vxor.u32 %v3604, 2147483648
        %v3615 = vsel %vm3613, %v3614, %v3605
        %v3616 = vsel %vm3609, %v3612, %v3615
        %v3617 = vsel %vm3606, nan, %v3616
        %v3618 = vand.u32 2147483647, %v1082
        %vm3619 = vcmp.le.f32.partialorder %v3618, 0.7853982
        %vm3620 = vcmp.lt.s32.totalorder %v1082, 0
        %v3621 = vand.u32 %v1082, 2139095040
        %v3622 = vshrl.u32 %v3621, 23
        %v3623 = vsub.s32 %v3622, 127
        %v3624 = vand.u32 2147483647, %v1082
        %v3625 = vand.u32 %v3624, 8388607
        %v3626 = vor.u32 %v3625, 8388608
        %v3627 = vsub.s32 0, %v3626
        %v3628 = vadd.s32 %v3623, 1
        %vm3629 = vcmp.gt.s32.totalorder %v3628, 0
        %v3630 = vsel %vm3629, %v3628, 0
        %v3631 = vshrl.u32 %v3630, 5
        %v3632 = vand.u32 %v3630, 31
        %v3633 = vsub.s32 32, %v3632
        %v3634 = vshrl.u32 683565275, %v3633
        %v3635 = vshll.u32 683565275, %v3632
        %v3636 = vshrl.u32 2475754826, %v3633
        %v3637 = vor.u32 %v3635, %v3636
        %v3638 = vshll.u32 2475754826, %v3632
        %v3639 = vshrl.u32 2131351028, %v3633
        %v3640 = vor.u32 %v3638, %v3639
        %v3641 = vshll.u32 2131351028, %v3632
        %v3642 = vshrl.u32 2102212464, %v3633
        %v3643 = vor.u32 %v3641, %v3642
        %v3644 = vshll.u32 2102212464, %v3632
        %v3645 = vshrl.u32 920167782, %v3633
        %v3646 = vor.u32 %v3644, %v3645
        %v3647 = vshll.u32 920167782, %v3632
        %v3648 = vshrl.u32 1326507024, %v3633
        %v3649 = vor.u32 %v3647, %v3648
        %vm3650 = vcmp.lt.s32.totalorder %v3631, 1
        %vm3651 = vcmp.lt.s32.totalorder %v3631, 2
        %vm3652 = vcmp.lt.s32.totalorder %v3631, 3
        %vm3653 = vcmp.lt.s32.totalorder %v3631, 4
        %v3654 = vsel %vm3650, %v3634, %v3637
        %v3655 = vsel %vm3653, %v3643, 2102212464
        %v3656 = vsel %vm3652, %v3640, %v3655
        %v3657 = vsel %vm3651, %v3654, %v3656
        %v3658 = vsel %vm3650, %v3637, %v3640
        %v3659 = vsel %vm3653, %v3646, 920167782
        %v3660 = vsel %vm3652, %v3643, %v3659
        %v3661 = vsel %vm3651, %v3658, %v3660
        %v3662 = vsel %vm3650, %v3640, %v3643
        %v3663 = vsel %vm3653, %v3649, 1326507024
        %v3664 = vsel %vm3652, %v3646, %v3663
        %v3665 = vsel %vm3651, %v3662, %v3664
        %v3666 = vshll.u32 %v3626, 8
        %v3667 = vmul.u32.u64.compose %v3666, %v3665
        %v3668 = vextract.low.u32 %v3667
        %v3669 = vextract.high.u32 %v3667
        %v3670 = vmul.u32.u64.compose %v3666, %v3661
        %v3671 = vextract.low.u32 %v3670
        %v3672 = vextract.high.u32 %v3670
        %v3673 = vmul.u32 %v3666, %v3657
        %v3674 = vadd.s32 %v3669, %v3671
        %vm3675 = vc.u32 %v3669, %v3671
        %v3676 = vadd.s32 %v3672, 1
        %v3677 = vsel %vm3675, %v3676, %v3672
        %v3678 = vadd.s32 %v3673, %v3677
        %v3679 = vadd.s32 %v3678, 536870912
        %v3680 = vshrl.u32 %v3679, 30
        %v3681 = vshll.u32 %v3680, 30
        %v3682 = vsub.s32 %v3678, %v3681
        %vm3683 = vcmp.lt.s32.totalorder %v3682, 0
        %v3684 = vsub.s32 0, %v3682
        %v3685 = vsel %vm3683, %v3684, %v3682
        %v3686 = vclz %v3685
        %v3687 = vsub.s32 %v3686, 2
        %vm3688 = vcmp.gt.s32.totalorder 0, %v3687
        %v3689 = vsel %vm3688, 0, %v3687
        %v3690 = vsub.s32 32, %v3689
        %v3691 = vshll.u32 %v3682, %v3689
        %v3692 = vshrl.u32 %v3674, %v3690
        %v3693 = vor.u32 %v3691, %v3692
        %v3694 = vsub.s32 4294967266, %v3689
        %v3695 = vadd.s32 %v3694, 127
        %v3696 = vshll.u32 %v3695, 23
        %v3697 = vor.u32 4788187, %v3696
        %v3698 = vand.u32 2147483647, %v3697
        %v3700 = vcvt.s32.f32 %v3693
        %v3701 = vmul.f32 %v3700, %v3698
        %v3702 = vxor.u32 %v3701, 2147483648
        %v3703 = vsel %vm3620, %v3702, %v3701
        %v3704 = vsub.s32 4, %v3680
        %v3705 = vsel %vm3620, %v3704, %v3680
        %v3706 = vsel %vm3619, %v1082, %v3703
        %v3707 = vsel %vm3619, 0, %v3705
        %v3708 = vcosq.f32.pop %v3706
        %v3709 = vsinq.f32.pop %v3706
        %vm3710 = vweird.f32 %v1082
        %v3711 = vadd.s32 %v3707, 3
        %v3712 = vand.u32 %v3711, 3
        %vm3713 = vcmp.lt.s32.totalorder %v3712, 2
        %vm3714 = vcmp.eq.s32.totalorder %v3712, 0
        %v3715 = vxor.u32 %v3709, 2147483648
        %v3716 = vsel %vm3714, %v3708, %v3715
        %vm3717 = vcmp.eq.s32.totalorder %v3712, 2
        %v3718 = vxor.u32 %v3708, 2147483648
        %v3719 = vsel %vm3717, %v3718, %v3709
        %v3720 = vsel %vm3713, %v3716, %v3719
        %v3721 = vsel %vm3710, nan, %v3720
        %v3722 = vand.u32 2147483647, %v1083
        %vm3723 = vcmp.le.f32.partialorder %v3722, 0.7853982
        %vm3724 = vcmp.lt.s32.totalorder %v1083, 0
        %v3725 = vand.u32 %v1083, 2139095040
        %v3726 = vshrl.u32 %v3725, 23
        %v3727 = vsub.s32 %v3726, 127
        %v3728 = vand.u32 2147483647, %v1083
        %v3729 = vand.u32 %v3728, 8388607
        %v3730 = vor.u32 %v3729, 8388608
        %v3731 = vsub.s32 0, %v3730
        %v3732 = vadd.s32 %v3727, 1
        %vm3733 = vcmp.gt.s32.totalorder %v3732, 0
        %v3734 = vsel %vm3733, %v3732, 0
        %v3735 = vshrl.u32 %v3734, 5
        %v3736 = vand.u32 %v3734, 31
        %v3737 = vsub.s32 32, %v3736
        %v3738 = vshrl.u32 683565275, %v3737
        %v3739 = vshll.u32 683565275, %v3736
        %v3740 = vshrl.u32 2475754826, %v3737
        %v3741 = vor.u32 %v3739, %v3740
        %v3742 = vshll.u32 2475754826, %v3736
        %v3743 = vshrl.u32 2131351028, %v3737
        %v3744 = vor.u32 %v3742, %v3743
        %v3745 = vshll.u32 2131351028, %v3736
        %v3746 = vshrl.u32 2102212464, %v3737
        %v3747 = vor.u32 %v3745, %v3746
        %v3748 = vshll.u32 2102212464, %v3736
        %v3749 = vshrl.u32 920167782, %v3737
        %v3750 = vor.u32 %v3748, %v3749
        %v3751 = vshll.u32 920167782, %v3736
        %v3752 = vshrl.u32 1326507024, %v3737
        %v3753 = vor.u32 %v3751, %v3752
        %vm3754 = vcmp.lt.s32.totalorder %v3735, 1
        %vm3755 = vcmp.lt.s32.totalorder %v3735, 2
        %vm3756 = vcmp.lt.s32.totalorder %v3735, 3
        %vm3757 = vcmp.lt.s32.totalorder %v3735, 4
        %v3758 = vsel %vm3754, %v3738, %v3741
        %v3759 = vsel %vm3757, %v3747, 2102212464
        %v3760 = vsel %vm3756, %v3744, %v3759
        %v3761 = vsel %vm3755, %v3758, %v3760
        %v3762 = vsel %vm3754, %v3741, %v3744
        %v3763 = vsel %vm3757, %v3750, 920167782
        %v3764 = vsel %vm3756, %v3747, %v3763
        %v3765 = vsel %vm3755, %v3762, %v3764
        %v3766 = vsel %vm3754, %v3744, %v3747
        %v3767 = vsel %vm3757, %v3753, 1326507024
        %v3768 = vsel %vm3756, %v3750, %v3767
        %v3769 = vsel %vm3755, %v3766, %v3768
        %v3770 = vshll.u32 %v3730, 8
        %v3771 = vmul.u32.u64.compose %v3770, %v3769
        %v3772 = vextract.low.u32 %v3771
        %v3773 = vextract.high.u32 %v3771
        %v3774 = vmul.u32.u64.compose %v3770, %v3765
        %v3775 = vextract.low.u32 %v3774
        %v3776 = vextract.high.u32 %v3774
        %v3777 = vmul.u32 %v3770, %v3761
        %v3778 = vadd.s32 %v3773, %v3775
        %vm3779 = vc.u32 %v3773, %v3775
        %v3780 = vadd.s32 %v3776, 1
        %v3781 = vsel %vm3779, %v3780, %v3776
        %v3782 = vadd.s32 %v3777, %v3781
        %v3783 = vadd.s32 %v3782, 536870912
        %v3784 = vshrl.u32 %v3783, 30
        %v3785 = vshll.u32 %v3784, 30
        %v3786 = vsub.s32 %v3782, %v3785
        %vm3787 = vcmp.lt.s32.totalorder %v3786, 0
        %v3788 = vsub.s32 0, %v3786
        %v3789 = vsel %vm3787, %v3788, %v3786
        %v3790 = vclz %v3789
        %v3791 = vsub.s32 %v3790, 2
        %vm3792 = vcmp.gt.s32.totalorder 0, %v3791
        %v3793 = vsel %vm3792, 0, %v3791
        %v3794 = vsub.s32 32, %v3793
        %v3795 = vshll.u32 %v3786, %v3793
        %v3796 = vshrl.u32 %v3778, %v3794
        %v3797 = vor.u32 %v3795, %v3796
        %v3798 = vsub.s32 4294967266, %v3793
        %v3799 = vadd.s32 %v3798, 127
        %v3800 = vshll.u32 %v3799, 23
        %v3801 = vor.u32 4788187, %v3800
        %v3802 = vand.u32 2147483647, %v3801
        %v3804 = vcvt.s32.f32 %v3797
        %v3805 = vmul.f32 %v3804, %v3802
        %v3806 = vxor.u32 %v3805, 2147483648
        %v3807 = vsel %vm3724, %v3806, %v3805
        %v3808 = vsub.s32 4, %v3784
        %v3809 = vsel %vm3724, %v3808, %v3784
        %v3810 = vsel %vm3723, %v1083, %v3807
        %v3811 = vsel %vm3723, 0, %v3809
        %v3812 = vcosq.f32.pop %v3810
        %v3813 = vsinq.f32.pop %v3810
        %vm3814 = vweird.f32 %v1083
        %v3815 = vadd.s32 %v3811, 3
        %v3816 = vand.u32 %v3815, 3
        %vm3817 = vcmp.lt.s32.totalorder %v3816, 2
        %vm3818 = vcmp.eq.s32.totalorder %v3816, 0
        %v3819 = vxor.u32 %v3813, 2147483648
        %v3820 = vsel %vm3818, %v3812, %v3819
        %vm3821 = vcmp.eq.s32.totalorder %v3816, 2
        %v3822 = vxor.u32 %v3812, 2147483648
        %v3823 = vsel %vm3821, %v3822, %v3813
        %v3824 = vsel %vm3817, %v3820, %v3823
        %v3825 = vsel %vm3814, nan, %v3824
        %v3826 = vand.u32 2147483647, %v1084
        %vm3827 = vcmp.le.f32.partialorder %v3826, 0.7853982
        %vm3828 = vcmp.lt.s32.totalorder %v1084, 0
        %v3829 = vand.u32 %v1084, 2139095040
        %v3830 = vshrl.u32 %v3829, 23
        %v3831 = vsub.s32 %v3830, 127
        %v3832 = vand.u32 2147483647, %v1084
        %v3833 = vand.u32 %v3832, 8388607
        %v3834 = vor.u32 %v3833, 8388608
        %v3835 = vsub.s32 0, %v3834
        %v3836 = vadd.s32 %v3831, 1
        %vm3837 = vcmp.gt.s32.totalorder %v3836, 0
        %v3838 = vsel %vm3837, %v3836, 0
        %v3839 = vshrl.u32 %v3838, 5
        %v3840 = vand.u32 %v3838, 31
        %v3841 = vsub.s32 32, %v3840
        %v3842 = vshrl.u32 683565275, %v3841
        %v3843 = vshll.u32 683565275, %v3840
        %v3844 = vshrl.u32 2475754826, %v3841
        %v3845 = vor.u32 %v3843, %v3844
        %v3846 = vshll.u32 2475754826, %v3840
        %v3847 = vshrl.u32 2131351028, %v3841
        %v3848 = vor.u32 %v3846, %v3847
        %v3849 = vshll.u32 2131351028, %v3840
        %v3850 = vshrl.u32 2102212464, %v3841
        %v3851 = vor.u32 %v3849, %v3850
        %v3852 = vshll.u32 2102212464, %v3840
        %v3853 = vshrl.u32 920167782, %v3841
        %v3854 = vor.u32 %v3852, %v3853
        %v3855 = vshll.u32 920167782, %v3840
        %v3856 = vshrl.u32 1326507024, %v3841
        %v3857 = vor.u32 %v3855, %v3856
        %vm3858 = vcmp.lt.s32.totalorder %v3839, 1
        %vm3859 = vcmp.lt.s32.totalorder %v3839, 2
        %vm3860 = vcmp.lt.s32.totalorder %v3839, 3
        %vm3861 = vcmp.lt.s32.totalorder %v3839, 4
        %v3862 = vsel %vm3858, %v3842, %v3845
        %v3863 = vsel %vm3861, %v3851, 2102212464
        %v3864 = vsel %vm3860, %v3848, %v3863
        %v3865 = vsel %vm3859, %v3862, %v3864
        %v3866 = vsel %vm3858, %v3845, %v3848
        %v3867 = vsel %vm3861, %v3854, 920167782
        %v3868 = vsel %vm3860, %v3851, %v3867
        %v3869 = vsel %vm3859, %v3866, %v3868
        %v3870 = vsel %vm3858, %v3848, %v3851
        %v3871 = vsel %vm3861, %v3857, 1326507024
        %v3872 = vsel %vm3860, %v3854, %v3871
        %v3873 = vsel %vm3859, %v3870, %v3872
        %v3874 = vshll.u32 %v3834, 8
        %v3875 = vmul.u32.u64.compose %v3874, %v3873
        %v3876 = vextract.low.u32 %v3875
        %v3877 = vextract.high.u32 %v3875
        %v3878 = vmul.u32.u64.compose %v3874, %v3869
        %v3879 = vextract.low.u32 %v3878
        %v3880 = vextract.high.u32 %v3878
        %v3881 = vmul.u32 %v3874, %v3865
        %v3882 = vadd.s32 %v3877, %v3879
        %vm3883 = vc.u32 %v3877, %v3879
        %v3884 = vadd.s32 %v3880, 1
        %v3885 = vsel %vm3883, %v3884, %v3880
        %v3886 = vadd.s32 %v3881, %v3885
        %v3887 = vadd.s32 %v3886, 536870912
        %v3888 = vshrl.u32 %v3887, 30
        %v3889 = vshll.u32 %v3888, 30
        %v3890 = vsub.s32 %v3886, %v3889
        %vm3891 = vcmp.lt.s32.totalorder %v3890, 0
        %v3892 = vsub.s32 0, %v3890
        %v3893 = vsel %vm3891, %v3892, %v3890
        %v3894 = vclz %v3893
        %v3895 = vsub.s32 %v3894, 2
        %vm3896 = vcmp.gt.s32.totalorder 0, %v3895
        %v3897 = vsel %vm3896, 0, %v3895
        %v3898 = vsub.s32 32, %v3897
        %v3899 = vshll.u32 %v3890, %v3897
        %v3900 = vshrl.u32 %v3882, %v3898
        %v3901 = vor.u32 %v3899, %v3900
        %v3902 = vsub.s32 4294967266, %v3897
        %v3903 = vadd.s32 %v3902, 127
        %v3904 = vshll.u32 %v3903, 23
        %v3905 = vor.u32 4788187, %v3904
        %v3906 = vand.u32 2147483647, %v3905
        %v3908 = vcvt.s32.f32 %v3901
        %v3909 = vmul.f32 %v3908, %v3906
        %v3910 = vxor.u32 %v3909, 2147483648
        %v3911 = vsel %vm3828, %v3910, %v3909
        %v3912 = vsub.s32 4, %v3888
        %v3913 = vsel %vm3828, %v3912, %v3888
        %v3914 = vsel %vm3827, %v1084, %v3911
        %v3915 = vsel %vm3827, 0, %v3913
        %v3916 = vcosq.f32.pop %v3914
        %v3917 = vsinq.f32.pop %v3914
        %vm3918 = vweird.f32 %v1084
        %v3919 = vadd.s32 %v3915, 3
        %v3920 = vand.u32 %v3919, 3
        %vm3921 = vcmp.lt.s32.totalorder %v3920, 2
        %vm3922 = vcmp.eq.s32.totalorder %v3920, 0
        %v3923 = vxor.u32 %v3917, 2147483648
        %v3924 = vsel %vm3922, %v3916, %v3923
        %vm3925 = vcmp.eq.s32.totalorder %v3920, 2
        %v3926 = vxor.u32 %v3916, 2147483648
        %v3927 = vsel %vm3925, %v3926, %v3917
        %v3928 = vsel %vm3921, %v3924, %v3927
        %v3929 = vsel %vm3918, nan, %v3928
        %v3930 = vand.u32 2147483647, %v1085
        %vm3931 = vcmp.le.f32.partialorder %v3930, 0.7853982
        %vm3932 = vcmp.lt.s32.totalorder %v1085, 0
        %v3933 = vand.u32 %v1085, 2139095040
        %v3934 = vshrl.u32 %v3933, 23
        %v3935 = vsub.s32 %v3934, 127
        %v3936 = vand.u32 2147483647, %v1085
        %v3937 = vand.u32 %v3936, 8388607
        %v3938 = vor.u32 %v3937, 8388608
        %v3939 = vsub.s32 0, %v3938
        %v3940 = vadd.s32 %v3935, 1
        %vm3941 = vcmp.gt.s32.totalorder %v3940, 0
        %v3942 = vsel %vm3941, %v3940, 0
        %v3943 = vshrl.u32 %v3942, 5
        %v3944 = vand.u32 %v3942, 31
        %v3945 = vsub.s32 32, %v3944
        %v3946 = vshrl.u32 683565275, %v3945
        %v3947 = vshll.u32 683565275, %v3944
        %v3948 = vshrl.u32 2475754826, %v3945
        %v3949 = vor.u32 %v3947, %v3948
        %v3950 = vshll.u32 2475754826, %v3944
        %v3951 = vshrl.u32 2131351028, %v3945
        %v3952 = vor.u32 %v3950, %v3951
        %v3953 = vshll.u32 2131351028, %v3944
        %v3954 = vshrl.u32 2102212464, %v3945
        %v3955 = vor.u32 %v3953, %v3954
        %v3956 = vshll.u32 2102212464, %v3944
        %v3957 = vshrl.u32 920167782, %v3945
        %v3958 = vor.u32 %v3956, %v3957
        %v3959 = vshll.u32 920167782, %v3944
        %v3960 = vshrl.u32 1326507024, %v3945
        %v3961 = vor.u32 %v3959, %v3960
        %vm3962 = vcmp.lt.s32.totalorder %v3943, 1
        %vm3963 = vcmp.lt.s32.totalorder %v3943, 2
        %vm3964 = vcmp.lt.s32.totalorder %v3943, 3
        %vm3965 = vcmp.lt.s32.totalorder %v3943, 4
        %v3966 = vsel %vm3962, %v3946, %v3949
        %v3967 = vsel %vm3965, %v3955, 2102212464
        %v3968 = vsel %vm3964, %v3952, %v3967
        %v3969 = vsel %vm3963, %v3966, %v3968
        %v3970 = vsel %vm3962, %v3949, %v3952
        %v3971 = vsel %vm3965, %v3958, 920167782
        %v3972 = vsel %vm3964, %v3955, %v3971
        %v3973 = vsel %vm3963, %v3970, %v3972
        %v3974 = vsel %vm3962, %v3952, %v3955
        %v3975 = vsel %vm3965, %v3961, 1326507024
        %v3976 = vsel %vm3964, %v3958, %v3975
        %v3977 = vsel %vm3963, %v3974, %v3976
        %v3978 = vshll.u32 %v3938, 8
        %v3979 = vmul.u32.u64.compose %v3978, %v3977
        %v3980 = vextract.low.u32 %v3979
        %v3981 = vextract.high.u32 %v3979
        %v3982 = vmul.u32.u64.compose %v3978, %v3973
        %v3983 = vextract.low.u32 %v3982
        %v3984 = vextract.high.u32 %v3982
        %v3985 = vmul.u32 %v3978, %v3969
        %v3986 = vadd.s32 %v3981, %v3983
        %vm3987 = vc.u32 %v3981, %v3983
        %v3988 = vadd.s32 %v3984, 1
        %v3989 = vsel %vm3987, %v3988, %v3984
        %v3990 = vadd.s32 %v3985, %v3989
        %v3991 = vadd.s32 %v3990, 536870912
        %v3992 = vshrl.u32 %v3991, 30
        %v3993 = vshll.u32 %v3992, 30
        %v3994 = vsub.s32 %v3990, %v3993
        %vm3995 = vcmp.lt.s32.totalorder %v3994, 0
        %v3996 = vsub.s32 0, %v3994
        %v3997 = vsel %vm3995, %v3996, %v3994
        %v3998 = vclz %v3997
        %v3999 = vsub.s32 %v3998, 2
        %vm4000 = vcmp.gt.s32.totalorder 0, %v3999
        %v4001 = vsel %vm4000, 0, %v3999
        %v4002 = vsub.s32 32, %v4001
        %v4003 = vshll.u32 %v3994, %v4001
        %v4004 = vshrl.u32 %v3986, %v4002
        %v4005 = vor.u32 %v4003, %v4004
        %v4006 = vsub.s32 4294967266, %v4001
        %v4007 = vadd.s32 %v4006, 127
        %v4008 = vshll.u32 %v4007, 23
        %v4009 = vor.u32 4788187, %v4008
        %v4010 = vand.u32 2147483647, %v4009
        %v4012 = vcvt.s32.f32 %v4005
        %v4013 = vmul.f32 %v4012, %v4010
        %v4014 = vxor.u32 %v4013, 2147483648
        %v4015 = vsel %vm3932, %v4014, %v4013
        %v4016 = vsub.s32 4, %v3992
        %v4017 = vsel %vm3932, %v4016, %v3992
        %v4018 = vsel %vm3931, %v1085, %v4015
        %v4019 = vsel %vm3931, 0, %v4017
        %v4020 = vcosq.f32.pop %v4018
        %v4021 = vsinq.f32.pop %v4018
        %vm4022 = vweird.f32 %v1085
        %v4023 = vadd.s32 %v4019, 3
        %v4024 = vand.u32 %v4023, 3
        %vm4025 = vcmp.lt.s32.totalorder %v4024, 2
        %vm4026 = vcmp.eq.s32.totalorder %v4024, 0
        %v4027 = vxor.u32 %v4021, 2147483648
        %v4028 = vsel %vm4026, %v4020, %v4027
        %vm4029 = vcmp.eq.s32.totalorder %v4024, 2
        %v4030 = vxor.u32 %v4020, 2147483648
        %v4031 = vsel %vm4029, %v4030, %v4021
        %v4032 = vsel %vm4025, %v4028, %v4031
        %v4033 = vsel %vm4022, nan, %v4032
        %v4034 = vand.u32 2147483647, %v1086
        %vm4035 = vcmp.le.f32.partialorder %v4034, 0.7853982
        %vm4036 = vcmp.lt.s32.totalorder %v1086, 0
        %v4037 = vand.u32 %v1086, 2139095040
        %v4038 = vshrl.u32 %v4037, 23
        %v4039 = vsub.s32 %v4038, 127
        %v4040 = vand.u32 2147483647, %v1086
        %v4041 = vand.u32 %v4040, 8388607
        %v4042 = vor.u32 %v4041, 8388608
        %v4043 = vsub.s32 0, %v4042
        %v4044 = vadd.s32 %v4039, 1
        %vm4045 = vcmp.gt.s32.totalorder %v4044, 0
        %v4046 = vsel %vm4045, %v4044, 0
        %v4047 = vshrl.u32 %v4046, 5
        %v4048 = vand.u32 %v4046, 31
        %v4049 = vsub.s32 32, %v4048
        %v4050 = vshrl.u32 683565275, %v4049
        %v4051 = vshll.u32 683565275, %v4048
        %v4052 = vshrl.u32 2475754826, %v4049
        %v4053 = vor.u32 %v4051, %v4052
        %v4054 = vshll.u32 2475754826, %v4048
        %v4055 = vshrl.u32 2131351028, %v4049
        %v4056 = vor.u32 %v4054, %v4055
        %v4057 = vshll.u32 2131351028, %v4048
        %v4058 = vshrl.u32 2102212464, %v4049
        %v4059 = vor.u32 %v4057, %v4058
        %v4060 = vshll.u32 2102212464, %v4048
        %v4061 = vshrl.u32 920167782, %v4049
        %v4062 = vor.u32 %v4060, %v4061
        %v4063 = vshll.u32 920167782, %v4048
        %v4064 = vshrl.u32 1326507024, %v4049
        %v4065 = vor.u32 %v4063, %v4064
        %vm4066 = vcmp.lt.s32.totalorder %v4047, 1
        %vm4067 = vcmp.lt.s32.totalorder %v4047, 2
        %vm4068 = vcmp.lt.s32.totalorder %v4047, 3
        %vm4069 = vcmp.lt.s32.totalorder %v4047, 4
        %v4070 = vsel %vm4066, %v4050, %v4053
        %v4071 = vsel %vm4069, %v4059, 2102212464
        %v4072 = vsel %vm4068, %v4056, %v4071
        %v4073 = vsel %vm4067, %v4070, %v4072
        %v4074 = vsel %vm4066, %v4053, %v4056
        %v4075 = vsel %vm4069, %v4062, 920167782
        %v4076 = vsel %vm4068, %v4059, %v4075
        %v4077 = vsel %vm4067, %v4074, %v4076
        %v4078 = vsel %vm4066, %v4056, %v4059
        %v4079 = vsel %vm4069, %v4065, 1326507024
        %v4080 = vsel %vm4068, %v4062, %v4079
        %v4081 = vsel %vm4067, %v4078, %v4080
        %v4082 = vshll.u32 %v4042, 8
        %v4083 = vmul.u32.u64.compose %v4082, %v4081
        %v4084 = vextract.low.u32 %v4083
        %v4085 = vextract.high.u32 %v4083
        %v4086 = vmul.u32.u64.compose %v4082, %v4077
        %v4087 = vextract.low.u32 %v4086
        %v4088 = vextract.high.u32 %v4086
        %v4089 = vmul.u32 %v4082, %v4073
        %v4090 = vadd.s32 %v4085, %v4087
        %vm4091 = vc.u32 %v4085, %v4087
        %v4092 = vadd.s32 %v4088, 1
        %v4093 = vsel %vm4091, %v4092, %v4088
        %v4094 = vadd.s32 %v4089, %v4093
        %v4095 = vadd.s32 %v4094, 536870912
        %v4096 = vshrl.u32 %v4095, 30
        %v4097 = vshll.u32 %v4096, 30
        %v4098 = vsub.s32 %v4094, %v4097
        %vm4099 = vcmp.lt.s32.totalorder %v4098, 0
        %v4100 = vsub.s32 0, %v4098
        %v4101 = vsel %vm4099, %v4100, %v4098
        %v4102 = vclz %v4101
        %v4103 = vsub.s32 %v4102, 2
        %vm4104 = vcmp.gt.s32.totalorder 0, %v4103
        %v4105 = vsel %vm4104, 0, %v4103
        %v4106 = vsub.s32 32, %v4105
        %v4107 = vshll.u32 %v4098, %v4105
        %v4108 = vshrl.u32 %v4090, %v4106
        %v4109 = vor.u32 %v4107, %v4108
        %v4110 = vsub.s32 4294967266, %v4105
        %v4111 = vadd.s32 %v4110, 127
        %v4112 = vshll.u32 %v4111, 23
        %v4113 = vor.u32 4788187, %v4112
        %v4114 = vand.u32 2147483647, %v4113
        %v4116 = vcvt.s32.f32 %v4109
        %v4117 = vmul.f32 %v4116, %v4114
        %v4118 = vxor.u32 %v4117, 2147483648
        %v4119 = vsel %vm4036, %v4118, %v4117
        %v4120 = vsub.s32 4, %v4096
        %v4121 = vsel %vm4036, %v4120, %v4096
        %v4122 = vsel %vm4035, %v1086, %v4119
        %v4123 = vsel %vm4035, 0, %v4121
        %v4124 = vcosq.f32.pop %v4122
        %v4125 = vsinq.f32.pop %v4122
        %vm4126 = vweird.f32 %v1086
        %v4127 = vadd.s32 %v4123, 3
        %v4128 = vand.u32 %v4127, 3
        %vm4129 = vcmp.lt.s32.totalorder %v4128, 2
        %vm4130 = vcmp.eq.s32.totalorder %v4128, 0
        %v4131 = vxor.u32 %v4125, 2147483648
        %v4132 = vsel %vm4130, %v4124, %v4131
        %vm4133 = vcmp.eq.s32.totalorder %v4128, 2
        %v4134 = vxor.u32 %v4124, 2147483648
        %v4135 = vsel %vm4133, %v4134, %v4125
        %v4136 = vsel %vm4129, %v4132, %v4135
        %v4137 = vsel %vm4126, nan, %v4136
        %v4138 = vand.u32 2147483647, %v1087
        %vm4139 = vcmp.le.f32.partialorder %v4138, 0.7853982
        %vm4140 = vcmp.lt.s32.totalorder %v1087, 0
        %v4141 = vand.u32 %v1087, 2139095040
        %v4142 = vshrl.u32 %v4141, 23
        %v4143 = vsub.s32 %v4142, 127
        %v4144 = vand.u32 2147483647, %v1087
        %v4145 = vand.u32 %v4144, 8388607
        %v4146 = vor.u32 %v4145, 8388608
        %v4147 = vsub.s32 0, %v4146
        %v4148 = vadd.s32 %v4143, 1
        %vm4149 = vcmp.gt.s32.totalorder %v4148, 0
        %v4150 = vsel %vm4149, %v4148, 0
        %v4151 = vshrl.u32 %v4150, 5
        %v4152 = vand.u32 %v4150, 31
        %v4153 = vsub.s32 32, %v4152
        %v4154 = vshrl.u32 683565275, %v4153
        %v4155 = vshll.u32 683565275, %v4152
        %v4156 = vshrl.u32 2475754826, %v4153
        %v4157 = vor.u32 %v4155, %v4156
        %v4158 = vshll.u32 2475754826, %v4152
        %v4159 = vshrl.u32 2131351028, %v4153
        %v4160 = vor.u32 %v4158, %v4159
        %v4161 = vshll.u32 2131351028, %v4152
        %v4162 = vshrl.u32 2102212464, %v4153
        %v4163 = vor.u32 %v4161, %v4162
        %v4164 = vshll.u32 2102212464, %v4152
        %v4165 = vshrl.u32 920167782, %v4153
        %v4166 = vor.u32 %v4164, %v4165
        %v4167 = vshll.u32 920167782, %v4152
        %v4168 = vshrl.u32 1326507024, %v4153
        %v4169 = vor.u32 %v4167, %v4168
        %vm4170 = vcmp.lt.s32.totalorder %v4151, 1
        %vm4171 = vcmp.lt.s32.totalorder %v4151, 2
        %vm4172 = vcmp.lt.s32.totalorder %v4151, 3
        %vm4173 = vcmp.lt.s32.totalorder %v4151, 4
        %v4174 = vsel %vm4170, %v4154, %v4157
        %v4175 = vsel %vm4173, %v4163, 2102212464
        %v4176 = vsel %vm4172, %v4160, %v4175
        %v4177 = vsel %vm4171, %v4174, %v4176
        %v4178 = vsel %vm4170, %v4157, %v4160
        %v4179 = vsel %vm4173, %v4166, 920167782
        %v4180 = vsel %vm4172, %v4163, %v4179
        %v4181 = vsel %vm4171, %v4178, %v4180
        %v4182 = vsel %vm4170, %v4160, %v4163
        %v4183 = vsel %vm4173, %v4169, 1326507024
        %v4184 = vsel %vm4172, %v4166, %v4183
        %v4185 = vsel %vm4171, %v4182, %v4184
        %v4186 = vshll.u32 %v4146, 8
        %v4187 = vmul.u32.u64.compose %v4186, %v4185
        %v4188 = vextract.low.u32 %v4187
        %v4189 = vextract.high.u32 %v4187
        %v4190 = vmul.u32.u64.compose %v4186, %v4181
        %v4191 = vextract.low.u32 %v4190
        %v4192 = vextract.high.u32 %v4190
        %v4193 = vmul.u32 %v4186, %v4177
        %v4194 = vadd.s32 %v4189, %v4191
        %vm4195 = vc.u32 %v4189, %v4191
        %v4196 = vadd.s32 %v4192, 1
        %v4197 = vsel %vm4195, %v4196, %v4192
        %v4198 = vadd.s32 %v4193, %v4197
        %v4199 = vadd.s32 %v4198, 536870912
        %v4200 = vshrl.u32 %v4199, 30
        %v4201 = vshll.u32 %v4200, 30
        %v4202 = vsub.s32 %v4198, %v4201
        %vm4203 = vcmp.lt.s32.totalorder %v4202, 0
        %v4204 = vsub.s32 0, %v4202
        %v4205 = vsel %vm4203, %v4204, %v4202
        %v4206 = vclz %v4205
        %v4207 = vsub.s32 %v4206, 2
        %vm4208 = vcmp.gt.s32.totalorder 0, %v4207
        %v4209 = vsel %vm4208, 0, %v4207
        %v4210 = vsub.s32 32, %v4209
        %v4211 = vshll.u32 %v4202, %v4209
        %v4212 = vshrl.u32 %v4194, %v4210
        %v4213 = vor.u32 %v4211, %v4212
        %v4214 = vsub.s32 4294967266, %v4209
        %v4215 = vadd.s32 %v4214, 127
        %v4216 = vshll.u32 %v4215, 23
        %v4217 = vor.u32 4788187, %v4216
        %v4218 = vand.u32 2147483647, %v4217
        %v4220 = vcvt.s32.f32 %v4213
        %v4221 = vmul.f32 %v4220, %v4218
        %v4222 = vxor.u32 %v4221, 2147483648
        %v4223 = vsel %vm4140, %v4222, %v4221
        %v4224 = vsub.s32 4, %v4200
        %v4225 = vsel %vm4140, %v4224, %v4200
        %v4226 = vsel %vm4139, %v1087, %v4223
        %v4227 = vsel %vm4139, 0, %v4225
        %v4228 = vcosq.f32.pop %v4226
        %v4229 = vsinq.f32.pop %v4226
        %vm4230 = vweird.f32 %v1087
        %v4231 = vadd.s32 %v4227, 3
        %v4232 = vand.u32 %v4231, 3
        %vm4233 = vcmp.lt.s32.totalorder %v4232, 2
        %vm4234 = vcmp.eq.s32.totalorder %v4232, 0
        %v4235 = vxor.u32 %v4229, 2147483648
        %v4236 = vsel %vm4234, %v4228, %v4235
        %vm4237 = vcmp.eq.s32.totalorder %v4232, 2
        %v4238 = vxor.u32 %v4228, 2147483648
        %v4239 = vsel %vm4237, %v4238, %v4229
        %v4240 = vsel %vm4233, %v4236, %v4239
        %v4241 = vsel %vm4230, nan, %v4240
        %v4242 = vand.u32 2147483647, %v1088
        %vm4243 = vcmp.le.f32.partialorder %v4242, 0.7853982
        %vm4244 = vcmp.lt.s32.totalorder %v1088, 0
        %v4245 = vand.u32 %v1088, 2139095040
        %v4246 = vshrl.u32 %v4245, 23
        %v4247 = vsub.s32 %v4246, 127
        %v4248 = vand.u32 2147483647, %v1088
        %v4249 = vand.u32 %v4248, 8388607
        %v4250 = vor.u32 %v4249, 8388608
        %v4251 = vsub.s32 0, %v4250
        %v4252 = vadd.s32 %v4247, 1
        %vm4253 = vcmp.gt.s32.totalorder %v4252, 0
        %v4254 = vsel %vm4253, %v4252, 0
        %v4255 = vshrl.u32 %v4254, 5
        %v4256 = vand.u32 %v4254, 31
        %v4257 = vsub.s32 32, %v4256
        %v4258 = vshrl.u32 683565275, %v4257
        %v4259 = vshll.u32 683565275, %v4256
        %v4260 = vshrl.u32 2475754826, %v4257
        %v4261 = vor.u32 %v4259, %v4260
        %v4262 = vshll.u32 2475754826, %v4256
        %v4263 = vshrl.u32 2131351028, %v4257
        %v4264 = vor.u32 %v4262, %v4263
        %v4265 = vshll.u32 2131351028, %v4256
        %v4266 = vshrl.u32 2102212464, %v4257
        %v4267 = vor.u32 %v4265, %v4266
        %v4268 = vshll.u32 2102212464, %v4256
        %v4269 = vshrl.u32 920167782, %v4257
        %v4270 = vor.u32 %v4268, %v4269
        %v4271 = vshll.u32 920167782, %v4256
        %v4272 = vshrl.u32 1326507024, %v4257
        %v4273 = vor.u32 %v4271, %v4272
        %vm4274 = vcmp.lt.s32.totalorder %v4255, 1
        %vm4275 = vcmp.lt.s32.totalorder %v4255, 2
        %vm4276 = vcmp.lt.s32.totalorder %v4255, 3
        %vm4277 = vcmp.lt.s32.totalorder %v4255, 4
        %v4278 = vsel %vm4274, %v4258, %v4261
        %v4279 = vsel %vm4277, %v4267, 2102212464
        %v4280 = vsel %vm4276, %v4264, %v4279
        %v4281 = vsel %vm4275, %v4278, %v4280
        %v4282 = vsel %vm4274, %v4261, %v4264
        %v4283 = vsel %vm4277, %v4270, 920167782
        %v4284 = vsel %vm4276, %v4267, %v4283
        %v4285 = vsel %vm4275, %v4282, %v4284
        %v4286 = vsel %vm4274, %v4264, %v4267
        %v4287 = vsel %vm4277, %v4273, 1326507024
        %v4288 = vsel %vm4276, %v4270, %v4287
        %v4289 = vsel %vm4275, %v4286, %v4288
        %v4290 = vshll.u32 %v4250, 8
        %v4291 = vmul.u32.u64.compose %v4290, %v4289
        %v4292 = vextract.low.u32 %v4291
        %v4293 = vextract.high.u32 %v4291
        %v4294 = vmul.u32.u64.compose %v4290, %v4285
        %v4295 = vextract.low.u32 %v4294
        %v4296 = vextract.high.u32 %v4294
        %v4297 = vmul.u32 %v4290, %v4281
        %v4298 = vadd.s32 %v4293, %v4295
        %vm4299 = vc.u32 %v4293, %v4295
        %v4300 = vadd.s32 %v4296, 1
        %v4301 = vsel %vm4299, %v4300, %v4296
        %v4302 = vadd.s32 %v4297, %v4301
        %v4303 = vadd.s32 %v4302, 536870912
        %v4304 = vshrl.u32 %v4303, 30
        %v4305 = vshll.u32 %v4304, 30
        %v4306 = vsub.s32 %v4302, %v4305
        %vm4307 = vcmp.lt.s32.totalorder %v4306, 0
        %v4308 = vsub.s32 0, %v4306
        %v4309 = vsel %vm4307, %v4308, %v4306
        %v4310 = vclz %v4309
        %v4311 = vsub.s32 %v4310, 2
        %vm4312 = vcmp.gt.s32.totalorder 0, %v4311
        %v4313 = vsel %vm4312, 0, %v4311
        %v4314 = vsub.s32 32, %v4313
        %v4315 = vshll.u32 %v4306, %v4313
        %v4316 = vshrl.u32 %v4298, %v4314
        %v4317 = vor.u32 %v4315, %v4316
        %v4318 = vsub.s32 4294967266, %v4313
        %v4319 = vadd.s32 %v4318, 127
        %v4320 = vshll.u32 %v4319, 23
        %v4321 = vor.u32 4788187, %v4320
        %v4322 = vand.u32 2147483647, %v4321
        %v4324 = vcvt.s32.f32 %v4317
        %v4325 = vmul.f32 %v4324, %v4322
        %v4326 = vxor.u32 %v4325, 2147483648
        %v4327 = vsel %vm4244, %v4326, %v4325
        %v4328 = vsub.s32 4, %v4304
        %v4329 = vsel %vm4244, %v4328, %v4304
        %v4330 = vsel %vm4243, %v1088, %v4327
        %v4331 = vsel %vm4243, 0, %v4329
        %v4332 = vcosq.f32.pop %v4330
        %v4333 = vsinq.f32.pop %v4330
        %vm4334 = vweird.f32 %v1088
        %v4335 = vadd.s32 %v4331, 3
        %v4336 = vand.u32 %v4335, 3
        %vm4337 = vcmp.lt.s32.totalorder %v4336, 2
        %vm4338 = vcmp.eq.s32.totalorder %v4336, 0
        %v4339 = vxor.u32 %v4333, 2147483648
        %v4340 = vsel %vm4338, %v4332, %v4339
        %vm4341 = vcmp.eq.s32.totalorder %v4336, 2
        %v4342 = vxor.u32 %v4332, 2147483648
        %v4343 = vsel %vm4341, %v4342, %v4333
        %v4344 = vsel %vm4337, %v4340, %v4343
        %v4345 = vsel %vm4334, nan, %v4344
        %v4346 = vand.u32 2147483647, %v1089
        %vm4347 = vcmp.le.f32.partialorder %v4346, 0.7853982
        %vm4348 = vcmp.lt.s32.totalorder %v1089, 0
        %v4349 = vand.u32 %v1089, 2139095040
        %v4350 = vshrl.u32 %v4349, 23
        %v4351 = vsub.s32 %v4350, 127
        %v4352 = vand.u32 2147483647, %v1089
        %v4353 = vand.u32 %v4352, 8388607
        %v4354 = vor.u32 %v4353, 8388608
        %v4355 = vsub.s32 0, %v4354
        %v4356 = vadd.s32 %v4351, 1
        %vm4357 = vcmp.gt.s32.totalorder %v4356, 0
        %v4358 = vsel %vm4357, %v4356, 0
        %v4359 = vshrl.u32 %v4358, 5
        %v4360 = vand.u32 %v4358, 31
        %v4361 = vsub.s32 32, %v4360
        %v4362 = vshrl.u32 683565275, %v4361
        %v4363 = vshll.u32 683565275, %v4360
        %v4364 = vshrl.u32 2475754826, %v4361
        %v4365 = vor.u32 %v4363, %v4364
        %v4366 = vshll.u32 2475754826, %v4360
        %v4367 = vshrl.u32 2131351028, %v4361
        %v4368 = vor.u32 %v4366, %v4367
        %v4369 = vshll.u32 2131351028, %v4360
        %v4370 = vshrl.u32 2102212464, %v4361
        %v4371 = vor.u32 %v4369, %v4370
        %v4372 = vshll.u32 2102212464, %v4360
        %v4373 = vshrl.u32 920167782, %v4361
        %v4374 = vor.u32 %v4372, %v4373
        %v4375 = vshll.u32 920167782, %v4360
        %v4376 = vshrl.u32 1326507024, %v4361
        %v4377 = vor.u32 %v4375, %v4376
        %vm4378 = vcmp.lt.s32.totalorder %v4359, 1
        %vm4379 = vcmp.lt.s32.totalorder %v4359, 2
        %vm4380 = vcmp.lt.s32.totalorder %v4359, 3
        %vm4381 = vcmp.lt.s32.totalorder %v4359, 4
        %v4382 = vsel %vm4378, %v4362, %v4365
        %v4383 = vsel %vm4381, %v4371, 2102212464
        %v4384 = vsel %vm4380, %v4368, %v4383
        %v4385 = vsel %vm4379, %v4382, %v4384
        %v4386 = vsel %vm4378, %v4365, %v4368
        %v4387 = vsel %vm4381, %v4374, 920167782
        %v4388 = vsel %vm4380, %v4371, %v4387
        %v4389 = vsel %vm4379, %v4386, %v4388
        %v4390 = vsel %vm4378, %v4368, %v4371
        %v4391 = vsel %vm4381, %v4377, 1326507024
        %v4392 = vsel %vm4380, %v4374, %v4391
        %v4393 = vsel %vm4379, %v4390, %v4392
        %v4394 = vshll.u32 %v4354, 8
        %v4395 = vmul.u32.u64.compose %v4394, %v4393
        %v4396 = vextract.low.u32 %v4395
        %v4397 = vextract.high.u32 %v4395
        %v4398 = vmul.u32.u64.compose %v4394, %v4389
        %v4399 = vextract.low.u32 %v4398
        %v4400 = vextract.high.u32 %v4398
        %v4401 = vmul.u32 %v4394, %v4385
        %v4402 = vadd.s32 %v4397, %v4399
        %vm4403 = vc.u32 %v4397, %v4399
        %v4404 = vadd.s32 %v4400, 1
        %v4405 = vsel %vm4403, %v4404, %v4400
        %v4406 = vadd.s32 %v4401, %v4405
        %v4407 = vadd.s32 %v4406, 536870912
        %v4408 = vshrl.u32 %v4407, 30
        %v4409 = vshll.u32 %v4408, 30
        %v4410 = vsub.s32 %v4406, %v4409
        %vm4411 = vcmp.lt.s32.totalorder %v4410, 0
        %v4412 = vsub.s32 0, %v4410
        %v4413 = vsel %vm4411, %v4412, %v4410
        %v4414 = vclz %v4413
        %v4415 = vsub.s32 %v4414, 2
        %vm4416 = vcmp.gt.s32.totalorder 0, %v4415
        %v4417 = vsel %vm4416, 0, %v4415
        %v4418 = vsub.s32 32, %v4417
        %v4419 = vshll.u32 %v4410, %v4417
        %v4420 = vshrl.u32 %v4402, %v4418
        %v4421 = vor.u32 %v4419, %v4420
        %v4422 = vsub.s32 4294967266, %v4417
        %v4423 = vadd.s32 %v4422, 127
        %v4424 = vshll.u32 %v4423, 23
        %v4425 = vor.u32 4788187, %v4424
        %v4426 = vand.u32 2147483647, %v4425
        %v4428 = vcvt.s32.f32 %v4421
        %v4429 = vmul.f32 %v4428, %v4426
        %v4430 = vxor.u32 %v4429, 2147483648
        %v4431 = vsel %vm4348, %v4430, %v4429
        %v4432 = vsub.s32 4, %v4408
        %v4433 = vsel %vm4348, %v4432, %v4408
        %v4434 = vsel %vm4347, %v1089, %v4431
        %v4435 = vsel %vm4347, 0, %v4433
        %v4436 = vcosq.f32.pop %v4434
        %v4437 = vsinq.f32.pop %v4434
        %vm4438 = vweird.f32 %v1089
        %v4439 = vadd.s32 %v4435, 3
        %v4440 = vand.u32 %v4439, 3
        %vm4441 = vcmp.lt.s32.totalorder %v4440, 2
        %vm4442 = vcmp.eq.s32.totalorder %v4440, 0
        %v4443 = vxor.u32 %v4437, 2147483648
        %v4444 = vsel %vm4442, %v4436, %v4443
        %vm4445 = vcmp.eq.s32.totalorder %v4440, 2
        %v4446 = vxor.u32 %v4436, 2147483648
        %v4447 = vsel %vm4445, %v4446, %v4437
        %v4448 = vsel %vm4441, %v4444, %v4447
        %v4449 = vsel %vm4438, nan, %v4448
        %v4450 = vand.u32 2147483647, %v1090
        %vm4451 = vcmp.le.f32.partialorder %v4450, 0.7853982
        %vm4452 = vcmp.lt.s32.totalorder %v1090, 0
        %v4453 = vand.u32 %v1090, 2139095040
        %v4454 = vshrl.u32 %v4453, 23
        %v4455 = vsub.s32 %v4454, 127
        %v4456 = vand.u32 2147483647, %v1090
        %v4457 = vand.u32 %v4456, 8388607
        %v4458 = vor.u32 %v4457, 8388608
        %v4459 = vsub.s32 0, %v4458
        %v4460 = vadd.s32 %v4455, 1
        %vm4461 = vcmp.gt.s32.totalorder %v4460, 0
        %v4462 = vsel %vm4461, %v4460, 0
        %v4463 = vshrl.u32 %v4462, 5
        %v4464 = vand.u32 %v4462, 31
        %v4465 = vsub.s32 32, %v4464
        %v4466 = vshrl.u32 683565275, %v4465
        %v4467 = vshll.u32 683565275, %v4464
        %v4468 = vshrl.u32 2475754826, %v4465
        %v4469 = vor.u32 %v4467, %v4468
        %v4470 = vshll.u32 2475754826, %v4464
        %v4471 = vshrl.u32 2131351028, %v4465
        %v4472 = vor.u32 %v4470, %v4471
        %v4473 = vshll.u32 2131351028, %v4464
        %v4474 = vshrl.u32 2102212464, %v4465
        %v4475 = vor.u32 %v4473, %v4474
        %v4476 = vshll.u32 2102212464, %v4464
        %v4477 = vshrl.u32 920167782, %v4465
        %v4478 = vor.u32 %v4476, %v4477
        %v4479 = vshll.u32 920167782, %v4464
        %v4480 = vshrl.u32 1326507024, %v4465
        %v4481 = vor.u32 %v4479, %v4480
        %vm4482 = vcmp.lt.s32.totalorder %v4463, 1
        %vm4483 = vcmp.lt.s32.totalorder %v4463, 2
        %vm4484 = vcmp.lt.s32.totalorder %v4463, 3
        %vm4485 = vcmp.lt.s32.totalorder %v4463, 4
        %v4486 = vsel %vm4482, %v4466, %v4469
        %v4487 = vsel %vm4485, %v4475, 2102212464
        %v4488 = vsel %vm4484, %v4472, %v4487
        %v4489 = vsel %vm4483, %v4486, %v4488
        %v4490 = vsel %vm4482, %v4469, %v4472
        %v4491 = vsel %vm4485, %v4478, 920167782
        %v4492 = vsel %vm4484, %v4475, %v4491
        %v4493 = vsel %vm4483, %v4490, %v4492
        %v4494 = vsel %vm4482, %v4472, %v4475
        %v4495 = vsel %vm4485, %v4481, 1326507024
        %v4496 = vsel %vm4484, %v4478, %v4495
        %v4497 = vsel %vm4483, %v4494, %v4496
        %v4498 = vshll.u32 %v4458, 8
        %v4499 = vmul.u32.u64.compose %v4498, %v4497
        %v4500 = vextract.low.u32 %v4499
        %v4501 = vextract.high.u32 %v4499
        %v4502 = vmul.u32.u64.compose %v4498, %v4493
        %v4503 = vextract.low.u32 %v4502
        %v4504 = vextract.high.u32 %v4502
        %v4505 = vmul.u32 %v4498, %v4489
        %v4506 = vadd.s32 %v4501, %v4503
        %vm4507 = vc.u32 %v4501, %v4503
        %v4508 = vadd.s32 %v4504, 1
        %v4509 = vsel %vm4507, %v4508, %v4504
        %v4510 = vadd.s32 %v4505, %v4509
        %v4511 = vadd.s32 %v4510, 536870912
        %v4512 = vshrl.u32 %v4511, 30
        %v4513 = vshll.u32 %v4512, 30
        %v4514 = vsub.s32 %v4510, %v4513
        %vm4515 = vcmp.lt.s32.totalorder %v4514, 0
        %v4516 = vsub.s32 0, %v4514
        %v4517 = vsel %vm4515, %v4516, %v4514
        %v4518 = vclz %v4517
        %v4519 = vsub.s32 %v4518, 2
        %vm4520 = vcmp.gt.s32.totalorder 0, %v4519
        %v4521 = vsel %vm4520, 0, %v4519
        %v4522 = vsub.s32 32, %v4521
        %v4523 = vshll.u32 %v4514, %v4521
        %v4524 = vshrl.u32 %v4506, %v4522
        %v4525 = vor.u32 %v4523, %v4524
        %v4526 = vsub.s32 4294967266, %v4521
        %v4527 = vadd.s32 %v4526, 127
        %v4528 = vshll.u32 %v4527, 23
        %v4529 = vor.u32 4788187, %v4528
        %v4530 = vand.u32 2147483647, %v4529
        %v4532 = vcvt.s32.f32 %v4525
        %v4533 = vmul.f32 %v4532, %v4530
        %v4534 = vxor.u32 %v4533, 2147483648
        %v4535 = vsel %vm4452, %v4534, %v4533
        %v4536 = vsub.s32 4, %v4512
        %v4537 = vsel %vm4452, %v4536, %v4512
        %v4538 = vsel %vm4451, %v1090, %v4535
        %v4539 = vsel %vm4451, 0, %v4537
        %v4540 = vcosq.f32.pop %v4538
        %v4541 = vsinq.f32.pop %v4538
        %vm4542 = vweird.f32 %v1090
        %v4543 = vadd.s32 %v4539, 3
        %v4544 = vand.u32 %v4543, 3
        %vm4545 = vcmp.lt.s32.totalorder %v4544, 2
        %vm4546 = vcmp.eq.s32.totalorder %v4544, 0
        %v4547 = vxor.u32 %v4541, 2147483648
        %v4548 = vsel %vm4546, %v4540, %v4547
        %vm4549 = vcmp.eq.s32.totalorder %v4544, 2
        %v4550 = vxor.u32 %v4540, 2147483648
        %v4551 = vsel %vm4549, %v4550, %v4541
        %v4552 = vsel %vm4545, %v4548, %v4551
        %v4553 = vsel %vm4542, nan, %v4552
        %v4554 = vand.u32 2147483647, %v1091
        %vm4555 = vcmp.le.f32.partialorder %v4554, 0.7853982
        %vm4556 = vcmp.lt.s32.totalorder %v1091, 0
        %v4557 = vand.u32 %v1091, 2139095040
        %v4558 = vshrl.u32 %v4557, 23
        %v4559 = vsub.s32 %v4558, 127
        %v4560 = vand.u32 2147483647, %v1091
        %v4561 = vand.u32 %v4560, 8388607
        %v4562 = vor.u32 %v4561, 8388608
        %v4563 = vsub.s32 0, %v4562
        %v4564 = vadd.s32 %v4559, 1
        %vm4565 = vcmp.gt.s32.totalorder %v4564, 0
        %v4566 = vsel %vm4565, %v4564, 0
        %v4567 = vshrl.u32 %v4566, 5
        %v4568 = vand.u32 %v4566, 31
        %v4569 = vsub.s32 32, %v4568
        %v4570 = vshrl.u32 683565275, %v4569
        %v4571 = vshll.u32 683565275, %v4568
        %v4572 = vshrl.u32 2475754826, %v4569
        %v4573 = vor.u32 %v4571, %v4572
        %v4574 = vshll.u32 2475754826, %v4568
        %v4575 = vshrl.u32 2131351028, %v4569
        %v4576 = vor.u32 %v4574, %v4575
        %v4577 = vshll.u32 2131351028, %v4568
        %v4578 = vshrl.u32 2102212464, %v4569
        %v4579 = vor.u32 %v4577, %v4578
        %v4580 = vshll.u32 2102212464, %v4568
        %v4581 = vshrl.u32 920167782, %v4569
        %v4582 = vor.u32 %v4580, %v4581
        %v4583 = vshll.u32 920167782, %v4568
        %v4584 = vshrl.u32 1326507024, %v4569
        %v4585 = vor.u32 %v4583, %v4584
        %vm4586 = vcmp.lt.s32.totalorder %v4567, 1
        %vm4587 = vcmp.lt.s32.totalorder %v4567, 2
        %vm4588 = vcmp.lt.s32.totalorder %v4567, 3
        %vm4589 = vcmp.lt.s32.totalorder %v4567, 4
        %v4590 = vsel %vm4586, %v4570, %v4573
        %v4591 = vsel %vm4589, %v4579, 2102212464
        %v4592 = vsel %vm4588, %v4576, %v4591
        %v4593 = vsel %vm4587, %v4590, %v4592
        %v4594 = vsel %vm4586, %v4573, %v4576
        %v4595 = vsel %vm4589, %v4582, 920167782
        %v4596 = vsel %vm4588, %v4579, %v4595
        %v4597 = vsel %vm4587, %v4594, %v4596
        %v4598 = vsel %vm4586, %v4576, %v4579
        %v4599 = vsel %vm4589, %v4585, 1326507024
        %v4600 = vsel %vm4588, %v4582, %v4599
        %v4601 = vsel %vm4587, %v4598, %v4600
        %v4602 = vshll.u32 %v4562, 8
        %v4603 = vmul.u32.u64.compose %v4602, %v4601
        %v4604 = vextract.low.u32 %v4603
        %v4605 = vextract.high.u32 %v4603
        %v4606 = vmul.u32.u64.compose %v4602, %v4597
        %v4607 = vextract.low.u32 %v4606
        %v4608 = vextract.high.u32 %v4606
        %v4609 = vmul.u32 %v4602, %v4593
        %v4610 = vadd.s32 %v4605, %v4607
        %vm4611 = vc.u32 %v4605, %v4607
        %v4612 = vadd.s32 %v4608, 1
        %v4613 = vsel %vm4611, %v4612, %v4608
        %v4614 = vadd.s32 %v4609, %v4613
        %v4615 = vadd.s32 %v4614, 536870912
        %v4616 = vshrl.u32 %v4615, 30
        %v4617 = vshll.u32 %v4616, 30
        %v4618 = vsub.s32 %v4614, %v4617
        %vm4619 = vcmp.lt.s32.totalorder %v4618, 0
        %v4620 = vsub.s32 0, %v4618
        %v4621 = vsel %vm4619, %v4620, %v4618
        %v4622 = vclz %v4621
        %v4623 = vsub.s32 %v4622, 2
        %vm4624 = vcmp.gt.s32.totalorder 0, %v4623
        %v4625 = vsel %vm4624, 0, %v4623
        %v4626 = vsub.s32 32, %v4625
        %v4627 = vshll.u32 %v4618, %v4625
        %v4628 = vshrl.u32 %v4610, %v4626
        %v4629 = vor.u32 %v4627, %v4628
        %v4630 = vsub.s32 4294967266, %v4625
        %v4631 = vadd.s32 %v4630, 127
        %v4632 = vshll.u32 %v4631, 23
        %v4633 = vor.u32 4788187, %v4632
        %v4634 = vand.u32 2147483647, %v4633
        %v4636 = vcvt.s32.f32 %v4629
        %v4637 = vmul.f32 %v4636, %v4634
        %v4638 = vxor.u32 %v4637, 2147483648
        %v4639 = vsel %vm4556, %v4638, %v4637
        %v4640 = vsub.s32 4, %v4616
        %v4641 = vsel %vm4556, %v4640, %v4616
        %v4642 = vsel %vm4555, %v1091, %v4639
        %v4643 = vsel %vm4555, 0, %v4641
        %v4644 = vcosq.f32.pop %v4642
        %v4645 = vsinq.f32.pop %v4642
        %vm4646 = vweird.f32 %v1091
        %v4647 = vadd.s32 %v4643, 3
        %v4648 = vand.u32 %v4647, 3
        %vm4649 = vcmp.lt.s32.totalorder %v4648, 2
        %vm4650 = vcmp.eq.s32.totalorder %v4648, 0
        %v4651 = vxor.u32 %v4645, 2147483648
        %v4652 = vsel %vm4650, %v4644, %v4651
        %vm4653 = vcmp.eq.s32.totalorder %v4648, 2
        %v4654 = vxor.u32 %v4644, 2147483648
        %v4655 = vsel %vm4653, %v4654, %v4645
        %v4656 = vsel %vm4649, %v4652, %v4655
        %v4657 = vsel %vm4646, nan, %v4656
        %v4658 = vand.u32 2147483647, %v1092
        %vm4659 = vcmp.le.f32.partialorder %v4658, 0.7853982
        %vm4660 = vcmp.lt.s32.totalorder %v1092, 0
        %v4661 = vand.u32 %v1092, 2139095040
        %v4662 = vshrl.u32 %v4661, 23
        %v4663 = vsub.s32 %v4662, 127
        %v4664 = vand.u32 2147483647, %v1092
        %v4665 = vand.u32 %v4664, 8388607
        %v4666 = vor.u32 %v4665, 8388608
        %v4667 = vsub.s32 0, %v4666
        %v4668 = vadd.s32 %v4663, 1
        %vm4669 = vcmp.gt.s32.totalorder %v4668, 0
        %v4670 = vsel %vm4669, %v4668, 0
        %v4671 = vshrl.u32 %v4670, 5
        %v4672 = vand.u32 %v4670, 31
        %v4673 = vsub.s32 32, %v4672
        %v4674 = vshrl.u32 683565275, %v4673
        %v4675 = vshll.u32 683565275, %v4672
        %v4676 = vshrl.u32 2475754826, %v4673
        %v4677 = vor.u32 %v4675, %v4676
        %v4678 = vshll.u32 2475754826, %v4672
        %v4679 = vshrl.u32 2131351028, %v4673
        %v4680 = vor.u32 %v4678, %v4679
        %v4681 = vshll.u32 2131351028, %v4672
        %v4682 = vshrl.u32 2102212464, %v4673
        %v4683 = vor.u32 %v4681, %v4682
        %v4684 = vshll.u32 2102212464, %v4672
        %v4685 = vshrl.u32 920167782, %v4673
        %v4686 = vor.u32 %v4684, %v4685
        %v4687 = vshll.u32 920167782, %v4672
        %v4688 = vshrl.u32 1326507024, %v4673
        %v4689 = vor.u32 %v4687, %v4688
        %vm4690 = vcmp.lt.s32.totalorder %v4671, 1
        %vm4691 = vcmp.lt.s32.totalorder %v4671, 2
        %vm4692 = vcmp.lt.s32.totalorder %v4671, 3
        %vm4693 = vcmp.lt.s32.totalorder %v4671, 4
        %v4694 = vsel %vm4690, %v4674, %v4677
        %v4695 = vsel %vm4693, %v4683, 2102212464
        %v4696 = vsel %vm4692, %v4680, %v4695
        %v4697 = vsel %vm4691, %v4694, %v4696
        %v4698 = vsel %vm4690, %v4677, %v4680
        %v4699 = vsel %vm4693, %v4686, 920167782
        %v4700 = vsel %vm4692, %v4683, %v4699
        %v4701 = vsel %vm4691, %v4698, %v4700
        %v4702 = vsel %vm4690, %v4680, %v4683
        %v4703 = vsel %vm4693, %v4689, 1326507024
        %v4704 = vsel %vm4692, %v4686, %v4703
        %v4705 = vsel %vm4691, %v4702, %v4704
        %v4706 = vshll.u32 %v4666, 8
        %v4707 = vmul.u32.u64.compose %v4706, %v4705
        %v4708 = vextract.low.u32 %v4707
        %v4709 = vextract.high.u32 %v4707
        %v4710 = vmul.u32.u64.compose %v4706, %v4701
        %v4711 = vextract.low.u32 %v4710
        %v4712 = vextract.high.u32 %v4710
        %v4713 = vmul.u32 %v4706, %v4697
        %v4714 = vadd.s32 %v4709, %v4711
        %vm4715 = vc.u32 %v4709, %v4711
        %v4716 = vadd.s32 %v4712, 1
        %v4717 = vsel %vm4715, %v4716, %v4712
        %v4718 = vadd.s32 %v4713, %v4717
        %v4719 = vadd.s32 %v4718, 536870912
        %v4720 = vshrl.u32 %v4719, 30
        %v4721 = vshll.u32 %v4720, 30
        %v4722 = vsub.s32 %v4718, %v4721
        %vm4723 = vcmp.lt.s32.totalorder %v4722, 0
        %v4724 = vsub.s32 0, %v4722
        %v4725 = vsel %vm4723, %v4724, %v4722
        %v4726 = vclz %v4725
        %v4727 = vsub.s32 %v4726, 2
        %vm4728 = vcmp.gt.s32.totalorder 0, %v4727
        %v4729 = vsel %vm4728, 0, %v4727
        %v4730 = vsub.s32 32, %v4729
        %v4731 = vshll.u32 %v4722, %v4729
        %v4732 = vshrl.u32 %v4714, %v4730
        %v4733 = vor.u32 %v4731, %v4732
        %v4734 = vsub.s32 4294967266, %v4729
        %v4735 = vadd.s32 %v4734, 127
        %v4736 = vshll.u32 %v4735, 23
        %v4737 = vor.u32 4788187, %v4736
        %v4738 = vand.u32 2147483647, %v4737
        %v4740 = vcvt.s32.f32 %v4733
        %v4741 = vmul.f32 %v4740, %v4738
        %v4742 = vxor.u32 %v4741, 2147483648
        %v4743 = vsel %vm4660, %v4742, %v4741
        %v4744 = vsub.s32 4, %v4720
        %v4745 = vsel %vm4660, %v4744, %v4720
        %v4746 = vsel %vm4659, %v1092, %v4743
        %v4747 = vsel %vm4659, 0, %v4745
        %v4748 = vcosq.f32.pop %v4746
        %v4749 = vsinq.f32.pop %v4746
        %vm4750 = vweird.f32 %v1092
        %v4751 = vadd.s32 %v4747, 3
        %v4752 = vand.u32 %v4751, 3
        %vm4753 = vcmp.lt.s32.totalorder %v4752, 2
        %vm4754 = vcmp.eq.s32.totalorder %v4752, 0
        %v4755 = vxor.u32 %v4749, 2147483648
        %v4756 = vsel %vm4754, %v4748, %v4755
        %vm4757 = vcmp.eq.s32.totalorder %v4752, 2
        %v4758 = vxor.u32 %v4748, 2147483648
        %v4759 = vsel %vm4757, %v4758, %v4749
        %v4760 = vsel %vm4753, %v4756, %v4759
        %v4761 = vsel %vm4750, nan, %v4760
        %v4762 = vand.u32 2147483647, %v1093
        %vm4763 = vcmp.le.f32.partialorder %v4762, 0.7853982
        %vm4764 = vcmp.lt.s32.totalorder %v1093, 0
        %v4765 = vand.u32 %v1093, 2139095040
        %v4766 = vshrl.u32 %v4765, 23
        %v4767 = vsub.s32 %v4766, 127
        %v4768 = vand.u32 2147483647, %v1093
        %v4769 = vand.u32 %v4768, 8388607
        %v4770 = vor.u32 %v4769, 8388608
        %v4771 = vsub.s32 0, %v4770
        %v4772 = vadd.s32 %v4767, 1
        %vm4773 = vcmp.gt.s32.totalorder %v4772, 0
        %v4774 = vsel %vm4773, %v4772, 0
        %v4775 = vshrl.u32 %v4774, 5
        %v4776 = vand.u32 %v4774, 31
        %v4777 = vsub.s32 32, %v4776
        %v4778 = vshrl.u32 683565275, %v4777
        %v4779 = vshll.u32 683565275, %v4776
        %v4780 = vshrl.u32 2475754826, %v4777
        %v4781 = vor.u32 %v4779, %v4780
        %v4782 = vshll.u32 2475754826, %v4776
        %v4783 = vshrl.u32 2131351028, %v4777
        %v4784 = vor.u32 %v4782, %v4783
        %v4785 = vshll.u32 2131351028, %v4776
        %v4786 = vshrl.u32 2102212464, %v4777
        %v4787 = vor.u32 %v4785, %v4786
        %v4788 = vshll.u32 2102212464, %v4776
        %v4789 = vshrl.u32 920167782, %v4777
        %v4790 = vor.u32 %v4788, %v4789
        %v4791 = vshll.u32 920167782, %v4776
        %v4792 = vshrl.u32 1326507024, %v4777
        %v4793 = vor.u32 %v4791, %v4792
        %vm4794 = vcmp.lt.s32.totalorder %v4775, 1
        %vm4795 = vcmp.lt.s32.totalorder %v4775, 2
        %vm4796 = vcmp.lt.s32.totalorder %v4775, 3
        %vm4797 = vcmp.lt.s32.totalorder %v4775, 4
        %v4798 = vsel %vm4794, %v4778, %v4781
        %v4799 = vsel %vm4797, %v4787, 2102212464
        %v4800 = vsel %vm4796, %v4784, %v4799
        %v4801 = vsel %vm4795, %v4798, %v4800
        %v4802 = vsel %vm4794, %v4781, %v4784
        %v4803 = vsel %vm4797, %v4790, 920167782
        %v4804 = vsel %vm4796, %v4787, %v4803
        %v4805 = vsel %vm4795, %v4802, %v4804
        %v4806 = vsel %vm4794, %v4784, %v4787
        %v4807 = vsel %vm4797, %v4793, 1326507024
        %v4808 = vsel %vm4796, %v4790, %v4807
        %v4809 = vsel %vm4795, %v4806, %v4808
        %v4810 = vshll.u32 %v4770, 8
        %v4811 = vmul.u32.u64.compose %v4810, %v4809
        %v4812 = vextract.low.u32 %v4811
        %v4813 = vextract.high.u32 %v4811
        %v4814 = vmul.u32.u64.compose %v4810, %v4805
        %v4815 = vextract.low.u32 %v4814
        %v4816 = vextract.high.u32 %v4814
        %v4817 = vmul.u32 %v4810, %v4801
        %v4818 = vadd.s32 %v4813, %v4815
        %vm4819 = vc.u32 %v4813, %v4815
        %v4820 = vadd.s32 %v4816, 1
        %v4821 = vsel %vm4819, %v4820, %v4816
        %v4822 = vadd.s32 %v4817, %v4821
        %v4823 = vadd.s32 %v4822, 536870912
        %v4824 = vshrl.u32 %v4823, 30
        %v4825 = vshll.u32 %v4824, 30
        %v4826 = vsub.s32 %v4822, %v4825
        %vm4827 = vcmp.lt.s32.totalorder %v4826, 0
        %v4828 = vsub.s32 0, %v4826
        %v4829 = vsel %vm4827, %v4828, %v4826
        %v4830 = vclz %v4829
        %v4831 = vsub.s32 %v4830, 2
        %vm4832 = vcmp.gt.s32.totalorder 0, %v4831
        %v4833 = vsel %vm4832, 0, %v4831
        %v4834 = vsub.s32 32, %v4833
        %v4835 = vshll.u32 %v4826, %v4833
        %v4836 = vshrl.u32 %v4818, %v4834
        %v4837 = vor.u32 %v4835, %v4836
        %v4838 = vsub.s32 4294967266, %v4833
        %v4839 = vadd.s32 %v4838, 127
        %v4840 = vshll.u32 %v4839, 23
        %v4841 = vor.u32 4788187, %v4840
        %v4842 = vand.u32 2147483647, %v4841
        %v4844 = vcvt.s32.f32 %v4837
        %v4845 = vmul.f32 %v4844, %v4842
        %v4846 = vxor.u32 %v4845, 2147483648
        %v4847 = vsel %vm4764, %v4846, %v4845
        %v4848 = vsub.s32 4, %v4824
        %v4849 = vsel %vm4764, %v4848, %v4824
        %v4850 = vsel %vm4763, %v1093, %v4847
        %v4851 = vsel %vm4763, 0, %v4849
        %v4852 = vcosq.f32.pop %v4850
        %v4853 = vsinq.f32.pop %v4850
        %vm4854 = vweird.f32 %v1093
        %v4855 = vadd.s32 %v4851, 3
        %v4856 = vand.u32 %v4855, 3
        %vm4857 = vcmp.lt.s32.totalorder %v4856, 2
        %vm4858 = vcmp.eq.s32.totalorder %v4856, 0
        %v4859 = vxor.u32 %v4853, 2147483648
        %v4860 = vsel %vm4858, %v4852, %v4859
        %vm4861 = vcmp.eq.s32.totalorder %v4856, 2
        %v4862 = vxor.u32 %v4852, 2147483648
        %v4863 = vsel %vm4861, %v4862, %v4853
        %v4864 = vsel %vm4857, %v4860, %v4863
        %v4865 = vsel %vm4854, nan, %v4864
        %v4866 = vand.u32 2147483647, %v1094
        %vm4867 = vcmp.le.f32.partialorder %v4866, 0.7853982
        %vm4868 = vcmp.lt.s32.totalorder %v1094, 0
        %v4869 = vand.u32 %v1094, 2139095040
        %v4870 = vshrl.u32 %v4869, 23
        %v4871 = vsub.s32 %v4870, 127
        %v4872 = vand.u32 2147483647, %v1094
        %v4873 = vand.u32 %v4872, 8388607
        %v4874 = vor.u32 %v4873, 8388608
        %v4875 = vsub.s32 0, %v4874
        %v4876 = vadd.s32 %v4871, 1
        %vm4877 = vcmp.gt.s32.totalorder %v4876, 0
        %v4878 = vsel %vm4877, %v4876, 0
        %v4879 = vshrl.u32 %v4878, 5
        %v4880 = vand.u32 %v4878, 31
        %v4881 = vsub.s32 32, %v4880
        %v4882 = vshrl.u32 683565275, %v4881
        %v4883 = vshll.u32 683565275, %v4880
        %v4884 = vshrl.u32 2475754826, %v4881
        %v4885 = vor.u32 %v4883, %v4884
        %v4886 = vshll.u32 2475754826, %v4880
        %v4887 = vshrl.u32 2131351028, %v4881
        %v4888 = vor.u32 %v4886, %v4887
        %v4889 = vshll.u32 2131351028, %v4880
        %v4890 = vshrl.u32 2102212464, %v4881
        %v4891 = vor.u32 %v4889, %v4890
        %v4892 = vshll.u32 2102212464, %v4880
        %v4893 = vshrl.u32 920167782, %v4881
        %v4894 = vor.u32 %v4892, %v4893
        %v4895 = vshll.u32 920167782, %v4880
        %v4896 = vshrl.u32 1326507024, %v4881
        %v4897 = vor.u32 %v4895, %v4896
        %vm4898 = vcmp.lt.s32.totalorder %v4879, 1
        %vm4899 = vcmp.lt.s32.totalorder %v4879, 2
        %vm4900 = vcmp.lt.s32.totalorder %v4879, 3
        %vm4901 = vcmp.lt.s32.totalorder %v4879, 4
        %v4902 = vsel %vm4898, %v4882, %v4885
        %v4903 = vsel %vm4901, %v4891, 2102212464
        %v4904 = vsel %vm4900, %v4888, %v4903
        %v4905 = vsel %vm4899, %v4902, %v4904
        %v4906 = vsel %vm4898, %v4885, %v4888
        %v4907 = vsel %vm4901, %v4894, 920167782
        %v4908 = vsel %vm4900, %v4891, %v4907
        %v4909 = vsel %vm4899, %v4906, %v4908
        %v4910 = vsel %vm4898, %v4888, %v4891
        %v4911 = vsel %vm4901, %v4897, 1326507024
        %v4912 = vsel %vm4900, %v4894, %v4911
        %v4913 = vsel %vm4899, %v4910, %v4912
        %v4914 = vshll.u32 %v4874, 8
        %v4915 = vmul.u32.u64.compose %v4914, %v4913
        %v4916 = vextract.low.u32 %v4915
        %v4917 = vextract.high.u32 %v4915
        %v4918 = vmul.u32.u64.compose %v4914, %v4909
        %v4919 = vextract.low.u32 %v4918
        %v4920 = vextract.high.u32 %v4918
        %v4921 = vmul.u32 %v4914, %v4905
        %v4922 = vadd.s32 %v4917, %v4919
        %vm4923 = vc.u32 %v4917, %v4919
        %v4924 = vadd.s32 %v4920, 1
        %v4925 = vsel %vm4923, %v4924, %v4920
        %v4926 = vadd.s32 %v4921, %v4925
        %v4927 = vadd.s32 %v4926, 536870912
        %v4928 = vshrl.u32 %v4927, 30
        %v4929 = vshll.u32 %v4928, 30
        %v4930 = vsub.s32 %v4926, %v4929
        %vm4931 = vcmp.lt.s32.totalorder %v4930, 0
        %v4932 = vsub.s32 0, %v4930
        %v4933 = vsel %vm4931, %v4932, %v4930
        %v4934 = vclz %v4933
        %v4935 = vsub.s32 %v4934, 2
        %vm4936 = vcmp.gt.s32.totalorder 0, %v4935
        %v4937 = vsel %vm4936, 0, %v4935
        %v4938 = vsub.s32 32, %v4937
        %v4939 = vshll.u32 %v4930, %v4937
        %v4940 = vshrl.u32 %v4922, %v4938
        %v4941 = vor.u32 %v4939, %v4940
        %v4942 = vsub.s32 4294967266, %v4937
        %v4943 = vadd.s32 %v4942, 127
        %v4944 = vshll.u32 %v4943, 23
        %v4945 = vor.u32 4788187, %v4944
        %v4946 = vand.u32 2147483647, %v4945
        %v4948 = vcvt.s32.f32 %v4941
        %v4949 = vmul.f32 %v4948, %v4946
        %v4950 = vxor.u32 %v4949, 2147483648
        %v4951 = vsel %vm4868, %v4950, %v4949
        %v4952 = vsub.s32 4, %v4928
        %v4953 = vsel %vm4868, %v4952, %v4928
        %v4954 = vsel %vm4867, %v1094, %v4951
        %v4955 = vsel %vm4867, 0, %v4953
        %v4956 = vcosq.f32.pop %v4954
        %v4957 = vsinq.f32.pop %v4954
        %vm4958 = vweird.f32 %v1094
        %v4959 = vadd.s32 %v4955, 3
        %v4960 = vand.u32 %v4959, 3
        %vm4961 = vcmp.lt.s32.totalorder %v4960, 2
        %vm4962 = vcmp.eq.s32.totalorder %v4960, 0
        %v4963 = vxor.u32 %v4957, 2147483648
        %v4964 = vsel %vm4962, %v4956, %v4963
        %vm4965 = vcmp.eq.s32.totalorder %v4960, 2
        %v4966 = vxor.u32 %v4956, 2147483648
        %v4967 = vsel %vm4965, %v4966, %v4957
        %v4968 = vsel %vm4961, %v4964, %v4967
        %v4969 = vsel %vm4958, nan, %v4968
        %v4970 = vand.u32 2147483647, %v1095
        %vm4971 = vcmp.le.f32.partialorder %v4970, 0.7853982
        %vm4972 = vcmp.lt.s32.totalorder %v1095, 0
        %v4973 = vand.u32 %v1095, 2139095040
        %v4974 = vshrl.u32 %v4973, 23
        %v4975 = vsub.s32 %v4974, 127
        %v4976 = vand.u32 2147483647, %v1095
        %v4977 = vand.u32 %v4976, 8388607
        %v4978 = vor.u32 %v4977, 8388608
        %v4979 = vsub.s32 0, %v4978
        %v4980 = vadd.s32 %v4975, 1
        %vm4981 = vcmp.gt.s32.totalorder %v4980, 0
        %v4982 = vsel %vm4981, %v4980, 0
        %v4983 = vshrl.u32 %v4982, 5
        %v4984 = vand.u32 %v4982, 31
        %v4985 = vsub.s32 32, %v4984
        %v4986 = vshrl.u32 683565275, %v4985
        %v4987 = vshll.u32 683565275, %v4984
        %v4988 = vshrl.u32 2475754826, %v4985
        %v4989 = vor.u32 %v4987, %v4988
        %v4990 = vshll.u32 2475754826, %v4984
        %v4991 = vshrl.u32 2131351028, %v4985
        %v4992 = vor.u32 %v4990, %v4991
        %v4993 = vshll.u32 2131351028, %v4984
        %v4994 = vshrl.u32 2102212464, %v4985
        %v4995 = vor.u32 %v4993, %v4994
        %v4996 = vshll.u32 2102212464, %v4984
        %v4997 = vshrl.u32 920167782, %v4985
        %v4998 = vor.u32 %v4996, %v4997
        %v4999 = vshll.u32 920167782, %v4984
        %v5000 = vshrl.u32 1326507024, %v4985
        %v5001 = vor.u32 %v4999, %v5000
        %vm5002 = vcmp.lt.s32.totalorder %v4983, 1
        %vm5003 = vcmp.lt.s32.totalorder %v4983, 2
        %vm5004 = vcmp.lt.s32.totalorder %v4983, 3
        %vm5005 = vcmp.lt.s32.totalorder %v4983, 4
        %v5006 = vsel %vm5002, %v4986, %v4989
        %v5007 = vsel %vm5005, %v4995, 2102212464
        %v5008 = vsel %vm5004, %v4992, %v5007
        %v5009 = vsel %vm5003, %v5006, %v5008
        %v5010 = vsel %vm5002, %v4989, %v4992
        %v5011 = vsel %vm5005, %v4998, 920167782
        %v5012 = vsel %vm5004, %v4995, %v5011
        %v5013 = vsel %vm5003, %v5010, %v5012
        %v5014 = vsel %vm5002, %v4992, %v4995
        %v5015 = vsel %vm5005, %v5001, 1326507024
        %v5016 = vsel %vm5004, %v4998, %v5015
        %v5017 = vsel %vm5003, %v5014, %v5016
        %v5018 = vshll.u32 %v4978, 8
        %v5019 = vmul.u32.u64.compose %v5018, %v5017
        %v5020 = vextract.low.u32 %v5019
        %v5021 = vextract.high.u32 %v5019
        %v5022 = vmul.u32.u64.compose %v5018, %v5013
        %v5023 = vextract.low.u32 %v5022
        %v5024 = vextract.high.u32 %v5022
        %v5025 = vmul.u32 %v5018, %v5009
        %v5026 = vadd.s32 %v5021, %v5023
        %vm5027 = vc.u32 %v5021, %v5023
        %v5028 = vadd.s32 %v5024, 1
        %v5029 = vsel %vm5027, %v5028, %v5024
        %v5030 = vadd.s32 %v5025, %v5029
        %v5031 = vadd.s32 %v5030, 536870912
        %v5032 = vshrl.u32 %v5031, 30
        %v5033 = vshll.u32 %v5032, 30
        %v5034 = vsub.s32 %v5030, %v5033
        %vm5035 = vcmp.lt.s32.totalorder %v5034, 0
        %v5036 = vsub.s32 0, %v5034
        %v5037 = vsel %vm5035, %v5036, %v5034
        %v5038 = vclz %v5037
        %v5039 = vsub.s32 %v5038, 2
        %vm5040 = vcmp.gt.s32.totalorder 0, %v5039
        %v5041 = vsel %vm5040, 0, %v5039
        %v5042 = vsub.s32 32, %v5041
        %v5043 = vshll.u32 %v5034, %v5041
        %v5044 = vshrl.u32 %v5026, %v5042
        %v5045 = vor.u32 %v5043, %v5044
        %v5046 = vsub.s32 4294967266, %v5041
        %v5047 = vadd.s32 %v5046, 127
        %v5048 = vshll.u32 %v5047, 23
        %v5049 = vor.u32 4788187, %v5048
        %v5050 = vand.u32 2147483647, %v5049
        %v5052 = vcvt.s32.f32 %v5045
        %v5053 = vmul.f32 %v5052, %v5050
        %v5054 = vxor.u32 %v5053, 2147483648
        %v5055 = vsel %vm4972, %v5054, %v5053
        %v5056 = vsub.s32 4, %v5032
        %v5057 = vsel %vm4972, %v5056, %v5032
        %v5058 = vsel %vm4971, %v1095, %v5055
        %v5059 = vsel %vm4971, 0, %v5057
        %v5060 = vcosq.f32.pop %v5058
        %v5061 = vsinq.f32.pop %v5058
        %vm5062 = vweird.f32 %v1095
        %v5063 = vadd.s32 %v5059, 3
        %v5064 = vand.u32 %v5063, 3
        %vm5065 = vcmp.lt.s32.totalorder %v5064, 2
        %vm5066 = vcmp.eq.s32.totalorder %v5064, 0
        %v5067 = vxor.u32 %v5061, 2147483648
        %v5068 = vsel %vm5066, %v5060, %v5067
        %vm5069 = vcmp.eq.s32.totalorder %v5064, 2
        %v5070 = vxor.u32 %v5060, 2147483648
        %v5071 = vsel %vm5069, %v5070, %v5061
        %v5072 = vsel %vm5065, %v5068, %v5071
        %v5073 = vsel %vm5062, nan, %v5072
        %v5074 = vand.u32 2147483647, %v1096
        %vm5075 = vcmp.le.f32.partialorder %v5074, 0.7853982
        %vm5076 = vcmp.lt.s32.totalorder %v1096, 0
        %v5077 = vand.u32 %v1096, 2139095040
        %v5078 = vshrl.u32 %v5077, 23
        %v5079 = vsub.s32 %v5078, 127
        %v5080 = vand.u32 2147483647, %v1096
        %v5081 = vand.u32 %v5080, 8388607
        %v5082 = vor.u32 %v5081, 8388608
        %v5083 = vsub.s32 0, %v5082
        %v5084 = vadd.s32 %v5079, 1
        %vm5085 = vcmp.gt.s32.totalorder %v5084, 0
        %v5086 = vsel %vm5085, %v5084, 0
        %v5087 = vshrl.u32 %v5086, 5
        %v5088 = vand.u32 %v5086, 31
        %v5089 = vsub.s32 32, %v5088
        %v5090 = vshrl.u32 683565275, %v5089
        %v5091 = vshll.u32 683565275, %v5088
        %v5092 = vshrl.u32 2475754826, %v5089
        %v5093 = vor.u32 %v5091, %v5092
        %v5094 = vshll.u32 2475754826, %v5088
        %v5095 = vshrl.u32 2131351028, %v5089
        %v5096 = vor.u32 %v5094, %v5095
        %v5097 = vshll.u32 2131351028, %v5088
        %v5098 = vshrl.u32 2102212464, %v5089
        %v5099 = vor.u32 %v5097, %v5098
        %v5100 = vshll.u32 2102212464, %v5088
        %v5101 = vshrl.u32 920167782, %v5089
        %v5102 = vor.u32 %v5100, %v5101
        %v5103 = vshll.u32 920167782, %v5088
        %v5104 = vshrl.u32 1326507024, %v5089
        %v5105 = vor.u32 %v5103, %v5104
        %vm5106 = vcmp.lt.s32.totalorder %v5087, 1
        %vm5107 = vcmp.lt.s32.totalorder %v5087, 2
        %vm5108 = vcmp.lt.s32.totalorder %v5087, 3
        %vm5109 = vcmp.lt.s32.totalorder %v5087, 4
        %v5110 = vsel %vm5106, %v5090, %v5093
        %v5111 = vsel %vm5109, %v5099, 2102212464
        %v5112 = vsel %vm5108, %v5096, %v5111
        %v5113 = vsel %vm5107, %v5110, %v5112
        %v5114 = vsel %vm5106, %v5093, %v5096
        %v5115 = vsel %vm5109, %v5102, 920167782
        %v5116 = vsel %vm5108, %v5099, %v5115
        %v5117 = vsel %vm5107, %v5114, %v5116
        %v5118 = vsel %vm5106, %v5096, %v5099
        %v5119 = vsel %vm5109, %v5105, 1326507024
        %v5120 = vsel %vm5108, %v5102, %v5119
        %v5121 = vsel %vm5107, %v5118, %v5120
        %v5122 = vshll.u32 %v5082, 8
        %v5123 = vmul.u32.u64.compose %v5122, %v5121
        %v5124 = vextract.low.u32 %v5123
        %v5125 = vextract.high.u32 %v5123
        %v5126 = vmul.u32.u64.compose %v5122, %v5117
        %v5127 = vextract.low.u32 %v5126
        %v5128 = vextract.high.u32 %v5126
        %v5129 = vmul.u32 %v5122, %v5113
        %v5130 = vadd.s32 %v5125, %v5127
        %vm5131 = vc.u32 %v5125, %v5127
        %v5132 = vadd.s32 %v5128, 1
        %v5133 = vsel %vm5131, %v5132, %v5128
        %v5134 = vadd.s32 %v5129, %v5133
        %v5135 = vadd.s32 %v5134, 536870912
        %v5136 = vshrl.u32 %v5135, 30
        %v5137 = vshll.u32 %v5136, 30
        %v5138 = vsub.s32 %v5134, %v5137
        %vm5139 = vcmp.lt.s32.totalorder %v5138, 0
        %v5140 = vsub.s32 0, %v5138
        %v5141 = vsel %vm5139, %v5140, %v5138
        %v5142 = vclz %v5141
        %v5143 = vsub.s32 %v5142, 2
        %vm5144 = vcmp.gt.s32.totalorder 0, %v5143
        %v5145 = vsel %vm5144, 0, %v5143
        %v5146 = vsub.s32 32, %v5145
        %v5147 = vshll.u32 %v5138, %v5145
        %v5148 = vshrl.u32 %v5130, %v5146
        %v5149 = vor.u32 %v5147, %v5148
        %v5150 = vsub.s32 4294967266, %v5145
        %v5151 = vadd.s32 %v5150, 127
        %v5152 = vshll.u32 %v5151, 23
        %v5153 = vor.u32 4788187, %v5152
        %v5154 = vand.u32 2147483647, %v5153
        %v5156 = vcvt.s32.f32 %v5149
        %v5157 = vmul.f32 %v5156, %v5154
        %v5158 = vxor.u32 %v5157, 2147483648
        %v5159 = vsel %vm5076, %v5158, %v5157
        %v5160 = vsub.s32 4, %v5136
        %v5161 = vsel %vm5076, %v5160, %v5136
        %v5162 = vsel %vm5075, %v1096, %v5159
        %v5163 = vsel %vm5075, 0, %v5161
        %v5164 = vcosq.f32.pop %v5162
        %v5165 = vsinq.f32.pop %v5162
        %vm5166 = vweird.f32 %v1096
        %v5167 = vadd.s32 %v5163, 3
        %v5168 = vand.u32 %v5167, 3
        %vm5169 = vcmp.lt.s32.totalorder %v5168, 2
        %vm5170 = vcmp.eq.s32.totalorder %v5168, 0
        %v5171 = vxor.u32 %v5165, 2147483648
        %v5172 = vsel %vm5170, %v5164, %v5171
        %vm5173 = vcmp.eq.s32.totalorder %v5168, 2
        %v5174 = vxor.u32 %v5164, 2147483648
        %v5175 = vsel %vm5173, %v5174, %v5165
        %v5176 = vsel %vm5169, %v5172, %v5175
        %v5177 = vsel %vm5166, nan, %v5176
        %v5178 = vand.u32 2147483647, %v1097
        %vm5179 = vcmp.le.f32.partialorder %v5178, 0.7853982
        %vm5180 = vcmp.lt.s32.totalorder %v1097, 0
        %v5181 = vand.u32 %v1097, 2139095040
        %v5182 = vshrl.u32 %v5181, 23
        %v5183 = vsub.s32 %v5182, 127
        %v5184 = vand.u32 2147483647, %v1097
        %v5185 = vand.u32 %v5184, 8388607
        %v5186 = vor.u32 %v5185, 8388608
        %v5187 = vsub.s32 0, %v5186
        %v5188 = vadd.s32 %v5183, 1
        %vm5189 = vcmp.gt.s32.totalorder %v5188, 0
        %v5190 = vsel %vm5189, %v5188, 0
        %v5191 = vshrl.u32 %v5190, 5
        %v5192 = vand.u32 %v5190, 31
        %v5193 = vsub.s32 32, %v5192
        %v5194 = vshrl.u32 683565275, %v5193
        %v5195 = vshll.u32 683565275, %v5192
        %v5196 = vshrl.u32 2475754826, %v5193
        %v5197 = vor.u32 %v5195, %v5196
        %v5198 = vshll.u32 2475754826, %v5192
        %v5199 = vshrl.u32 2131351028, %v5193
        %v5200 = vor.u32 %v5198, %v5199
        %v5201 = vshll.u32 2131351028, %v5192
        %v5202 = vshrl.u32 2102212464, %v5193
        %v5203 = vor.u32 %v5201, %v5202
        %v5204 = vshll.u32 2102212464, %v5192
        %v5205 = vshrl.u32 920167782, %v5193
        %v5206 = vor.u32 %v5204, %v5205
        %v5207 = vshll.u32 920167782, %v5192
        %v5208 = vshrl.u32 1326507024, %v5193
        %v5209 = vor.u32 %v5207, %v5208
        %vm5210 = vcmp.lt.s32.totalorder %v5191, 1
        %vm5211 = vcmp.lt.s32.totalorder %v5191, 2
        %vm5212 = vcmp.lt.s32.totalorder %v5191, 3
        %vm5213 = vcmp.lt.s32.totalorder %v5191, 4
        %v5214 = vsel %vm5210, %v5194, %v5197
        %v5215 = vsel %vm5213, %v5203, 2102212464
        %v5216 = vsel %vm5212, %v5200, %v5215
        %v5217 = vsel %vm5211, %v5214, %v5216
        %v5218 = vsel %vm5210, %v5197, %v5200
        %v5219 = vsel %vm5213, %v5206, 920167782
        %v5220 = vsel %vm5212, %v5203, %v5219
        %v5221 = vsel %vm5211, %v5218, %v5220
        %v5222 = vsel %vm5210, %v5200, %v5203
        %v5223 = vsel %vm5213, %v5209, 1326507024
        %v5224 = vsel %vm5212, %v5206, %v5223
        %v5225 = vsel %vm5211, %v5222, %v5224
        %v5226 = vshll.u32 %v5186, 8
        %v5227 = vmul.u32.u64.compose %v5226, %v5225
        %v5228 = vextract.low.u32 %v5227
        %v5229 = vextract.high.u32 %v5227
        %v5230 = vmul.u32.u64.compose %v5226, %v5221
        %v5231 = vextract.low.u32 %v5230
        %v5232 = vextract.high.u32 %v5230
        %v5233 = vmul.u32 %v5226, %v5217
        %v5234 = vadd.s32 %v5229, %v5231
        %vm5235 = vc.u32 %v5229, %v5231
        %v5236 = vadd.s32 %v5232, 1
        %v5237 = vsel %vm5235, %v5236, %v5232
        %v5238 = vadd.s32 %v5233, %v5237
        %v5239 = vadd.s32 %v5238, 536870912
        %v5240 = vshrl.u32 %v5239, 30
        %v5241 = vshll.u32 %v5240, 30
        %v5242 = vsub.s32 %v5238, %v5241
        %vm5243 = vcmp.lt.s32.totalorder %v5242, 0
        %v5244 = vsub.s32 0, %v5242
        %v5245 = vsel %vm5243, %v5244, %v5242
        %v5246 = vclz %v5245
        %v5247 = vsub.s32 %v5246, 2
        %vm5248 = vcmp.gt.s32.totalorder 0, %v5247
        %v5249 = vsel %vm5248, 0, %v5247
        %v5250 = vsub.s32 32, %v5249
        %v5251 = vshll.u32 %v5242, %v5249
        %v5252 = vshrl.u32 %v5234, %v5250
        %v5253 = vor.u32 %v5251, %v5252
        %v5254 = vsub.s32 4294967266, %v5249
        %v5255 = vadd.s32 %v5254, 127
        %v5256 = vshll.u32 %v5255, 23
        %v5257 = vor.u32 4788187, %v5256
        %v5258 = vand.u32 2147483647, %v5257
        %v5260 = vcvt.s32.f32 %v5253
        %v5261 = vmul.f32 %v5260, %v5258
        %v5262 = vxor.u32 %v5261, 2147483648
        %v5263 = vsel %vm5180, %v5262, %v5261
        %v5264 = vsub.s32 4, %v5240
        %v5265 = vsel %vm5180, %v5264, %v5240
        %v5266 = vsel %vm5179, %v1097, %v5263
        %v5267 = vsel %vm5179, 0, %v5265
        %v5268 = vcosq.f32.pop %v5266
        %v5269 = vsinq.f32.pop %v5266
        %vm5270 = vweird.f32 %v1097
        %v5271 = vadd.s32 %v5267, 3
        %v5272 = vand.u32 %v5271, 3
        %vm5273 = vcmp.lt.s32.totalorder %v5272, 2
        %vm5274 = vcmp.eq.s32.totalorder %v5272, 0
        %v5275 = vxor.u32 %v5269, 2147483648
        %v5276 = vsel %vm5274, %v5268, %v5275
        %vm5277 = vcmp.eq.s32.totalorder %v5272, 2
        %v5278 = vxor.u32 %v5268, 2147483648
        %v5279 = vsel %vm5277, %v5278, %v5269
        %v5280 = vsel %vm5273, %v5276, %v5279
        %v5281 = vsel %vm5270, nan, %v5280
        %v5282 = vand.u32 2147483647, %v1098
        %vm5283 = vcmp.le.f32.partialorder %v5282, 0.7853982
        %vm5284 = vcmp.lt.s32.totalorder %v1098, 0
        %v5285 = vand.u32 %v1098, 2139095040
        %v5286 = vshrl.u32 %v5285, 23
        %v5287 = vsub.s32 %v5286, 127
        %v5288 = vand.u32 2147483647, %v1098
        %v5289 = vand.u32 %v5288, 8388607
        %v5290 = vor.u32 %v5289, 8388608
        %v5291 = vsub.s32 0, %v5290
        %v5292 = vadd.s32 %v5287, 1
        %vm5293 = vcmp.gt.s32.totalorder %v5292, 0
        %v5294 = vsel %vm5293, %v5292, 0
        %v5295 = vshrl.u32 %v5294, 5
        %v5296 = vand.u32 %v5294, 31
        %v5297 = vsub.s32 32, %v5296
        %v5298 = vshrl.u32 683565275, %v5297
        %v5299 = vshll.u32 683565275, %v5296
        %v5300 = vshrl.u32 2475754826, %v5297
        %v5301 = vor.u32 %v5299, %v5300
        %v5302 = vshll.u32 2475754826, %v5296
        %v5303 = vshrl.u32 2131351028, %v5297
        %v5304 = vor.u32 %v5302, %v5303
        %v5305 = vshll.u32 2131351028, %v5296
        %v5306 = vshrl.u32 2102212464, %v5297
        %v5307 = vor.u32 %v5305, %v5306
        %v5308 = vshll.u32 2102212464, %v5296
        %v5309 = vshrl.u32 920167782, %v5297
        %v5310 = vor.u32 %v5308, %v5309
        %v5311 = vshll.u32 920167782, %v5296
        %v5312 = vshrl.u32 1326507024, %v5297
        %v5313 = vor.u32 %v5311, %v5312
        %vm5314 = vcmp.lt.s32.totalorder %v5295, 1
        %vm5315 = vcmp.lt.s32.totalorder %v5295, 2
        %vm5316 = vcmp.lt.s32.totalorder %v5295, 3
        %vm5317 = vcmp.lt.s32.totalorder %v5295, 4
        %v5318 = vsel %vm5314, %v5298, %v5301
        %v5319 = vsel %vm5317, %v5307, 2102212464
        %v5320 = vsel %vm5316, %v5304, %v5319
        %v5321 = vsel %vm5315, %v5318, %v5320
        %v5322 = vsel %vm5314, %v5301, %v5304
        %v5323 = vsel %vm5317, %v5310, 920167782
        %v5324 = vsel %vm5316, %v5307, %v5323
        %v5325 = vsel %vm5315, %v5322, %v5324
        %v5326 = vsel %vm5314, %v5304, %v5307
        %v5327 = vsel %vm5317, %v5313, 1326507024
        %v5328 = vsel %vm5316, %v5310, %v5327
        %v5329 = vsel %vm5315, %v5326, %v5328
        %v5330 = vshll.u32 %v5290, 8
        %v5331 = vmul.u32.u64.compose %v5330, %v5329
        %v5332 = vextract.low.u32 %v5331
        %v5333 = vextract.high.u32 %v5331
        %v5334 = vmul.u32.u64.compose %v5330, %v5325
        %v5335 = vextract.low.u32 %v5334
        %v5336 = vextract.high.u32 %v5334
        %v5337 = vmul.u32 %v5330, %v5321
        %v5338 = vadd.s32 %v5333, %v5335
        %vm5339 = vc.u32 %v5333, %v5335
        %v5340 = vadd.s32 %v5336, 1
        %v5341 = vsel %vm5339, %v5340, %v5336
        %v5342 = vadd.s32 %v5337, %v5341
        %v5343 = vadd.s32 %v5342, 536870912
        %v5344 = vshrl.u32 %v5343, 30
        %v5345 = vshll.u32 %v5344, 30
        %v5346 = vsub.s32 %v5342, %v5345
        %vm5347 = vcmp.lt.s32.totalorder %v5346, 0
        %v5348 = vsub.s32 0, %v5346
        %v5349 = vsel %vm5347, %v5348, %v5346
        %v5350 = vclz %v5349
        %v5351 = vsub.s32 %v5350, 2
        %vm5352 = vcmp.gt.s32.totalorder 0, %v5351
        %v5353 = vsel %vm5352, 0, %v5351
        %v5354 = vsub.s32 32, %v5353
        %v5355 = vshll.u32 %v5346, %v5353
        %v5356 = vshrl.u32 %v5338, %v5354
        %v5357 = vor.u32 %v5355, %v5356
        %v5358 = vsub.s32 4294967266, %v5353
        %v5359 = vadd.s32 %v5358, 127
        %v5360 = vshll.u32 %v5359, 23
        %v5361 = vor.u32 4788187, %v5360
        %v5362 = vand.u32 2147483647, %v5361
        %v5364 = vcvt.s32.f32 %v5357
        %v5365 = vmul.f32 %v5364, %v5362
        %v5366 = vxor.u32 %v5365, 2147483648
        %v5367 = vsel %vm5284, %v5366, %v5365
        %v5368 = vsub.s32 4, %v5344
        %v5369 = vsel %vm5284, %v5368, %v5344
        %v5370 = vsel %vm5283, %v1098, %v5367
        %v5371 = vsel %vm5283, 0, %v5369
        %v5372 = vcosq.f32.pop %v5370
        %v5373 = vsinq.f32.pop %v5370
        %vm5374 = vweird.f32 %v1098
        %v5375 = vadd.s32 %v5371, 3
        %v5376 = vand.u32 %v5375, 3
        %vm5377 = vcmp.lt.s32.totalorder %v5376, 2
        %vm5378 = vcmp.eq.s32.totalorder %v5376, 0
        %v5379 = vxor.u32 %v5373, 2147483648
        %v5380 = vsel %vm5378, %v5372, %v5379
        %vm5381 = vcmp.eq.s32.totalorder %v5376, 2
        %v5382 = vxor.u32 %v5372, 2147483648
        %v5383 = vsel %vm5381, %v5382, %v5373
        %v5384 = vsel %vm5377, %v5380, %v5383
        %v5385 = vsel %vm5374, nan, %v5384
        %v5386 = vand.u32 2147483647, %v1099
        %vm5387 = vcmp.le.f32.partialorder %v5386, 0.7853982
        %vm5388 = vcmp.lt.s32.totalorder %v1099, 0
        %v5389 = vand.u32 %v1099, 2139095040
        %v5390 = vshrl.u32 %v5389, 23
        %v5391 = vsub.s32 %v5390, 127
        %v5392 = vand.u32 2147483647, %v1099
        %v5393 = vand.u32 %v5392, 8388607
        %v5394 = vor.u32 %v5393, 8388608
        %v5395 = vsub.s32 0, %v5394
        %v5396 = vadd.s32 %v5391, 1
        %vm5397 = vcmp.gt.s32.totalorder %v5396, 0
        %v5398 = vsel %vm5397, %v5396, 0
        %v5399 = vshrl.u32 %v5398, 5
        %v5400 = vand.u32 %v5398, 31
        %v5401 = vsub.s32 32, %v5400
        %v5402 = vshrl.u32 683565275, %v5401
        %v5403 = vshll.u32 683565275, %v5400
        %v5404 = vshrl.u32 2475754826, %v5401
        %v5405 = vor.u32 %v5403, %v5404
        %v5406 = vshll.u32 2475754826, %v5400
        %v5407 = vshrl.u32 2131351028, %v5401
        %v5408 = vor.u32 %v5406, %v5407
        %v5409 = vshll.u32 2131351028, %v5400
        %v5410 = vshrl.u32 2102212464, %v5401
        %v5411 = vor.u32 %v5409, %v5410
        %v5412 = vshll.u32 2102212464, %v5400
        %v5413 = vshrl.u32 920167782, %v5401
        %v5414 = vor.u32 %v5412, %v5413
        %v5415 = vshll.u32 920167782, %v5400
        %v5416 = vshrl.u32 1326507024, %v5401
        %v5417 = vor.u32 %v5415, %v5416
        %vm5418 = vcmp.lt.s32.totalorder %v5399, 1
        %vm5419 = vcmp.lt.s32.totalorder %v5399, 2
        %vm5420 = vcmp.lt.s32.totalorder %v5399, 3
        %vm5421 = vcmp.lt.s32.totalorder %v5399, 4
        %v5422 = vsel %vm5418, %v5402, %v5405
        %v5423 = vsel %vm5421, %v5411, 2102212464
        %v5424 = vsel %vm5420, %v5408, %v5423
        %v5425 = vsel %vm5419, %v5422, %v5424
        %v5426 = vsel %vm5418, %v5405, %v5408
        %v5427 = vsel %vm5421, %v5414, 920167782
        %v5428 = vsel %vm5420, %v5411, %v5427
        %v5429 = vsel %vm5419, %v5426, %v5428
        %v5430 = vsel %vm5418, %v5408, %v5411
        %v5431 = vsel %vm5421, %v5417, 1326507024
        %v5432 = vsel %vm5420, %v5414, %v5431
        %v5433 = vsel %vm5419, %v5430, %v5432
        %v5434 = vshll.u32 %v5394, 8
        %v5435 = vmul.u32.u64.compose %v5434, %v5433
        %v5436 = vextract.low.u32 %v5435
        %v5437 = vextract.high.u32 %v5435
        %v5438 = vmul.u32.u64.compose %v5434, %v5429
        %v5439 = vextract.low.u32 %v5438
        %v5440 = vextract.high.u32 %v5438
        %v5441 = vmul.u32 %v5434, %v5425
        %v5442 = vadd.s32 %v5437, %v5439
        %vm5443 = vc.u32 %v5437, %v5439
        %v5444 = vadd.s32 %v5440, 1
        %v5445 = vsel %vm5443, %v5444, %v5440
        %v5446 = vadd.s32 %v5441, %v5445
        %v5447 = vadd.s32 %v5446, 536870912
        %v5448 = vshrl.u32 %v5447, 30
        %v5449 = vshll.u32 %v5448, 30
        %v5450 = vsub.s32 %v5446, %v5449
        %vm5451 = vcmp.lt.s32.totalorder %v5450, 0
        %v5452 = vsub.s32 0, %v5450
        %v5453 = vsel %vm5451, %v5452, %v5450
        %v5454 = vclz %v5453
        %v5455 = vsub.s32 %v5454, 2
        %vm5456 = vcmp.gt.s32.totalorder 0, %v5455
        %v5457 = vsel %vm5456, 0, %v5455
        %v5458 = vsub.s32 32, %v5457
        %v5459 = vshll.u32 %v5450, %v5457
        %v5460 = vshrl.u32 %v5442, %v5458
        %v5461 = vor.u32 %v5459, %v5460
        %v5462 = vsub.s32 4294967266, %v5457
        %v5463 = vadd.s32 %v5462, 127
        %v5464 = vshll.u32 %v5463, 23
        %v5465 = vor.u32 4788187, %v5464
        %v5466 = vand.u32 2147483647, %v5465
        %v5468 = vcvt.s32.f32 %v5461
        %v5469 = vmul.f32 %v5468, %v5466
        %v5470 = vxor.u32 %v5469, 2147483648
        %v5471 = vsel %vm5388, %v5470, %v5469
        %v5472 = vsub.s32 4, %v5448
        %v5473 = vsel %vm5388, %v5472, %v5448
        %v5474 = vsel %vm5387, %v1099, %v5471
        %v5475 = vsel %vm5387, 0, %v5473
        %v5476 = vcosq.f32.pop %v5474
        %v5477 = vsinq.f32.pop %v5474
        %vm5478 = vweird.f32 %v1099
        %v5479 = vadd.s32 %v5475, 3
        %v5480 = vand.u32 %v5479, 3
        %vm5481 = vcmp.lt.s32.totalorder %v5480, 2
        %vm5482 = vcmp.eq.s32.totalorder %v5480, 0
        %v5483 = vxor.u32 %v5477, 2147483648
        %v5484 = vsel %vm5482, %v5476, %v5483
        %vm5485 = vcmp.eq.s32.totalorder %v5480, 2
        %v5486 = vxor.u32 %v5476, 2147483648
        %v5487 = vsel %vm5485, %v5486, %v5477
        %v5488 = vsel %vm5481, %v5484, %v5487
        %v5489 = vsel %vm5478, nan, %v5488
        %v5490 = vand.u32 2147483647, %v1100
        %vm5491 = vcmp.le.f32.partialorder %v5490, 0.7853982
        %vm5492 = vcmp.lt.s32.totalorder %v1100, 0
        %v5493 = vand.u32 %v1100, 2139095040
        %v5494 = vshrl.u32 %v5493, 23
        %v5495 = vsub.s32 %v5494, 127
        %v5496 = vand.u32 2147483647, %v1100
        %v5497 = vand.u32 %v5496, 8388607
        %v5498 = vor.u32 %v5497, 8388608
        %v5499 = vsub.s32 0, %v5498
        %v5500 = vadd.s32 %v5495, 1
        %vm5501 = vcmp.gt.s32.totalorder %v5500, 0
        %v5502 = vsel %vm5501, %v5500, 0
        %v5503 = vshrl.u32 %v5502, 5
        %v5504 = vand.u32 %v5502, 31
        %v5505 = vsub.s32 32, %v5504
        %v5506 = vshrl.u32 683565275, %v5505
        %v5507 = vshll.u32 683565275, %v5504
        %v5508 = vshrl.u32 2475754826, %v5505
        %v5509 = vor.u32 %v5507, %v5508
        %v5510 = vshll.u32 2475754826, %v5504
        %v5511 = vshrl.u32 2131351028, %v5505
        %v5512 = vor.u32 %v5510, %v5511
        %v5513 = vshll.u32 2131351028, %v5504
        %v5514 = vshrl.u32 2102212464, %v5505
        %v5515 = vor.u32 %v5513, %v5514
        %v5516 = vshll.u32 2102212464, %v5504
        %v5517 = vshrl.u32 920167782, %v5505
        %v5518 = vor.u32 %v5516, %v5517
        %v5519 = vshll.u32 920167782, %v5504
        %v5520 = vshrl.u32 1326507024, %v5505
        %v5521 = vor.u32 %v5519, %v5520
        %vm5522 = vcmp.lt.s32.totalorder %v5503, 1
        %vm5523 = vcmp.lt.s32.totalorder %v5503, 2
        %vm5524 = vcmp.lt.s32.totalorder %v5503, 3
        %vm5525 = vcmp.lt.s32.totalorder %v5503, 4
        %v5526 = vsel %vm5522, %v5506, %v5509
        %v5527 = vsel %vm5525, %v5515, 2102212464
        %v5528 = vsel %vm5524, %v5512, %v5527
        %v5529 = vsel %vm5523, %v5526, %v5528
        %v5530 = vsel %vm5522, %v5509, %v5512
        %v5531 = vsel %vm5525, %v5518, 920167782
        %v5532 = vsel %vm5524, %v5515, %v5531
        %v5533 = vsel %vm5523, %v5530, %v5532
        %v5534 = vsel %vm5522, %v5512, %v5515
        %v5535 = vsel %vm5525, %v5521, 1326507024
        %v5536 = vsel %vm5524, %v5518, %v5535
        %v5537 = vsel %vm5523, %v5534, %v5536
        %v5538 = vshll.u32 %v5498, 8
        %v5539 = vmul.u32.u64.compose %v5538, %v5537
        %v5540 = vextract.low.u32 %v5539
        %v5541 = vextract.high.u32 %v5539
        %v5542 = vmul.u32.u64.compose %v5538, %v5533
        %v5543 = vextract.low.u32 %v5542
        %v5544 = vextract.high.u32 %v5542
        %v5545 = vmul.u32 %v5538, %v5529
        %v5546 = vadd.s32 %v5541, %v5543
        %vm5547 = vc.u32 %v5541, %v5543
        %v5548 = vadd.s32 %v5544, 1
        %v5549 = vsel %vm5547, %v5548, %v5544
        %v5550 = vadd.s32 %v5545, %v5549
        %v5551 = vadd.s32 %v5550, 536870912
        %v5552 = vshrl.u32 %v5551, 30
        %v5553 = vshll.u32 %v5552, 30
        %v5554 = vsub.s32 %v5550, %v5553
        %vm5555 = vcmp.lt.s32.totalorder %v5554, 0
        %v5556 = vsub.s32 0, %v5554
        %v5557 = vsel %vm5555, %v5556, %v5554
        %v5558 = vclz %v5557
        %v5559 = vsub.s32 %v5558, 2
        %vm5560 = vcmp.gt.s32.totalorder 0, %v5559
        %v5561 = vsel %vm5560, 0, %v5559
        %v5562 = vsub.s32 32, %v5561
        %v5563 = vshll.u32 %v5554, %v5561
        %v5564 = vshrl.u32 %v5546, %v5562
        %v5565 = vor.u32 %v5563, %v5564
        %v5566 = vsub.s32 4294967266, %v5561
        %v5567 = vadd.s32 %v5566, 127
        %v5568 = vshll.u32 %v5567, 23
        %v5569 = vor.u32 4788187, %v5568
        %v5570 = vand.u32 2147483647, %v5569
        %v5572 = vcvt.s32.f32 %v5565
        %v5573 = vmul.f32 %v5572, %v5570
        %v5574 = vxor.u32 %v5573, 2147483648
        %v5575 = vsel %vm5492, %v5574, %v5573
        %v5576 = vsub.s32 4, %v5552
        %v5577 = vsel %vm5492, %v5576, %v5552
        %v5578 = vsel %vm5491, %v1100, %v5575
        %v5579 = vsel %vm5491, 0, %v5577
        %v5580 = vcosq.f32.pop %v5578
        %v5581 = vsinq.f32.pop %v5578
        %vm5582 = vweird.f32 %v1100
        %v5583 = vadd.s32 %v5579, 3
        %v5584 = vand.u32 %v5583, 3
        %vm5585 = vcmp.lt.s32.totalorder %v5584, 2
        %vm5586 = vcmp.eq.s32.totalorder %v5584, 0
        %v5587 = vxor.u32 %v5581, 2147483648
        %v5588 = vsel %vm5586, %v5580, %v5587
        %vm5589 = vcmp.eq.s32.totalorder %v5584, 2
        %v5590 = vxor.u32 %v5580, 2147483648
        %v5591 = vsel %vm5589, %v5590, %v5581
        %v5592 = vsel %vm5585, %v5588, %v5591
        %v5593 = vsel %vm5582, nan, %v5592
        %v5594 = vand.u32 2147483647, %v1101
        %vm5595 = vcmp.le.f32.partialorder %v5594, 0.7853982
        %vm5596 = vcmp.lt.s32.totalorder %v1101, 0
        %v5597 = vand.u32 %v1101, 2139095040
        %v5598 = vshrl.u32 %v5597, 23
        %v5599 = vsub.s32 %v5598, 127
        %v5600 = vand.u32 2147483647, %v1101
        %v5601 = vand.u32 %v5600, 8388607
        %v5602 = vor.u32 %v5601, 8388608
        %v5603 = vsub.s32 0, %v5602
        %v5604 = vadd.s32 %v5599, 1
        %vm5605 = vcmp.gt.s32.totalorder %v5604, 0
        %v5606 = vsel %vm5605, %v5604, 0
        %v5607 = vshrl.u32 %v5606, 5
        %v5608 = vand.u32 %v5606, 31
        %v5609 = vsub.s32 32, %v5608
        %v5610 = vshrl.u32 683565275, %v5609
        %v5611 = vshll.u32 683565275, %v5608
        %v5612 = vshrl.u32 2475754826, %v5609
        %v5613 = vor.u32 %v5611, %v5612
        %v5614 = vshll.u32 2475754826, %v5608
        %v5615 = vshrl.u32 2131351028, %v5609
        %v5616 = vor.u32 %v5614, %v5615
        %v5617 = vshll.u32 2131351028, %v5608
        %v5618 = vshrl.u32 2102212464, %v5609
        %v5619 = vor.u32 %v5617, %v5618
        %v5620 = vshll.u32 2102212464, %v5608
        %v5621 = vshrl.u32 920167782, %v5609
        %v5622 = vor.u32 %v5620, %v5621
        %v5623 = vshll.u32 920167782, %v5608
        %v5624 = vshrl.u32 1326507024, %v5609
        %v5625 = vor.u32 %v5623, %v5624
        %vm5626 = vcmp.lt.s32.totalorder %v5607, 1
        %vm5627 = vcmp.lt.s32.totalorder %v5607, 2
        %vm5628 = vcmp.lt.s32.totalorder %v5607, 3
        %vm5629 = vcmp.lt.s32.totalorder %v5607, 4
        %v5630 = vsel %vm5626, %v5610, %v5613
        %v5631 = vsel %vm5629, %v5619, 2102212464
        %v5632 = vsel %vm5628, %v5616, %v5631
        %v5633 = vsel %vm5627, %v5630, %v5632
        %v5634 = vsel %vm5626, %v5613, %v5616
        %v5635 = vsel %vm5629, %v5622, 920167782
        %v5636 = vsel %vm5628, %v5619, %v5635
        %v5637 = vsel %vm5627, %v5634, %v5636
        %v5638 = vsel %vm5626, %v5616, %v5619
        %v5639 = vsel %vm5629, %v5625, 1326507024
        %v5640 = vsel %vm5628, %v5622, %v5639
        %v5641 = vsel %vm5627, %v5638, %v5640
        %v5642 = vshll.u32 %v5602, 8
        %v5643 = vmul.u32.u64.compose %v5642, %v5641
        %v5644 = vextract.low.u32 %v5643
        %v5645 = vextract.high.u32 %v5643
        %v5646 = vmul.u32.u64.compose %v5642, %v5637
        %v5647 = vextract.low.u32 %v5646
        %v5648 = vextract.high.u32 %v5646
        %v5649 = vmul.u32 %v5642, %v5633
        %v5650 = vadd.s32 %v5645, %v5647
        %vm5651 = vc.u32 %v5645, %v5647
        %v5652 = vadd.s32 %v5648, 1
        %v5653 = vsel %vm5651, %v5652, %v5648
        %v5654 = vadd.s32 %v5649, %v5653
        %v5655 = vadd.s32 %v5654, 536870912
        %v5656 = vshrl.u32 %v5655, 30
        %v5657 = vshll.u32 %v5656, 30
        %v5658 = vsub.s32 %v5654, %v5657
        %vm5659 = vcmp.lt.s32.totalorder %v5658, 0
        %v5660 = vsub.s32 0, %v5658
        %v5661 = vsel %vm5659, %v5660, %v5658
        %v5662 = vclz %v5661
        %v5663 = vsub.s32 %v5662, 2
        %vm5664 = vcmp.gt.s32.totalorder 0, %v5663
        %v5665 = vsel %vm5664, 0, %v5663
        %v5666 = vsub.s32 32, %v5665
        %v5667 = vshll.u32 %v5658, %v5665
        %v5668 = vshrl.u32 %v5650, %v5666
        %v5669 = vor.u32 %v5667, %v5668
        %v5670 = vsub.s32 4294967266, %v5665
        %v5671 = vadd.s32 %v5670, 127
        %v5672 = vshll.u32 %v5671, 23
        %v5673 = vor.u32 4788187, %v5672
        %v5674 = vand.u32 2147483647, %v5673
        %v5676 = vcvt.s32.f32 %v5669
        %v5677 = vmul.f32 %v5676, %v5674
        %v5678 = vxor.u32 %v5677, 2147483648
        %v5679 = vsel %vm5596, %v5678, %v5677
        %v5680 = vsub.s32 4, %v5656
        %v5681 = vsel %vm5596, %v5680, %v5656
        %v5682 = vsel %vm5595, %v1101, %v5679
        %v5683 = vsel %vm5595, 0, %v5681
        %v5684 = vcosq.f32.pop %v5682
        %v5685 = vsinq.f32.pop %v5682
        %vm5686 = vweird.f32 %v1101
        %v5687 = vadd.s32 %v5683, 3
        %v5688 = vand.u32 %v5687, 3
        %vm5689 = vcmp.lt.s32.totalorder %v5688, 2
        %vm5690 = vcmp.eq.s32.totalorder %v5688, 0
        %v5691 = vxor.u32 %v5685, 2147483648
        %v5692 = vsel %vm5690, %v5684, %v5691
        %vm5693 = vcmp.eq.s32.totalorder %v5688, 2
        %v5694 = vxor.u32 %v5684, 2147483648
        %v5695 = vsel %vm5693, %v5694, %v5685
        %v5696 = vsel %vm5689, %v5692, %v5695
        %v5697 = vsel %vm5686, nan, %v5696
        %v5698 = vand.u32 2147483647, %v1102
        %vm5699 = vcmp.le.f32.partialorder %v5698, 0.7853982
        %vm5700 = vcmp.lt.s32.totalorder %v1102, 0
        %v5701 = vand.u32 %v1102, 2139095040
        %v5702 = vshrl.u32 %v5701, 23
        %v5703 = vsub.s32 %v5702, 127
        %v5704 = vand.u32 2147483647, %v1102
        %v5705 = vand.u32 %v5704, 8388607
        %v5706 = vor.u32 %v5705, 8388608
        %v5707 = vsub.s32 0, %v5706
        %v5708 = vadd.s32 %v5703, 1
        %vm5709 = vcmp.gt.s32.totalorder %v5708, 0
        %v5710 = vsel %vm5709, %v5708, 0
        %v5711 = vshrl.u32 %v5710, 5
        %v5712 = vand.u32 %v5710, 31
        %v5713 = vsub.s32 32, %v5712
        %v5714 = vshrl.u32 683565275, %v5713
        %v5715 = vshll.u32 683565275, %v5712
        %v5716 = vshrl.u32 2475754826, %v5713
        %v5717 = vor.u32 %v5715, %v5716
        %v5718 = vshll.u32 2475754826, %v5712
        %v5719 = vshrl.u32 2131351028, %v5713
        %v5720 = vor.u32 %v5718, %v5719
        %v5721 = vshll.u32 2131351028, %v5712
        %v5722 = vshrl.u32 2102212464, %v5713
        %v5723 = vor.u32 %v5721, %v5722
        %v5724 = vshll.u32 2102212464, %v5712
        %v5725 = vshrl.u32 920167782, %v5713
        %v5726 = vor.u32 %v5724, %v5725
        %v5727 = vshll.u32 920167782, %v5712
        %v5728 = vshrl.u32 1326507024, %v5713
        %v5729 = vor.u32 %v5727, %v5728
        %vm5730 = vcmp.lt.s32.totalorder %v5711, 1
        %vm5731 = vcmp.lt.s32.totalorder %v5711, 2
        %vm5732 = vcmp.lt.s32.totalorder %v5711, 3
        %vm5733 = vcmp.lt.s32.totalorder %v5711, 4
        %v5734 = vsel %vm5730, %v5714, %v5717
        %v5735 = vsel %vm5733, %v5723, 2102212464
        %v5736 = vsel %vm5732, %v5720, %v5735
        %v5737 = vsel %vm5731, %v5734, %v5736
        %v5738 = vsel %vm5730, %v5717, %v5720
        %v5739 = vsel %vm5733, %v5726, 920167782
        %v5740 = vsel %vm5732, %v5723, %v5739
        %v5741 = vsel %vm5731, %v5738, %v5740
        %v5742 = vsel %vm5730, %v5720, %v5723
        %v5743 = vsel %vm5733, %v5729, 1326507024
        %v5744 = vsel %vm5732, %v5726, %v5743
        %v5745 = vsel %vm5731, %v5742, %v5744
        %v5746 = vshll.u32 %v5706, 8
        %v5747 = vmul.u32.u64.compose %v5746, %v5745
        %v5748 = vextract.low.u32 %v5747
        %v5749 = vextract.high.u32 %v5747
        %v5750 = vmul.u32.u64.compose %v5746, %v5741
        %v5751 = vextract.low.u32 %v5750
        %v5752 = vextract.high.u32 %v5750
        %v5753 = vmul.u32 %v5746, %v5737
        %v5754 = vadd.s32 %v5749, %v5751
        %vm5755 = vc.u32 %v5749, %v5751
        %v5756 = vadd.s32 %v5752, 1
        %v5757 = vsel %vm5755, %v5756, %v5752
        %v5758 = vadd.s32 %v5753, %v5757
        %v5759 = vadd.s32 %v5758, 536870912
        %v5760 = vshrl.u32 %v5759, 30
        %v5761 = vshll.u32 %v5760, 30
        %v5762 = vsub.s32 %v5758, %v5761
        %vm5763 = vcmp.lt.s32.totalorder %v5762, 0
        %v5764 = vsub.s32 0, %v5762
        %v5765 = vsel %vm5763, %v5764, %v5762
        %v5766 = vclz %v5765
        %v5767 = vsub.s32 %v5766, 2
        %vm5768 = vcmp.gt.s32.totalorder 0, %v5767
        %v5769 = vsel %vm5768, 0, %v5767
        %v5770 = vsub.s32 32, %v5769
        %v5771 = vshll.u32 %v5762, %v5769
        %v5772 = vshrl.u32 %v5754, %v5770
        %v5773 = vor.u32 %v5771, %v5772
        %v5774 = vsub.s32 4294967266, %v5769
        %v5775 = vadd.s32 %v5774, 127
        %v5776 = vshll.u32 %v5775, 23
        %v5777 = vor.u32 4788187, %v5776
        %v5778 = vand.u32 2147483647, %v5777
        %v5780 = vcvt.s32.f32 %v5773
        %v5781 = vmul.f32 %v5780, %v5778
        %v5782 = vxor.u32 %v5781, 2147483648
        %v5783 = vsel %vm5700, %v5782, %v5781
        %v5784 = vsub.s32 4, %v5760
        %v5785 = vsel %vm5700, %v5784, %v5760
        %v5786 = vsel %vm5699, %v1102, %v5783
        %v5787 = vsel %vm5699, 0, %v5785
        %v5788 = vcosq.f32.pop %v5786
        %v5789 = vsinq.f32.pop %v5786
        %vm5790 = vweird.f32 %v1102
        %v5791 = vadd.s32 %v5787, 3
        %v5792 = vand.u32 %v5791, 3
        %vm5793 = vcmp.lt.s32.totalorder %v5792, 2
        %vm5794 = vcmp.eq.s32.totalorder %v5792, 0
        %v5795 = vxor.u32 %v5789, 2147483648
        %v5796 = vsel %vm5794, %v5788, %v5795
        %vm5797 = vcmp.eq.s32.totalorder %v5792, 2
        %v5798 = vxor.u32 %v5788, 2147483648
        %v5799 = vsel %vm5797, %v5798, %v5789
        %v5800 = vsel %vm5793, %v5796, %v5799
        %v5801 = vsel %vm5790, nan, %v5800
        %v5802 = vand.u32 2147483647, %v1103
        %vm5803 = vcmp.le.f32.partialorder %v5802, 0.7853982
        %vm5804 = vcmp.lt.s32.totalorder %v1103, 0
        %v5805 = vand.u32 %v1103, 2139095040
        %v5806 = vshrl.u32 %v5805, 23
        %v5807 = vsub.s32 %v5806, 127
        %v5808 = vand.u32 2147483647, %v1103
        %v5809 = vand.u32 %v5808, 8388607
        %v5810 = vor.u32 %v5809, 8388608
        %v5811 = vsub.s32 0, %v5810
        %v5812 = vadd.s32 %v5807, 1
        %vm5813 = vcmp.gt.s32.totalorder %v5812, 0
        %v5814 = vsel %vm5813, %v5812, 0
        %v5815 = vshrl.u32 %v5814, 5
        %v5816 = vand.u32 %v5814, 31
        %v5817 = vsub.s32 32, %v5816
        %v5818 = vshrl.u32 683565275, %v5817
        %v5819 = vshll.u32 683565275, %v5816
        %v5820 = vshrl.u32 2475754826, %v5817
        %v5821 = vor.u32 %v5819, %v5820
        %v5822 = vshll.u32 2475754826, %v5816
        %v5823 = vshrl.u32 2131351028, %v5817
        %v5824 = vor.u32 %v5822, %v5823
        %v5825 = vshll.u32 2131351028, %v5816
        %v5826 = vshrl.u32 2102212464, %v5817
        %v5827 = vor.u32 %v5825, %v5826
        %v5828 = vshll.u32 2102212464, %v5816
        %v5829 = vshrl.u32 920167782, %v5817
        %v5830 = vor.u32 %v5828, %v5829
        %v5831 = vshll.u32 920167782, %v5816
        %v5832 = vshrl.u32 1326507024, %v5817
        %v5833 = vor.u32 %v5831, %v5832
        %vm5834 = vcmp.lt.s32.totalorder %v5815, 1
        %vm5835 = vcmp.lt.s32.totalorder %v5815, 2
        %vm5836 = vcmp.lt.s32.totalorder %v5815, 3
        %vm5837 = vcmp.lt.s32.totalorder %v5815, 4
        %v5838 = vsel %vm5834, %v5818, %v5821
        %v5839 = vsel %vm5837, %v5827, 2102212464
        %v5840 = vsel %vm5836, %v5824, %v5839
        %v5841 = vsel %vm5835, %v5838, %v5840
        %v5842 = vsel %vm5834, %v5821, %v5824
        %v5843 = vsel %vm5837, %v5830, 920167782
        %v5844 = vsel %vm5836, %v5827, %v5843
        %v5845 = vsel %vm5835, %v5842, %v5844
        %v5846 = vsel %vm5834, %v5824, %v5827
        %v5847 = vsel %vm5837, %v5833, 1326507024
        %v5848 = vsel %vm5836, %v5830, %v5847
        %v5849 = vsel %vm5835, %v5846, %v5848
        %v5850 = vshll.u32 %v5810, 8
        %v5851 = vmul.u32.u64.compose %v5850, %v5849
        %v5852 = vextract.low.u32 %v5851
        %v5853 = vextract.high.u32 %v5851
        %v5854 = vmul.u32.u64.compose %v5850, %v5845
        %v5855 = vextract.low.u32 %v5854
        %v5856 = vextract.high.u32 %v5854
        %v5857 = vmul.u32 %v5850, %v5841
        %v5858 = vadd.s32 %v5853, %v5855
        %vm5859 = vc.u32 %v5853, %v5855
        %v5860 = vadd.s32 %v5856, 1
        %v5861 = vsel %vm5859, %v5860, %v5856
        %v5862 = vadd.s32 %v5857, %v5861
        %v5863 = vadd.s32 %v5862, 536870912
        %v5864 = vshrl.u32 %v5863, 30
        %v5865 = vshll.u32 %v5864, 30
        %v5866 = vsub.s32 %v5862, %v5865
        %vm5867 = vcmp.lt.s32.totalorder %v5866, 0
        %v5868 = vsub.s32 0, %v5866
        %v5869 = vsel %vm5867, %v5868, %v5866
        %v5870 = vclz %v5869
        %v5871 = vsub.s32 %v5870, 2
        %vm5872 = vcmp.gt.s32.totalorder 0, %v5871
        %v5873 = vsel %vm5872, 0, %v5871
        %v5874 = vsub.s32 32, %v5873
        %v5875 = vshll.u32 %v5866, %v5873
        %v5876 = vshrl.u32 %v5858, %v5874
        %v5877 = vor.u32 %v5875, %v5876
        %v5878 = vsub.s32 4294967266, %v5873
        %v5879 = vadd.s32 %v5878, 127
        %v5880 = vshll.u32 %v5879, 23
        %v5881 = vor.u32 4788187, %v5880
        %v5882 = vand.u32 2147483647, %v5881
        %v5884 = vcvt.s32.f32 %v5877
        %v5885 = vmul.f32 %v5884, %v5882
        %v5886 = vxor.u32 %v5885, 2147483648
        %v5887 = vsel %vm5804, %v5886, %v5885
        %v5888 = vsub.s32 4, %v5864
        %v5889 = vsel %vm5804, %v5888, %v5864
        %v5890 = vsel %vm5803, %v1103, %v5887
        %v5891 = vsel %vm5803, 0, %v5889
        %v5892 = vcosq.f32.pop %v5890
        %v5893 = vsinq.f32.pop %v5890
        %vm5894 = vweird.f32 %v1103
        %v5895 = vadd.s32 %v5891, 3
        %v5896 = vand.u32 %v5895, 3
        %vm5897 = vcmp.lt.s32.totalorder %v5896, 2
        %vm5898 = vcmp.eq.s32.totalorder %v5896, 0
        %v5899 = vxor.u32 %v5893, 2147483648
        %v5900 = vsel %vm5898, %v5892, %v5899
        %vm5901 = vcmp.eq.s32.totalorder %v5896, 2
        %v5902 = vxor.u32 %v5892, 2147483648
        %v5903 = vsel %vm5901, %v5902, %v5893
        %v5904 = vsel %vm5897, %v5900, %v5903
        %v5905 = vsel %vm5894, nan, %v5904
        %v5906 = vand.u32 2147483647, %v1104
        %vm5907 = vcmp.le.f32.partialorder %v5906, 0.7853982
        %vm5908 = vcmp.lt.s32.totalorder %v1104, 0
        %v5909 = vand.u32 %v1104, 2139095040
        %v5910 = vshrl.u32 %v5909, 23
        %v5911 = vsub.s32 %v5910, 127
        %v5912 = vand.u32 2147483647, %v1104
        %v5913 = vand.u32 %v5912, 8388607
        %v5914 = vor.u32 %v5913, 8388608
        %v5915 = vsub.s32 0, %v5914
        %v5916 = vadd.s32 %v5911, 1
        %vm5917 = vcmp.gt.s32.totalorder %v5916, 0
        %v5918 = vsel %vm5917, %v5916, 0
        %v5919 = vshrl.u32 %v5918, 5
        %v5920 = vand.u32 %v5918, 31
        %v5921 = vsub.s32 32, %v5920
        %v5922 = vshrl.u32 683565275, %v5921
        %v5923 = vshll.u32 683565275, %v5920
        %v5924 = vshrl.u32 2475754826, %v5921
        %v5925 = vor.u32 %v5923, %v5924
        %v5926 = vshll.u32 2475754826, %v5920
        %v5927 = vshrl.u32 2131351028, %v5921
        %v5928 = vor.u32 %v5926, %v5927
        %v5929 = vshll.u32 2131351028, %v5920
        %v5930 = vshrl.u32 2102212464, %v5921
        %v5931 = vor.u32 %v5929, %v5930
        %v5932 = vshll.u32 2102212464, %v5920
        %v5933 = vshrl.u32 920167782, %v5921
        %v5934 = vor.u32 %v5932, %v5933
        %v5935 = vshll.u32 920167782, %v5920
        %v5936 = vshrl.u32 1326507024, %v5921
        %v5937 = vor.u32 %v5935, %v5936
        %vm5938 = vcmp.lt.s32.totalorder %v5919, 1
        %vm5939 = vcmp.lt.s32.totalorder %v5919, 2
        %vm5940 = vcmp.lt.s32.totalorder %v5919, 3
        %vm5941 = vcmp.lt.s32.totalorder %v5919, 4
        %v5942 = vsel %vm5938, %v5922, %v5925
        %v5943 = vsel %vm5941, %v5931, 2102212464
        %v5944 = vsel %vm5940, %v5928, %v5943
        %v5945 = vsel %vm5939, %v5942, %v5944
        %v5946 = vsel %vm5938, %v5925, %v5928
        %v5947 = vsel %vm5941, %v5934, 920167782
        %v5948 = vsel %vm5940, %v5931, %v5947
        %v5949 = vsel %vm5939, %v5946, %v5948
        %v5950 = vsel %vm5938, %v5928, %v5931
        %v5951 = vsel %vm5941, %v5937, 1326507024
        %v5952 = vsel %vm5940, %v5934, %v5951
        %v5953 = vsel %vm5939, %v5950, %v5952
        %v5954 = vshll.u32 %v5914, 8
        %v5955 = vmul.u32.u64.compose %v5954, %v5953
        %v5956 = vextract.low.u32 %v5955
        %v5957 = vextract.high.u32 %v5955
        %v5958 = vmul.u32.u64.compose %v5954, %v5949
        %v5959 = vextract.low.u32 %v5958
        %v5960 = vextract.high.u32 %v5958
        %v5961 = vmul.u32 %v5954, %v5945
        %v5962 = vadd.s32 %v5957, %v5959
        %vm5963 = vc.u32 %v5957, %v5959
        %v5964 = vadd.s32 %v5960, 1
        %v5965 = vsel %vm5963, %v5964, %v5960
        %v5966 = vadd.s32 %v5961, %v5965
        %v5967 = vadd.s32 %v5966, 536870912
        %v5968 = vshrl.u32 %v5967, 30
        %v5969 = vshll.u32 %v5968, 30
        %v5970 = vsub.s32 %v5966, %v5969
        %vm5971 = vcmp.lt.s32.totalorder %v5970, 0
        %v5972 = vsub.s32 0, %v5970
        %v5973 = vsel %vm5971, %v5972, %v5970
        %v5974 = vclz %v5973
        %v5975 = vsub.s32 %v5974, 2
        %vm5976 = vcmp.gt.s32.totalorder 0, %v5975
        %v5977 = vsel %vm5976, 0, %v5975
        %v5978 = vsub.s32 32, %v5977
        %v5979 = vshll.u32 %v5970, %v5977
        %v5980 = vshrl.u32 %v5962, %v5978
        %v5981 = vor.u32 %v5979, %v5980
        %v5982 = vsub.s32 4294967266, %v5977
        %v5983 = vadd.s32 %v5982, 127
        %v5984 = vshll.u32 %v5983, 23
        %v5985 = vor.u32 4788187, %v5984
        %v5986 = vand.u32 2147483647, %v5985
        %v5988 = vcvt.s32.f32 %v5981
        %v5989 = vmul.f32 %v5988, %v5986
        %v5990 = vxor.u32 %v5989, 2147483648
        %v5991 = vsel %vm5908, %v5990, %v5989
        %v5992 = vsub.s32 4, %v5968
        %v5993 = vsel %vm5908, %v5992, %v5968
        %v5994 = vsel %vm5907, %v1104, %v5991
        %v5995 = vsel %vm5907, 0, %v5993
        %v5996 = vcosq.f32.pop %v5994
        %v5997 = vsinq.f32.pop %v5994
        %vm5998 = vweird.f32 %v1104
        %v5999 = vadd.s32 %v5995, 3
        %v6000 = vand.u32 %v5999, 3
        %vm6001 = vcmp.lt.s32.totalorder %v6000, 2
        %vm6002 = vcmp.eq.s32.totalorder %v6000, 0
        %v6003 = vxor.u32 %v5997, 2147483648
        %v6004 = vsel %vm6002, %v5996, %v6003
        %vm6005 = vcmp.eq.s32.totalorder %v6000, 2
        %v6006 = vxor.u32 %v5996, 2147483648
        %v6007 = vsel %vm6005, %v6006, %v5997
        %v6008 = vsel %vm6001, %v6004, %v6007
        %v6009 = vsel %vm5998, nan, %v6008
        %v6010 = vand.u32 2147483647, %v1105
        %vm6011 = vcmp.le.f32.partialorder %v6010, 0.7853982
        %vm6012 = vcmp.lt.s32.totalorder %v1105, 0
        %v6013 = vand.u32 %v1105, 2139095040
        %v6014 = vshrl.u32 %v6013, 23
        %v6015 = vsub.s32 %v6014, 127
        %v6016 = vand.u32 2147483647, %v1105
        %v6017 = vand.u32 %v6016, 8388607
        %v6018 = vor.u32 %v6017, 8388608
        %v6019 = vsub.s32 0, %v6018
        %v6020 = vadd.s32 %v6015, 1
        %vm6021 = vcmp.gt.s32.totalorder %v6020, 0
        %v6022 = vsel %vm6021, %v6020, 0
        %v6023 = vshrl.u32 %v6022, 5
        %v6024 = vand.u32 %v6022, 31
        %v6025 = vsub.s32 32, %v6024
        %v6026 = vshrl.u32 683565275, %v6025
        %v6027 = vshll.u32 683565275, %v6024
        %v6028 = vshrl.u32 2475754826, %v6025
        %v6029 = vor.u32 %v6027, %v6028
        %v6030 = vshll.u32 2475754826, %v6024
        %v6031 = vshrl.u32 2131351028, %v6025
        %v6032 = vor.u32 %v6030, %v6031
        %v6033 = vshll.u32 2131351028, %v6024
        %v6034 = vshrl.u32 2102212464, %v6025
        %v6035 = vor.u32 %v6033, %v6034
        %v6036 = vshll.u32 2102212464, %v6024
        %v6037 = vshrl.u32 920167782, %v6025
        %v6038 = vor.u32 %v6036, %v6037
        %v6039 = vshll.u32 920167782, %v6024
        %v6040 = vshrl.u32 1326507024, %v6025
        %v6041 = vor.u32 %v6039, %v6040
        %vm6042 = vcmp.lt.s32.totalorder %v6023, 1
        %vm6043 = vcmp.lt.s32.totalorder %v6023, 2
        %vm6044 = vcmp.lt.s32.totalorder %v6023, 3
        %vm6045 = vcmp.lt.s32.totalorder %v6023, 4
        %v6046 = vsel %vm6042, %v6026, %v6029
        %v6047 = vsel %vm6045, %v6035, 2102212464
        %v6048 = vsel %vm6044, %v6032, %v6047
        %v6049 = vsel %vm6043, %v6046, %v6048
        %v6050 = vsel %vm6042, %v6029, %v6032
        %v6051 = vsel %vm6045, %v6038, 920167782
        %v6052 = vsel %vm6044, %v6035, %v6051
        %v6053 = vsel %vm6043, %v6050, %v6052
        %v6054 = vsel %vm6042, %v6032, %v6035
        %v6055 = vsel %vm6045, %v6041, 1326507024
        %v6056 = vsel %vm6044, %v6038, %v6055
        %v6057 = vsel %vm6043, %v6054, %v6056
        %v6058 = vshll.u32 %v6018, 8
        %v6059 = vmul.u32.u64.compose %v6058, %v6057
        %v6060 = vextract.low.u32 %v6059
        %v6061 = vextract.high.u32 %v6059
        %v6062 = vmul.u32.u64.compose %v6058, %v6053
        %v6063 = vextract.low.u32 %v6062
        %v6064 = vextract.high.u32 %v6062
        %v6065 = vmul.u32 %v6058, %v6049
        %v6066 = vadd.s32 %v6061, %v6063
        %vm6067 = vc.u32 %v6061, %v6063
        %v6068 = vadd.s32 %v6064, 1
        %v6069 = vsel %vm6067, %v6068, %v6064
        %v6070 = vadd.s32 %v6065, %v6069
        %v6071 = vadd.s32 %v6070, 536870912
        %v6072 = vshrl.u32 %v6071, 30
        %v6073 = vshll.u32 %v6072, 30
        %v6074 = vsub.s32 %v6070, %v6073
        %vm6075 = vcmp.lt.s32.totalorder %v6074, 0
        %v6076 = vsub.s32 0, %v6074
        %v6077 = vsel %vm6075, %v6076, %v6074
        %v6078 = vclz %v6077
        %v6079 = vsub.s32 %v6078, 2
        %vm6080 = vcmp.gt.s32.totalorder 0, %v6079
        %v6081 = vsel %vm6080, 0, %v6079
        %v6082 = vsub.s32 32, %v6081
        %v6083 = vshll.u32 %v6074, %v6081
        %v6084 = vshrl.u32 %v6066, %v6082
        %v6085 = vor.u32 %v6083, %v6084
        %v6086 = vsub.s32 4294967266, %v6081
        %v6087 = vadd.s32 %v6086, 127
        %v6088 = vshll.u32 %v6087, 23
        %v6089 = vor.u32 4788187, %v6088
        %v6090 = vand.u32 2147483647, %v6089
        %v6092 = vcvt.s32.f32 %v6085
        %v6093 = vmul.f32 %v6092, %v6090
        %v6094 = vxor.u32 %v6093, 2147483648
        %v6095 = vsel %vm6012, %v6094, %v6093
        %v6096 = vsub.s32 4, %v6072
        %v6097 = vsel %vm6012, %v6096, %v6072
        %v6098 = vsel %vm6011, %v1105, %v6095
        %v6099 = vsel %vm6011, 0, %v6097
        %v6100 = vcosq.f32.pop %v6098
        %v6101 = vsinq.f32.pop %v6098
        %vm6102 = vweird.f32 %v1105
        %v6103 = vadd.s32 %v6099, 3
        %v6104 = vand.u32 %v6103, 3
        %vm6105 = vcmp.lt.s32.totalorder %v6104, 2
        %vm6106 = vcmp.eq.s32.totalorder %v6104, 0
        %v6107 = vxor.u32 %v6101, 2147483648
        %v6108 = vsel %vm6106, %v6100, %v6107
        %vm6109 = vcmp.eq.s32.totalorder %v6104, 2
        %v6110 = vxor.u32 %v6100, 2147483648
        %v6111 = vsel %vm6109, %v6110, %v6101
        %v6112 = vsel %vm6105, %v6108, %v6111
        %v6113 = vsel %vm6102, nan, %v6112
        %v6114 = vand.u32 2147483647, %v1106
        %vm6115 = vcmp.le.f32.partialorder %v6114, 0.7853982
        %vm6116 = vcmp.lt.s32.totalorder %v1106, 0
        %v6117 = vand.u32 %v1106, 2139095040
        %v6118 = vshrl.u32 %v6117, 23
        %v6119 = vsub.s32 %v6118, 127
        %v6120 = vand.u32 2147483647, %v1106
        %v6121 = vand.u32 %v6120, 8388607
        %v6122 = vor.u32 %v6121, 8388608
        %v6123 = vsub.s32 0, %v6122
        %v6124 = vadd.s32 %v6119, 1
        %vm6125 = vcmp.gt.s32.totalorder %v6124, 0
        %v6126 = vsel %vm6125, %v6124, 0
        %v6127 = vshrl.u32 %v6126, 5
        %v6128 = vand.u32 %v6126, 31
        %v6129 = vsub.s32 32, %v6128
        %v6130 = vshrl.u32 683565275, %v6129
        %v6131 = vshll.u32 683565275, %v6128
        %v6132 = vshrl.u32 2475754826, %v6129
        %v6133 = vor.u32 %v6131, %v6132
        %v6134 = vshll.u32 2475754826, %v6128
        %v6135 = vshrl.u32 2131351028, %v6129
        %v6136 = vor.u32 %v6134, %v6135
        %v6137 = vshll.u32 2131351028, %v6128
        %v6138 = vshrl.u32 2102212464, %v6129
        %v6139 = vor.u32 %v6137, %v6138
        %v6140 = vshll.u32 2102212464, %v6128
        %v6141 = vshrl.u32 920167782, %v6129
        %v6142 = vor.u32 %v6140, %v6141
        %v6143 = vshll.u32 920167782, %v6128
        %v6144 = vshrl.u32 1326507024, %v6129
        %v6145 = vor.u32 %v6143, %v6144
        %vm6146 = vcmp.lt.s32.totalorder %v6127, 1
        %vm6147 = vcmp.lt.s32.totalorder %v6127, 2
        %vm6148 = vcmp.lt.s32.totalorder %v6127, 3
        %vm6149 = vcmp.lt.s32.totalorder %v6127, 4
        %v6150 = vsel %vm6146, %v6130, %v6133
        %v6151 = vsel %vm6149, %v6139, 2102212464
        %v6152 = vsel %vm6148, %v6136, %v6151
        %v6153 = vsel %vm6147, %v6150, %v6152
        %v6154 = vsel %vm6146, %v6133, %v6136
        %v6155 = vsel %vm6149, %v6142, 920167782
        %v6156 = vsel %vm6148, %v6139, %v6155
        %v6157 = vsel %vm6147, %v6154, %v6156
        %v6158 = vsel %vm6146, %v6136, %v6139
        %v6159 = vsel %vm6149, %v6145, 1326507024
        %v6160 = vsel %vm6148, %v6142, %v6159
        %v6161 = vsel %vm6147, %v6158, %v6160
        %v6162 = vshll.u32 %v6122, 8
        %v6163 = vmul.u32.u64.compose %v6162, %v6161
        %v6164 = vextract.low.u32 %v6163
        %v6165 = vextract.high.u32 %v6163
        %v6166 = vmul.u32.u64.compose %v6162, %v6157
        %v6167 = vextract.low.u32 %v6166
        %v6168 = vextract.high.u32 %v6166
        %v6169 = vmul.u32 %v6162, %v6153
        %v6170 = vadd.s32 %v6165, %v6167
        %vm6171 = vc.u32 %v6165, %v6167
        %v6172 = vadd.s32 %v6168, 1
        %v6173 = vsel %vm6171, %v6172, %v6168
        %v6174 = vadd.s32 %v6169, %v6173
        %v6175 = vadd.s32 %v6174, 536870912
        %v6176 = vshrl.u32 %v6175, 30
        %v6177 = vshll.u32 %v6176, 30
        %v6178 = vsub.s32 %v6174, %v6177
        %vm6179 = vcmp.lt.s32.totalorder %v6178, 0
        %v6180 = vsub.s32 0, %v6178
        %v6181 = vsel %vm6179, %v6180, %v6178
        %v6182 = vclz %v6181
        %v6183 = vsub.s32 %v6182, 2
        %vm6184 = vcmp.gt.s32.totalorder 0, %v6183
        %v6185 = vsel %vm6184, 0, %v6183
        %v6186 = vsub.s32 32, %v6185
        %v6187 = vshll.u32 %v6178, %v6185
        %v6188 = vshrl.u32 %v6170, %v6186
        %v6189 = vor.u32 %v6187, %v6188
        %v6190 = vsub.s32 4294967266, %v6185
        %v6191 = vadd.s32 %v6190, 127
        %v6192 = vshll.u32 %v6191, 23
        %v6193 = vor.u32 4788187, %v6192
        %v6194 = vand.u32 2147483647, %v6193
        %v6196 = vcvt.s32.f32 %v6189
        %v6197 = vmul.f32 %v6196, %v6194
        %v6198 = vxor.u32 %v6197, 2147483648
        %v6199 = vsel %vm6116, %v6198, %v6197
        %v6200 = vsub.s32 4, %v6176
        %v6201 = vsel %vm6116, %v6200, %v6176
        %v6202 = vsel %vm6115, %v1106, %v6199
        %v6203 = vsel %vm6115, 0, %v6201
        %v6204 = vcosq.f32.pop %v6202
        %v6205 = vsinq.f32.pop %v6202
        %vm6206 = vweird.f32 %v1106
        %v6207 = vadd.s32 %v6203, 3
        %v6208 = vand.u32 %v6207, 3
        %vm6209 = vcmp.lt.s32.totalorder %v6208, 2
        %vm6210 = vcmp.eq.s32.totalorder %v6208, 0
        %v6211 = vxor.u32 %v6205, 2147483648
        %v6212 = vsel %vm6210, %v6204, %v6211
        %vm6213 = vcmp.eq.s32.totalorder %v6208, 2
        %v6214 = vxor.u32 %v6204, 2147483648
        %v6215 = vsel %vm6213, %v6214, %v6205
        %v6216 = vsel %vm6209, %v6212, %v6215
        %v6217 = vsel %vm6206, nan, %v6216
        %v6218 = vand.u32 2147483647, %v1107
        %vm6219 = vcmp.le.f32.partialorder %v6218, 0.7853982
        %vm6220 = vcmp.lt.s32.totalorder %v1107, 0
        %v6221 = vand.u32 %v1107, 2139095040
        %v6222 = vshrl.u32 %v6221, 23
        %v6223 = vsub.s32 %v6222, 127
        %v6224 = vand.u32 2147483647, %v1107
        %v6225 = vand.u32 %v6224, 8388607
        %v6226 = vor.u32 %v6225, 8388608
        %v6227 = vsub.s32 0, %v6226
        %v6228 = vadd.s32 %v6223, 1
        %vm6229 = vcmp.gt.s32.totalorder %v6228, 0
        %v6230 = vsel %vm6229, %v6228, 0
        %v6231 = vshrl.u32 %v6230, 5
        %v6232 = vand.u32 %v6230, 31
        %v6233 = vsub.s32 32, %v6232
        %v6234 = vshrl.u32 683565275, %v6233
        %v6235 = vshll.u32 683565275, %v6232
        %v6236 = vshrl.u32 2475754826, %v6233
        %v6237 = vor.u32 %v6235, %v6236
        %v6238 = vshll.u32 2475754826, %v6232
        %v6239 = vshrl.u32 2131351028, %v6233
        %v6240 = vor.u32 %v6238, %v6239
        %v6241 = vshll.u32 2131351028, %v6232
        %v6242 = vshrl.u32 2102212464, %v6233
        %v6243 = vor.u32 %v6241, %v6242
        %v6244 = vshll.u32 2102212464, %v6232
        %v6245 = vshrl.u32 920167782, %v6233
        %v6246 = vor.u32 %v6244, %v6245
        %v6247 = vshll.u32 920167782, %v6232
        %v6248 = vshrl.u32 1326507024, %v6233
        %v6249 = vor.u32 %v6247, %v6248
        %vm6250 = vcmp.lt.s32.totalorder %v6231, 1
        %vm6251 = vcmp.lt.s32.totalorder %v6231, 2
        %vm6252 = vcmp.lt.s32.totalorder %v6231, 3
        %vm6253 = vcmp.lt.s32.totalorder %v6231, 4
        %v6254 = vsel %vm6250, %v6234, %v6237
        %v6255 = vsel %vm6253, %v6243, 2102212464
        %v6256 = vsel %vm6252, %v6240, %v6255
        %v6257 = vsel %vm6251, %v6254, %v6256
        %v6258 = vsel %vm6250, %v6237, %v6240
        %v6259 = vsel %vm6253, %v6246, 920167782
        %v6260 = vsel %vm6252, %v6243, %v6259
        %v6261 = vsel %vm6251, %v6258, %v6260
        %v6262 = vsel %vm6250, %v6240, %v6243
        %v6263 = vsel %vm6253, %v6249, 1326507024
        %v6264 = vsel %vm6252, %v6246, %v6263
        %v6265 = vsel %vm6251, %v6262, %v6264
        %v6266 = vshll.u32 %v6226, 8
        %v6267 = vmul.u32.u64.compose %v6266, %v6265
        %v6268 = vextract.low.u32 %v6267
        %v6269 = vextract.high.u32 %v6267
        %v6270 = vmul.u32.u64.compose %v6266, %v6261
        %v6271 = vextract.low.u32 %v6270
        %v6272 = vextract.high.u32 %v6270
        %v6273 = vmul.u32 %v6266, %v6257
        %v6274 = vadd.s32 %v6269, %v6271
        %vm6275 = vc.u32 %v6269, %v6271
        %v6276 = vadd.s32 %v6272, 1
        %v6277 = vsel %vm6275, %v6276, %v6272
        %v6278 = vadd.s32 %v6273, %v6277
        %v6279 = vadd.s32 %v6278, 536870912
        %v6280 = vshrl.u32 %v6279, 30
        %v6281 = vshll.u32 %v6280, 30
        %v6282 = vsub.s32 %v6278, %v6281
        %vm6283 = vcmp.lt.s32.totalorder %v6282, 0
        %v6284 = vsub.s32 0, %v6282
        %v6285 = vsel %vm6283, %v6284, %v6282
        %v6286 = vclz %v6285
        %v6287 = vsub.s32 %v6286, 2
        %vm6288 = vcmp.gt.s32.totalorder 0, %v6287
        %v6289 = vsel %vm6288, 0, %v6287
        %v6290 = vsub.s32 32, %v6289
        %v6291 = vshll.u32 %v6282, %v6289
        %v6292 = vshrl.u32 %v6274, %v6290
        %v6293 = vor.u32 %v6291, %v6292
        %v6294 = vsub.s32 4294967266, %v6289
        %v6295 = vadd.s32 %v6294, 127
        %v6296 = vshll.u32 %v6295, 23
        %v6297 = vor.u32 4788187, %v6296
        %v6298 = vand.u32 2147483647, %v6297
        %v6300 = vcvt.s32.f32 %v6293
        %v6301 = vmul.f32 %v6300, %v6298
        %v6302 = vxor.u32 %v6301, 2147483648
        %v6303 = vsel %vm6220, %v6302, %v6301
        %v6304 = vsub.s32 4, %v6280
        %v6305 = vsel %vm6220, %v6304, %v6280
        %v6306 = vsel %vm6219, %v1107, %v6303
        %v6307 = vsel %vm6219, 0, %v6305
        %v6308 = vcosq.f32.pop %v6306
        %v6309 = vsinq.f32.pop %v6306
        %vm6310 = vweird.f32 %v1107
        %v6311 = vadd.s32 %v6307, 3
        %v6312 = vand.u32 %v6311, 3
        %vm6313 = vcmp.lt.s32.totalorder %v6312, 2
        %vm6314 = vcmp.eq.s32.totalorder %v6312, 0
        %v6315 = vxor.u32 %v6309, 2147483648
        %v6316 = vsel %vm6314, %v6308, %v6315
        %vm6317 = vcmp.eq.s32.totalorder %v6312, 2
        %v6318 = vxor.u32 %v6308, 2147483648
        %v6319 = vsel %vm6317, %v6318, %v6309
        %v6320 = vsel %vm6313, %v6316, %v6319
        %v6321 = vsel %vm6310, nan, %v6320
        %v6322 = vand.u32 2147483647, %v1108
        %vm6323 = vcmp.le.f32.partialorder %v6322, 0.7853982
        %vm6324 = vcmp.lt.s32.totalorder %v1108, 0
        %v6325 = vand.u32 %v1108, 2139095040
        %v6326 = vshrl.u32 %v6325, 23
        %v6327 = vsub.s32 %v6326, 127
        %v6328 = vand.u32 2147483647, %v1108
        %v6329 = vand.u32 %v6328, 8388607
        %v6330 = vor.u32 %v6329, 8388608
        %v6331 = vsub.s32 0, %v6330
        %v6332 = vadd.s32 %v6327, 1
        %vm6333 = vcmp.gt.s32.totalorder %v6332, 0
        %v6334 = vsel %vm6333, %v6332, 0
        %v6335 = vshrl.u32 %v6334, 5
        %v6336 = vand.u32 %v6334, 31
        %v6337 = vsub.s32 32, %v6336
        %v6338 = vshrl.u32 683565275, %v6337
        %v6339 = vshll.u32 683565275, %v6336
        %v6340 = vshrl.u32 2475754826, %v6337
        %v6341 = vor.u32 %v6339, %v6340
        %v6342 = vshll.u32 2475754826, %v6336
        %v6343 = vshrl.u32 2131351028, %v6337
        %v6344 = vor.u32 %v6342, %v6343
        %v6345 = vshll.u32 2131351028, %v6336
        %v6346 = vshrl.u32 2102212464, %v6337
        %v6347 = vor.u32 %v6345, %v6346
        %v6348 = vshll.u32 2102212464, %v6336
        %v6349 = vshrl.u32 920167782, %v6337
        %v6350 = vor.u32 %v6348, %v6349
        %v6351 = vshll.u32 920167782, %v6336
        %v6352 = vshrl.u32 1326507024, %v6337
        %v6353 = vor.u32 %v6351, %v6352
        %vm6354 = vcmp.lt.s32.totalorder %v6335, 1
        %vm6355 = vcmp.lt.s32.totalorder %v6335, 2
        %vm6356 = vcmp.lt.s32.totalorder %v6335, 3
        %vm6357 = vcmp.lt.s32.totalorder %v6335, 4
        %v6358 = vsel %vm6354, %v6338, %v6341
        %v6359 = vsel %vm6357, %v6347, 2102212464
        %v6360 = vsel %vm6356, %v6344, %v6359
        %v6361 = vsel %vm6355, %v6358, %v6360
        %v6362 = vsel %vm6354, %v6341, %v6344
        %v6363 = vsel %vm6357, %v6350, 920167782
        %v6364 = vsel %vm6356, %v6347, %v6363
        %v6365 = vsel %vm6355, %v6362, %v6364
        %v6366 = vsel %vm6354, %v6344, %v6347
        %v6367 = vsel %vm6357, %v6353, 1326507024
        %v6368 = vsel %vm6356, %v6350, %v6367
        %v6369 = vsel %vm6355, %v6366, %v6368
        %v6370 = vshll.u32 %v6330, 8
        %v6371 = vmul.u32.u64.compose %v6370, %v6369
        %v6372 = vextract.low.u32 %v6371
        %v6373 = vextract.high.u32 %v6371
        %v6374 = vmul.u32.u64.compose %v6370, %v6365
        %v6375 = vextract.low.u32 %v6374
        %v6376 = vextract.high.u32 %v6374
        %v6377 = vmul.u32 %v6370, %v6361
        %v6378 = vadd.s32 %v6373, %v6375
        %vm6379 = vc.u32 %v6373, %v6375
        %v6380 = vadd.s32 %v6376, 1
        %v6381 = vsel %vm6379, %v6380, %v6376
        %v6382 = vadd.s32 %v6377, %v6381
        %v6383 = vadd.s32 %v6382, 536870912
        %v6384 = vshrl.u32 %v6383, 30
        %v6385 = vshll.u32 %v6384, 30
        %v6386 = vsub.s32 %v6382, %v6385
        %vm6387 = vcmp.lt.s32.totalorder %v6386, 0
        %v6388 = vsub.s32 0, %v6386
        %v6389 = vsel %vm6387, %v6388, %v6386
        %v6390 = vclz %v6389
        %v6391 = vsub.s32 %v6390, 2
        %vm6392 = vcmp.gt.s32.totalorder 0, %v6391
        %v6393 = vsel %vm6392, 0, %v6391
        %v6394 = vsub.s32 32, %v6393
        %v6395 = vshll.u32 %v6386, %v6393
        %v6396 = vshrl.u32 %v6378, %v6394
        %v6397 = vor.u32 %v6395, %v6396
        %v6398 = vsub.s32 4294967266, %v6393
        %v6399 = vadd.s32 %v6398, 127
        %v6400 = vshll.u32 %v6399, 23
        %v6401 = vor.u32 4788187, %v6400
        %v6402 = vand.u32 2147483647, %v6401
        %v6404 = vcvt.s32.f32 %v6397
        %v6405 = vmul.f32 %v6404, %v6402
        %v6406 = vxor.u32 %v6405, 2147483648
        %v6407 = vsel %vm6324, %v6406, %v6405
        %v6408 = vsub.s32 4, %v6384
        %v6409 = vsel %vm6324, %v6408, %v6384
        %v6410 = vsel %vm6323, %v1108, %v6407
        %v6411 = vsel %vm6323, 0, %v6409
        %v6412 = vcosq.f32.pop %v6410
        %v6413 = vsinq.f32.pop %v6410
        %vm6414 = vweird.f32 %v1108
        %v6415 = vadd.s32 %v6411, 3
        %v6416 = vand.u32 %v6415, 3
        %vm6417 = vcmp.lt.s32.totalorder %v6416, 2
        %vm6418 = vcmp.eq.s32.totalorder %v6416, 0
        %v6419 = vxor.u32 %v6413, 2147483648
        %v6420 = vsel %vm6418, %v6412, %v6419
        %vm6421 = vcmp.eq.s32.totalorder %v6416, 2
        %v6422 = vxor.u32 %v6412, 2147483648
        %v6423 = vsel %vm6421, %v6422, %v6413
        %v6424 = vsel %vm6417, %v6420, %v6423
        %v6425 = vsel %vm6414, nan, %v6424
        %v6426 = vand.u32 2147483647, %v1109
        %vm6427 = vcmp.le.f32.partialorder %v6426, 0.7853982
        %vm6428 = vcmp.lt.s32.totalorder %v1109, 0
        %v6429 = vand.u32 %v1109, 2139095040
        %v6430 = vshrl.u32 %v6429, 23
        %v6431 = vsub.s32 %v6430, 127
        %v6432 = vand.u32 2147483647, %v1109
        %v6433 = vand.u32 %v6432, 8388607
        %v6434 = vor.u32 %v6433, 8388608
        %v6435 = vsub.s32 0, %v6434
        %v6436 = vadd.s32 %v6431, 1
        %vm6437 = vcmp.gt.s32.totalorder %v6436, 0
        %v6438 = vsel %vm6437, %v6436, 0
        %v6439 = vshrl.u32 %v6438, 5
        %v6440 = vand.u32 %v6438, 31
        %v6441 = vsub.s32 32, %v6440
        %v6442 = vshrl.u32 683565275, %v6441
        %v6443 = vshll.u32 683565275, %v6440
        %v6444 = vshrl.u32 2475754826, %v6441
        %v6445 = vor.u32 %v6443, %v6444
        %v6446 = vshll.u32 2475754826, %v6440
        %v6447 = vshrl.u32 2131351028, %v6441
        %v6448 = vor.u32 %v6446, %v6447
        %v6449 = vshll.u32 2131351028, %v6440
        %v6450 = vshrl.u32 2102212464, %v6441
        %v6451 = vor.u32 %v6449, %v6450
        %v6452 = vshll.u32 2102212464, %v6440
        %v6453 = vshrl.u32 920167782, %v6441
        %v6454 = vor.u32 %v6452, %v6453
        %v6455 = vshll.u32 920167782, %v6440
        %v6456 = vshrl.u32 1326507024, %v6441
        %v6457 = vor.u32 %v6455, %v6456
        %vm6458 = vcmp.lt.s32.totalorder %v6439, 1
        %vm6459 = vcmp.lt.s32.totalorder %v6439, 2
        %vm6460 = vcmp.lt.s32.totalorder %v6439, 3
        %vm6461 = vcmp.lt.s32.totalorder %v6439, 4
        %v6462 = vsel %vm6458, %v6442, %v6445
        %v6463 = vsel %vm6461, %v6451, 2102212464
        %v6464 = vsel %vm6460, %v6448, %v6463
        %v6465 = vsel %vm6459, %v6462, %v6464
        %v6466 = vsel %vm6458, %v6445, %v6448
        %v6467 = vsel %vm6461, %v6454, 920167782
        %v6468 = vsel %vm6460, %v6451, %v6467
        %v6469 = vsel %vm6459, %v6466, %v6468
        %v6470 = vsel %vm6458, %v6448, %v6451
        %v6471 = vsel %vm6461, %v6457, 1326507024
        %v6472 = vsel %vm6460, %v6454, %v6471
        %v6473 = vsel %vm6459, %v6470, %v6472
        %v6474 = vshll.u32 %v6434, 8
        %v6475 = vmul.u32.u64.compose %v6474, %v6473
        %v6476 = vextract.low.u32 %v6475
        %v6477 = vextract.high.u32 %v6475
        %v6478 = vmul.u32.u64.compose %v6474, %v6469
        %v6479 = vextract.low.u32 %v6478
        %v6480 = vextract.high.u32 %v6478
        %v6481 = vmul.u32 %v6474, %v6465
        %v6482 = vadd.s32 %v6477, %v6479
        %vm6483 = vc.u32 %v6477, %v6479
        %v6484 = vadd.s32 %v6480, 1
        %v6485 = vsel %vm6483, %v6484, %v6480
        %v6486 = vadd.s32 %v6481, %v6485
        %v6487 = vadd.s32 %v6486, 536870912
        %v6488 = vshrl.u32 %v6487, 30
        %v6489 = vshll.u32 %v6488, 30
        %v6490 = vsub.s32 %v6486, %v6489
        %vm6491 = vcmp.lt.s32.totalorder %v6490, 0
        %v6492 = vsub.s32 0, %v6490
        %v6493 = vsel %vm6491, %v6492, %v6490
        %v6494 = vclz %v6493
        %v6495 = vsub.s32 %v6494, 2
        %vm6496 = vcmp.gt.s32.totalorder 0, %v6495
        %v6497 = vsel %vm6496, 0, %v6495
        %v6498 = vsub.s32 32, %v6497
        %v6499 = vshll.u32 %v6490, %v6497
        %v6500 = vshrl.u32 %v6482, %v6498
        %v6501 = vor.u32 %v6499, %v6500
        %v6502 = vsub.s32 4294967266, %v6497
        %v6503 = vadd.s32 %v6502, 127
        %v6504 = vshll.u32 %v6503, 23
        %v6505 = vor.u32 4788187, %v6504
        %v6506 = vand.u32 2147483647, %v6505
        %v6508 = vcvt.s32.f32 %v6501
        %v6509 = vmul.f32 %v6508, %v6506
        %v6510 = vxor.u32 %v6509, 2147483648
        %v6511 = vsel %vm6428, %v6510, %v6509
        %v6512 = vsub.s32 4, %v6488
        %v6513 = vsel %vm6428, %v6512, %v6488
        %v6514 = vsel %vm6427, %v1109, %v6511
        %v6515 = vsel %vm6427, 0, %v6513
        %v6516 = vcosq.f32.pop %v6514
        %v6517 = vsinq.f32.pop %v6514
        %vm6518 = vweird.f32 %v1109
        %v6519 = vadd.s32 %v6515, 3
        %v6520 = vand.u32 %v6519, 3
        %vm6521 = vcmp.lt.s32.totalorder %v6520, 2
        %vm6522 = vcmp.eq.s32.totalorder %v6520, 0
        %v6523 = vxor.u32 %v6517, 2147483648
        %v6524 = vsel %vm6522, %v6516, %v6523
        %vm6525 = vcmp.eq.s32.totalorder %v6520, 2
        %v6526 = vxor.u32 %v6516, 2147483648
        %v6527 = vsel %vm6525, %v6526, %v6517
        %v6528 = vsel %vm6521, %v6524, %v6527
        %v6529 = vsel %vm6518, nan, %v6528
        %v6530 = vand.u32 2147483647, %v1110
        %vm6531 = vcmp.le.f32.partialorder %v6530, 0.7853982
        %vm6532 = vcmp.lt.s32.totalorder %v1110, 0
        %v6533 = vand.u32 %v1110, 2139095040
        %v6534 = vshrl.u32 %v6533, 23
        %v6535 = vsub.s32 %v6534, 127
        %v6536 = vand.u32 2147483647, %v1110
        %v6537 = vand.u32 %v6536, 8388607
        %v6538 = vor.u32 %v6537, 8388608
        %v6539 = vsub.s32 0, %v6538
        %v6540 = vadd.s32 %v6535, 1
        %vm6541 = vcmp.gt.s32.totalorder %v6540, 0
        %v6542 = vsel %vm6541, %v6540, 0
        %v6543 = vshrl.u32 %v6542, 5
        %v6544 = vand.u32 %v6542, 31
        %v6545 = vsub.s32 32, %v6544
        %v6546 = vshrl.u32 683565275, %v6545
        %v6547 = vshll.u32 683565275, %v6544
        %v6548 = vshrl.u32 2475754826, %v6545
        %v6549 = vor.u32 %v6547, %v6548
        %v6550 = vshll.u32 2475754826, %v6544
        %v6551 = vshrl.u32 2131351028, %v6545
        %v6552 = vor.u32 %v6550, %v6551
        %v6553 = vshll.u32 2131351028, %v6544
        %v6554 = vshrl.u32 2102212464, %v6545
        %v6555 = vor.u32 %v6553, %v6554
        %v6556 = vshll.u32 2102212464, %v6544
        %v6557 = vshrl.u32 920167782, %v6545
        %v6558 = vor.u32 %v6556, %v6557
        %v6559 = vshll.u32 920167782, %v6544
        %v6560 = vshrl.u32 1326507024, %v6545
        %v6561 = vor.u32 %v6559, %v6560
        %vm6562 = vcmp.lt.s32.totalorder %v6543, 1
        %vm6563 = vcmp.lt.s32.totalorder %v6543, 2
        %vm6564 = vcmp.lt.s32.totalorder %v6543, 3
        %vm6565 = vcmp.lt.s32.totalorder %v6543, 4
        %v6566 = vsel %vm6562, %v6546, %v6549
        %v6567 = vsel %vm6565, %v6555, 2102212464
        %v6568 = vsel %vm6564, %v6552, %v6567
        %v6569 = vsel %vm6563, %v6566, %v6568
        %v6570 = vsel %vm6562, %v6549, %v6552
        %v6571 = vsel %vm6565, %v6558, 920167782
        %v6572 = vsel %vm6564, %v6555, %v6571
        %v6573 = vsel %vm6563, %v6570, %v6572
        %v6574 = vsel %vm6562, %v6552, %v6555
        %v6575 = vsel %vm6565, %v6561, 1326507024
        %v6576 = vsel %vm6564, %v6558, %v6575
        %v6577 = vsel %vm6563, %v6574, %v6576
        %v6578 = vshll.u32 %v6538, 8
        %v6579 = vmul.u32.u64.compose %v6578, %v6577
        %v6580 = vextract.low.u32 %v6579
        %v6581 = vextract.high.u32 %v6579
        %v6582 = vmul.u32.u64.compose %v6578, %v6573
        %v6583 = vextract.low.u32 %v6582
        %v6584 = vextract.high.u32 %v6582
        %v6585 = vmul.u32 %v6578, %v6569
        %v6586 = vadd.s32 %v6581, %v6583
        %vm6587 = vc.u32 %v6581, %v6583
        %v6588 = vadd.s32 %v6584, 1
        %v6589 = vsel %vm6587, %v6588, %v6584
        %v6590 = vadd.s32 %v6585, %v6589
        %v6591 = vadd.s32 %v6590, 536870912
        %v6592 = vshrl.u32 %v6591, 30
        %v6593 = vshll.u32 %v6592, 30
        %v6594 = vsub.s32 %v6590, %v6593
        %vm6595 = vcmp.lt.s32.totalorder %v6594, 0
        %v6596 = vsub.s32 0, %v6594
        %v6597 = vsel %vm6595, %v6596, %v6594
        %v6598 = vclz %v6597
        %v6599 = vsub.s32 %v6598, 2
        %vm6600 = vcmp.gt.s32.totalorder 0, %v6599
        %v6601 = vsel %vm6600, 0, %v6599
        %v6602 = vsub.s32 32, %v6601
        %v6603 = vshll.u32 %v6594, %v6601
        %v6604 = vshrl.u32 %v6586, %v6602
        %v6605 = vor.u32 %v6603, %v6604
        %v6606 = vsub.s32 4294967266, %v6601
        %v6607 = vadd.s32 %v6606, 127
        %v6608 = vshll.u32 %v6607, 23
        %v6609 = vor.u32 4788187, %v6608
        %v6610 = vand.u32 2147483647, %v6609
        %v6612 = vcvt.s32.f32 %v6605
        %v6613 = vmul.f32 %v6612, %v6610
        %v6614 = vxor.u32 %v6613, 2147483648
        %v6615 = vsel %vm6532, %v6614, %v6613
        %v6616 = vsub.s32 4, %v6592
        %v6617 = vsel %vm6532, %v6616, %v6592
        %v6618 = vsel %vm6531, %v1110, %v6615
        %v6619 = vsel %vm6531, 0, %v6617
        %v6620 = vcosq.f32.pop %v6618
        %v6621 = vsinq.f32.pop %v6618
        %vm6622 = vweird.f32 %v1110
        %v6623 = vadd.s32 %v6619, 3
        %v6624 = vand.u32 %v6623, 3
        %vm6625 = vcmp.lt.s32.totalorder %v6624, 2
        %vm6626 = vcmp.eq.s32.totalorder %v6624, 0
        %v6627 = vxor.u32 %v6621, 2147483648
        %v6628 = vsel %vm6626, %v6620, %v6627
        %vm6629 = vcmp.eq.s32.totalorder %v6624, 2
        %v6630 = vxor.u32 %v6620, 2147483648
        %v6631 = vsel %vm6629, %v6630, %v6621
        %v6632 = vsel %vm6625, %v6628, %v6631
        %v6633 = vsel %vm6622, nan, %v6632
        %v6634 = vand.u32 2147483647, %v1111
        %vm6635 = vcmp.le.f32.partialorder %v6634, 0.7853982
        %vm6636 = vcmp.lt.s32.totalorder %v1111, 0
        %v6637 = vand.u32 %v1111, 2139095040
        %v6638 = vshrl.u32 %v6637, 23
        %v6639 = vsub.s32 %v6638, 127
        %v6640 = vand.u32 2147483647, %v1111
        %v6641 = vand.u32 %v6640, 8388607
        %v6642 = vor.u32 %v6641, 8388608
        %v6643 = vsub.s32 0, %v6642
        %v6644 = vadd.s32 %v6639, 1
        %vm6645 = vcmp.gt.s32.totalorder %v6644, 0
        %v6646 = vsel %vm6645, %v6644, 0
        %v6647 = vshrl.u32 %v6646, 5
        %v6648 = vand.u32 %v6646, 31
        %v6649 = vsub.s32 32, %v6648
        %v6650 = vshrl.u32 683565275, %v6649
        %v6651 = vshll.u32 683565275, %v6648
        %v6652 = vshrl.u32 2475754826, %v6649
        %v6653 = vor.u32 %v6651, %v6652
        %v6654 = vshll.u32 2475754826, %v6648
        %v6655 = vshrl.u32 2131351028, %v6649
        %v6656 = vor.u32 %v6654, %v6655
        %v6657 = vshll.u32 2131351028, %v6648
        %v6658 = vshrl.u32 2102212464, %v6649
        %v6659 = vor.u32 %v6657, %v6658
        %v6660 = vshll.u32 2102212464, %v6648
        %v6661 = vshrl.u32 920167782, %v6649
        %v6662 = vor.u32 %v6660, %v6661
        %v6663 = vshll.u32 920167782, %v6648
        %v6664 = vshrl.u32 1326507024, %v6649
        %v6665 = vor.u32 %v6663, %v6664
        %vm6666 = vcmp.lt.s32.totalorder %v6647, 1
        %vm6667 = vcmp.lt.s32.totalorder %v6647, 2
        %vm6668 = vcmp.lt.s32.totalorder %v6647, 3
        %vm6669 = vcmp.lt.s32.totalorder %v6647, 4
        %v6670 = vsel %vm6666, %v6650, %v6653
        %v6671 = vsel %vm6669, %v6659, 2102212464
        %v6672 = vsel %vm6668, %v6656, %v6671
        %v6673 = vsel %vm6667, %v6670, %v6672
        %v6674 = vsel %vm6666, %v6653, %v6656
        %v6675 = vsel %vm6669, %v6662, 920167782
        %v6676 = vsel %vm6668, %v6659, %v6675
        %v6677 = vsel %vm6667, %v6674, %v6676
        %v6678 = vsel %vm6666, %v6656, %v6659
        %v6679 = vsel %vm6669, %v6665, 1326507024
        %v6680 = vsel %vm6668, %v6662, %v6679
        %v6681 = vsel %vm6667, %v6678, %v6680
        %v6682 = vshll.u32 %v6642, 8
        %v6683 = vmul.u32.u64.compose %v6682, %v6681
        %v6684 = vextract.low.u32 %v6683
        %v6685 = vextract.high.u32 %v6683
        %v6686 = vmul.u32.u64.compose %v6682, %v6677
        %v6687 = vextract.low.u32 %v6686
        %v6688 = vextract.high.u32 %v6686
        %v6689 = vmul.u32 %v6682, %v6673
        %v6690 = vadd.s32 %v6685, %v6687
        %vm6691 = vc.u32 %v6685, %v6687
        %v6692 = vadd.s32 %v6688, 1
        %v6693 = vsel %vm6691, %v6692, %v6688
        %v6694 = vadd.s32 %v6689, %v6693
        %v6695 = vadd.s32 %v6694, 536870912
        %v6696 = vshrl.u32 %v6695, 30
        %v6697 = vshll.u32 %v6696, 30
        %v6698 = vsub.s32 %v6694, %v6697
        %vm6699 = vcmp.lt.s32.totalorder %v6698, 0
        %v6700 = vsub.s32 0, %v6698
        %v6701 = vsel %vm6699, %v6700, %v6698
        %v6702 = vclz %v6701
        %v6703 = vsub.s32 %v6702, 2
        %vm6704 = vcmp.gt.s32.totalorder 0, %v6703
        %v6705 = vsel %vm6704, 0, %v6703
        %v6706 = vsub.s32 32, %v6705
        %v6707 = vshll.u32 %v6698, %v6705
        %v6708 = vshrl.u32 %v6690, %v6706
        %v6709 = vor.u32 %v6707, %v6708
        %v6710 = vsub.s32 4294967266, %v6705
        %v6711 = vadd.s32 %v6710, 127
        %v6712 = vshll.u32 %v6711, 23
        %v6713 = vor.u32 4788187, %v6712
        %v6714 = vand.u32 2147483647, %v6713
        %v6716 = vcvt.s32.f32 %v6709
        %v6717 = vmul.f32 %v6716, %v6714
        %v6718 = vxor.u32 %v6717, 2147483648
        %v6719 = vsel %vm6636, %v6718, %v6717
        %v6720 = vsub.s32 4, %v6696
        %v6721 = vsel %vm6636, %v6720, %v6696
        %v6722 = vsel %vm6635, %v1111, %v6719
        %v6723 = vsel %vm6635, 0, %v6721
        %v6724 = vcosq.f32.pop %v6722
        %v6725 = vsinq.f32.pop %v6722
        %vm6726 = vweird.f32 %v1111
        %v6727 = vadd.s32 %v6723, 3
        %v6728 = vand.u32 %v6727, 3
        %vm6729 = vcmp.lt.s32.totalorder %v6728, 2
        %vm6730 = vcmp.eq.s32.totalorder %v6728, 0
        %v6731 = vxor.u32 %v6725, 2147483648
        %v6732 = vsel %vm6730, %v6724, %v6731
        %vm6733 = vcmp.eq.s32.totalorder %v6728, 2
        %v6734 = vxor.u32 %v6724, 2147483648
        %v6735 = vsel %vm6733, %v6734, %v6725
        %v6736 = vsel %vm6729, %v6732, %v6735
        %v6737 = vsel %vm6726, nan, %v6736
        %v6738 = vand.u32 2147483647, %v1112
        %vm6739 = vcmp.le.f32.partialorder %v6738, 0.7853982
        %vm6740 = vcmp.lt.s32.totalorder %v1112, 0
        %v6741 = vand.u32 %v1112, 2139095040
        %v6742 = vshrl.u32 %v6741, 23
        %v6743 = vsub.s32 %v6742, 127
        %v6744 = vand.u32 2147483647, %v1112
        %v6745 = vand.u32 %v6744, 8388607
        %v6746 = vor.u32 %v6745, 8388608
        %v6747 = vsub.s32 0, %v6746
        %v6748 = vadd.s32 %v6743, 1
        %vm6749 = vcmp.gt.s32.totalorder %v6748, 0
        %v6750 = vsel %vm6749, %v6748, 0
        %v6751 = vshrl.u32 %v6750, 5
        %v6752 = vand.u32 %v6750, 31
        %v6753 = vsub.s32 32, %v6752
        %v6754 = vshrl.u32 683565275, %v6753
        %v6755 = vshll.u32 683565275, %v6752
        %v6756 = vshrl.u32 2475754826, %v6753
        %v6757 = vor.u32 %v6755, %v6756
        %v6758 = vshll.u32 2475754826, %v6752
        %v6759 = vshrl.u32 2131351028, %v6753
        %v6760 = vor.u32 %v6758, %v6759
        %v6761 = vshll.u32 2131351028, %v6752
        %v6762 = vshrl.u32 2102212464, %v6753
        %v6763 = vor.u32 %v6761, %v6762
        %v6764 = vshll.u32 2102212464, %v6752
        %v6765 = vshrl.u32 920167782, %v6753
        %v6766 = vor.u32 %v6764, %v6765
        %v6767 = vshll.u32 920167782, %v6752
        %v6768 = vshrl.u32 1326507024, %v6753
        %v6769 = vor.u32 %v6767, %v6768
        %vm6770 = vcmp.lt.s32.totalorder %v6751, 1
        %vm6771 = vcmp.lt.s32.totalorder %v6751, 2
        %vm6772 = vcmp.lt.s32.totalorder %v6751, 3
        %vm6773 = vcmp.lt.s32.totalorder %v6751, 4
        %v6774 = vsel %vm6770, %v6754, %v6757
        %v6775 = vsel %vm6773, %v6763, 2102212464
        %v6776 = vsel %vm6772, %v6760, %v6775
        %v6777 = vsel %vm6771, %v6774, %v6776
        %v6778 = vsel %vm6770, %v6757, %v6760
        %v6779 = vsel %vm6773, %v6766, 920167782
        %v6780 = vsel %vm6772, %v6763, %v6779
        %v6781 = vsel %vm6771, %v6778, %v6780
        %v6782 = vsel %vm6770, %v6760, %v6763
        %v6783 = vsel %vm6773, %v6769, 1326507024
        %v6784 = vsel %vm6772, %v6766, %v6783
        %v6785 = vsel %vm6771, %v6782, %v6784
        %v6786 = vshll.u32 %v6746, 8
        %v6787 = vmul.u32.u64.compose %v6786, %v6785
        %v6788 = vextract.low.u32 %v6787
        %v6789 = vextract.high.u32 %v6787
        %v6790 = vmul.u32.u64.compose %v6786, %v6781
        %v6791 = vextract.low.u32 %v6790
        %v6792 = vextract.high.u32 %v6790
        %v6793 = vmul.u32 %v6786, %v6777
        %v6794 = vadd.s32 %v6789, %v6791
        %vm6795 = vc.u32 %v6789, %v6791
        %v6796 = vadd.s32 %v6792, 1
        %v6797 = vsel %vm6795, %v6796, %v6792
        %v6798 = vadd.s32 %v6793, %v6797
        %v6799 = vadd.s32 %v6798, 536870912
        %v6800 = vshrl.u32 %v6799, 30
        %v6801 = vshll.u32 %v6800, 30
        %v6802 = vsub.s32 %v6798, %v6801
        %vm6803 = vcmp.lt.s32.totalorder %v6802, 0
        %v6804 = vsub.s32 0, %v6802
        %v6805 = vsel %vm6803, %v6804, %v6802
        %v6806 = vclz %v6805
        %v6807 = vsub.s32 %v6806, 2
        %vm6808 = vcmp.gt.s32.totalorder 0, %v6807
        %v6809 = vsel %vm6808, 0, %v6807
        %v6810 = vsub.s32 32, %v6809
        %v6811 = vshll.u32 %v6802, %v6809
        %v6812 = vshrl.u32 %v6794, %v6810
        %v6813 = vor.u32 %v6811, %v6812
        %v6814 = vsub.s32 4294967266, %v6809
        %v6815 = vadd.s32 %v6814, 127
        %v6816 = vshll.u32 %v6815, 23
        %v6817 = vor.u32 4788187, %v6816
        %v6818 = vand.u32 2147483647, %v6817
        %v6820 = vcvt.s32.f32 %v6813
        %v6821 = vmul.f32 %v6820, %v6818
        %v6822 = vxor.u32 %v6821, 2147483648
        %v6823 = vsel %vm6740, %v6822, %v6821
        %v6824 = vsub.s32 4, %v6800
        %v6825 = vsel %vm6740, %v6824, %v6800
        %v6826 = vsel %vm6739, %v1112, %v6823
        %v6827 = vsel %vm6739, 0, %v6825
        %v6828 = vcosq.f32.pop %v6826
        %v6829 = vsinq.f32.pop %v6826
        %vm6830 = vweird.f32 %v1112
        %v6831 = vadd.s32 %v6827, 3
        %v6832 = vand.u32 %v6831, 3
        %vm6833 = vcmp.lt.s32.totalorder %v6832, 2
        %vm6834 = vcmp.eq.s32.totalorder %v6832, 0
        %v6835 = vxor.u32 %v6829, 2147483648
        %v6836 = vsel %vm6834, %v6828, %v6835
        %vm6837 = vcmp.eq.s32.totalorder %v6832, 2
        %v6838 = vxor.u32 %v6828, 2147483648
        %v6839 = vsel %vm6837, %v6838, %v6829
        %v6840 = vsel %vm6833, %v6836, %v6839
        %v6841 = vsel %vm6830, nan, %v6840
        %v6842 = vand.u32 2147483647, %v1113
        %vm6843 = vcmp.le.f32.partialorder %v6842, 0.7853982
        %vm6844 = vcmp.lt.s32.totalorder %v1113, 0
        %v6845 = vand.u32 %v1113, 2139095040
        %v6846 = vshrl.u32 %v6845, 23
        %v6847 = vsub.s32 %v6846, 127
        %v6848 = vand.u32 2147483647, %v1113
        %v6849 = vand.u32 %v6848, 8388607
        %v6850 = vor.u32 %v6849, 8388608
        %v6851 = vsub.s32 0, %v6850
        %v6852 = vadd.s32 %v6847, 1
        %vm6853 = vcmp.gt.s32.totalorder %v6852, 0
        %v6854 = vsel %vm6853, %v6852, 0
        %v6855 = vshrl.u32 %v6854, 5
        %v6856 = vand.u32 %v6854, 31
        %v6857 = vsub.s32 32, %v6856
        %v6858 = vshrl.u32 683565275, %v6857
        %v6859 = vshll.u32 683565275, %v6856
        %v6860 = vshrl.u32 2475754826, %v6857
        %v6861 = vor.u32 %v6859, %v6860
        %v6862 = vshll.u32 2475754826, %v6856
        %v6863 = vshrl.u32 2131351028, %v6857
        %v6864 = vor.u32 %v6862, %v6863
        %v6865 = vshll.u32 2131351028, %v6856
        %v6866 = vshrl.u32 2102212464, %v6857
        %v6867 = vor.u32 %v6865, %v6866
        %v6868 = vshll.u32 2102212464, %v6856
        %v6869 = vshrl.u32 920167782, %v6857
        %v6870 = vor.u32 %v6868, %v6869
        %v6871 = vshll.u32 920167782, %v6856
        %v6872 = vshrl.u32 1326507024, %v6857
        %v6873 = vor.u32 %v6871, %v6872
        %vm6874 = vcmp.lt.s32.totalorder %v6855, 1
        %vm6875 = vcmp.lt.s32.totalorder %v6855, 2
        %vm6876 = vcmp.lt.s32.totalorder %v6855, 3
        %vm6877 = vcmp.lt.s32.totalorder %v6855, 4
        %v6878 = vsel %vm6874, %v6858, %v6861
        %v6879 = vsel %vm6877, %v6867, 2102212464
        %v6880 = vsel %vm6876, %v6864, %v6879
        %v6881 = vsel %vm6875, %v6878, %v6880
        %v6882 = vsel %vm6874, %v6861, %v6864
        %v6883 = vsel %vm6877, %v6870, 920167782
        %v6884 = vsel %vm6876, %v6867, %v6883
        %v6885 = vsel %vm6875, %v6882, %v6884
        %v6886 = vsel %vm6874, %v6864, %v6867
        %v6887 = vsel %vm6877, %v6873, 1326507024
        %v6888 = vsel %vm6876, %v6870, %v6887
        %v6889 = vsel %vm6875, %v6886, %v6888
        %v6890 = vshll.u32 %v6850, 8
        %v6891 = vmul.u32.u64.compose %v6890, %v6889
        %v6892 = vextract.low.u32 %v6891
        %v6893 = vextract.high.u32 %v6891
        %v6894 = vmul.u32.u64.compose %v6890, %v6885
        %v6895 = vextract.low.u32 %v6894
        %v6896 = vextract.high.u32 %v6894
        %v6897 = vmul.u32 %v6890, %v6881
        %v6898 = vadd.s32 %v6893, %v6895
        %vm6899 = vc.u32 %v6893, %v6895
        %v6900 = vadd.s32 %v6896, 1
        %v6901 = vsel %vm6899, %v6900, %v6896
        %v6902 = vadd.s32 %v6897, %v6901
        %v6903 = vadd.s32 %v6902, 536870912
        %v6904 = vshrl.u32 %v6903, 30
        %v6905 = vshll.u32 %v6904, 30
        %v6906 = vsub.s32 %v6902, %v6905
        %vm6907 = vcmp.lt.s32.totalorder %v6906, 0
        %v6908 = vsub.s32 0, %v6906
        %v6909 = vsel %vm6907, %v6908, %v6906
        %v6910 = vclz %v6909
        %v6911 = vsub.s32 %v6910, 2
        %vm6912 = vcmp.gt.s32.totalorder 0, %v6911
        %v6913 = vsel %vm6912, 0, %v6911
        %v6914 = vsub.s32 32, %v6913
        %v6915 = vshll.u32 %v6906, %v6913
        %v6916 = vshrl.u32 %v6898, %v6914
        %v6917 = vor.u32 %v6915, %v6916
        %v6918 = vsub.s32 4294967266, %v6913
        %v6919 = vadd.s32 %v6918, 127
        %v6920 = vshll.u32 %v6919, 23
        %v6921 = vor.u32 4788187, %v6920
        %v6922 = vand.u32 2147483647, %v6921
        %v6924 = vcvt.s32.f32 %v6917
        %v6925 = vmul.f32 %v6924, %v6922
        %v6926 = vxor.u32 %v6925, 2147483648
        %v6927 = vsel %vm6844, %v6926, %v6925
        %v6928 = vsub.s32 4, %v6904
        %v6929 = vsel %vm6844, %v6928, %v6904
        %v6930 = vsel %vm6843, %v1113, %v6927
        %v6931 = vsel %vm6843, 0, %v6929
        %v6932 = vcosq.f32.pop %v6930
        %v6933 = vsinq.f32.pop %v6930
        %vm6934 = vweird.f32 %v1113
        %v6935 = vadd.s32 %v6931, 3
        %v6936 = vand.u32 %v6935, 3
        %vm6937 = vcmp.lt.s32.totalorder %v6936, 2
        %vm6938 = vcmp.eq.s32.totalorder %v6936, 0
        %v6939 = vxor.u32 %v6933, 2147483648
        %v6940 = vsel %vm6938, %v6932, %v6939
        %vm6941 = vcmp.eq.s32.totalorder %v6936, 2
        %v6942 = vxor.u32 %v6932, 2147483648
        %v6943 = vsel %vm6941, %v6942, %v6933
        %v6944 = vsel %vm6937, %v6940, %v6943
        %v6945 = vsel %vm6934, nan, %v6944
        %v6946 = vand.u32 2147483647, %v1114
        %vm6947 = vcmp.le.f32.partialorder %v6946, 0.7853982
        %vm6948 = vcmp.lt.s32.totalorder %v1114, 0
        %v6949 = vand.u32 %v1114, 2139095040
        %v6950 = vshrl.u32 %v6949, 23
        %v6951 = vsub.s32 %v6950, 127
        %v6952 = vand.u32 2147483647, %v1114
        %v6953 = vand.u32 %v6952, 8388607
        %v6954 = vor.u32 %v6953, 8388608
        %v6955 = vsub.s32 0, %v6954
        %v6956 = vadd.s32 %v6951, 1
        %vm6957 = vcmp.gt.s32.totalorder %v6956, 0
        %v6958 = vsel %vm6957, %v6956, 0
        %v6959 = vshrl.u32 %v6958, 5
        %v6960 = vand.u32 %v6958, 31
        %v6961 = vsub.s32 32, %v6960
        %v6962 = vshrl.u32 683565275, %v6961
        %v6963 = vshll.u32 683565275, %v6960
        %v6964 = vshrl.u32 2475754826, %v6961
        %v6965 = vor.u32 %v6963, %v6964
        %v6966 = vshll.u32 2475754826, %v6960
        %v6967 = vshrl.u32 2131351028, %v6961
        %v6968 = vor.u32 %v6966, %v6967
        %v6969 = vshll.u32 2131351028, %v6960
        %v6970 = vshrl.u32 2102212464, %v6961
        %v6971 = vor.u32 %v6969, %v6970
        %v6972 = vshll.u32 2102212464, %v6960
        %v6973 = vshrl.u32 920167782, %v6961
        %v6974 = vor.u32 %v6972, %v6973
        %v6975 = vshll.u32 920167782, %v6960
        %v6976 = vshrl.u32 1326507024, %v6961
        %v6977 = vor.u32 %v6975, %v6976
        %vm6978 = vcmp.lt.s32.totalorder %v6959, 1
        %vm6979 = vcmp.lt.s32.totalorder %v6959, 2
        %vm6980 = vcmp.lt.s32.totalorder %v6959, 3
        %vm6981 = vcmp.lt.s32.totalorder %v6959, 4
        %v6982 = vsel %vm6978, %v6962, %v6965
        %v6983 = vsel %vm6981, %v6971, 2102212464
        %v6984 = vsel %vm6980, %v6968, %v6983
        %v6985 = vsel %vm6979, %v6982, %v6984
        %v6986 = vsel %vm6978, %v6965, %v6968
        %v6987 = vsel %vm6981, %v6974, 920167782
        %v6988 = vsel %vm6980, %v6971, %v6987
        %v6989 = vsel %vm6979, %v6986, %v6988
        %v6990 = vsel %vm6978, %v6968, %v6971
        %v6991 = vsel %vm6981, %v6977, 1326507024
        %v6992 = vsel %vm6980, %v6974, %v6991
        %v6993 = vsel %vm6979, %v6990, %v6992
        %v6994 = vshll.u32 %v6954, 8
        %v6995 = vmul.u32.u64.compose %v6994, %v6993
        %v6996 = vextract.low.u32 %v6995
        %v6997 = vextract.high.u32 %v6995
        %v6998 = vmul.u32.u64.compose %v6994, %v6989
        %v6999 = vextract.low.u32 %v6998
        %v7000 = vextract.high.u32 %v6998
        %v7001 = vmul.u32 %v6994, %v6985
        %v7002 = vadd.s32 %v6997, %v6999
        %vm7003 = vc.u32 %v6997, %v6999
        %v7004 = vadd.s32 %v7000, 1
        %v7005 = vsel %vm7003, %v7004, %v7000
        %v7006 = vadd.s32 %v7001, %v7005
        %v7007 = vadd.s32 %v7006, 536870912
        %v7008 = vshrl.u32 %v7007, 30
        %v7009 = vshll.u32 %v7008, 30
        %v7010 = vsub.s32 %v7006, %v7009
        %vm7011 = vcmp.lt.s32.totalorder %v7010, 0
        %v7012 = vsub.s32 0, %v7010
        %v7013 = vsel %vm7011, %v7012, %v7010
        %v7014 = vclz %v7013
        %v7015 = vsub.s32 %v7014, 2
        %vm7016 = vcmp.gt.s32.totalorder 0, %v7015
        %v7017 = vsel %vm7016, 0, %v7015
        %v7018 = vsub.s32 32, %v7017
        %v7019 = vshll.u32 %v7010, %v7017
        %v7020 = vshrl.u32 %v7002, %v7018
        %v7021 = vor.u32 %v7019, %v7020
        %v7022 = vsub.s32 4294967266, %v7017
        %v7023 = vadd.s32 %v7022, 127
        %v7024 = vshll.u32 %v7023, 23
        %v7025 = vor.u32 4788187, %v7024
        %v7026 = vand.u32 2147483647, %v7025
        %v7028 = vcvt.s32.f32 %v7021
        %v7029 = vmul.f32 %v7028, %v7026
        %v7030 = vxor.u32 %v7029, 2147483648
        %v7031 = vsel %vm6948, %v7030, %v7029
        %v7032 = vsub.s32 4, %v7008
        %v7033 = vsel %vm6948, %v7032, %v7008
        %v7034 = vsel %vm6947, %v1114, %v7031
        %v7035 = vsel %vm6947, 0, %v7033
        %v7036 = vcosq.f32.pop %v7034
        %v7037 = vsinq.f32.pop %v7034
        %vm7038 = vweird.f32 %v1114
        %v7039 = vadd.s32 %v7035, 3
        %v7040 = vand.u32 %v7039, 3
        %vm7041 = vcmp.lt.s32.totalorder %v7040, 2
        %vm7042 = vcmp.eq.s32.totalorder %v7040, 0
        %v7043 = vxor.u32 %v7037, 2147483648
        %v7044 = vsel %vm7042, %v7036, %v7043
        %vm7045 = vcmp.eq.s32.totalorder %v7040, 2
        %v7046 = vxor.u32 %v7036, 2147483648
        %v7047 = vsel %vm7045, %v7046, %v7037
        %v7048 = vsel %vm7041, %v7044, %v7047
        %v7049 = vsel %vm7038, nan, %v7048
        %v7050 = vand.u32 2147483647, %v1115
        %vm7051 = vcmp.le.f32.partialorder %v7050, 0.7853982
        %vm7052 = vcmp.lt.s32.totalorder %v1115, 0
        %v7053 = vand.u32 %v1115, 2139095040
        %v7054 = vshrl.u32 %v7053, 23
        %v7055 = vsub.s32 %v7054, 127
        %v7056 = vand.u32 2147483647, %v1115
        %v7057 = vand.u32 %v7056, 8388607
        %v7058 = vor.u32 %v7057, 8388608
        %v7059 = vsub.s32 0, %v7058
        %v7060 = vadd.s32 %v7055, 1
        %vm7061 = vcmp.gt.s32.totalorder %v7060, 0
        %v7062 = vsel %vm7061, %v7060, 0
        %v7063 = vshrl.u32 %v7062, 5
        %v7064 = vand.u32 %v7062, 31
        %v7065 = vsub.s32 32, %v7064
        %v7066 = vshrl.u32 683565275, %v7065
        %v7067 = vshll.u32 683565275, %v7064
        %v7068 = vshrl.u32 2475754826, %v7065
        %v7069 = vor.u32 %v7067, %v7068
        %v7070 = vshll.u32 2475754826, %v7064
        %v7071 = vshrl.u32 2131351028, %v7065
        %v7072 = vor.u32 %v7070, %v7071
        %v7073 = vshll.u32 2131351028, %v7064
        %v7074 = vshrl.u32 2102212464, %v7065
        %v7075 = vor.u32 %v7073, %v7074
        %v7076 = vshll.u32 2102212464, %v7064
        %v7077 = vshrl.u32 920167782, %v7065
        %v7078 = vor.u32 %v7076, %v7077
        %v7079 = vshll.u32 920167782, %v7064
        %v7080 = vshrl.u32 1326507024, %v7065
        %v7081 = vor.u32 %v7079, %v7080
        %vm7082 = vcmp.lt.s32.totalorder %v7063, 1
        %vm7083 = vcmp.lt.s32.totalorder %v7063, 2
        %vm7084 = vcmp.lt.s32.totalorder %v7063, 3
        %vm7085 = vcmp.lt.s32.totalorder %v7063, 4
        %v7086 = vsel %vm7082, %v7066, %v7069
        %v7087 = vsel %vm7085, %v7075, 2102212464
        %v7088 = vsel %vm7084, %v7072, %v7087
        %v7089 = vsel %vm7083, %v7086, %v7088
        %v7090 = vsel %vm7082, %v7069, %v7072
        %v7091 = vsel %vm7085, %v7078, 920167782
        %v7092 = vsel %vm7084, %v7075, %v7091
        %v7093 = vsel %vm7083, %v7090, %v7092
        %v7094 = vsel %vm7082, %v7072, %v7075
        %v7095 = vsel %vm7085, %v7081, 1326507024
        %v7096 = vsel %vm7084, %v7078, %v7095
        %v7097 = vsel %vm7083, %v7094, %v7096
        %v7098 = vshll.u32 %v7058, 8
        %v7099 = vmul.u32.u64.compose %v7098, %v7097
        %v7100 = vextract.low.u32 %v7099
        %v7101 = vextract.high.u32 %v7099
        %v7102 = vmul.u32.u64.compose %v7098, %v7093
        %v7103 = vextract.low.u32 %v7102
        %v7104 = vextract.high.u32 %v7102
        %v7105 = vmul.u32 %v7098, %v7089
        %v7106 = vadd.s32 %v7101, %v7103
        %vm7107 = vc.u32 %v7101, %v7103
        %v7108 = vadd.s32 %v7104, 1
        %v7109 = vsel %vm7107, %v7108, %v7104
        %v7110 = vadd.s32 %v7105, %v7109
        %v7111 = vadd.s32 %v7110, 536870912
        %v7112 = vshrl.u32 %v7111, 30
        %v7113 = vshll.u32 %v7112, 30
        %v7114 = vsub.s32 %v7110, %v7113
        %vm7115 = vcmp.lt.s32.totalorder %v7114, 0
        %v7116 = vsub.s32 0, %v7114
        %v7117 = vsel %vm7115, %v7116, %v7114
        %v7118 = vclz %v7117
        %v7119 = vsub.s32 %v7118, 2
        %vm7120 = vcmp.gt.s32.totalorder 0, %v7119
        %v7121 = vsel %vm7120, 0, %v7119
        %v7122 = vsub.s32 32, %v7121
        %v7123 = vshll.u32 %v7114, %v7121
        %v7124 = vshrl.u32 %v7106, %v7122
        %v7125 = vor.u32 %v7123, %v7124
        %v7126 = vsub.s32 4294967266, %v7121
        %v7127 = vadd.s32 %v7126, 127
        %v7128 = vshll.u32 %v7127, 23
        %v7129 = vor.u32 4788187, %v7128
        %v7130 = vand.u32 2147483647, %v7129
        %v7132 = vcvt.s32.f32 %v7125
        %v7133 = vmul.f32 %v7132, %v7130
        %v7134 = vxor.u32 %v7133, 2147483648
        %v7135 = vsel %vm7052, %v7134, %v7133
        %v7136 = vsub.s32 4, %v7112
        %v7137 = vsel %vm7052, %v7136, %v7112
        %v7138 = vsel %vm7051, %v1115, %v7135
        %v7139 = vsel %vm7051, 0, %v7137
        %v7140 = vcosq.f32.pop %v7138
        %v7141 = vsinq.f32.pop %v7138
        %vm7142 = vweird.f32 %v1115
        %v7143 = vadd.s32 %v7139, 3
        %v7144 = vand.u32 %v7143, 3
        %vm7145 = vcmp.lt.s32.totalorder %v7144, 2
        %vm7146 = vcmp.eq.s32.totalorder %v7144, 0
        %v7147 = vxor.u32 %v7141, 2147483648
        %v7148 = vsel %vm7146, %v7140, %v7147
        %vm7149 = vcmp.eq.s32.totalorder %v7144, 2
        %v7150 = vxor.u32 %v7140, 2147483648
        %v7151 = vsel %vm7149, %v7150, %v7141
        %v7152 = vsel %vm7145, %v7148, %v7151
        %v7153 = vsel %vm7142, nan, %v7152
        %v7154 = vand.u32 2147483647, %v1116
        %vm7155 = vcmp.le.f32.partialorder %v7154, 0.7853982
        %vm7156 = vcmp.lt.s32.totalorder %v1116, 0
        %v7157 = vand.u32 %v1116, 2139095040
        %v7158 = vshrl.u32 %v7157, 23
        %v7159 = vsub.s32 %v7158, 127
        %v7160 = vand.u32 2147483647, %v1116
        %v7161 = vand.u32 %v7160, 8388607
        %v7162 = vor.u32 %v7161, 8388608
        %v7163 = vsub.s32 0, %v7162
        %v7164 = vadd.s32 %v7159, 1
        %vm7165 = vcmp.gt.s32.totalorder %v7164, 0
        %v7166 = vsel %vm7165, %v7164, 0
        %v7167 = vshrl.u32 %v7166, 5
        %v7168 = vand.u32 %v7166, 31
        %v7169 = vsub.s32 32, %v7168
        %v7170 = vshrl.u32 683565275, %v7169
        %v7171 = vshll.u32 683565275, %v7168
        %v7172 = vshrl.u32 2475754826, %v7169
        %v7173 = vor.u32 %v7171, %v7172
        %v7174 = vshll.u32 2475754826, %v7168
        %v7175 = vshrl.u32 2131351028, %v7169
        %v7176 = vor.u32 %v7174, %v7175
        %v7177 = vshll.u32 2131351028, %v7168
        %v7178 = vshrl.u32 2102212464, %v7169
        %v7179 = vor.u32 %v7177, %v7178
        %v7180 = vshll.u32 2102212464, %v7168
        %v7181 = vshrl.u32 920167782, %v7169
        %v7182 = vor.u32 %v7180, %v7181
        %v7183 = vshll.u32 920167782, %v7168
        %v7184 = vshrl.u32 1326507024, %v7169
        %v7185 = vor.u32 %v7183, %v7184
        %vm7186 = vcmp.lt.s32.totalorder %v7167, 1
        %vm7187 = vcmp.lt.s32.totalorder %v7167, 2
        %vm7188 = vcmp.lt.s32.totalorder %v7167, 3
        %vm7189 = vcmp.lt.s32.totalorder %v7167, 4
        %v7190 = vsel %vm7186, %v7170, %v7173
        %v7191 = vsel %vm7189, %v7179, 2102212464
        %v7192 = vsel %vm7188, %v7176, %v7191
        %v7193 = vsel %vm7187, %v7190, %v7192
        %v7194 = vsel %vm7186, %v7173, %v7176
        %v7195 = vsel %vm7189, %v7182, 920167782
        %v7196 = vsel %vm7188, %v7179, %v7195
        %v7197 = vsel %vm7187, %v7194, %v7196
        %v7198 = vsel %vm7186, %v7176, %v7179
        %v7199 = vsel %vm7189, %v7185, 1326507024
        %v7200 = vsel %vm7188, %v7182, %v7199
        %v7201 = vsel %vm7187, %v7198, %v7200
        %v7202 = vshll.u32 %v7162, 8
        %v7203 = vmul.u32.u64.compose %v7202, %v7201
        %v7204 = vextract.low.u32 %v7203
        %v7205 = vextract.high.u32 %v7203
        %v7206 = vmul.u32.u64.compose %v7202, %v7197
        %v7207 = vextract.low.u32 %v7206
        %v7208 = vextract.high.u32 %v7206
        %v7209 = vmul.u32 %v7202, %v7193
        %v7210 = vadd.s32 %v7205, %v7207
        %vm7211 = vc.u32 %v7205, %v7207
        %v7212 = vadd.s32 %v7208, 1
        %v7213 = vsel %vm7211, %v7212, %v7208
        %v7214 = vadd.s32 %v7209, %v7213
        %v7215 = vadd.s32 %v7214, 536870912
        %v7216 = vshrl.u32 %v7215, 30
        %v7217 = vshll.u32 %v7216, 30
        %v7218 = vsub.s32 %v7214, %v7217
        %vm7219 = vcmp.lt.s32.totalorder %v7218, 0
        %v7220 = vsub.s32 0, %v7218
        %v7221 = vsel %vm7219, %v7220, %v7218
        %v7222 = vclz %v7221
        %v7223 = vsub.s32 %v7222, 2
        %vm7224 = vcmp.gt.s32.totalorder 0, %v7223
        %v7225 = vsel %vm7224, 0, %v7223
        %v7226 = vsub.s32 32, %v7225
        %v7227 = vshll.u32 %v7218, %v7225
        %v7228 = vshrl.u32 %v7210, %v7226
        %v7229 = vor.u32 %v7227, %v7228
        %v7230 = vsub.s32 4294967266, %v7225
        %v7231 = vadd.s32 %v7230, 127
        %v7232 = vshll.u32 %v7231, 23
        %v7233 = vor.u32 4788187, %v7232
        %v7234 = vand.u32 2147483647, %v7233
        %v7236 = vcvt.s32.f32 %v7229
        %v7237 = vmul.f32 %v7236, %v7234
        %v7238 = vxor.u32 %v7237, 2147483648
        %v7239 = vsel %vm7156, %v7238, %v7237
        %v7240 = vsub.s32 4, %v7216
        %v7241 = vsel %vm7156, %v7240, %v7216
        %v7242 = vsel %vm7155, %v1116, %v7239
        %v7243 = vsel %vm7155, 0, %v7241
        %v7244 = vcosq.f32.pop %v7242
        %v7245 = vsinq.f32.pop %v7242
        %vm7246 = vweird.f32 %v1116
        %v7247 = vadd.s32 %v7243, 3
        %v7248 = vand.u32 %v7247, 3
        %vm7249 = vcmp.lt.s32.totalorder %v7248, 2
        %vm7250 = vcmp.eq.s32.totalorder %v7248, 0
        %v7251 = vxor.u32 %v7245, 2147483648
        %v7252 = vsel %vm7250, %v7244, %v7251
        %vm7253 = vcmp.eq.s32.totalorder %v7248, 2
        %v7254 = vxor.u32 %v7244, 2147483648
        %v7255 = vsel %vm7253, %v7254, %v7245
        %v7256 = vsel %vm7249, %v7252, %v7255
        %v7257 = vsel %vm7246, nan, %v7256
        %v7258 = vand.u32 2147483647, %v1117
        %vm7259 = vcmp.le.f32.partialorder %v7258, 0.7853982
        %vm7260 = vcmp.lt.s32.totalorder %v1117, 0
        %v7261 = vand.u32 %v1117, 2139095040
        %v7262 = vshrl.u32 %v7261, 23
        %v7263 = vsub.s32 %v7262, 127
        %v7264 = vand.u32 2147483647, %v1117
        %v7265 = vand.u32 %v7264, 8388607
        %v7266 = vor.u32 %v7265, 8388608
        %v7267 = vsub.s32 0, %v7266
        %v7268 = vadd.s32 %v7263, 1
        %vm7269 = vcmp.gt.s32.totalorder %v7268, 0
        %v7270 = vsel %vm7269, %v7268, 0
        %v7271 = vshrl.u32 %v7270, 5
        %v7272 = vand.u32 %v7270, 31
        %v7273 = vsub.s32 32, %v7272
        %v7274 = vshrl.u32 683565275, %v7273
        %v7275 = vshll.u32 683565275, %v7272
        %v7276 = vshrl.u32 2475754826, %v7273
        %v7277 = vor.u32 %v7275, %v7276
        %v7278 = vshll.u32 2475754826, %v7272
        %v7279 = vshrl.u32 2131351028, %v7273
        %v7280 = vor.u32 %v7278, %v7279
        %v7281 = vshll.u32 2131351028, %v7272
        %v7282 = vshrl.u32 2102212464, %v7273
        %v7283 = vor.u32 %v7281, %v7282
        %v7284 = vshll.u32 2102212464, %v7272
        %v7285 = vshrl.u32 920167782, %v7273
        %v7286 = vor.u32 %v7284, %v7285
        %v7287 = vshll.u32 920167782, %v7272
        %v7288 = vshrl.u32 1326507024, %v7273
        %v7289 = vor.u32 %v7287, %v7288
        %vm7290 = vcmp.lt.s32.totalorder %v7271, 1
        %vm7291 = vcmp.lt.s32.totalorder %v7271, 2
        %vm7292 = vcmp.lt.s32.totalorder %v7271, 3
        %vm7293 = vcmp.lt.s32.totalorder %v7271, 4
        %v7294 = vsel %vm7290, %v7274, %v7277
        %v7295 = vsel %vm7293, %v7283, 2102212464
        %v7296 = vsel %vm7292, %v7280, %v7295
        %v7297 = vsel %vm7291, %v7294, %v7296
        %v7298 = vsel %vm7290, %v7277, %v7280
        %v7299 = vsel %vm7293, %v7286, 920167782
        %v7300 = vsel %vm7292, %v7283, %v7299
        %v7301 = vsel %vm7291, %v7298, %v7300
        %v7302 = vsel %vm7290, %v7280, %v7283
        %v7303 = vsel %vm7293, %v7289, 1326507024
        %v7304 = vsel %vm7292, %v7286, %v7303
        %v7305 = vsel %vm7291, %v7302, %v7304
        %v7306 = vshll.u32 %v7266, 8
        %v7307 = vmul.u32.u64.compose %v7306, %v7305
        %v7308 = vextract.low.u32 %v7307
        %v7309 = vextract.high.u32 %v7307
        %v7310 = vmul.u32.u64.compose %v7306, %v7301
        %v7311 = vextract.low.u32 %v7310
        %v7312 = vextract.high.u32 %v7310
        %v7313 = vmul.u32 %v7306, %v7297
        %v7314 = vadd.s32 %v7309, %v7311
        %vm7315 = vc.u32 %v7309, %v7311
        %v7316 = vadd.s32 %v7312, 1
        %v7317 = vsel %vm7315, %v7316, %v7312
        %v7318 = vadd.s32 %v7313, %v7317
        %v7319 = vadd.s32 %v7318, 536870912
        %v7320 = vshrl.u32 %v7319, 30
        %v7321 = vshll.u32 %v7320, 30
        %v7322 = vsub.s32 %v7318, %v7321
        %vm7323 = vcmp.lt.s32.totalorder %v7322, 0
        %v7324 = vsub.s32 0, %v7322
        %v7325 = vsel %vm7323, %v7324, %v7322
        %v7326 = vclz %v7325
        %v7327 = vsub.s32 %v7326, 2
        %vm7328 = vcmp.gt.s32.totalorder 0, %v7327
        %v7329 = vsel %vm7328, 0, %v7327
        %v7330 = vsub.s32 32, %v7329
        %v7331 = vshll.u32 %v7322, %v7329
        %v7332 = vshrl.u32 %v7314, %v7330
        %v7333 = vor.u32 %v7331, %v7332
        %v7334 = vsub.s32 4294967266, %v7329
        %v7335 = vadd.s32 %v7334, 127
        %v7336 = vshll.u32 %v7335, 23
        %v7337 = vor.u32 4788187, %v7336
        %v7338 = vand.u32 2147483647, %v7337
        %v7340 = vcvt.s32.f32 %v7333
        %v7341 = vmul.f32 %v7340, %v7338
        %v7342 = vxor.u32 %v7341, 2147483648
        %v7343 = vsel %vm7260, %v7342, %v7341
        %v7344 = vsub.s32 4, %v7320
        %v7345 = vsel %vm7260, %v7344, %v7320
        %v7346 = vsel %vm7259, %v1117, %v7343
        %v7347 = vsel %vm7259, 0, %v7345
        %v7348 = vcosq.f32.pop %v7346
        %v7349 = vsinq.f32.pop %v7346
        %vm7350 = vweird.f32 %v1117
        %v7351 = vadd.s32 %v7347, 3
        %v7352 = vand.u32 %v7351, 3
        %vm7353 = vcmp.lt.s32.totalorder %v7352, 2
        %vm7354 = vcmp.eq.s32.totalorder %v7352, 0
        %v7355 = vxor.u32 %v7349, 2147483648
        %v7356 = vsel %vm7354, %v7348, %v7355
        %vm7357 = vcmp.eq.s32.totalorder %v7352, 2
        %v7358 = vxor.u32 %v7348, 2147483648
        %v7359 = vsel %vm7357, %v7358, %v7349
        %v7360 = vsel %vm7353, %v7356, %v7359
        %v7361 = vsel %vm7350, nan, %v7360
        %v7362 = vand.u32 2147483647, %v1118
        %vm7363 = vcmp.le.f32.partialorder %v7362, 0.7853982
        %vm7364 = vcmp.lt.s32.totalorder %v1118, 0
        %v7365 = vand.u32 %v1118, 2139095040
        %v7366 = vshrl.u32 %v7365, 23
        %v7367 = vsub.s32 %v7366, 127
        %v7368 = vand.u32 2147483647, %v1118
        %v7369 = vand.u32 %v7368, 8388607
        %v7370 = vor.u32 %v7369, 8388608
        %v7371 = vsub.s32 0, %v7370
        %v7372 = vadd.s32 %v7367, 1
        %vm7373 = vcmp.gt.s32.totalorder %v7372, 0
        %v7374 = vsel %vm7373, %v7372, 0
        %v7375 = vshrl.u32 %v7374, 5
        %v7376 = vand.u32 %v7374, 31
        %v7377 = vsub.s32 32, %v7376
        %v7378 = vshrl.u32 683565275, %v7377
        %v7379 = vshll.u32 683565275, %v7376
        %v7380 = vshrl.u32 2475754826, %v7377
        %v7381 = vor.u32 %v7379, %v7380
        %v7382 = vshll.u32 2475754826, %v7376
        %v7383 = vshrl.u32 2131351028, %v7377
        %v7384 = vor.u32 %v7382, %v7383
        %v7385 = vshll.u32 2131351028, %v7376
        %v7386 = vshrl.u32 2102212464, %v7377
        %v7387 = vor.u32 %v7385, %v7386
        %v7388 = vshll.u32 2102212464, %v7376
        %v7389 = vshrl.u32 920167782, %v7377
        %v7390 = vor.u32 %v7388, %v7389
        %v7391 = vshll.u32 920167782, %v7376
        %v7392 = vshrl.u32 1326507024, %v7377
        %v7393 = vor.u32 %v7391, %v7392
        %vm7394 = vcmp.lt.s32.totalorder %v7375, 1
        %vm7395 = vcmp.lt.s32.totalorder %v7375, 2
        %vm7396 = vcmp.lt.s32.totalorder %v7375, 3
        %vm7397 = vcmp.lt.s32.totalorder %v7375, 4
        %v7398 = vsel %vm7394, %v7378, %v7381
        %v7399 = vsel %vm7397, %v7387, 2102212464
        %v7400 = vsel %vm7396, %v7384, %v7399
        %v7401 = vsel %vm7395, %v7398, %v7400
        %v7402 = vsel %vm7394, %v7381, %v7384
        %v7403 = vsel %vm7397, %v7390, 920167782
        %v7404 = vsel %vm7396, %v7387, %v7403
        %v7405 = vsel %vm7395, %v7402, %v7404
        %v7406 = vsel %vm7394, %v7384, %v7387
        %v7407 = vsel %vm7397, %v7393, 1326507024
        %v7408 = vsel %vm7396, %v7390, %v7407
        %v7409 = vsel %vm7395, %v7406, %v7408
        %v7410 = vshll.u32 %v7370, 8
        %v7411 = vmul.u32.u64.compose %v7410, %v7409
        %v7412 = vextract.low.u32 %v7411
        %v7413 = vextract.high.u32 %v7411
        %v7414 = vmul.u32.u64.compose %v7410, %v7405
        %v7415 = vextract.low.u32 %v7414
        %v7416 = vextract.high.u32 %v7414
        %v7417 = vmul.u32 %v7410, %v7401
        %v7418 = vadd.s32 %v7413, %v7415
        %vm7419 = vc.u32 %v7413, %v7415
        %v7420 = vadd.s32 %v7416, 1
        %v7421 = vsel %vm7419, %v7420, %v7416
        %v7422 = vadd.s32 %v7417, %v7421
        %v7423 = vadd.s32 %v7422, 536870912
        %v7424 = vshrl.u32 %v7423, 30
        %v7425 = vshll.u32 %v7424, 30
        %v7426 = vsub.s32 %v7422, %v7425
        %vm7427 = vcmp.lt.s32.totalorder %v7426, 0
        %v7428 = vsub.s32 0, %v7426
        %v7429 = vsel %vm7427, %v7428, %v7426
        %v7430 = vclz %v7429
        %v7431 = vsub.s32 %v7430, 2
        %vm7432 = vcmp.gt.s32.totalorder 0, %v7431
        %v7433 = vsel %vm7432, 0, %v7431
        %v7434 = vsub.s32 32, %v7433
        %v7435 = vshll.u32 %v7426, %v7433
        %v7436 = vshrl.u32 %v7418, %v7434
        %v7437 = vor.u32 %v7435, %v7436
        %v7438 = vsub.s32 4294967266, %v7433
        %v7439 = vadd.s32 %v7438, 127
        %v7440 = vshll.u32 %v7439, 23
        %v7441 = vor.u32 4788187, %v7440
        %v7442 = vand.u32 2147483647, %v7441
        %v7444 = vcvt.s32.f32 %v7437
        %v7445 = vmul.f32 %v7444, %v7442
        %v7446 = vxor.u32 %v7445, 2147483648
        %v7447 = vsel %vm7364, %v7446, %v7445
        %v7448 = vsub.s32 4, %v7424
        %v7449 = vsel %vm7364, %v7448, %v7424
        %v7450 = vsel %vm7363, %v1118, %v7447
        %v7451 = vsel %vm7363, 0, %v7449
        %v7452 = vcosq.f32.pop %v7450
        %v7453 = vsinq.f32.pop %v7450
        %vm7454 = vweird.f32 %v1118
        %v7455 = vadd.s32 %v7451, 3
        %v7456 = vand.u32 %v7455, 3
        %vm7457 = vcmp.lt.s32.totalorder %v7456, 2
        %vm7458 = vcmp.eq.s32.totalorder %v7456, 0
        %v7459 = vxor.u32 %v7453, 2147483648
        %v7460 = vsel %vm7458, %v7452, %v7459
        %vm7461 = vcmp.eq.s32.totalorder %v7456, 2
        %v7462 = vxor.u32 %v7452, 2147483648
        %v7463 = vsel %vm7461, %v7462, %v7453
        %v7464 = vsel %vm7457, %v7460, %v7463
        %v7465 = vsel %vm7454, nan, %v7464
        %v7466 = vand.u32 2147483647, %v1119
        %vm7467 = vcmp.le.f32.partialorder %v7466, 0.7853982
        %vm7468 = vcmp.lt.s32.totalorder %v1119, 0
        %v7469 = vand.u32 %v1119, 2139095040
        %v7470 = vshrl.u32 %v7469, 23
        %v7471 = vsub.s32 %v7470, 127
        %v7472 = vand.u32 2147483647, %v1119
        %v7473 = vand.u32 %v7472, 8388607
        %v7474 = vor.u32 %v7473, 8388608
        %v7475 = vsub.s32 0, %v7474
        %v7476 = vadd.s32 %v7471, 1
        %vm7477 = vcmp.gt.s32.totalorder %v7476, 0
        %v7478 = vsel %vm7477, %v7476, 0
        %v7479 = vshrl.u32 %v7478, 5
        %v7480 = vand.u32 %v7478, 31
        %v7481 = vsub.s32 32, %v7480
        %v7482 = vshrl.u32 683565275, %v7481
        %v7483 = vshll.u32 683565275, %v7480
        %v7484 = vshrl.u32 2475754826, %v7481
        %v7485 = vor.u32 %v7483, %v7484
        %v7486 = vshll.u32 2475754826, %v7480
        %v7487 = vshrl.u32 2131351028, %v7481
        %v7488 = vor.u32 %v7486, %v7487
        %v7489 = vshll.u32 2131351028, %v7480
        %v7490 = vshrl.u32 2102212464, %v7481
        %v7491 = vor.u32 %v7489, %v7490
        %v7492 = vshll.u32 2102212464, %v7480
        %v7493 = vshrl.u32 920167782, %v7481
        %v7494 = vor.u32 %v7492, %v7493
        %v7495 = vshll.u32 920167782, %v7480
        %v7496 = vshrl.u32 1326507024, %v7481
        %v7497 = vor.u32 %v7495, %v7496
        %vm7498 = vcmp.lt.s32.totalorder %v7479, 1
        %vm7499 = vcmp.lt.s32.totalorder %v7479, 2
        %vm7500 = vcmp.lt.s32.totalorder %v7479, 3
        %vm7501 = vcmp.lt.s32.totalorder %v7479, 4
        %v7502 = vsel %vm7498, %v7482, %v7485
        %v7503 = vsel %vm7501, %v7491, 2102212464
        %v7504 = vsel %vm7500, %v7488, %v7503
        %v7505 = vsel %vm7499, %v7502, %v7504
        %v7506 = vsel %vm7498, %v7485, %v7488
        %v7507 = vsel %vm7501, %v7494, 920167782
        %v7508 = vsel %vm7500, %v7491, %v7507
        %v7509 = vsel %vm7499, %v7506, %v7508
        %v7510 = vsel %vm7498, %v7488, %v7491
        %v7511 = vsel %vm7501, %v7497, 1326507024
        %v7512 = vsel %vm7500, %v7494, %v7511
        %v7513 = vsel %vm7499, %v7510, %v7512
        %v7514 = vshll.u32 %v7474, 8
        %v7515 = vmul.u32.u64.compose %v7514, %v7513
        %v7516 = vextract.low.u32 %v7515
        %v7517 = vextract.high.u32 %v7515
        %v7518 = vmul.u32.u64.compose %v7514, %v7509
        %v7519 = vextract.low.u32 %v7518
        %v7520 = vextract.high.u32 %v7518
        %v7521 = vmul.u32 %v7514, %v7505
        %v7522 = vadd.s32 %v7517, %v7519
        %vm7523 = vc.u32 %v7517, %v7519
        %v7524 = vadd.s32 %v7520, 1
        %v7525 = vsel %vm7523, %v7524, %v7520
        %v7526 = vadd.s32 %v7521, %v7525
        %v7527 = vadd.s32 %v7526, 536870912
        %v7528 = vshrl.u32 %v7527, 30
        %v7529 = vshll.u32 %v7528, 30
        %v7530 = vsub.s32 %v7526, %v7529
        %vm7531 = vcmp.lt.s32.totalorder %v7530, 0
        %v7532 = vsub.s32 0, %v7530
        %v7533 = vsel %vm7531, %v7532, %v7530
        %v7534 = vclz %v7533
        %v7535 = vsub.s32 %v7534, 2
        %vm7536 = vcmp.gt.s32.totalorder 0, %v7535
        %v7537 = vsel %vm7536, 0, %v7535
        %v7538 = vsub.s32 32, %v7537
        %v7539 = vshll.u32 %v7530, %v7537
        %v7540 = vshrl.u32 %v7522, %v7538
        %v7541 = vor.u32 %v7539, %v7540
        %v7542 = vsub.s32 4294967266, %v7537
        %v7543 = vadd.s32 %v7542, 127
        %v7544 = vshll.u32 %v7543, 23
        %v7545 = vor.u32 4788187, %v7544
        %v7546 = vand.u32 2147483647, %v7545
        %v7548 = vcvt.s32.f32 %v7541
        %v7549 = vmul.f32 %v7548, %v7546
        %v7550 = vxor.u32 %v7549, 2147483648
        %v7551 = vsel %vm7468, %v7550, %v7549
        %v7552 = vsub.s32 4, %v7528
        %v7553 = vsel %vm7468, %v7552, %v7528
        %v7554 = vsel %vm7467, %v1119, %v7551
        %v7555 = vsel %vm7467, 0, %v7553
        %v7556 = vcosq.f32.pop %v7554
        %v7557 = vsinq.f32.pop %v7554
        %vm7558 = vweird.f32 %v1119
        %v7559 = vadd.s32 %v7555, 3
        %v7560 = vand.u32 %v7559, 3
        %vm7561 = vcmp.lt.s32.totalorder %v7560, 2
        %vm7562 = vcmp.eq.s32.totalorder %v7560, 0
        %v7563 = vxor.u32 %v7557, 2147483648
        %v7564 = vsel %vm7562, %v7556, %v7563
        %vm7565 = vcmp.eq.s32.totalorder %v7560, 2
        %v7566 = vxor.u32 %v7556, 2147483648
        %v7567 = vsel %vm7565, %v7566, %v7557
        %v7568 = vsel %vm7561, %v7564, %v7567
        %v7569 = vsel %vm7558, nan, %v7568
        %v7570 = vand.u32 2147483647, %v1120
        %vm7571 = vcmp.le.f32.partialorder %v7570, 0.7853982
        %vm7572 = vcmp.lt.s32.totalorder %v1120, 0
        %v7573 = vand.u32 %v1120, 2139095040
        %v7574 = vshrl.u32 %v7573, 23
        %v7575 = vsub.s32 %v7574, 127
        %v7576 = vand.u32 2147483647, %v1120
        %v7577 = vand.u32 %v7576, 8388607
        %v7578 = vor.u32 %v7577, 8388608
        %v7579 = vsub.s32 0, %v7578
        %v7580 = vadd.s32 %v7575, 1
        %vm7581 = vcmp.gt.s32.totalorder %v7580, 0
        %v7582 = vsel %vm7581, %v7580, 0
        %v7583 = vshrl.u32 %v7582, 5
        %v7584 = vand.u32 %v7582, 31
        %v7585 = vsub.s32 32, %v7584
        %v7586 = vshrl.u32 683565275, %v7585
        %v7587 = vshll.u32 683565275, %v7584
        %v7588 = vshrl.u32 2475754826, %v7585
        %v7589 = vor.u32 %v7587, %v7588
        %v7590 = vshll.u32 2475754826, %v7584
        %v7591 = vshrl.u32 2131351028, %v7585
        %v7592 = vor.u32 %v7590, %v7591
        %v7593 = vshll.u32 2131351028, %v7584
        %v7594 = vshrl.u32 2102212464, %v7585
        %v7595 = vor.u32 %v7593, %v7594
        %v7596 = vshll.u32 2102212464, %v7584
        %v7597 = vshrl.u32 920167782, %v7585
        %v7598 = vor.u32 %v7596, %v7597
        %v7599 = vshll.u32 920167782, %v7584
        %v7600 = vshrl.u32 1326507024, %v7585
        %v7601 = vor.u32 %v7599, %v7600
        %vm7602 = vcmp.lt.s32.totalorder %v7583, 1
        %vm7603 = vcmp.lt.s32.totalorder %v7583, 2
        %vm7604 = vcmp.lt.s32.totalorder %v7583, 3
        %vm7605 = vcmp.lt.s32.totalorder %v7583, 4
        %v7606 = vsel %vm7602, %v7586, %v7589
        %v7607 = vsel %vm7605, %v7595, 2102212464
        %v7608 = vsel %vm7604, %v7592, %v7607
        %v7609 = vsel %vm7603, %v7606, %v7608
        %v7610 = vsel %vm7602, %v7589, %v7592
        %v7611 = vsel %vm7605, %v7598, 920167782
        %v7612 = vsel %vm7604, %v7595, %v7611
        %v7613 = vsel %vm7603, %v7610, %v7612
        %v7614 = vsel %vm7602, %v7592, %v7595
        %v7615 = vsel %vm7605, %v7601, 1326507024
        %v7616 = vsel %vm7604, %v7598, %v7615
        %v7617 = vsel %vm7603, %v7614, %v7616
        %v7618 = vshll.u32 %v7578, 8
        %v7619 = vmul.u32.u64.compose %v7618, %v7617
        %v7620 = vextract.low.u32 %v7619
        %v7621 = vextract.high.u32 %v7619
        %v7622 = vmul.u32.u64.compose %v7618, %v7613
        %v7623 = vextract.low.u32 %v7622
        %v7624 = vextract.high.u32 %v7622
        %v7625 = vmul.u32 %v7618, %v7609
        %v7626 = vadd.s32 %v7621, %v7623
        %vm7627 = vc.u32 %v7621, %v7623
        %v7628 = vadd.s32 %v7624, 1
        %v7629 = vsel %vm7627, %v7628, %v7624
        %v7630 = vadd.s32 %v7625, %v7629
        %v7631 = vadd.s32 %v7630, 536870912
        %v7632 = vshrl.u32 %v7631, 30
        %v7633 = vshll.u32 %v7632, 30
        %v7634 = vsub.s32 %v7630, %v7633
        %vm7635 = vcmp.lt.s32.totalorder %v7634, 0
        %v7636 = vsub.s32 0, %v7634
        %v7637 = vsel %vm7635, %v7636, %v7634
        %v7638 = vclz %v7637
        %v7639 = vsub.s32 %v7638, 2
        %vm7640 = vcmp.gt.s32.totalorder 0, %v7639
        %v7641 = vsel %vm7640, 0, %v7639
        %v7642 = vsub.s32 32, %v7641
        %v7643 = vshll.u32 %v7634, %v7641
        %v7644 = vshrl.u32 %v7626, %v7642
        %v7645 = vor.u32 %v7643, %v7644
        %v7646 = vsub.s32 4294967266, %v7641
        %v7647 = vadd.s32 %v7646, 127
        %v7648 = vshll.u32 %v7647, 23
        %v7649 = vor.u32 4788187, %v7648
        %v7650 = vand.u32 2147483647, %v7649
        %v7652 = vcvt.s32.f32 %v7645
        %v7653 = vmul.f32 %v7652, %v7650
        %v7654 = vxor.u32 %v7653, 2147483648
        %v7655 = vsel %vm7572, %v7654, %v7653
        %v7656 = vsub.s32 4, %v7632
        %v7657 = vsel %vm7572, %v7656, %v7632
        %v7658 = vsel %vm7571, %v1120, %v7655
        %v7659 = vsel %vm7571, 0, %v7657
        %v7660 = vcosq.f32.pop %v7658
        %v7661 = vsinq.f32.pop %v7658
        %vm7662 = vweird.f32 %v1120
        %v7663 = vadd.s32 %v7659, 3
        %v7664 = vand.u32 %v7663, 3
        %vm7665 = vcmp.lt.s32.totalorder %v7664, 2
        %vm7666 = vcmp.eq.s32.totalorder %v7664, 0
        %v7667 = vxor.u32 %v7661, 2147483648
        %v7668 = vsel %vm7666, %v7660, %v7667
        %vm7669 = vcmp.eq.s32.totalorder %v7664, 2
        %v7670 = vxor.u32 %v7660, 2147483648
        %v7671 = vsel %vm7669, %v7670, %v7661
        %v7672 = vsel %vm7665, %v7668, %v7671
        %v7673 = vsel %vm7662, nan, %v7672
        %v7674 = vand.u32 2147483647, %v1121
        %vm7675 = vcmp.le.f32.partialorder %v7674, 0.7853982
        %vm7676 = vcmp.lt.s32.totalorder %v1121, 0
        %v7677 = vand.u32 %v1121, 2139095040
        %v7678 = vshrl.u32 %v7677, 23
        %v7679 = vsub.s32 %v7678, 127
        %v7680 = vand.u32 2147483647, %v1121
        %v7681 = vand.u32 %v7680, 8388607
        %v7682 = vor.u32 %v7681, 8388608
        %v7683 = vsub.s32 0, %v7682
        %v7684 = vadd.s32 %v7679, 1
        %vm7685 = vcmp.gt.s32.totalorder %v7684, 0
        %v7686 = vsel %vm7685, %v7684, 0
        %v7687 = vshrl.u32 %v7686, 5
        %v7688 = vand.u32 %v7686, 31
        %v7689 = vsub.s32 32, %v7688
        %v7690 = vshrl.u32 683565275, %v7689
        %v7691 = vshll.u32 683565275, %v7688
        %v7692 = vshrl.u32 2475754826, %v7689
        %v7693 = vor.u32 %v7691, %v7692
        %v7694 = vshll.u32 2475754826, %v7688
        %v7695 = vshrl.u32 2131351028, %v7689
        %v7696 = vor.u32 %v7694, %v7695
        %v7697 = vshll.u32 2131351028, %v7688
        %v7698 = vshrl.u32 2102212464, %v7689
        %v7699 = vor.u32 %v7697, %v7698
        %v7700 = vshll.u32 2102212464, %v7688
        %v7701 = vshrl.u32 920167782, %v7689
        %v7702 = vor.u32 %v7700, %v7701
        %v7703 = vshll.u32 920167782, %v7688
        %v7704 = vshrl.u32 1326507024, %v7689
        %v7705 = vor.u32 %v7703, %v7704
        %vm7706 = vcmp.lt.s32.totalorder %v7687, 1
        %vm7707 = vcmp.lt.s32.totalorder %v7687, 2
        %vm7708 = vcmp.lt.s32.totalorder %v7687, 3
        %vm7709 = vcmp.lt.s32.totalorder %v7687, 4
        %v7710 = vsel %vm7706, %v7690, %v7693
        %v7711 = vsel %vm7709, %v7699, 2102212464
        %v7712 = vsel %vm7708, %v7696, %v7711
        %v7713 = vsel %vm7707, %v7710, %v7712
        %v7714 = vsel %vm7706, %v7693, %v7696
        %v7715 = vsel %vm7709, %v7702, 920167782
        %v7716 = vsel %vm7708, %v7699, %v7715
        %v7717 = vsel %vm7707, %v7714, %v7716
        %v7718 = vsel %vm7706, %v7696, %v7699
        %v7719 = vsel %vm7709, %v7705, 1326507024
        %v7720 = vsel %vm7708, %v7702, %v7719
        %v7721 = vsel %vm7707, %v7718, %v7720
        %v7722 = vshll.u32 %v7682, 8
        %v7723 = vmul.u32.u64.compose %v7722, %v7721
        %v7724 = vextract.low.u32 %v7723
        %v7725 = vextract.high.u32 %v7723
        %v7726 = vmul.u32.u64.compose %v7722, %v7717
        %v7727 = vextract.low.u32 %v7726
        %v7728 = vextract.high.u32 %v7726
        %v7729 = vmul.u32 %v7722, %v7713
        %v7730 = vadd.s32 %v7725, %v7727
        %vm7731 = vc.u32 %v7725, %v7727
        %v7732 = vadd.s32 %v7728, 1
        %v7733 = vsel %vm7731, %v7732, %v7728
        %v7734 = vadd.s32 %v7729, %v7733
        %v7735 = vadd.s32 %v7734, 536870912
        %v7736 = vshrl.u32 %v7735, 30
        %v7737 = vshll.u32 %v7736, 30
        %v7738 = vsub.s32 %v7734, %v7737
        %vm7739 = vcmp.lt.s32.totalorder %v7738, 0
        %v7740 = vsub.s32 0, %v7738
        %v7741 = vsel %vm7739, %v7740, %v7738
        %v7742 = vclz %v7741
        %v7743 = vsub.s32 %v7742, 2
        %vm7744 = vcmp.gt.s32.totalorder 0, %v7743
        %v7745 = vsel %vm7744, 0, %v7743
        %v7746 = vsub.s32 32, %v7745
        %v7747 = vshll.u32 %v7738, %v7745
        %v7748 = vshrl.u32 %v7730, %v7746
        %v7749 = vor.u32 %v7747, %v7748
        %v7750 = vsub.s32 4294967266, %v7745
        %v7751 = vadd.s32 %v7750, 127
        %v7752 = vshll.u32 %v7751, 23
        %v7753 = vor.u32 4788187, %v7752
        %v7754 = vand.u32 2147483647, %v7753
        %v7756 = vcvt.s32.f32 %v7749
        %v7757 = vmul.f32 %v7756, %v7754
        %v7758 = vxor.u32 %v7757, 2147483648
        %v7759 = vsel %vm7676, %v7758, %v7757
        %v7760 = vsub.s32 4, %v7736
        %v7761 = vsel %vm7676, %v7760, %v7736
        %v7762 = vsel %vm7675, %v1121, %v7759
        %v7763 = vsel %vm7675, 0, %v7761
        %v7764 = vcosq.f32.pop %v7762
        %v7765 = vsinq.f32.pop %v7762
        %vm7766 = vweird.f32 %v1121
        %v7767 = vadd.s32 %v7763, 3
        %v7768 = vand.u32 %v7767, 3
        %vm7769 = vcmp.lt.s32.totalorder %v7768, 2
        %vm7770 = vcmp.eq.s32.totalorder %v7768, 0
        %v7771 = vxor.u32 %v7765, 2147483648
        %v7772 = vsel %vm7770, %v7764, %v7771
        %vm7773 = vcmp.eq.s32.totalorder %v7768, 2
        %v7774 = vxor.u32 %v7764, 2147483648
        %v7775 = vsel %vm7773, %v7774, %v7765
        %v7776 = vsel %vm7769, %v7772, %v7775
        %v7777 = vsel %vm7766, nan, %v7776
        %7778 = vst [vmem:[%s202] sm:$0xff] %v1225
        %7779 = vst [vmem:[%s202 + $0x8] sm:$0xff] %v1329
        %7780 = vst [vmem:[%s202 + $0x10] sm:$0xff] %v1433
        %7781 = vst [vmem:[%s202 + $0x18] sm:$0xff] %v1537
        %7782 = vst [vmem:[%s202 + $0x20] sm:$0xff] %v1641
        %7783 = vst [vmem:[%s202 + $0x28] sm:$0xff] %v1745
        %7784 = vst [vmem:[%s202 + $0x30] sm:$0xff] %v1849
        %7785 = vst [vmem:[%s202 + $0x38] sm:$0xff] %v1953
        %7786 = vst [vmem:[%s202 + $0x40] sm:$0xff] %v2057
        %7787 = vst [vmem:[%s202 + $0x48] sm:$0xff] %v2161
        %7788 = vst [vmem:[%s202 + $0x50] sm:$0xff] %v2265
        %7789 = vst [vmem:[%s202 + $0x58] sm:$0xff] %v2369
        %7790 = vst [vmem:[%s202 + $0x60] sm:$0xff] %v2473
        %7791 = vst [vmem:[%s202 + $0x68] sm:$0xff] %v2577
        %7792 = vst [vmem:[%s202 + $0x70] sm:$0xff] %v2681
        %7793 = vst [vmem:[%s202 + $0x78] sm:$0xff] %v2785
        %7794 = vst [vmem:[%s202 + $0x80] sm:$0xff] %v2889
        %7795 = vst [vmem:[%s202 + $0x88] sm:$0xff] %v2993
        %7796 = vst [vmem:[%s202 + $0x90] sm:$0xff] %v3097
        %7797 = vst [vmem:[%s202 + $0x98] sm:$0xff] %v3201
        %7798 = vst [vmem:[%s202 + $0xa0] sm:$0xff] %v3305
        %7799 = vst [vmem:[%s202 + $0xa8] sm:$0xff] %v3409
        %7800 = vst [vmem:[%s202 + $0xb0] sm:$0xff] %v3513
        %7801 = vst [vmem:[%s202 + $0xb8] sm:$0xff] %v3617
        %7802 = vst [vmem:[%s202 + $0xc0] sm:$0xff] %v3721
        %7803 = vst [vmem:[%s202 + $0xc8] sm:$0xff] %v3825
        %7804 = vst [vmem:[%s202 + $0xd0] sm:$0xff] %v3929
        %7805 = vst [vmem:[%s202 + $0xd8] sm:$0xff] %v4033
        %7806 = vst [vmem:[%s202 + $0xe0] sm:$0xff] %v4137
        %7807 = vst [vmem:[%s202 + $0xe8] sm:$0xff] %v4241
        %7808 = vst [vmem:[%s202 + $0xf0] sm:$0xff] %v4345
        %7809 = vst [vmem:[%s202 + $0xf8] sm:$0xff] %v4449
        %7810 = vst [vmem:[%s202 + $0x100] sm:$0xff] %v4553
        %7811 = vst [vmem:[%s202 + $0x108] sm:$0xff] %v4657
        %7812 = vst [vmem:[%s202 + $0x110] sm:$0xff] %v4761
        %7813 = vst [vmem:[%s202 + $0x118] sm:$0xff] %v4865
        %7814 = vst [vmem:[%s202 + $0x120] sm:$0xff] %v4969
        %7815 = vst [vmem:[%s202 + $0x128] sm:$0xff] %v5073
        %7816 = vst [vmem:[%s202 + $0x130] sm:$0xff] %v5177
        %7817 = vst [vmem:[%s202 + $0x138] sm:$0xff] %v5281
        %7818 = vst [vmem:[%s202 + $0x140] sm:$0xff] %v5385
        %7819 = vst [vmem:[%s202 + $0x148] sm:$0xff] %v5489
        %7820 = vst [vmem:[%s202 + $0x150] sm:$0xff] %v5593
        %7821 = vst [vmem:[%s202 + $0x158] sm:$0xff] %v5697
        %7822 = vst [vmem:[%s202 + $0x160] sm:$0xff] %v5801
        %7823 = vst [vmem:[%s202 + $0x168] sm:$0xff] %v5905
        %7824 = vst [vmem:[%s202 + $0x170] sm:$0xff] %v6009
        %7825 = vst [vmem:[%s202 + $0x178] sm:$0xff] %v6113
        %7826 = vst [vmem:[%s202 + $0x180] sm:$0xff] %v6217
        %7827 = vst [vmem:[%s202 + $0x188] sm:$0xff] %v6321
        %7828 = vst [vmem:[%s202 + $0x190] sm:$0xff] %v6425
        %7829 = vst [vmem:[%s202 + $0x198] sm:$0xff] %v6529
        %7830 = vst [vmem:[%s202 + $0x1a0] sm:$0xff] %v6633
        %7831 = vst [vmem:[%s202 + $0x1a8] sm:$0xff] %v6737
        %7832 = vst [vmem:[%s202 + $0x1b0] sm:$0xff] %v6841
        %7833 = vst [vmem:[%s202 + $0x1b8] sm:$0xff] %v6945
        %7834 = vst [vmem:[%s202 + $0x1c0] sm:$0xff] %v7049
        %7835 = vst [vmem:[%s202 + $0x1c8] sm:$0xff] %v7153
        %7836 = vst [vmem:[%s202 + $0x1d0] sm:$0xff] %v7257
        %7837 = vst [vmem:[%s202 + $0x1d8] sm:$0xff] %v7361
        %7838 = vst [vmem:[%s202 + $0x1e0] sm:$0xff] %v7465
        %7839 = vst [vmem:[%s202 + $0x1e8] sm:$0xff] %v7569
        %7840 = vst [vmem:[%s202 + $0x1f0] sm:$0xff] %v7673
        %7841 = vst [vmem:[%s202 + $0x1f8] sm:$0xff] %v7777
        %7842 = vst [vmem:[%s202] ss:$8 sm:$0xf] %v262
        %7843 = vst [vmem:[%s202] ss:$8 sm:$0xf0] %v262
        %s7844 = scalar_lea.vmem %s202, 1 [#allocation5]
        %7845 = vst [vmem:[%s7844] ss:$8 sm:$0xf] %v266
        %7846 = vst [vmem:[%s7844] ss:$8 sm:$0xf0] %v266
        %s7847 = scalar_lea.vmem %s202, 2 [#allocation5]
        %7848 = vst [vmem:[%s7847] ss:$8 sm:$0xf] %v270
        %7849 = vst [vmem:[%s7847] ss:$8 sm:$0xf0] %v270
        %v7850 = vmul.f32 %v262, %v262
        %v7851 = vmul.f32 %v266, %v266
        %v7852 = vadd.f32 %v7850, %v7851
        %v7853 = vmul.f32 %v270, %v270
        %v7854 = vadd.f32 %v7852, %v7853
        %v7855 = vrsqrt.pop %v7854
        %v7856 = vmul.f32 %v7854, %v7855
        %vm7857 = vcmp.eq.f32.partialorder %v7854, inf
        %v7858 = vsel %vm7857, %v7854, %v7856
        %vm7859 = vcmp.eq.f32.partialorder %v7854, 0.0
        %v7860 = vand.u32 %v7854, 2147483648
        %v7861 = vsel %vm7859, %v7860, %v7858
        %v7862 = vstv %s227
        %v7863 = vsub.f32 %v7861, %v7862
        %v7864 = vstv %s229
        %v7865 = vmul.f32 %v7863, %v7864
        %s7866 = scalar_lea.vmem %s202, 455 [#allocation5]
        %7867 = vst [vmem:[%s7866] ss:$8 sm:$0xf] %v7865
        %7868 = vst [vmem:[%s7866] ss:$8 sm:$0xf0] %v7865
        %s7869 = sand.u32 %s110, 1
        %s7870 = scalar_lea.sflag [#allocation3], %s7869
        %s7871 = sand.u32 %s110, 1
        %s7872 = smul.addr %s7871, 512
        %s7873 = scalar_lea.vmem [#allocation5], %s7872
        // Predicated region
        $region37: #{frequency_encoding.1} parent=31 // pred_check
          %p7874 = pneg %p120
        $region38: #{frequency_encoding.1} parent=31 // pred_check_branch
          %7876 = sbr.rel (%p7874) target = $region40
        $region39: #{frequency_encoding.1} parent=31 // pred_region
          %s7877 = smul.u32 8, %s23
          %s7879 = ssub.s32 8192, 8192
          %7880 = vsyncadd %s7870, %s7879
          %s7881 = smul.addr %s22, 64
          %s7882 = sadd.s32 %s7877, %s7881
          %s7883 = smul.addr %s7882, 128
          %s7884 = scalar_lea.hbm %s3, %s7883
          %s7885 = sshll.u32 %s7873, 4
          %s7886 = int_to_ptr.vmem [resolvable:$true] %s7885
          %7891 = dma.vmem_to_hbm [thread:$0]  %s7886, 8192, %s7884, %s7870, 1024, 1024, 64
        $region40: #{frequency_encoding.1} parent=31 // pred_fallthru
          _
      $region32: #{frequency_encoding.1} parent=5 // pred_fallthru
        _
      %p7892 = scmp.le.s32.totalorder 2, %s13
      // Predicated region
      $region41: #{frequency_encoding.1} parent=5 // pred_check
        %p7893 = pneg %p7892
      $region42: #{frequency_encoding.1} parent=5 // pred_check_branch
        %7895 = sbr.rel (%p7893) target = $region44
      $region43: #{frequency_encoding.1} parent=5 // pred_region
        %s7896 = ssub.s32 %s13, 2
        // Predicated region
        $region45: #{frequency_encoding.1} parent=43 // pred_check
          %p7897 = pneg %p126
        $region46: #{frequency_encoding.1} parent=43 // pred_check_branch
          %7899 = sbr.rel (%p7897) target = $region48
        $region47: #{frequency_encoding.1} parent=43 // pred_region
          %s7900 = sand.u32 %s111, 1
          %s7901 = scalar_lea.sflag [#allocation3], %s7900
          %s7902 = sand.u32 %s111, 1
          %s7903 = smul.addr %s7902, 512
          %s7904 = scalar_lea.vmem [#allocation5], %s7903
          %7905 = dma.done %s7901, 8192
        $region48: #{frequency_encoding.1} parent=43 // pred_fallthru
          _
      $region44: #{frequency_encoding.1} parent=5 // pred_fallthru
        _
    $region6: #{frequency_encoding.1} parent=1 // loop_footer
      %s17 = sadd.s32 1, %s13
    $region7: #{frequency_encoding.1} parent=1 // loop_footer_branch
      %12 = sbr.rel target = $region3
    $region8: #{frequency_encoding.1} parent=1 // loop_exit
      _
    %7906 = vsyncpa [#allocation3], 1
    %s7907 = scalar_lea.sflag [#allocation3], 1
    %7908 = vsyncpa %s7907, 1
    %7909 = vsyncpa [#allocation4], 1
    %s7910 = scalar_lea.sflag [#allocation4], 1
    %7911 = vsyncpa %s7910, 1

</llo_original>
